<compile_context>
chip_gen: v6e
topology: v6e:2x2x1
jax: 0.10.0
libtpu: 0.0.40
codegen_flags: <defaults>
</compile_context>

<pallas_src>
import functools

import jax
import jax.numpy as jnp
from jax.experimental import pallas as pl
from jax.experimental.pallas import tpu as pltpu

KH = KW = 5
PAD = 2


# ---------------------------------------------------------------------------
# Pallas kernels
# ---------------------------------------------------------------------------
def msn_conv_relu_kernel(col_ref, w_ref, beta_ref, o_ref):
  """im2col conv (single MXU matmul) + mean-only BN (batch stats) + ReLU.

  col_ref:  (M, K)     bf16  im2col patches, M = N*H*W rows, K = KH*KW*Cin (padded)
  w_ref:    (K, Cout)  bf16  spectral-normalized weight, rows in (kh, kw, cin) order
  beta_ref: (1, Cout)  f32   mean-only-BN shift
  o_ref:    (M, Cout)  bf16
  """
  acc = jnp.dot(col_ref[...], w_ref[...], preferred_element_type=jnp.float32)
  # Mean-only batch norm: per-output-channel mean over all (N, H, W) positions.
  mean = jnp.mean(acc, axis=0, keepdims=True)
  y = acc - mean + beta_ref[...]
  o_ref[...] = jnp.maximum(y, 0.0).astype(o_ref.dtype)


def msn_fc_kernel(x_ref, w_ref, beta_ref, o_ref, acc_ref):
  """K-tiled linear + mean-only BN over the batch dim (applied in the finalize step).

  x_ref:    (N, KT)  bf16 block of the flattened activation
  w_ref:    (KT, F)  bf16 block of the (row-permuted, unpadded) weight
  beta_ref: (1, F)   f32
  o_ref:    (N, F)   f32, resident across the K grid
  acc_ref:  (N, F)   f32 VMEM accumulator
  """
  k = pl.program_id(0)

  @pl.when(k == 0)
  def _init():
    acc_ref[...] = jnp.zeros_like(acc_ref)

  acc_ref[...] += jnp.dot(x_ref[...], w_ref[...],
                          preferred_element_type=jnp.float32)

  @pl.when(k == pl.num_programs(0) - 1)
  def _finalize():
    y = acc_ref[...]
    mean = jnp.mean(y, axis=0, keepdims=True)   # batch mean
    o_ref[...] = (y - mean + beta_ref[...]).astype(o_ref.dtype)


# ---------------------------------------------------------------------------
# Wrappers around pallas_call
# ---------------------------------------------------------------------------
def msn_conv_relu(col, w, beta):
  M, K = col.shape
  cout = w.shape[-1]
  return pl.pallas_call(
      msn_conv_relu_kernel,
      out_shape=jax.ShapeDtypeStruct((M, cout), jnp.bfloat16),
      grid=(1,),
      in_specs=[
          pl.BlockSpec((M, K), lambda i: (0, 0)),
          pl.BlockSpec((K, cout), lambda i: (0, 0)),
          pl.BlockSpec((1, cout), lambda i: (0, 0)),
      ],
      out_specs=pl.BlockSpec((M, cout), lambda i: (0, 0)),
      compiler_params=pltpu.CompilerParams(dimension_semantics=("arbitrary",)),
  )(col, w, beta)


def _pick_kt(k_total, cap=8192):
  """Largest multiple of 128 that divides K and is <= cap (few big K steps)."""
  if k_total % 128 != 0 or k_total <= cap:
    return k_total
  best = 128
  kt = 128
  while kt <= cap:
    if k_total % kt == 0:
      best = kt
    kt += 128
  return best


def msn_fc(x, w_kf, beta):
  N, K = x.shape
  F = w_kf.shape[-1]
  kt = _pick_kt(K)          # K = 25088 -> kt = 6272 -> 4 grid steps
  return pl.pallas_call(
      msn_fc_kernel,
      out_shape=jax.ShapeDtypeStruct((N, F), jnp.float32),
      grid=(K // kt,),
      in_specs=[
          pl.BlockSpec((N, kt), lambda k: (0, k)),
          pl.BlockSpec((kt, F), lambda k: (k, 0)),
          pl.BlockSpec((1, F), lambda k: (0, 0)),
      ],
      out_specs=pl.BlockSpec((N, F), lambda k: (0, 0)),
      scratch_shapes=[pltpu.VMEM((N, F), jnp.float32)],
      compiler_params=pltpu.CompilerParams(dimension_semantics=("arbitrary",)),
  )(x, w_kf, beta)


# ---------------------------------------------------------------------------
# Plain-JAX layout plumbing (im2col patch extraction, done per layer in the wrapper)
# ---------------------------------------------------------------------------
def im2col_same5x5(x_nhwc, k_pad=None):
  """(N,H,W,C) -> (N*H*W, KH*KW*C) patches for a 5x5 / stride-1 / pad-2 conv.

  Patch column order is (kh, kw, cin), matching the kernel weight row order.
  """
  N, H, W, C = x_nhwc.shape
  xp = jnp.pad(x_nhwc, ((0, 0), (PAD, PAD), (PAD, PAD), (0, 0)))
  taps = [xp[:, kh:kh + H, kw:kw + W, :] for kh in range(KH) for kw in range(KW)]
  col = jnp.concatenate(taps, axis=-1).reshape(N * H * W, KH * KW * C)
  if k_pad is not None and k_pad > col.shape[-1]:
    col = jnp.pad(col, ((0, 0), (0, k_pad - col.shape[-1])))
  return col


# ---------------------------------------------------------------------------
# Parameter setup (plain JAX glue, done once)
# ---------------------------------------------------------------------------
def spectral_normalize(w2d, n_iter=10):
  """Divide w2d (out, in) by its largest singular value (power iteration)."""
  u = jnp.arange(1, w2d.shape[0] + 1, dtype=jnp.float32)
  u = u / jnp.linalg.norm(u)
  v = jnp.zeros((w2d.shape[1],), jnp.float32)
  for _ in range(n_iter):
    v = w2d.T @ u
    v = v / (jnp.linalg.norm(v) + 1e-12)
    u = w2d @ v
    u = u / (jnp.linalg.norm(u) + 1e-12)
  sigma = u @ (w2d @ v)
  return w2d / sigma


def init_params(num_classes=10):
  key = jax.random.PRNGKey(0)
  k1, k2, k3, k4, k5, k6 = jax.random.split(key, 6)
  # torch-layout weights: conv (Cout, Cin, KH, KW), linear (F, K); betas are the
  # mean-only-BN shifts (conv/linear biases cancel under mean-only BN).
  w1 = 0.1 * jax.random.normal(k1, (16, 1, KH, KW), jnp.float32)
  beta1 = 0.01 * jax.random.normal(k2, (16,), jnp.float32)
  w2 = 0.1 * jax.random.normal(k3, (32, 16, KH, KW), jnp.float32)
  beta2 = 0.01 * jax.random.normal(k4, (32,), jnp.float32)
  wf = 0.05 * jax.random.normal(k5, (num_classes, 32 * 28 * 28), jnp.float32)
  betaf = 0.01 * jax.random.normal(k6, (num_classes,), jnp.float32)
  return dict(w1=w1, beta1=beta1, w2=w2, beta2=beta2, wf=wf, betaf=betaf)


def prepare_kernel_params(params, num_classes=10):
  """Spectral-normalize and lay weights out for the im2col matmuls.

  Channel counts are NOT zero-padded (no wasted MXU K / HBM streaming).  The torch
  (C,H,W) flatten order of the FC is pre-baked into a row permutation of wf so the
  NHWC-ordered conv2 output can feed the FC with a free reshape.
  """
  # conv1: (16,1,5,5) -> rows (kh,kw,cin) -> (25,16), K padded 25->32 for layout.
  w1 = params["w1"]
  w1_sn = spectral_normalize(w1.reshape(w1.shape[0], -1)).reshape(w1.shape)
  w1_k = jnp.transpose(w1_sn, (2, 3, 1, 0)).reshape(KH * KW * 1, 16)
  w1_k = jnp.pad(w1_k, ((0, 32 - KH * KW), (0, 0))).astype(jnp.bfloat16)   # (32, 16)
  beta1 = params["beta1"].reshape(1, 16).astype(jnp.float32)

  # conv2: (32,16,5,5) -> rows (kh,kw,cin) -> (400, 32), no padding.
  w2 = params["w2"]
  w2_sn = spectral_normalize(w2.reshape(w2.shape[0], -1)).reshape(w2.shape)
  w2_k = jnp.transpose(w2_sn, (2, 3, 1, 0)).reshape(KH * KW * 16, 32).astype(jnp.bfloat16)
  beta2 = params["beta2"].reshape(1, 32).astype(jnp.float32)

  # fc: torch rows are (c,h,w)-flattened; permute to the (h,w,c) order produced by the
  # NHWC conv2 output flatten.  K = 28*28*32 = 25088 (no padded channels).
  wf_sn = spectral_normalize(params["wf"])                    # (F, 32*28*28)
  wf3 = wf_sn.reshape(num_classes, 32, 28, 28)
  wf3 = jnp.transpose(wf3, (2, 3, 1, 0))                      # (H, W, C, F)
  wf_k = wf3.reshape(28 * 28 * 32, num_classes).astype(jnp.bfloat16)
  betaf = params["betaf"].reshape(1, num_classes).astype(jnp.float32)

  return dict(w1=w1_k, beta1=beta1, w2=w2_k, beta2=beta2, wf=wf_k, betaf=betaf)


# ---------------------------------------------------------------------------
# Full forward pass
# ---------------------------------------------------------------------------
@functools.partial(jax.jit, static_argnames=())
def msn_convnet_forward(x_nchw, kparams):
  N, _, H, W = x_nchw.shape
  x = jnp.transpose(x_nchw, (0, 2, 3, 1)).astype(jnp.bfloat16)   # NCHW -> NHWC (N,28,28,1)

  # layer1: MSNConv2d(1 -> 16, 5x5, pad=2) + ReLU, as one (N*784, 32) x (32, 16) matmul.
  col1 = im2col_same5x5(x, k_pad=32)                              # (N*784, 32) bf16
  h1 = msn_conv_relu(col1, kparams["w1"], kparams["beta1"])       # (N*784, 16) bf16

  # layer2: MSNConv2d(16 -> 32, 5x5, pad=2) + ReLU, as one (N*784, 400) x (400, 32) matmul.
  col2 = im2col_same5x5(h1.reshape(N, H, W, 16))                  # (N*784, 400) bf16
  h2 = msn_conv_relu(col2, kparams["w2"], kparams["beta2"])       # (N*784, 32) bf16

  # Free reshape: (N*784, 32) row-major == (N, 784*32) in the (h,w,c) order baked into wf.
  h2f = h2.reshape(N, H * W * 32)                                 # (N, 25088)
  out = msn_fc(h2f, kparams["wf"], kparams["betaf"])              # (N, num_classes) f32
  return out


if __name__ == "__main__":
  num_classes = 10
  params = init_params(num_classes)
  kparams = prepare_kernel_params(params, num_classes)

  # Input must be 28x28 spatial, 1 channel (fc expects 32*28*28 features); batch = 2.
  x = jax.random.normal(jax.random.PRNGKey(0), (2, 1, 28, 28), jnp.float32)

  out = msn_convnet_forward(x, kparams)
  out = jax.block_until_ready(out)
  assert out.shape == (2, num_classes) and out.dtype == jnp.float32
  assert bool(jnp.all(jnp.isfinite(out)))
  print("KERNEL_OK")
</pallas_src>

<mosaic_0001>
module attributes {stable_mosaic.version = 11 : i64} {
  func.func @msn_conv_relu_kernel(%arg0: i32, %arg1: memref<1568x32xbf16, #tpu.memory_space<vmem>>, %arg2: memref<32x16xbf16, #tpu.memory_space<vmem>>, %arg3: memref<1x16xf32, #tpu.memory_space<vmem>>, %arg4: memref<1568x16xbf16, #tpu.memory_space<vmem>>) attributes {dimension_semantics = [#tpu.dimension_semantics<arbitrary>], iteration_bounds = array<i64: 1>, scalar_prefetch = 0 : i64, scratch_operands = 0 : i64, tpu.core_type = #tpu.core_type<tc>, window_params = [{pipeline_mode = #tpu.pipeline_mode<synchronous>, transform_indices = @transform_0, window_bounds = array<i64: 1568, 32>}, {pipeline_mode = #tpu.pipeline_mode<synchronous>, transform_indices = @transform_1, window_bounds = array<i64: 32, 16>}, {pipeline_mode = #tpu.pipeline_mode<synchronous>, transform_indices = @transform_2, window_bounds = array<i64: 1, 16>}, {pipeline_mode = #tpu.pipeline_mode<synchronous>, transform_indices = @transform_3, window_bounds = array<i64: 1568, 16>}]} {
    %c0 = arith.constant 0 : index
    %c0_0 = arith.constant 0 : index
    %0 = vector.load %arg1[%c0, %c0_0] : memref<1568x32xbf16, #tpu.memory_space<vmem>>, vector<1568x32xbf16>
    %c0_1 = arith.constant 0 : index
    %c0_2 = arith.constant 0 : index
    %1 = vector.load %arg2[%c0_1, %c0_2] : memref<32x16xbf16, #tpu.memory_space<vmem>>, vector<32x16xbf16>
    %cst = arith.constant dense<0.000000e+00> : vector<1568x16xf32>
    %2 = tpu.matmul %0, %1, %cst {dimension_numbers = #tpu.dot_dimension_numbers<[1], [0], [0], [1], [0, 0, 1, 1], [], []>} : vector<1568x32xbf16>, vector<32x16xbf16>, vector<1568x16xf32> -> vector<1568x16xf32>
    %cst_3 = arith.constant dense<0.000000e+00> : vector<16xf32>
    %3 = vector.multi_reduction <add>, %2, %cst_3 [0] : vector<1568x16xf32> to vector<16xf32>
    %4 = vector.shape_cast %3 : vector<16xf32> to vector<1x16xf32>
    %cst_4 = arith.constant 1.568000e+03 : f32
    %5 = vector.broadcast %cst_4 : f32 to vector<1x16xf32>
    %6 = arith.divf %4, %5 : vector<1x16xf32>
    %7 = vector.broadcast %6 : vector<1x16xf32> to vector<1568x16xf32>
    %8 = arith.subf %2, %7 : vector<1568x16xf32>
    %c0_5 = arith.constant 0 : index
    %c0_6 = arith.constant 0 : index
    %9 = vector.load %arg3[%c0_5, %c0_6] : memref<1x16xf32, #tpu.memory_space<vmem>>, vector<1x16xf32>
    %10 = vector.broadcast %9 : vector<1x16xf32> to vector<1568x16xf32>
    %11 = arith.addf %8, %10 : vector<1568x16xf32>
    %cst_7 = arith.constant 0.000000e+00 : f32
    %12 = vector.broadcast %cst_7 : f32 to vector<1568x16xf32>
    %13 = arith.maximumf %11, %12 : vector<1568x16xf32>
    %14 = arith.truncf %13 : vector<1568x16xf32> to vector<1568x16xbf16>
    %c0_8 = arith.constant 0 : index
    %c0_9 = arith.constant 0 : index
    %15 = vector.load %arg4[%c0_8, %c0_9] : memref<1568x16xbf16, #tpu.memory_space<vmem>>, vector<1568x16xbf16>
    tpu.vector_store %arg4[%c0_8, %c0_9], %14 {strides = array<i32>} : memref<1568x16xbf16, #tpu.memory_space<vmem>>, vector<1568x16xbf16>,
    return
  }
  func.func @transform_0(%arg0: i32) -> (i32, i32) {
    %c0_i32 = arith.constant 0 : i32
    %c0_i32_0 = arith.constant 0 : i32
    %c0_i32_1 = arith.constant 0 : i32
    return %c0_i32, %c0_i32_0 : i32, i32
  }
  func.func @transform_1(%arg0: i32) -> (i32, i32) {
    %c0_i32 = arith.constant 0 : i32
    %c0_i32_0 = arith.constant 0 : i32
    %c0_i32_1 = arith.constant 0 : i32
    return %c0_i32, %c0_i32_0 : i32, i32
  }
  func.func @transform_2(%arg0: i32) -> (i32, i32) {
    %c0_i32 = arith.constant 0 : i32
    %c0_i32_0 = arith.constant 0 : i32
    %c0_i32_1 = arith.constant 0 : i32
    return %c0_i32, %c0_i32_0 : i32, i32
  }
  func.func @transform_3(%arg0: i32) -> (i32, i32) {
    %c0_i32 = arith.constant 0 : i32
    %c0_i32_0 = arith.constant 0 : i32
    %c0_i32_1 = arith.constant 0 : i32
    return %c0_i32, %c0_i32_0 : i32, i32
  }
}

module attributes {stable_mosaic.version = 11 : i64} {
  func.func @msn_conv_relu_kernel(%arg0: i32, %arg1: memref<1568x400xbf16, #tpu.memory_space<vmem>>, %arg2: memref<400x32xbf16, #tpu.memory_space<vmem>>, %arg3: memref<1x32xf32, #tpu.memory_space<vmem>>, %arg4: memref<1568x32xbf16, #tpu.memory_space<vmem>>) attributes {dimension_semantics = [#tpu.dimension_semantics<arbitrary>], iteration_bounds = array<i64: 1>, scalar_prefetch = 0 : i64, scratch_operands = 0 : i64, tpu.core_type = #tpu.core_type<tc>, window_params = [{pipeline_mode = #tpu.pipeline_mode<synchronous>, transform_indices = @transform_0, window_bounds = array<i64: 1568, 400>}, {pipeline_mode = #tpu.pipeline_mode<synchronous>, transform_indices = @transform_1, window_bounds = array<i64: 400, 32>}, {pipeline_mode = #tpu.pipeline_mode<synchronous>, transform_indices = @transform_2, window_bounds = array<i64: 1, 32>}, {pipeline_mode = #tpu.pipeline_mode<synchronous>, transform_indices = @transform_3, window_bounds = array<i64: 1568, 32>}]} {
    %c0 = arith.constant 0 : index
    %c0_0 = arith.constant 0 : index
    %0 = vector.load %arg1[%c0, %c0_0] : memref<1568x400xbf16, #tpu.memory_space<vmem>>, vector<1568x400xbf16>
    %c0_1 = arith.constant 0 : index
    %c0_2 = arith.constant 0 : index
    %1 = vector.load %arg2[%c0_1, %c0_2] : memref<400x32xbf16, #tpu.memory_space<vmem>>, vector<400x32xbf16>
    %cst = arith.constant dense<0.000000e+00> : vector<1568x32xf32>
    %2 = tpu.matmul %0, %1, %cst {dimension_numbers = #tpu.dot_dimension_numbers<[1], [0], [0], [1], [0, 0, 1, 1], [], []>} : vector<1568x400xbf16>, vector<400x32xbf16>, vector<1568x32xf32> -> vector<1568x32xf32>
    %cst_3 = arith.constant dense<0.000000e+00> : vector<32xf32>
    %3 = vector.multi_reduction <add>, %2, %cst_3 [0] : vector<1568x32xf32> to vector<32xf32>
    %4 = vector.shape_cast %3 : vector<32xf32> to vector<1x32xf32>
    %cst_4 = arith.constant 1.568000e+03 : f32
    %5 = vector.broadcast %cst_4 : f32 to vector<1x32xf32>
    %6 = arith.divf %4, %5 : vector<1x32xf32>
    %7 = vector.broadcast %6 : vector<1x32xf32> to vector<1568x32xf32>
    %8 = arith.subf %2, %7 : vector<1568x32xf32>
    %c0_5 = arith.constant 0 : index
    %c0_6 = arith.constant 0 : index
    %9 = vector.load %arg3[%c0_5, %c0_6] : memref<1x32xf32, #tpu.memory_space<vmem>>, vector<1x32xf32>
    %10 = vector.broadcast %9 : vector<1x32xf32> to vector<1568x32xf32>
    %11 = arith.addf %8, %10 : vector<1568x32xf32>
    %cst_7 = arith.constant 0.000000e+00 : f32
    %12 = vector.broadcast %cst_7 : f32 to vector<1568x32xf32>
    %13 = arith.maximumf %11, %12 : vector<1568x32xf32>
    %14 = arith.truncf %13 : vector<1568x32xf32> to vector<1568x32xbf16>
    %c0_8 = arith.constant 0 : index
    %c0_9 = arith.constant 0 : index
    %15 = vector.load %arg4[%c0_8, %c0_9] : memref<1568x32xbf16, #tpu.memory_space<vmem>>, vector<1568x32xbf16>
    tpu.vector_store %arg4[%c0_8, %c0_9], %14 {strides = array<i32>} : memref<1568x32xbf16, #tpu.memory_space<vmem>>, vector<1568x32xbf16>,
    return
  }
  func.func @transform_0(%arg0: i32) -> (i32, i32) {
    %c0_i32 = arith.constant 0 : i32
    %c0_i32_0 = arith.constant 0 : i32
    %c0_i32_1 = arith.constant 0 : i32
    return %c0_i32, %c0_i32_0 : i32, i32
  }
  func.func @transform_1(%arg0: i32) -> (i32, i32) {
    %c0_i32 = arith.constant 0 : i32
    %c0_i32_0 = arith.constant 0 : i32
    %c0_i32_1 = arith.constant 0 : i32
    return %c0_i32, %c0_i32_0 : i32, i32
  }
  func.func @transform_2(%arg0: i32) -> (i32, i32) {
    %c0_i32 = arith.constant 0 : i32
    %c0_i32_0 = arith.constant 0 : i32
    %c0_i32_1 = arith.constant 0 : i32
    return %c0_i32, %c0_i32_0 : i32, i32
  }
  func.func @transform_3(%arg0: i32) -> (i32, i32) {
    %c0_i32 = arith.constant 0 : i32
    %c0_i32_0 = arith.constant 0 : i32
    %c0_i32_1 = arith.constant 0 : i32
    return %c0_i32, %c0_i32_0 : i32, i32
  }
}

module attributes {stable_mosaic.version = 11 : i64} {
  func.func @msn_fc_kernel(%arg0: i32, %arg1: memref<2x6272xbf16, #tpu.memory_space<vmem>>, %arg2: memref<6272x10xbf16, #tpu.memory_space<vmem>>, %arg3: memref<1x10xf32, #tpu.memory_space<vmem>>, %arg4: memref<2x10xf32, #tpu.memory_space<vmem>>, %arg5: memref<2x10xf32, #tpu.memory_space<vmem>>) attributes {dimension_semantics = [#tpu.dimension_semantics<arbitrary>], iteration_bounds = array<i64: 4>, scalar_prefetch = 0 : i64, scratch_operands = 1 : i64, tpu.core_type = #tpu.core_type<tc>, window_params = [{transform_indices = @transform_0, window_bounds = array<i64: 2, 6272>}, {transform_indices = @transform_1, window_bounds = array<i64: 6272, 10>}, {pipeline_mode = #tpu.pipeline_mode<synchronous>, transform_indices = @transform_2, window_bounds = array<i64: 1, 10>}, {pipeline_mode = #tpu.pipeline_mode<synchronous>, transform_indices = @transform_3, window_bounds = array<i64: 2, 10>}]} {
    %c0_i32 = arith.constant 0 : i32
    %0 = arith.cmpi eq, %arg0, %c0_i32 : i32
    %1 = arith.extui %0 : i1 to i32
    %c0_i32_0 = arith.constant 0 : i32
    %2 = arith.cmpi ne, %1, %c0_i32_0 : i32
    scf.if %2 {
      %cst_9 = arith.constant 0.000000e+00 : f32
      %12 = vector.broadcast %cst_9 : f32 to vector<2x10xf32>
      %c0_10 = arith.constant 0 : index
      %c0_11 = arith.constant 0 : index
      %13 = vector.load %arg5[%c0_10, %c0_11] : memref<2x10xf32, #tpu.memory_space<vmem>>, vector<2x10xf32>
      tpu.vector_store %arg5[%c0_10, %c0_11], %12 {strides = array<i32>} : memref<2x10xf32, #tpu.memory_space<vmem>>, vector<2x10xf32>,
    } else {
    }
    %c0 = arith.constant 0 : index
    %c0_1 = arith.constant 0 : index
    %3 = vector.load %arg5[%c0, %c0_1] : memref<2x10xf32, #tpu.memory_space<vmem>>, vector<2x10xf32>
    %c0_2 = arith.constant 0 : index
    %c0_3 = arith.constant 0 : index
    %4 = vector.load %arg1[%c0_2, %c0_3] : memref<2x6272xbf16, #tpu.memory_space<vmem>>, vector<2x6272xbf16>
    %c0_4 = arith.constant 0 : index
    %c0_5 = arith.constant 0 : index
    %5 = vector.load %arg2[%c0_4, %c0_5] : memref<6272x10xbf16, #tpu.memory_space<vmem>>, vector<6272x10xbf16>
    %cst = arith.constant dense<0.000000e+00> : vector<2x10xf32>
    %6 = tpu.matmul %4, %5, %cst {dimension_numbers = #tpu.dot_dimension_numbers<[1], [0], [0], [1], [0, 0, 1, 1], [], []>} : vector<2x6272xbf16>, vector<6272x10xbf16>, vector<2x10xf32> -> vector<2x10xf32>
    %7 = arith.addf %3, %6 : vector<2x10xf32>
    %c0_6 = arith.constant 0 : index
    %c0_7 = arith.constant 0 : index
    %8 = vector.load %arg5[%c0_6, %c0_7] : memref<2x10xf32, #tpu.memory_space<vmem>>, vector<2x10xf32>
    tpu.vector_store %arg5[%c0_6, %c0_7], %7 {strides = array<i32>} : memref<2x10xf32, #tpu.memory_space<vmem>>, vector<2x10xf32>,
    %c3_i32 = arith.constant 3 : i32
    %9 = arith.cmpi eq, %arg0, %c3_i32 : i32
    %10 = arith.extui %9 : i1 to i32
    %c0_i32_8 = arith.constant 0 : i32
    %11 = arith.cmpi ne, %10, %c0_i32_8 : i32
    scf.if %11 {
      %c0_9 = arith.constant 0 : index
      %c0_10 = arith.constant 0 : index
      %12 = vector.load %arg5[%c0_9, %c0_10] : memref<2x10xf32, #tpu.memory_space<vmem>>, vector<2x10xf32>
      %cst_11 = arith.constant dense<0.000000e+00> : vector<10xf32>
      %13 = vector.multi_reduction <add>, %12, %cst_11 [0] : vector<2x10xf32> to vector<10xf32>
      %14 = vector.shape_cast %13 : vector<10xf32> to vector<1x10xf32>
      %cst_12 = arith.constant 2.000000e+00 : f32
      %15 = vector.broadcast %cst_12 : f32 to vector<1x10xf32>
      %16 = arith.divf %14, %15 : vector<1x10xf32>
      %17 = vector.broadcast %16 : vector<1x10xf32> to vector<2x10xf32>
      %18 = arith.subf %12, %17 : vector<2x10xf32>
      %c0_13 = arith.constant 0 : index
      %c0_14 = arith.constant 0 : index
      %19 = vector.load %arg3[%c0_13, %c0_14] : memref<1x10xf32, #tpu.memory_space<vmem>>, vector<1x10xf32>
      %20 = vector.broadcast %19 : vector<1x10xf32> to vector<2x10xf32>
      %21 = arith.addf %18, %20 : vector<2x10xf32>
      %c0_15 = arith.constant 0 : index
      %c0_16 = arith.constant 0 : index
      %22 = vector.load %arg4[%c0_15, %c0_16] : memref<2x10xf32, #tpu.memory_space<vmem>>, vector<2x10xf32>
      tpu.vector_store %arg4[%c0_15, %c0_16], %21 {strides = array<i32>} : memref<2x10xf32, #tpu.memory_space<vmem>>, vector<2x10xf32>,
    } else {
    }
    return
  }
  func.func @transform_0(%arg0: i32) -> (i32, i32) {
    %c0_i32 = arith.constant 0 : i32
    %c0_i32_0 = arith.constant 0 : i32
    return %c0_i32, %arg0 : i32, i32
  }
  func.func @transform_1(%arg0: i32) -> (i32, i32) {
    %c0_i32 = arith.constant 0 : i32
    %c0_i32_0 = arith.constant 0 : i32
    return %arg0, %c0_i32 : i32, i32
  }
  func.func @transform_2(%arg0: i32) -> (i32, i32) {
    %c0_i32 = arith.constant 0 : i32
    %c0_i32_0 = arith.constant 0 : i32
    %c0_i32_1 = arith.constant 0 : i32
    return %c0_i32, %c0_i32_0 : i32, i32
  }
  func.func @transform_3(%arg0: i32) -> (i32, i32) {
    %c0_i32 = arith.constant 0 : i32
    %c0_i32_0 = arith.constant 0 : i32
    %c0_i32_1 = arith.constant 0 : i32
    return %c0_i32, %c0_i32_0 : i32, i32
  }
}

</mosaic_0001>

<llo_original>
// kernel: msn_convnet_forward.3
$region0: #{msn_convnet_forward.3}
  #allocation0 [shape = 'u32[]', space=smem, size = 0x4, offset = 0x4, fixed_abs, tag = 'smem constant byte address 0x4 - core index']
  #allocation1 [shape = 'u32[144,128]{1,0:T(1,128)}', space=vmem, size = 0x12000, scoped, tag = 'internal scratch']
  %s0 = inlined_call_operand.vmem [shape: bf16[1568,32], index: 0, kind: input, shape index: {}]
  %s1 = inlined_call_operand.vmem [shape: bf16[32,16], index: 1, kind: input, shape index: {}]
  %s2 = inlined_call_operand.hbm [shape: f32[1,16], index: 2, kind: input, shape index: {}]
  %s3 = inlined_call_operand.vmem [shape: bf16[1568,16], index: 3, kind: output, shape index: {}]
  %s4 = sld [smem:[#allocation0]]
  $region26: #{msn_convnet_forward.3} parent=0
    _
  %s6 = ssub.s32 1, %s4
  %s7 = scalar_select 0, %s6, %s4
  $region1: #{msn_convnet_forward.3} parent=0
    #allocation2 [shape = 'u8[512]{0}', space=vmem, size = 0x400, scoped, tag = 'input window, operand 2, single buffered']
    #allocation3 [shape = 's32[1]{0}', space=sflag, size = 0x4, scoped, tag = 'scoped memory for msn_convnet_forward.3']
    %8 = vsyncpa [#allocation3], 0
    // Predicated region
    $region2: #{msn_convnet_forward.3} parent=1 // pred_check
      _
    $region3: #{msn_convnet_forward.3} parent=1 // pred_check_branch
      %10 = sbr.rel (0) target = $region5
    $region4: #{msn_convnet_forward.3} parent=1 // pred_region
      _
    $region5: #{msn_convnet_forward.3} parent=1 // pred_fallthru
      _
    // Predicated region
    $region6: #{msn_convnet_forward.3} parent=1 // pred_check
      _
    $region7: #{msn_convnet_forward.3} parent=1 // pred_check_branch
      %12 = sbr.rel (0) target = $region9
    $region8: #{msn_convnet_forward.3} parent=1 // pred_region
      _
    $region9: #{msn_convnet_forward.3} parent=1 // pred_fallthru
      _
    // Predicated region
    $region10: #{msn_convnet_forward.3} parent=1 // pred_check
      _
    $region11: #{msn_convnet_forward.3} parent=1 // pred_check_branch
      %14 = sbr.rel (0) target = $region13
    $region12: #{msn_convnet_forward.3} parent=1 // pred_region
      %s16 = ssub.s32 16, 16
      %17 = vsyncadd [#allocation3], %s16
      %s19 = sshll.u32 [#allocation2], 4
      %s20 = int_to_ptr.vmem [resolvable:$true] %s19
      %22 = dma.hbm_to_vmem [thread:$0]  %s2, 16, %s20, [#allocation3]
    $region13: #{msn_convnet_forward.3} parent=1 // pred_fallthru
      _
    // Predicated region
    $region14: #{msn_convnet_forward.3} parent=1 // pred_check
      _
    $region15: #{msn_convnet_forward.3} parent=1 // pred_check_branch
      %24 = sbr.rel (0) target = $region17
    $region16: #{msn_convnet_forward.3} parent=1 // pred_region
      %25 = dma.done [#allocation3], 16
    $region17: #{msn_convnet_forward.3} parent=1 // pred_fallthru
      _
    %v27 = vld [vmem:[%s0] sm:$0xf]
    %v28 = vld [vmem:[%s0 + $0x4] sm:$0xf]
    %v29 = vld [vmem:[%s0 + $0x8] sm:$0xf]
    %v30 = vld [vmem:[%s0 + $0xc] sm:$0xf]
    %v31 = vld [vmem:[%s0 + $0x10] sm:$0xf]
    %v32 = vld [vmem:[%s0 + $0x14] sm:$0xf]
    %v33 = vld [vmem:[%s0 + $0x18] sm:$0xf]
    %v34 = vld [vmem:[%s0 + $0x1c] sm:$0xf]
    %v35 = vld [vmem:[%s0 + $0x20] sm:$0xf]
    %v36 = vld [vmem:[%s0 + $0x24] sm:$0xf]
    %v37 = vld [vmem:[%s0 + $0x28] sm:$0xf]
    %v38 = vld [vmem:[%s0 + $0x2c] sm:$0xf]
    %v39 = vld [vmem:[%s0 + $0x30] sm:$0xf]
    %v40 = vld [vmem:[%s0 + $0x34] sm:$0xf]
    %v41 = vld [vmem:[%s0 + $0x38] sm:$0xf]
    %v42 = vld [vmem:[%s0 + $0x3c] sm:$0xf]
    %v43 = vld [vmem:[%s0 + $0x40] sm:$0xf]
    %v44 = vld [vmem:[%s0 + $0x44] sm:$0xf]
    %v45 = vld [vmem:[%s0 + $0x48] sm:$0xf]
    %v46 = vld [vmem:[%s0 + $0x4c] sm:$0xf]
    %v47 = vld [vmem:[%s0 + $0x50] sm:$0xf]
    %v48 = vld [vmem:[%s0 + $0x54] sm:$0xf]
    %v49 = vld [vmem:[%s0 + $0x58] sm:$0xf]
    %v50 = vld [vmem:[%s0 + $0x5c] sm:$0xf]
    %v51 = vld [vmem:[%s0 + $0x60] sm:$0xf]
    %v52 = vld [vmem:[%s0 + $0x64] sm:$0xf]
    %v53 = vld [vmem:[%s0 + $0x68] sm:$0xf]
    %v54 = vld [vmem:[%s0 + $0x6c] sm:$0xf]
    %v55 = vld [vmem:[%s0 + $0x70] sm:$0xf]
    %v56 = vld [vmem:[%s0 + $0x74] sm:$0xf]
    %v57 = vld [vmem:[%s0 + $0x78] sm:$0xf]
    %v58 = vld [vmem:[%s0 + $0x7c] sm:$0xf]
    %v59 = vld [vmem:[%s0 + $0x80] sm:$0xf]
    %v60 = vld [vmem:[%s0 + $0x84] sm:$0xf]
    %v61 = vld [vmem:[%s0 + $0x88] sm:$0xf]
    %v62 = vld [vmem:[%s0 + $0x8c] sm:$0xf]
    %v63 = vld [vmem:[%s0 + $0x90] sm:$0xf]
    %v64 = vld [vmem:[%s0 + $0x94] sm:$0xf]
    %v65 = vld [vmem:[%s0 + $0x98] sm:$0xf]
    %v66 = vld [vmem:[%s0 + $0x9c] sm:$0xf]
    %v67 = vld [vmem:[%s0 + $0xa0] sm:$0xf]
    %v68 = vld [vmem:[%s0 + $0xa4] sm:$0xf]
    %v69 = vld [vmem:[%s0 + $0xa8] sm:$0xf]
    %v70 = vld [vmem:[%s0 + $0xac] sm:$0xf]
    %v71 = vld [vmem:[%s0 + $0xb0] sm:$0xf]
    %v72 = vld [vmem:[%s0 + $0xb4] sm:$0xf]
    %v73 = vld [vmem:[%s0 + $0xb8] sm:$0xf]
    %v74 = vld [vmem:[%s0 + $0xbc] sm:$0xf]
    %v75 = vld [vmem:[%s0 + $0xc0] sm:$0xf]
    %v76 = vld [vmem:[%s0 + $0xc4] sm:$0xf]
    %v77 = vld [vmem:[%s0 + $0xc8] sm:$0xf]
    %v78 = vld [vmem:[%s0 + $0xcc] sm:$0xf]
    %v79 = vld [vmem:[%s0 + $0xd0] sm:$0xf]
    %v80 = vld [vmem:[%s0 + $0xd4] sm:$0xf]
    %v81 = vld [vmem:[%s0 + $0xd8] sm:$0xf]
    %v82 = vld [vmem:[%s0 + $0xdc] sm:$0xf]
    %v83 = vld [vmem:[%s0 + $0xe0] sm:$0xf]
    %v84 = vld [vmem:[%s0 + $0xe4] sm:$0xf]
    %v85 = vld [vmem:[%s0 + $0xe8] sm:$0xf]
    %v86 = vld [vmem:[%s0 + $0xec] sm:$0xf]
    %v87 = vld [vmem:[%s0 + $0xf0] sm:$0xf]
    %v88 = vld [vmem:[%s0 + $0xf4] sm:$0xf]
    %v89 = vld [vmem:[%s0 + $0xf8] sm:$0xf]
    %v90 = vld [vmem:[%s0 + $0xfc] sm:$0xf]
    %v91 = vld [vmem:[%s0 + $0x100] sm:$0xf]
    %v92 = vld [vmem:[%s0 + $0x104] sm:$0xf]
    %v93 = vld [vmem:[%s0 + $0x108] sm:$0xf]
    %v94 = vld [vmem:[%s0 + $0x10c] sm:$0xf]
    %v95 = vld [vmem:[%s0 + $0x110] sm:$0xf]
    %v96 = vld [vmem:[%s0 + $0x114] sm:$0xf]
    %v97 = vld [vmem:[%s0 + $0x118] sm:$0xf]
    %v98 = vld [vmem:[%s0 + $0x11c] sm:$0xf]
    %v99 = vld [vmem:[%s0 + $0x120] sm:$0xf]
    %v100 = vld [vmem:[%s0 + $0x124] sm:$0xf]
    %v101 = vld [vmem:[%s0 + $0x128] sm:$0xf]
    %v102 = vld [vmem:[%s0 + $0x12c] sm:$0xf]
    %v103 = vld [vmem:[%s0 + $0x130] sm:$0xf]
    %v104 = vld [vmem:[%s0 + $0x134] sm:$0xf]
    %v105 = vld [vmem:[%s0 + $0x138] sm:$0xf]
    %v106 = vld [vmem:[%s0 + $0x13c] sm:$0xf]
    %v107 = vld [vmem:[%s0 + $0x140] sm:$0xf]
    %v108 = vld [vmem:[%s0 + $0x144] sm:$0xf]
    %v109 = vld [vmem:[%s0 + $0x148] sm:$0xf]
    %v110 = vld [vmem:[%s0 + $0x14c] sm:$0xf]
    %v111 = vld [vmem:[%s0 + $0x150] sm:$0xf]
    %v112 = vld [vmem:[%s0 + $0x154] sm:$0xf]
    %v113 = vld [vmem:[%s0 + $0x158] sm:$0xf]
    %v114 = vld [vmem:[%s0 + $0x15c] sm:$0xf]
    %v115 = vld [vmem:[%s0 + $0x160] sm:$0xf]
    %v116 = vld [vmem:[%s0 + $0x164] sm:$0xf]
    %v117 = vld [vmem:[%s0 + $0x168] sm:$0xf]
    %v118 = vld [vmem:[%s0 + $0x16c] sm:$0xf]
    %v119 = vld [vmem:[%s0 + $0x170] sm:$0xf]
    %v120 = vld [vmem:[%s0 + $0x174] sm:$0xf]
    %v121 = vld [vmem:[%s0 + $0x178] sm:$0xf]
    %v122 = vld [vmem:[%s0 + $0x17c] sm:$0xf]
    %v123 = vld [vmem:[%s0 + $0x180] sm:$0xf]
    %v124 = vld [vmem:[%s0 + $0x184] sm:$0xf]
    %v125 = vld [vmem:[%s0 + $0x188] sm:$0xf]
    %v126 = vld [vmem:[%s0 + $0x18c] sm:$0xf]
    %v127 = vld [vmem:[%s0 + $0x190] sm:$0xf]
    %v128 = vld [vmem:[%s0 + $0x194] sm:$0xf]
    %v129 = vld [vmem:[%s0 + $0x198] sm:$0xf]
    %v130 = vld [vmem:[%s0 + $0x19c] sm:$0xf]
    %v131 = vld [vmem:[%s0 + $0x1a0] sm:$0xf]
    %v132 = vld [vmem:[%s0 + $0x1a4] sm:$0xf]
    %v133 = vld [vmem:[%s0 + $0x1a8] sm:$0xf]
    %v134 = vld [vmem:[%s0 + $0x1ac] sm:$0xf]
    %v135 = vld [vmem:[%s0 + $0x1b0] sm:$0xf]
    %v136 = vld [vmem:[%s0 + $0x1b4] sm:$0xf]
    %v137 = vld [vmem:[%s0 + $0x1b8] sm:$0xf]
    %v138 = vld [vmem:[%s0 + $0x1bc] sm:$0xf]
    %v139 = vld [vmem:[%s0 + $0x1c0] sm:$0xf]
    %v140 = vld [vmem:[%s0 + $0x1c4] sm:$0xf]
    %v141 = vld [vmem:[%s0 + $0x1c8] sm:$0xf]
    %v142 = vld [vmem:[%s0 + $0x1cc] sm:$0xf]
    %v143 = vld [vmem:[%s0 + $0x1d0] sm:$0xf]
    %v144 = vld [vmem:[%s0 + $0x1d4] sm:$0xf]
    %v145 = vld [vmem:[%s0 + $0x1d8] sm:$0xf]
    %v146 = vld [vmem:[%s0 + $0x1dc] sm:$0xf]
    %v147 = vld [vmem:[%s0 + $0x1e0] sm:$0xf]
    %v148 = vld [vmem:[%s0 + $0x1e4] sm:$0xf]
    %v149 = vld [vmem:[%s0 + $0x1e8] sm:$0xf]
    %v150 = vld [vmem:[%s0 + $0x1ec] sm:$0xf]
    %v151 = vld [vmem:[%s0 + $0x1f0] sm:$0xf]
    %v152 = vld [vmem:[%s0 + $0x1f4] sm:$0xf]
    %v153 = vld [vmem:[%s0 + $0x1f8] sm:$0xf]
    %v154 = vld [vmem:[%s0 + $0x1fc] sm:$0xf]
    %v155 = vld [vmem:[%s0 + $0x200] sm:$0xf]
    %v156 = vld [vmem:[%s0 + $0x204] sm:$0xf]
    %v157 = vld [vmem:[%s0 + $0x208] sm:$0xf]
    %v158 = vld [vmem:[%s0 + $0x20c] sm:$0xf]
    %v159 = vld [vmem:[%s0 + $0x210] sm:$0xf]
    %v160 = vld [vmem:[%s0 + $0x214] sm:$0xf]
    %v161 = vld [vmem:[%s0 + $0x218] sm:$0xf]
    %v162 = vld [vmem:[%s0 + $0x21c] sm:$0xf]
    %v163 = vld [vmem:[%s0 + $0x220] sm:$0xf]
    %v164 = vld [vmem:[%s0 + $0x224] sm:$0xf]
    %v165 = vld [vmem:[%s0 + $0x228] sm:$0xf]
    %v166 = vld [vmem:[%s0 + $0x22c] sm:$0xf]
    %v167 = vld [vmem:[%s0 + $0x230] sm:$0xf]
    %v168 = vld [vmem:[%s0 + $0x234] sm:$0xf]
    %v169 = vld [vmem:[%s0 + $0x238] sm:$0xf]
    %v170 = vld [vmem:[%s0 + $0x23c] sm:$0xf]
    %v171 = vld [vmem:[%s0 + $0x240] sm:$0xf]
    %v172 = vld [vmem:[%s0 + $0x244] sm:$0xf]
    %v173 = vld [vmem:[%s0 + $0x248] sm:$0xf]
    %v174 = vld [vmem:[%s0 + $0x24c] sm:$0xf]
    %v175 = vld [vmem:[%s0 + $0x250] sm:$0xf]
    %v176 = vld [vmem:[%s0 + $0x254] sm:$0xf]
    %v177 = vld [vmem:[%s0 + $0x258] sm:$0xf]
    %v178 = vld [vmem:[%s0 + $0x25c] sm:$0xf]
    %v179 = vld [vmem:[%s0 + $0x260] sm:$0xf]
    %v180 = vld [vmem:[%s0 + $0x264] sm:$0xf]
    %v181 = vld [vmem:[%s0 + $0x268] sm:$0xf]
    %v182 = vld [vmem:[%s0 + $0x26c] sm:$0xf]
    %v183 = vld [vmem:[%s0 + $0x270] sm:$0xf]
    %v184 = vld [vmem:[%s0 + $0x274] sm:$0xf]
    %v185 = vld [vmem:[%s0 + $0x278] sm:$0xf]
    %v186 = vld [vmem:[%s0 + $0x27c] sm:$0xf]
    %v187 = vld [vmem:[%s0 + $0x280] sm:$0xf]
    %v188 = vld [vmem:[%s0 + $0x284] sm:$0xf]
    %v189 = vld [vmem:[%s0 + $0x288] sm:$0xf]
    %v190 = vld [vmem:[%s0 + $0x28c] sm:$0xf]
    %v191 = vld [vmem:[%s0 + $0x290] sm:$0xf]
    %v192 = vld [vmem:[%s0 + $0x294] sm:$0xf]
    %v193 = vld [vmem:[%s0 + $0x298] sm:$0xf]
    %v194 = vld [vmem:[%s0 + $0x29c] sm:$0xf]
    %v195 = vld [vmem:[%s0 + $0x2a0] sm:$0xf]
    %v196 = vld [vmem:[%s0 + $0x2a4] sm:$0xf]
    %v197 = vld [vmem:[%s0 + $0x2a8] sm:$0xf]
    %v198 = vld [vmem:[%s0 + $0x2ac] sm:$0xf]
    %v199 = vld [vmem:[%s0 + $0x2b0] sm:$0xf]
    %v200 = vld [vmem:[%s0 + $0x2b4] sm:$0xf]
    %v201 = vld [vmem:[%s0 + $0x2b8] sm:$0xf]
    %v202 = vld [vmem:[%s0 + $0x2bc] sm:$0xf]
    %v203 = vld [vmem:[%s0 + $0x2c0] sm:$0xf]
    %v204 = vld [vmem:[%s0 + $0x2c4] sm:$0xf]
    %v205 = vld [vmem:[%s0 + $0x2c8] sm:$0xf]
    %v206 = vld [vmem:[%s0 + $0x2cc] sm:$0xf]
    %v207 = vld [vmem:[%s0 + $0x2d0] sm:$0xf]
    %v208 = vld [vmem:[%s0 + $0x2d4] sm:$0xf]
    %v209 = vld [vmem:[%s0 + $0x2d8] sm:$0xf]
    %v210 = vld [vmem:[%s0 + $0x2dc] sm:$0xf]
    %v211 = vld [vmem:[%s0 + $0x2e0] sm:$0xf]
    %v212 = vld [vmem:[%s0 + $0x2e4] sm:$0xf]
    %v213 = vld [vmem:[%s0 + $0x2e8] sm:$0xf]
    %v214 = vld [vmem:[%s0 + $0x2ec] sm:$0xf]
    %v215 = vld [vmem:[%s0 + $0x2f0] sm:$0xf]
    %v216 = vld [vmem:[%s0 + $0x2f4] sm:$0xf]
    %v217 = vld [vmem:[%s0 + $0x2f8] sm:$0xf]
    %v218 = vld [vmem:[%s0 + $0x2fc] sm:$0xf]
    %v219 = vld [vmem:[%s0 + $0x300] sm:$0xf]
    %v220 = vld [vmem:[%s0 + $0x304] sm:$0xf]
    %v221 = vld [vmem:[%s0 + $0x308] sm:$0xf]
    %v222 = vld [vmem:[%s0 + $0x30c] sm:$0xf]
    %v223 = vld [vmem:[%s1] sm:$0xf]
    %v224 = vld [vmem:[%s1 + $0x4] sm:$0xf]
    %v225 = vld [vmem:[%s1 + $0x8] sm:$0xf]
    %v226 = vld [vmem:[%s1 + $0xc] sm:$0xf]
    %v423 = vunpack.c.l.b16 %v27
    %v424 = vunpack.c.l.b16 %v28
    %v425 = vunpack.c.l.b16 %v29
    %v426 = vunpack.c.l.b16 %v30
    %v427 = vunpack.c.l.b16 %v31
    %v428 = vunpack.c.l.b16 %v32
    %v429 = vunpack.c.l.b16 %v33
    %v430 = vunpack.c.l.b16 %v34
    %v431 = vunpack.c.l.b16 %v35
    %v432 = vunpack.c.l.b16 %v36
    %v433 = vunpack.c.l.b16 %v37
    %v434 = vunpack.c.l.b16 %v38
    %v435 = vunpack.c.l.b16 %v39
    %v436 = vunpack.c.l.b16 %v40
    %v437 = vunpack.c.l.b16 %v41
    %v438 = vunpack.c.l.b16 %v42
    %v439 = vunpack.c.l.b16 %v43
    %v440 = vunpack.c.l.b16 %v44
    %v441 = vunpack.c.l.b16 %v45
    %v442 = vunpack.c.l.b16 %v46
    %v443 = vunpack.c.l.b16 %v47
    %v444 = vunpack.c.l.b16 %v48
    %v445 = vunpack.c.l.b16 %v49
    %v446 = vunpack.c.l.b16 %v50
    %v447 = vunpack.c.l.b16 %v51
    %v448 = vunpack.c.l.b16 %v52
    %v449 = vunpack.c.l.b16 %v53
    %v450 = vunpack.c.l.b16 %v54
    %v451 = vunpack.c.l.b16 %v55
    %v452 = vunpack.c.l.b16 %v56
    %v453 = vunpack.c.l.b16 %v57
    %v454 = vunpack.c.l.b16 %v58
    %v455 = vunpack.c.l.b16 %v59
    %v456 = vunpack.c.l.b16 %v60
    %v457 = vunpack.c.l.b16 %v61
    %v458 = vunpack.c.l.b16 %v62
    %v459 = vunpack.c.l.b16 %v63
    %v460 = vunpack.c.l.b16 %v64
    %v461 = vunpack.c.l.b16 %v65
    %v462 = vunpack.c.l.b16 %v66
    %v463 = vunpack.c.l.b16 %v67
    %v464 = vunpack.c.l.b16 %v68
    %v465 = vunpack.c.l.b16 %v69
    %v466 = vunpack.c.l.b16 %v70
    %v467 = vunpack.c.l.b16 %v71
    %v468 = vunpack.c.l.b16 %v72
    %v469 = vunpack.c.l.b16 %v73
    %v470 = vunpack.c.l.b16 %v74
    %v471 = vunpack.c.l.b16 %v75
    %v472 = vunpack.c.l.b16 %v76
    %v473 = vunpack.c.l.b16 %v77
    %v474 = vunpack.c.l.b16 %v78
    %v475 = vunpack.c.l.b16 %v79
    %v476 = vunpack.c.l.b16 %v80
    %v477 = vunpack.c.l.b16 %v81
    %v478 = vunpack.c.l.b16 %v82
    %v479 = vunpack.c.l.b16 %v83
    %v480 = vunpack.c.l.b16 %v84
    %v481 = vunpack.c.l.b16 %v85
    %v482 = vunpack.c.l.b16 %v86
    %v483 = vunpack.c.l.b16 %v87
    %v484 = vunpack.c.l.b16 %v88
    %v485 = vunpack.c.l.b16 %v89
    %v486 = vunpack.c.l.b16 %v90
    %v487 = vunpack.c.l.b16 %v91
    %v488 = vunpack.c.l.b16 %v92
    %v489 = vunpack.c.l.b16 %v93
    %v490 = vunpack.c.l.b16 %v94
    %v491 = vunpack.c.l.b16 %v95
    %v492 = vunpack.c.l.b16 %v96
    %v493 = vunpack.c.l.b16 %v97
    %v494 = vunpack.c.l.b16 %v98
    %v495 = vunpack.c.l.b16 %v99
    %v496 = vunpack.c.l.b16 %v100
    %v497 = vunpack.c.l.b16 %v101
    %v498 = vunpack.c.l.b16 %v102
    %v499 = vunpack.c.l.b16 %v103
    %v500 = vunpack.c.l.b16 %v104
    %v501 = vunpack.c.l.b16 %v105
    %v502 = vunpack.c.l.b16 %v106
    %v503 = vunpack.c.l.b16 %v107
    %v504 = vunpack.c.l.b16 %v108
    %v505 = vunpack.c.l.b16 %v109
    %v506 = vunpack.c.l.b16 %v110
    %v507 = vunpack.c.l.b16 %v111
    %v508 = vunpack.c.l.b16 %v112
    %v509 = vunpack.c.l.b16 %v113
    %v510 = vunpack.c.l.b16 %v114
    %v511 = vunpack.c.l.b16 %v115
    %v512 = vunpack.c.l.b16 %v116
    %v513 = vunpack.c.l.b16 %v117
    %v514 = vunpack.c.l.b16 %v118
    %v515 = vunpack.c.l.b16 %v119
    %v516 = vunpack.c.l.b16 %v120
    %v517 = vunpack.c.l.b16 %v121
    %v518 = vunpack.c.l.b16 %v122
    %v519 = vunpack.c.l.b16 %v123
    %v520 = vunpack.c.l.b16 %v124
    %v521 = vunpack.c.l.b16 %v125
    %v522 = vunpack.c.l.b16 %v126
    %v523 = vunpack.c.l.b16 %v127
    %v524 = vunpack.c.l.b16 %v128
    %v525 = vunpack.c.l.b16 %v129
    %v526 = vunpack.c.l.b16 %v130
    %v527 = vunpack.c.l.b16 %v131
    %v528 = vunpack.c.l.b16 %v132
    %v529 = vunpack.c.l.b16 %v133
    %v530 = vunpack.c.l.b16 %v134
    %v531 = vunpack.c.l.b16 %v135
    %v532 = vunpack.c.l.b16 %v136
    %v533 = vunpack.c.l.b16 %v137
    %v534 = vunpack.c.l.b16 %v138
    %v535 = vunpack.c.l.b16 %v139
    %v536 = vunpack.c.l.b16 %v140
    %v537 = vunpack.c.l.b16 %v141
    %v538 = vunpack.c.l.b16 %v142
    %v539 = vunpack.c.l.b16 %v143
    %v540 = vunpack.c.l.b16 %v144
    %v541 = vunpack.c.l.b16 %v145
    %v542 = vunpack.c.l.b16 %v146
    %v543 = vunpack.c.l.b16 %v147
    %v544 = vunpack.c.l.b16 %v148
    %v545 = vunpack.c.l.b16 %v149
    %v546 = vunpack.c.l.b16 %v150
    %v547 = vunpack.c.l.b16 %v151
    %v548 = vunpack.c.l.b16 %v152
    %v549 = vunpack.c.l.b16 %v153
    %v550 = vunpack.c.l.b16 %v154
    %v551 = vunpack.c.l.b16 %v155
    %v552 = vunpack.c.l.b16 %v156
    %v553 = vunpack.c.l.b16 %v157
    %v554 = vunpack.c.l.b16 %v158
    %v555 = vunpack.c.l.b16 %v159
    %v556 = vunpack.c.l.b16 %v160
    %v557 = vunpack.c.l.b16 %v161
    %v558 = vunpack.c.l.b16 %v162
    %v559 = vunpack.c.l.b16 %v163
    %v560 = vunpack.c.l.b16 %v164
    %v561 = vunpack.c.l.b16 %v165
    %v562 = vunpack.c.l.b16 %v166
    %v563 = vunpack.c.l.b16 %v167
    %v564 = vunpack.c.l.b16 %v168
    %v565 = vunpack.c.l.b16 %v169
    %v566 = vunpack.c.l.b16 %v170
    %v567 = vunpack.c.l.b16 %v171
    %v568 = vunpack.c.l.b16 %v172
    %v569 = vunpack.c.l.b16 %v173
    %v570 = vunpack.c.l.b16 %v174
    %v571 = vunpack.c.l.b16 %v175
    %v572 = vunpack.c.l.b16 %v176
    %v573 = vunpack.c.l.b16 %v177
    %v574 = vunpack.c.l.b16 %v178
    %v575 = vunpack.c.l.b16 %v179
    %v576 = vunpack.c.l.b16 %v180
    %v577 = vunpack.c.l.b16 %v181
    %v578 = vunpack.c.l.b16 %v182
    %v579 = vunpack.c.l.b16 %v183
    %v580 = vunpack.c.l.b16 %v184
    %v581 = vunpack.c.l.b16 %v185
    %v582 = vunpack.c.l.b16 %v186
    %v583 = vunpack.c.l.b16 %v187
    %v584 = vunpack.c.l.b16 %v188
    %v585 = vunpack.c.l.b16 %v189
    %v586 = vunpack.c.l.b16 %v190
    %v587 = vunpack.c.l.b16 %v191
    %v588 = vunpack.c.l.b16 %v192
    %v589 = vunpack.c.l.b16 %v193
    %v590 = vunpack.c.l.b16 %v194
    %v591 = vunpack.c.l.b16 %v195
    %v592 = vunpack.c.l.b16 %v196
    %v593 = vunpack.c.l.b16 %v197
    %v594 = vunpack.c.l.b16 %v198
    %v595 = vunpack.c.l.b16 %v199
    %v596 = vunpack.c.l.b16 %v200
    %v597 = vunpack.c.l.b16 %v201
    %v598 = vunpack.c.l.b16 %v202
    %v599 = vunpack.c.l.b16 %v203
    %v600 = vunpack.c.l.b16 %v204
    %v601 = vunpack.c.l.b16 %v205
    %v602 = vunpack.c.l.b16 %v206
    %v603 = vunpack.c.l.b16 %v207
    %v604 = vunpack.c.l.b16 %v208
    %v605 = vunpack.c.l.b16 %v209
    %v606 = vunpack.c.l.b16 %v210
    %v607 = vunpack.c.l.b16 %v211
    %v608 = vunpack.c.l.b16 %v212
    %v609 = vunpack.c.l.b16 %v213
    %v610 = vunpack.c.l.b16 %v214
    %v611 = vunpack.c.l.b16 %v215
    %v612 = vunpack.c.l.b16 %v216
    %v613 = vunpack.c.l.b16 %v217
    %v614 = vunpack.c.l.b16 %v218
    %v615 = vunpack.c.l.b16 %v219
    %v616 = vunpack.c.l.b16 %v220
    %v617 = vunpack.c.l.b16 %v221
    %v618 = vunpack.c.l.b16 %v222
    %v619 = vpack.c.b16 %v424, %v423
    %v620 = vpack.c.b16 %v426, %v425
    %v621 = vpack.c.b16 %v428, %v427
    %v622 = vpack.c.b16 %v430, %v429
    %v623 = vpack.c.b16 %v432, %v431
    %v624 = vpack.c.b16 %v434, %v433
    %v625 = vpack.c.b16 %v436, %v435
    %v626 = vpack.c.b16 %v438, %v437
    %v627 = vpack.c.b16 %v440, %v439
    %v628 = vpack.c.b16 %v442, %v441
    %v629 = vpack.c.b16 %v444, %v443
    %v630 = vpack.c.b16 %v446, %v445
    %v631 = vpack.c.b16 %v448, %v447
    %v632 = vpack.c.b16 %v450, %v449
    %v633 = vpack.c.b16 %v452, %v451
    %v634 = vpack.c.b16 %v454, %v453
    %v635 = vpack.c.b16 %v456, %v455
    %v636 = vpack.c.b16 %v458, %v457
    %v637 = vpack.c.b16 %v460, %v459
    %v638 = vpack.c.b16 %v462, %v461
    %v639 = vpack.c.b16 %v464, %v463
    %v640 = vpack.c.b16 %v466, %v465
    %v641 = vpack.c.b16 %v468, %v467
    %v642 = vpack.c.b16 %v470, %v469
    %v643 = vpack.c.b16 %v472, %v471
    %v644 = vpack.c.b16 %v474, %v473
    %v645 = vpack.c.b16 %v476, %v475
    %v646 = vpack.c.b16 %v478, %v477
    %v647 = vpack.c.b16 %v480, %v479
    %v648 = vpack.c.b16 %v482, %v481
    %v649 = vpack.c.b16 %v484, %v483
    %v650 = vpack.c.b16 %v486, %v485
    %v651 = vpack.c.b16 %v488, %v487
    %v652 = vpack.c.b16 %v490, %v489
    %v653 = vpack.c.b16 %v492, %v491
    %v654 = vpack.c.b16 %v494, %v493
    %v655 = vpack.c.b16 %v496, %v495
    %v656 = vpack.c.b16 %v498, %v497
    %v657 = vpack.c.b16 %v500, %v499
    %v658 = vpack.c.b16 %v502, %v501
    %v659 = vpack.c.b16 %v504, %v503
    %v660 = vpack.c.b16 %v506, %v505
    %v661 = vpack.c.b16 %v508, %v507
    %v662 = vpack.c.b16 %v510, %v509
    %v663 = vpack.c.b16 %v512, %v511
    %v664 = vpack.c.b16 %v514, %v513
    %v665 = vpack.c.b16 %v516, %v515
    %v666 = vpack.c.b16 %v518, %v517
    %v667 = vpack.c.b16 %v520, %v519
    %v668 = vpack.c.b16 %v522, %v521
    %v669 = vpack.c.b16 %v524, %v523
    %v670 = vpack.c.b16 %v526, %v525
    %v671 = vpack.c.b16 %v528, %v527
    %v672 = vpack.c.b16 %v530, %v529
    %v673 = vpack.c.b16 %v532, %v531
    %v674 = vpack.c.b16 %v534, %v533
    %v675 = vpack.c.b16 %v536, %v535
    %v676 = vpack.c.b16 %v538, %v537
    %v677 = vpack.c.b16 %v540, %v539
    %v678 = vpack.c.b16 %v542, %v541
    %v679 = vpack.c.b16 %v544, %v543
    %v680 = vpack.c.b16 %v546, %v545
    %v681 = vpack.c.b16 %v548, %v547
    %v682 = vpack.c.b16 %v550, %v549
    %v683 = vpack.c.b16 %v552, %v551
    %v684 = vpack.c.b16 %v554, %v553
    %v685 = vpack.c.b16 %v556, %v555
    %v686 = vpack.c.b16 %v558, %v557
    %v687 = vpack.c.b16 %v560, %v559
    %v688 = vpack.c.b16 %v562, %v561
    %v689 = vpack.c.b16 %v564, %v563
    %v690 = vpack.c.b16 %v566, %v565
    %v691 = vpack.c.b16 %v568, %v567
    %v692 = vpack.c.b16 %v570, %v569
    %v693 = vpack.c.b16 %v572, %v571
    %v694 = vpack.c.b16 %v574, %v573
    %v695 = vpack.c.b16 %v576, %v575
    %v696 = vpack.c.b16 %v578, %v577
    %v697 = vpack.c.b16 %v580, %v579
    %v698 = vpack.c.b16 %v582, %v581
    %v699 = vpack.c.b16 %v584, %v583
    %v700 = vpack.c.b16 %v586, %v585
    %v701 = vpack.c.b16 %v588, %v587
    %v702 = vpack.c.b16 %v590, %v589
    %v703 = vpack.c.b16 %v592, %v591
    %v704 = vpack.c.b16 %v594, %v593
    %v705 = vpack.c.b16 %v596, %v595
    %v706 = vpack.c.b16 %v598, %v597
    %v707 = vpack.c.b16 %v600, %v599
    %v708 = vpack.c.b16 %v602, %v601
    %v709 = vpack.c.b16 %v604, %v603
    %v710 = vpack.c.b16 %v606, %v605
    %v711 = vpack.c.b16 %v608, %v607
    %v712 = vpack.c.b16 %v610, %v609
    %v713 = vpack.c.b16 %v612, %v611
    %v714 = vpack.c.b16 %v614, %v613
    %v715 = vpack.c.b16 %v616, %v615
    %v716 = vpack.c.b16 %v618, %v617
    %v721 = vunpack.c.l.b16 %v223
    %v722 = vunpack.c.l.b16 %v224
    %v723 = vunpack.c.l.b16 %v225
    %v724 = vunpack.c.l.b16 %v226
    %v725 = vpack.c.b16 %v722, %v721
    %v726 = vpack.c.b16 %v724, %v723
    %vm729 = vcmask 261120
    %v731 = vsel %vm729, %v619, 0
    %v734 = vsel %vm729, %v620, 0
    %v737 = vsel %vm729, %v621, 0
    %v740 = vsel %vm729, %v622, 0
    %v743 = vsel %vm729, %v623, 0
    %v746 = vsel %vm729, %v624, 0
    %v749 = vsel %vm729, %v625, 0
    %v752 = vsel %vm729, %v626, 0
    %v755 = vsel %vm729, %v627, 0
    %v758 = vsel %vm729, %v628, 0
    %v761 = vsel %vm729, %v629, 0
    %v764 = vsel %vm729, %v630, 0
    %v767 = vsel %vm729, %v631, 0
    %v770 = vsel %vm729, %v632, 0
    %v773 = vsel %vm729, %v633, 0
    %v776 = vsel %vm729, %v634, 0
    %v779 = vsel %vm729, %v635, 0
    %v782 = vsel %vm729, %v636, 0
    %v785 = vsel %vm729, %v637, 0
    %v788 = vsel %vm729, %v638, 0
    %v791 = vsel %vm729, %v639, 0
    %v794 = vsel %vm729, %v640, 0
    %v797 = vsel %vm729, %v641, 0
    %v800 = vsel %vm729, %v642, 0
    %v803 = vsel %vm729, %v643, 0
    %v806 = vsel %vm729, %v644, 0
    %v809 = vsel %vm729, %v645, 0
    %v812 = vsel %vm729, %v646, 0
    %v815 = vsel %vm729, %v647, 0
    %v818 = vsel %vm729, %v648, 0
    %v821 = vsel %vm729, %v649, 0
    %v824 = vsel %vm729, %v650, 0
    %v827 = vsel %vm729, %v651, 0
    %v830 = vsel %vm729, %v652, 0
    %v833 = vsel %vm729, %v653, 0
    %v836 = vsel %vm729, %v654, 0
    %v839 = vsel %vm729, %v655, 0
    %v842 = vsel %vm729, %v656, 0
    %v845 = vsel %vm729, %v657, 0
    %v848 = vsel %vm729, %v658, 0
    %v851 = vsel %vm729, %v659, 0
    %v854 = vsel %vm729, %v660, 0
    %v857 = vsel %vm729, %v661, 0
    %v860 = vsel %vm729, %v662, 0
    %v863 = vsel %vm729, %v663, 0
    %v866 = vsel %vm729, %v664, 0
    %v869 = vsel %vm729, %v665, 0
    %v872 = vsel %vm729, %v666, 0
    %v875 = vsel %vm729, %v667, 0
    %v878 = vsel %vm729, %v668, 0
    %v881 = vsel %vm729, %v669, 0
    %v884 = vsel %vm729, %v670, 0
    %v887 = vsel %vm729, %v671, 0
    %v890 = vsel %vm729, %v672, 0
    %v893 = vsel %vm729, %v673, 0
    %v896 = vsel %vm729, %v674, 0
    %v899 = vsel %vm729, %v675, 0
    %v902 = vsel %vm729, %v676, 0
    %v905 = vsel %vm729, %v677, 0
    %v908 = vsel %vm729, %v678, 0
    %v911 = vsel %vm729, %v679, 0
    %v914 = vsel %vm729, %v680, 0
    %v917 = vsel %vm729, %v681, 0
    %v920 = vsel %vm729, %v682, 0
    %v923 = vsel %vm729, %v683, 0
    %v926 = vsel %vm729, %v684, 0
    %v929 = vsel %vm729, %v685, 0
    %v932 = vsel %vm729, %v686, 0
    %v935 = vsel %vm729, %v687, 0
    %v938 = vsel %vm729, %v688, 0
    %v941 = vsel %vm729, %v689, 0
    %v944 = vsel %vm729, %v690, 0
    %v947 = vsel %vm729, %v691, 0
    %v950 = vsel %vm729, %v692, 0
    %v953 = vsel %vm729, %v693, 0
    %v956 = vsel %vm729, %v694, 0
    %v959 = vsel %vm729, %v695, 0
    %v962 = vsel %vm729, %v696, 0
    %v965 = vsel %vm729, %v697, 0
    %v968 = vsel %vm729, %v698, 0
    %v971 = vsel %vm729, %v699, 0
    %v974 = vsel %vm729, %v700, 0
    %v977 = vsel %vm729, %v701, 0
    %v980 = vsel %vm729, %v702, 0
    %v983 = vsel %vm729, %v703, 0
    %v986 = vsel %vm729, %v704, 0
    %v989 = vsel %vm729, %v705, 0
    %v992 = vsel %vm729, %v706, 0
    %v995 = vsel %vm729, %v707, 0
    %v998 = vsel %vm729, %v708, 0
    %v1001 = vsel %vm729, %v709, 0
    %v1004 = vsel %vm729, %v710, 0
    %v1007 = vsel %vm729, %v711, 0
    %v1010 = vsel %vm729, %v712, 0
    %v1013 = vsel %vm729, %v713, 0
    %v1016 = vsel %vm729, %v714, 0
    %v1019 = vsel %vm729, %v715, 0
    %v1022 = vsel %vm729, %v716, 0
    %1024 = vmatprep.subr.bf16.mxu0 0
    %1025 = vmatpush1.bf16.msra.mxu0 0
    %1026 = vmatprep.subr.bf16.mxu0 0
    %1027 = vmatpush1.bf16.msra.mxu0 0
    %1028 = vmatprep.subr.bf16.mxu0 0
    %1029 = vmatpush1.bf16.msra.mxu0 0
    %1030 = vmatprep.subr.bf16.mxu0 0
    %1031 = vmatpush1.bf16.msra.mxu0 0
    %1032 = vmatprep.subr.bf16.mxu0 0
    %1033 = vmatpush1.bf16.msra.mxu0 0
    %1034 = vmatprep.subr.bf16.mxu0 0
    %1035 = vmatpush1.bf16.msra.mxu0 0
    %1036 = vmatprep.subr.bf16.mxu0 0
    %1037 = vmatpush1.bf16.msra.mxu0 %v726
    %1038 = vmatprep.subr.bf16.mxu0 0
    %1039 = vmatpush1.bf16.msra.mxu0 %v725
    %1040 = vmatprep.subr.bf16.mxu0 0
    %1041 = vmatpush2.bf16.msra.mxu0 0
    %1042 = vmatprep.subr.bf16.mxu0 0
    %1043 = vmatpush2.bf16.msra.mxu0 0
    %1044 = vmatprep.subr.bf16.mxu0 0
    %1045 = vmatpush2.bf16.msra.mxu0 0
    %1046 = vmatprep.subr.bf16.mxu0 0
    %1047 = vmatpush2.bf16.msra.mxu0 0
    %1048 = vmatprep.subr.bf16.mxu0 0
    %1049 = vmatpush2.bf16.msra.mxu0 0
    %1050 = vmatprep.subr.bf16.mxu0 0
    %1051 = vmatpush2.bf16.msra.mxu0 0
    %1052 = vmatprep.subr.bf16.mxu0 0
    %1053 = vmatpush2.bf16.msra.mxu0 0
    %1054 = vmatprep.subr.bf16.mxu0 0
    %1055 = vmatpush2.bf16.msra.mxu0 0
    %1056 = vmatprep.mubr.bf16.mxu0 0
    %1057 = vmatmul.mubr.bf16.gmra.mxu0 %v731
    %v1058 = vpop.f32.mrf.mxu0
    %v1059 = vadd.f32 0.0, %v1058
    %v1060 = vpop.f32.mrf.mxu0
    %v1061 = vpop.f32.mrf.mxu0
    %v1062 = vadd.f32 0.0, %v1061
    %v1063 = vpop.f32.mrf.mxu0
    %1064 = vmatprep.mubr.bf16.mxu0 0
    %1065 = vmatmul.mubr.bf16.gmra.mxu0 %v734
    %v1066 = vpop.f32.mrf.mxu0
    %v1067 = vadd.f32 0.0, %v1066
    %v1068 = vpop.f32.mrf.mxu0
    %v1069 = vpop.f32.mrf.mxu0
    %v1070 = vadd.f32 0.0, %v1069
    %v1071 = vpop.f32.mrf.mxu0
    %1072 = vmatprep.mubr.bf16.mxu0 0
    %1073 = vmatmul.mubr.bf16.gmra.mxu0 %v737
    %v1074 = vpop.f32.mrf.mxu0
    %v1075 = vadd.f32 0.0, %v1074
    %v1076 = vpop.f32.mrf.mxu0
    %v1077 = vpop.f32.mrf.mxu0
    %v1078 = vadd.f32 0.0, %v1077
    %v1079 = vpop.f32.mrf.mxu0
    %1080 = vmatprep.mubr.bf16.mxu0 0
    %1081 = vmatmul.mubr.bf16.gmra.mxu0 %v740
    %v1082 = vpop.f32.mrf.mxu0
    %v1083 = vadd.f32 0.0, %v1082
    %v1084 = vpop.f32.mrf.mxu0
    %v1085 = vpop.f32.mrf.mxu0
    %v1086 = vadd.f32 0.0, %v1085
    %v1087 = vpop.f32.mrf.mxu0
    %1088 = vmatprep.mubr.bf16.mxu0 0
    %1089 = vmatmul.mubr.bf16.gmra.mxu0 %v743
    %v1090 = vpop.f32.mrf.mxu0
    %v1091 = vadd.f32 0.0, %v1090
    %v1092 = vpop.f32.mrf.mxu0
    %v1093 = vpop.f32.mrf.mxu0
    %v1094 = vadd.f32 0.0, %v1093
    %v1095 = vpop.f32.mrf.mxu0
    %1096 = vmatprep.mubr.bf16.mxu0 0
    %1097 = vmatmul.mubr.bf16.gmra.mxu0 %v746
    %v1098 = vpop.f32.mrf.mxu0
    %v1099 = vadd.f32 0.0, %v1098
    %v1100 = vpop.f32.mrf.mxu0
    %v1101 = vpop.f32.mrf.mxu0
    %v1102 = vadd.f32 0.0, %v1101
    %v1103 = vpop.f32.mrf.mxu0
    %1104 = vmatprep.mubr.bf16.mxu0 0
    %1105 = vmatmul.mubr.bf16.gmra.mxu0 %v749
    %v1106 = vpop.f32.mrf.mxu0
    %v1107 = vadd.f32 0.0, %v1106
    %v1108 = vpop.f32.mrf.mxu0
    %v1109 = vpop.f32.mrf.mxu0
    %v1110 = vadd.f32 0.0, %v1109
    %v1111 = vpop.f32.mrf.mxu0
    %1112 = vmatprep.mubr.bf16.mxu0 0
    %1113 = vmatmul.mubr.bf16.gmra.mxu0 %v752
    %v1114 = vpop.f32.mrf.mxu0
    %v1115 = vadd.f32 0.0, %v1114
    %v1116 = vpop.f32.mrf.mxu0
    %v1117 = vpop.f32.mrf.mxu0
    %v1118 = vadd.f32 0.0, %v1117
    %v1119 = vpop.f32.mrf.mxu0
    %1120 = vmatprep.mubr.bf16.mxu0 0
    %1121 = vmatmul.mubr.bf16.gmra.mxu0 %v755
    %v1122 = vpop.f32.mrf.mxu0
    %v1123 = vadd.f32 0.0, %v1122
    %v1124 = vpop.f32.mrf.mxu0
    %v1125 = vpop.f32.mrf.mxu0
    %v1126 = vadd.f32 0.0, %v1125
    %v1127 = vpop.f32.mrf.mxu0
    %1128 = vmatprep.mubr.bf16.mxu0 0
    %1129 = vmatmul.mubr.bf16.gmra.mxu0 %v758
    %v1130 = vpop.f32.mrf.mxu0
    %v1131 = vadd.f32 0.0, %v1130
    %v1132 = vpop.f32.mrf.mxu0
    %v1133 = vpop.f32.mrf.mxu0
    %v1134 = vadd.f32 0.0, %v1133
    %v1135 = vpop.f32.mrf.mxu0
    %1136 = vmatprep.mubr.bf16.mxu0 0
    %1137 = vmatmul.mubr.bf16.gmra.mxu0 %v761
    %v1138 = vpop.f32.mrf.mxu0
    %v1139 = vadd.f32 0.0, %v1138
    %v1140 = vpop.f32.mrf.mxu0
    %v1141 = vpop.f32.mrf.mxu0
    %v1142 = vadd.f32 0.0, %v1141
    %v1143 = vpop.f32.mrf.mxu0
    %1144 = vmatprep.mubr.bf16.mxu0 0
    %1145 = vmatmul.mubr.bf16.gmra.mxu0 %v764
    %v1146 = vpop.f32.mrf.mxu0
    %v1147 = vadd.f32 0.0, %v1146
    %v1148 = vpop.f32.mrf.mxu0
    %v1149 = vpop.f32.mrf.mxu0
    %v1150 = vadd.f32 0.0, %v1149
    %v1151 = vpop.f32.mrf.mxu0
    %1152 = vmatprep.mubr.bf16.mxu0 0
    %1153 = vmatmul.mubr.bf16.gmra.mxu0 %v767
    %v1154 = vpop.f32.mrf.mxu0
    %v1155 = vadd.f32 0.0, %v1154
    %v1156 = vpop.f32.mrf.mxu0
    %v1157 = vpop.f32.mrf.mxu0
    %v1158 = vadd.f32 0.0, %v1157
    %v1159 = vpop.f32.mrf.mxu0
    %1160 = vmatprep.mubr.bf16.mxu0 0
    %1161 = vmatmul.mubr.bf16.gmra.mxu0 %v770
    %v1162 = vpop.f32.mrf.mxu0
    %v1163 = vadd.f32 0.0, %v1162
    %v1164 = vpop.f32.mrf.mxu0
    %v1165 = vpop.f32.mrf.mxu0
    %v1166 = vadd.f32 0.0, %v1165
    %v1167 = vpop.f32.mrf.mxu0
    %1168 = vmatprep.mubr.bf16.mxu0 0
    %1169 = vmatmul.mubr.bf16.gmra.mxu0 %v773
    %v1170 = vpop.f32.mrf.mxu0
    %v1171 = vadd.f32 0.0, %v1170
    %v1172 = vpop.f32.mrf.mxu0
    %v1173 = vpop.f32.mrf.mxu0
    %v1174 = vadd.f32 0.0, %v1173
    %v1175 = vpop.f32.mrf.mxu0
    %1176 = vmatprep.mubr.bf16.mxu0 0
    %1177 = vmatmul.mubr.bf16.gmra.mxu0 %v776
    %v1178 = vpop.f32.mrf.mxu0
    %v1179 = vadd.f32 0.0, %v1178
    %v1180 = vpop.f32.mrf.mxu0
    %v1181 = vpop.f32.mrf.mxu0
    %v1182 = vadd.f32 0.0, %v1181
    %v1183 = vpop.f32.mrf.mxu0
    %1184 = vmatprep.mubr.bf16.mxu0 0
    %1185 = vmatmul.mubr.bf16.gmra.mxu0 %v779
    %v1186 = vpop.f32.mrf.mxu0
    %v1187 = vadd.f32 0.0, %v1186
    %v1188 = vpop.f32.mrf.mxu0
    %v1189 = vpop.f32.mrf.mxu0
    %v1190 = vadd.f32 0.0, %v1189
    %v1191 = vpop.f32.mrf.mxu0
    %1192 = vmatprep.mubr.bf16.mxu0 0
    %1193 = vmatmul.mubr.bf16.gmra.mxu0 %v782
    %v1194 = vpop.f32.mrf.mxu0
    %v1195 = vadd.f32 0.0, %v1194
    %v1196 = vpop.f32.mrf.mxu0
    %v1197 = vpop.f32.mrf.mxu0
    %v1198 = vadd.f32 0.0, %v1197
    %v1199 = vpop.f32.mrf.mxu0
    %1200 = vmatprep.mubr.bf16.mxu0 0
    %1201 = vmatmul.mubr.bf16.gmra.mxu0 %v785
    %v1202 = vpop.f32.mrf.mxu0
    %v1203 = vadd.f32 0.0, %v1202
    %v1204 = vpop.f32.mrf.mxu0
    %v1205 = vpop.f32.mrf.mxu0
    %v1206 = vadd.f32 0.0, %v1205
    %v1207 = vpop.f32.mrf.mxu0
    %1208 = vmatprep.mubr.bf16.mxu0 0
    %1209 = vmatmul.mubr.bf16.gmra.mxu0 %v788
    %v1210 = vpop.f32.mrf.mxu0
    %v1211 = vadd.f32 0.0, %v1210
    %v1212 = vpop.f32.mrf.mxu0
    %v1213 = vpop.f32.mrf.mxu0
    %v1214 = vadd.f32 0.0, %v1213
    %v1215 = vpop.f32.mrf.mxu0
    %1216 = vmatprep.mubr.bf16.mxu0 0
    %1217 = vmatmul.mubr.bf16.gmra.mxu0 %v791
    %v1218 = vpop.f32.mrf.mxu0
    %v1219 = vadd.f32 0.0, %v1218
    %v1220 = vpop.f32.mrf.mxu0
    %v1221 = vpop.f32.mrf.mxu0
    %v1222 = vadd.f32 0.0, %v1221
    %v1223 = vpop.f32.mrf.mxu0
    %1224 = vmatprep.mubr.bf16.mxu0 0
    %1225 = vmatmul.mubr.bf16.gmra.mxu0 %v794
    %v1226 = vpop.f32.mrf.mxu0
    %v1227 = vadd.f32 0.0, %v1226
    %v1228 = vpop.f32.mrf.mxu0
    %v1229 = vpop.f32.mrf.mxu0
    %v1230 = vadd.f32 0.0, %v1229
    %v1231 = vpop.f32.mrf.mxu0
    %1232 = vmatprep.mubr.bf16.mxu0 0
    %1233 = vmatmul.mubr.bf16.gmra.mxu0 %v797
    %v1234 = vpop.f32.mrf.mxu0
    %v1235 = vadd.f32 0.0, %v1234
    %v1236 = vpop.f32.mrf.mxu0
    %v1237 = vpop.f32.mrf.mxu0
    %v1238 = vadd.f32 0.0, %v1237
    %v1239 = vpop.f32.mrf.mxu0
    %1240 = vmatprep.mubr.bf16.mxu0 0
    %1241 = vmatmul.mubr.bf16.gmra.mxu0 %v800
    %v1242 = vpop.f32.mrf.mxu0
    %v1243 = vadd.f32 0.0, %v1242
    %v1244 = vpop.f32.mrf.mxu0
    %v1245 = vpop.f32.mrf.mxu0
    %v1246 = vadd.f32 0.0, %v1245
    %v1247 = vpop.f32.mrf.mxu0
    %1248 = vmatprep.mubr.bf16.mxu0 0
    %1249 = vmatmul.mubr.bf16.gmra.mxu0 %v803
    %v1250 = vpop.f32.mrf.mxu0
    %v1251 = vadd.f32 0.0, %v1250
    %v1252 = vpop.f32.mrf.mxu0
    %v1253 = vpop.f32.mrf.mxu0
    %v1254 = vadd.f32 0.0, %v1253
    %v1255 = vpop.f32.mrf.mxu0
    %1256 = vmatprep.mubr.bf16.mxu0 0
    %1257 = vmatmul.mubr.bf16.gmra.mxu0 %v806
    %v1258 = vpop.f32.mrf.mxu0
    %v1259 = vadd.f32 0.0, %v1258
    %v1260 = vpop.f32.mrf.mxu0
    %v1261 = vpop.f32.mrf.mxu0
    %v1262 = vadd.f32 0.0, %v1261
    %v1263 = vpop.f32.mrf.mxu0
    %1264 = vmatprep.mubr.bf16.mxu0 0
    %1265 = vmatmul.mubr.bf16.gmra.mxu0 %v809
    %v1266 = vpop.f32.mrf.mxu0
    %v1267 = vadd.f32 0.0, %v1266
    %v1268 = vpop.f32.mrf.mxu0
    %v1269 = vpop.f32.mrf.mxu0
    %v1270 = vadd.f32 0.0, %v1269
    %v1271 = vpop.f32.mrf.mxu0
    %1272 = vmatprep.mubr.bf16.mxu0 0
    %1273 = vmatmul.mubr.bf16.gmra.mxu0 %v812
    %v1274 = vpop.f32.mrf.mxu0
    %v1275 = vadd.f32 0.0, %v1274
    %v1276 = vpop.f32.mrf.mxu0
    %v1277 = vpop.f32.mrf.mxu0
    %v1278 = vadd.f32 0.0, %v1277
    %v1279 = vpop.f32.mrf.mxu0
    %1280 = vmatprep.mubr.bf16.mxu0 0
    %1281 = vmatmul.mubr.bf16.gmra.mxu0 %v815
    %v1282 = vpop.f32.mrf.mxu0
    %v1283 = vadd.f32 0.0, %v1282
    %v1284 = vpop.f32.mrf.mxu0
    %v1285 = vpop.f32.mrf.mxu0
    %v1286 = vadd.f32 0.0, %v1285
    %v1287 = vpop.f32.mrf.mxu0
    %1288 = vmatprep.mubr.bf16.mxu0 0
    %1289 = vmatmul.mubr.bf16.gmra.mxu0 %v818
    %v1290 = vpop.f32.mrf.mxu0
    %v1291 = vadd.f32 0.0, %v1290
    %v1292 = vpop.f32.mrf.mxu0
    %v1293 = vpop.f32.mrf.mxu0
    %v1294 = vadd.f32 0.0, %v1293
    %v1295 = vpop.f32.mrf.mxu0
    %1296 = vmatprep.mubr.bf16.mxu0 0
    %1297 = vmatmul.mubr.bf16.gmra.mxu0 %v821
    %v1298 = vpop.f32.mrf.mxu0
    %v1299 = vadd.f32 0.0, %v1298
    %v1300 = vpop.f32.mrf.mxu0
    %v1301 = vpop.f32.mrf.mxu0
    %v1302 = vadd.f32 0.0, %v1301
    %v1303 = vpop.f32.mrf.mxu0
    %1304 = vmatprep.mubr.bf16.mxu0 0
    %1305 = vmatmul.mubr.bf16.gmra.mxu0 %v824
    %v1306 = vpop.f32.mrf.mxu0
    %v1307 = vadd.f32 0.0, %v1306
    %v1308 = vpop.f32.mrf.mxu0
    %v1309 = vpop.f32.mrf.mxu0
    %v1310 = vadd.f32 0.0, %v1309
    %v1311 = vpop.f32.mrf.mxu0
    %1312 = vmatprep.mubr.bf16.mxu0 0
    %1313 = vmatmul.mubr.bf16.gmra.mxu0 %v827
    %v1314 = vpop.f32.mrf.mxu0
    %v1315 = vadd.f32 0.0, %v1314
    %v1316 = vpop.f32.mrf.mxu0
    %v1317 = vpop.f32.mrf.mxu0
    %v1318 = vadd.f32 0.0, %v1317
    %v1319 = vpop.f32.mrf.mxu0
    %1320 = vmatprep.mubr.bf16.mxu0 0
    %1321 = vmatmul.mubr.bf16.gmra.mxu0 %v830
    %v1322 = vpop.f32.mrf.mxu0
    %v1323 = vadd.f32 0.0, %v1322
    %v1324 = vpop.f32.mrf.mxu0
    %v1325 = vpop.f32.mrf.mxu0
    %v1326 = vadd.f32 0.0, %v1325
    %v1327 = vpop.f32.mrf.mxu0
    %1328 = vmatprep.mubr.bf16.mxu0 0
    %1329 = vmatmul.mubr.bf16.gmra.mxu0 %v833
    %v1330 = vpop.f32.mrf.mxu0
    %v1331 = vadd.f32 0.0, %v1330
    %v1332 = vpop.f32.mrf.mxu0
    %v1333 = vpop.f32.mrf.mxu0
    %v1334 = vadd.f32 0.0, %v1333
    %v1335 = vpop.f32.mrf.mxu0
    %1336 = vmatprep.mubr.bf16.mxu0 0
    %1337 = vmatmul.mubr.bf16.gmra.mxu0 %v836
    %v1338 = vpop.f32.mrf.mxu0
    %v1339 = vadd.f32 0.0, %v1338
    %v1340 = vpop.f32.mrf.mxu0
    %v1341 = vpop.f32.mrf.mxu0
    %v1342 = vadd.f32 0.0, %v1341
    %v1343 = vpop.f32.mrf.mxu0
    %1344 = vmatprep.mubr.bf16.mxu0 0
    %1345 = vmatmul.mubr.bf16.gmra.mxu0 %v839
    %v1346 = vpop.f32.mrf.mxu0
    %v1347 = vadd.f32 0.0, %v1346
    %v1348 = vpop.f32.mrf.mxu0
    %v1349 = vpop.f32.mrf.mxu0
    %v1350 = vadd.f32 0.0, %v1349
    %v1351 = vpop.f32.mrf.mxu0
    %1352 = vmatprep.mubr.bf16.mxu0 0
    %1353 = vmatmul.mubr.bf16.gmra.mxu0 %v842
    %v1354 = vpop.f32.mrf.mxu0
    %v1355 = vadd.f32 0.0, %v1354
    %v1356 = vpop.f32.mrf.mxu0
    %v1357 = vpop.f32.mrf.mxu0
    %v1358 = vadd.f32 0.0, %v1357
    %v1359 = vpop.f32.mrf.mxu0
    %1360 = vmatprep.mubr.bf16.mxu0 0
    %1361 = vmatmul.mubr.bf16.gmra.mxu0 %v845
    %v1362 = vpop.f32.mrf.mxu0
    %v1363 = vadd.f32 0.0, %v1362
    %v1364 = vpop.f32.mrf.mxu0
    %v1365 = vpop.f32.mrf.mxu0
    %v1366 = vadd.f32 0.0, %v1365
    %v1367 = vpop.f32.mrf.mxu0
    %1368 = vmatprep.mubr.bf16.mxu0 0
    %1369 = vmatmul.mubr.bf16.gmra.mxu0 %v848
    %v1370 = vpop.f32.mrf.mxu0
    %v1371 = vadd.f32 0.0, %v1370
    %v1372 = vpop.f32.mrf.mxu0
    %v1373 = vpop.f32.mrf.mxu0
    %v1374 = vadd.f32 0.0, %v1373
    %v1375 = vpop.f32.mrf.mxu0
    %1376 = vmatprep.mubr.bf16.mxu0 0
    %1377 = vmatmul.mubr.bf16.gmra.mxu0 %v851
    %v1378 = vpop.f32.mrf.mxu0
    %v1379 = vadd.f32 0.0, %v1378
    %v1380 = vpop.f32.mrf.mxu0
    %v1381 = vpop.f32.mrf.mxu0
    %v1382 = vadd.f32 0.0, %v1381
    %v1383 = vpop.f32.mrf.mxu0
    %1384 = vmatprep.mubr.bf16.mxu0 0
    %1385 = vmatmul.mubr.bf16.gmra.mxu0 %v854
    %v1386 = vpop.f32.mrf.mxu0
    %v1387 = vadd.f32 0.0, %v1386
    %v1388 = vpop.f32.mrf.mxu0
    %v1389 = vpop.f32.mrf.mxu0
    %v1390 = vadd.f32 0.0, %v1389
    %v1391 = vpop.f32.mrf.mxu0
    %1392 = vmatprep.mubr.bf16.mxu0 0
    %1393 = vmatmul.mubr.bf16.gmra.mxu0 %v857
    %v1394 = vpop.f32.mrf.mxu0
    %v1395 = vadd.f32 0.0, %v1394
    %v1396 = vpop.f32.mrf.mxu0
    %v1397 = vpop.f32.mrf.mxu0
    %v1398 = vadd.f32 0.0, %v1397
    %v1399 = vpop.f32.mrf.mxu0
    %1400 = vmatprep.mubr.bf16.mxu0 0
    %1401 = vmatmul.mubr.bf16.gmra.mxu0 %v860
    %v1402 = vpop.f32.mrf.mxu0
    %v1403 = vadd.f32 0.0, %v1402
    %v1404 = vpop.f32.mrf.mxu0
    %v1405 = vpop.f32.mrf.mxu0
    %v1406 = vadd.f32 0.0, %v1405
    %v1407 = vpop.f32.mrf.mxu0
    %1408 = vmatprep.mubr.bf16.mxu0 0
    %1409 = vmatmul.mubr.bf16.gmra.mxu0 %v863
    %v1410 = vpop.f32.mrf.mxu0
    %v1411 = vadd.f32 0.0, %v1410
    %v1412 = vpop.f32.mrf.mxu0
    %v1413 = vpop.f32.mrf.mxu0
    %v1414 = vadd.f32 0.0, %v1413
    %v1415 = vpop.f32.mrf.mxu0
    %1416 = vmatprep.mubr.bf16.mxu0 0
    %1417 = vmatmul.mubr.bf16.gmra.mxu0 %v866
    %v1418 = vpop.f32.mrf.mxu0
    %v1419 = vadd.f32 0.0, %v1418
    %v1420 = vpop.f32.mrf.mxu0
    %v1421 = vpop.f32.mrf.mxu0
    %v1422 = vadd.f32 0.0, %v1421
    %v1423 = vpop.f32.mrf.mxu0
    %1424 = vmatprep.mubr.bf16.mxu0 0
    %1425 = vmatmul.mubr.bf16.gmra.mxu0 %v869
    %v1426 = vpop.f32.mrf.mxu0
    %v1427 = vadd.f32 0.0, %v1426
    %v1428 = vpop.f32.mrf.mxu0
    %v1429 = vpop.f32.mrf.mxu0
    %v1430 = vadd.f32 0.0, %v1429
    %v1431 = vpop.f32.mrf.mxu0
    %1432 = vmatprep.mubr.bf16.mxu0 0
    %1433 = vmatmul.mubr.bf16.gmra.mxu0 %v872
    %v1434 = vpop.f32.mrf.mxu0
    %v1435 = vadd.f32 0.0, %v1434
    %v1436 = vpop.f32.mrf.mxu0
    %v1437 = vpop.f32.mrf.mxu0
    %v1438 = vadd.f32 0.0, %v1437
    %v1439 = vpop.f32.mrf.mxu0
    %1440 = vmatprep.mubr.bf16.mxu0 0
    %1441 = vmatmul.mubr.bf16.gmra.mxu0 %v875
    %v1442 = vpop.f32.mrf.mxu0
    %v1443 = vadd.f32 0.0, %v1442
    %v1444 = vpop.f32.mrf.mxu0
    %v1445 = vpop.f32.mrf.mxu0
    %v1446 = vadd.f32 0.0, %v1445
    %v1447 = vpop.f32.mrf.mxu0
    %1448 = vmatprep.mubr.bf16.mxu0 0
    %1449 = vmatmul.mubr.bf16.gmra.mxu0 %v878
    %v1450 = vpop.f32.mrf.mxu0
    %v1451 = vadd.f32 0.0, %v1450
    %v1452 = vpop.f32.mrf.mxu0
    %v1453 = vpop.f32.mrf.mxu0
    %v1454 = vadd.f32 0.0, %v1453
    %v1455 = vpop.f32.mrf.mxu0
    %1456 = vmatprep.mubr.bf16.mxu0 0
    %1457 = vmatmul.mubr.bf16.gmra.mxu0 %v881
    %v1458 = vpop.f32.mrf.mxu0
    %v1459 = vadd.f32 0.0, %v1458
    %v1460 = vpop.f32.mrf.mxu0
    %v1461 = vpop.f32.mrf.mxu0
    %v1462 = vadd.f32 0.0, %v1461
    %v1463 = vpop.f32.mrf.mxu0
    %1464 = vmatprep.mubr.bf16.mxu0 0
    %1465 = vmatmul.mubr.bf16.gmra.mxu0 %v884
    %v1466 = vpop.f32.mrf.mxu0
    %v1467 = vadd.f32 0.0, %v1466
    %v1468 = vpop.f32.mrf.mxu0
    %v1469 = vpop.f32.mrf.mxu0
    %v1470 = vadd.f32 0.0, %v1469
    %v1471 = vpop.f32.mrf.mxu0
    %1472 = vmatprep.mubr.bf16.mxu0 0
    %1473 = vmatmul.mubr.bf16.gmra.mxu0 %v887
    %v1474 = vpop.f32.mrf.mxu0
    %v1475 = vadd.f32 0.0, %v1474
    %v1476 = vpop.f32.mrf.mxu0
    %v1477 = vpop.f32.mrf.mxu0
    %v1478 = vadd.f32 0.0, %v1477
    %v1479 = vpop.f32.mrf.mxu0
    %1480 = vmatprep.mubr.bf16.mxu0 0
    %1481 = vmatmul.mubr.bf16.gmra.mxu0 %v890
    %v1482 = vpop.f32.mrf.mxu0
    %v1483 = vadd.f32 0.0, %v1482
    %v1484 = vpop.f32.mrf.mxu0
    %v1485 = vpop.f32.mrf.mxu0
    %v1486 = vadd.f32 0.0, %v1485
    %v1487 = vpop.f32.mrf.mxu0
    %1488 = vmatprep.mubr.bf16.mxu0 0
    %1489 = vmatmul.mubr.bf16.gmra.mxu0 %v893
    %v1490 = vpop.f32.mrf.mxu0
    %v1491 = vadd.f32 0.0, %v1490
    %v1492 = vpop.f32.mrf.mxu0
    %v1493 = vpop.f32.mrf.mxu0
    %v1494 = vadd.f32 0.0, %v1493
    %v1495 = vpop.f32.mrf.mxu0
    %1496 = vmatprep.mubr.bf16.mxu0 0
    %1497 = vmatmul.mubr.bf16.gmra.mxu0 %v896
    %v1498 = vpop.f32.mrf.mxu0
    %v1499 = vadd.f32 0.0, %v1498
    %v1500 = vpop.f32.mrf.mxu0
    %v1501 = vpop.f32.mrf.mxu0
    %v1502 = vadd.f32 0.0, %v1501
    %v1503 = vpop.f32.mrf.mxu0
    %1504 = vmatprep.mubr.bf16.mxu0 0
    %1505 = vmatmul.mubr.bf16.gmra.mxu0 %v899
    %v1506 = vpop.f32.mrf.mxu0
    %v1507 = vadd.f32 0.0, %v1506
    %v1508 = vpop.f32.mrf.mxu0
    %v1509 = vpop.f32.mrf.mxu0
    %v1510 = vadd.f32 0.0, %v1509
    %v1511 = vpop.f32.mrf.mxu0
    %1512 = vmatprep.mubr.bf16.mxu0 0
    %1513 = vmatmul.mubr.bf16.gmra.mxu0 %v902
    %v1514 = vpop.f32.mrf.mxu0
    %v1515 = vadd.f32 0.0, %v1514
    %v1516 = vpop.f32.mrf.mxu0
    %v1517 = vpop.f32.mrf.mxu0
    %v1518 = vadd.f32 0.0, %v1517
    %v1519 = vpop.f32.mrf.mxu0
    %1520 = vmatprep.mubr.bf16.mxu0 0
    %1521 = vmatmul.mubr.bf16.gmra.mxu0 %v905
    %v1522 = vpop.f32.mrf.mxu0
    %v1523 = vadd.f32 0.0, %v1522
    %v1524 = vpop.f32.mrf.mxu0
    %v1525 = vpop.f32.mrf.mxu0
    %v1526 = vadd.f32 0.0, %v1525
    %v1527 = vpop.f32.mrf.mxu0
    %1528 = vmatprep.mubr.bf16.mxu0 0
    %1529 = vmatmul.mubr.bf16.gmra.mxu0 %v908
    %v1530 = vpop.f32.mrf.mxu0
    %v1531 = vadd.f32 0.0, %v1530
    %v1532 = vpop.f32.mrf.mxu0
    %v1533 = vpop.f32.mrf.mxu0
    %v1534 = vadd.f32 0.0, %v1533
    %v1535 = vpop.f32.mrf.mxu0
    %1536 = vmatprep.mubr.bf16.mxu0 0
    %1537 = vmatmul.mubr.bf16.gmra.mxu0 %v911
    %v1538 = vpop.f32.mrf.mxu0
    %v1539 = vadd.f32 0.0, %v1538
    %v1540 = vpop.f32.mrf.mxu0
    %v1541 = vpop.f32.mrf.mxu0
    %v1542 = vadd.f32 0.0, %v1541
    %v1543 = vpop.f32.mrf.mxu0
    %1544 = vmatprep.mubr.bf16.mxu0 0
    %1545 = vmatmul.mubr.bf16.gmra.mxu0 %v914
    %v1546 = vpop.f32.mrf.mxu0
    %v1547 = vadd.f32 0.0, %v1546
    %v1548 = vpop.f32.mrf.mxu0
    %v1549 = vpop.f32.mrf.mxu0
    %v1550 = vadd.f32 0.0, %v1549
    %v1551 = vpop.f32.mrf.mxu0
    %1552 = vmatprep.mubr.bf16.mxu0 0
    %1553 = vmatmul.mubr.bf16.gmra.mxu0 %v917
    %v1554 = vpop.f32.mrf.mxu0
    %v1555 = vadd.f32 0.0, %v1554
    %v1556 = vpop.f32.mrf.mxu0
    %v1557 = vpop.f32.mrf.mxu0
    %v1558 = vadd.f32 0.0, %v1557
    %v1559 = vpop.f32.mrf.mxu0
    %1560 = vmatprep.mubr.bf16.mxu0 0
    %1561 = vmatmul.mubr.bf16.gmra.mxu0 %v920
    %v1562 = vpop.f32.mrf.mxu0
    %v1563 = vadd.f32 0.0, %v1562
    %v1564 = vpop.f32.mrf.mxu0
    %v1565 = vpop.f32.mrf.mxu0
    %v1566 = vadd.f32 0.0, %v1565
    %v1567 = vpop.f32.mrf.mxu0
    %1568 = vmatprep.mubr.bf16.mxu0 0
    %1569 = vmatmul.mubr.bf16.gmra.mxu0 %v923
    %v1570 = vpop.f32.mrf.mxu0
    %v1571 = vadd.f32 0.0, %v1570
    %v1572 = vpop.f32.mrf.mxu0
    %v1573 = vpop.f32.mrf.mxu0
    %v1574 = vadd.f32 0.0, %v1573
    %v1575 = vpop.f32.mrf.mxu0
    %1576 = vmatprep.mubr.bf16.mxu0 0
    %1577 = vmatmul.mubr.bf16.gmra.mxu0 %v926
    %v1578 = vpop.f32.mrf.mxu0
    %v1579 = vadd.f32 0.0, %v1578
    %v1580 = vpop.f32.mrf.mxu0
    %v1581 = vpop.f32.mrf.mxu0
    %v1582 = vadd.f32 0.0, %v1581
    %v1583 = vpop.f32.mrf.mxu0
    %1584 = vmatprep.mubr.bf16.mxu0 0
    %1585 = vmatmul.mubr.bf16.gmra.mxu0 %v929
    %v1586 = vpop.f32.mrf.mxu0
    %v1587 = vadd.f32 0.0, %v1586
    %v1588 = vpop.f32.mrf.mxu0
    %v1589 = vpop.f32.mrf.mxu0
    %v1590 = vadd.f32 0.0, %v1589
    %v1591 = vpop.f32.mrf.mxu0
    %1592 = vmatprep.mubr.bf16.mxu0 0
    %1593 = vmatmul.mubr.bf16.gmra.mxu0 %v932
    %v1594 = vpop.f32.mrf.mxu0
    %v1595 = vadd.f32 0.0, %v1594
    %v1596 = vpop.f32.mrf.mxu0
    %v1597 = vpop.f32.mrf.mxu0
    %v1598 = vadd.f32 0.0, %v1597
    %v1599 = vpop.f32.mrf.mxu0
    %1600 = vmatprep.mubr.bf16.mxu0 0
    %1601 = vmatmul.mubr.bf16.gmra.mxu0 %v935
    %v1602 = vpop.f32.mrf.mxu0
    %v1603 = vadd.f32 0.0, %v1602
    %v1604 = vpop.f32.mrf.mxu0
    %v1605 = vpop.f32.mrf.mxu0
    %v1606 = vadd.f32 0.0, %v1605
    %v1607 = vpop.f32.mrf.mxu0
    %1608 = vmatprep.mubr.bf16.mxu0 0
    %1609 = vmatmul.mubr.bf16.gmra.mxu0 %v938
    %v1610 = vpop.f32.mrf.mxu0
    %v1611 = vadd.f32 0.0, %v1610
    %v1612 = vpop.f32.mrf.mxu0
    %v1613 = vpop.f32.mrf.mxu0
    %v1614 = vadd.f32 0.0, %v1613
    %v1615 = vpop.f32.mrf.mxu0
    %1616 = vmatprep.mubr.bf16.mxu0 0
    %1617 = vmatmul.mubr.bf16.gmra.mxu0 %v941
    %v1618 = vpop.f32.mrf.mxu0
    %v1619 = vadd.f32 0.0, %v1618
    %v1620 = vpop.f32.mrf.mxu0
    %v1621 = vpop.f32.mrf.mxu0
    %v1622 = vadd.f32 0.0, %v1621
    %v1623 = vpop.f32.mrf.mxu0
    %1624 = vmatprep.mubr.bf16.mxu0 0
    %1625 = vmatmul.mubr.bf16.gmra.mxu0 %v944
    %v1626 = vpop.f32.mrf.mxu0
    %v1627 = vadd.f32 0.0, %v1626
    %v1628 = vpop.f32.mrf.mxu0
    %v1629 = vpop.f32.mrf.mxu0
    %v1630 = vadd.f32 0.0, %v1629
    %v1631 = vpop.f32.mrf.mxu0
    %1632 = vmatprep.mubr.bf16.mxu0 0
    %1633 = vmatmul.mubr.bf16.gmra.mxu0 %v947
    %v1634 = vpop.f32.mrf.mxu0
    %v1635 = vadd.f32 0.0, %v1634
    %v1636 = vpop.f32.mrf.mxu0
    %v1637 = vpop.f32.mrf.mxu0
    %v1638 = vadd.f32 0.0, %v1637
    %v1639 = vpop.f32.mrf.mxu0
    %1640 = vmatprep.mubr.bf16.mxu0 0
    %1641 = vmatmul.mubr.bf16.gmra.mxu0 %v950
    %v1642 = vpop.f32.mrf.mxu0
    %v1643 = vadd.f32 0.0, %v1642
    %v1644 = vpop.f32.mrf.mxu0
    %v1645 = vpop.f32.mrf.mxu0
    %v1646 = vadd.f32 0.0, %v1645
    %v1647 = vpop.f32.mrf.mxu0
    %1648 = vmatprep.mubr.bf16.mxu0 0
    %1649 = vmatmul.mubr.bf16.gmra.mxu0 %v953
    %v1650 = vpop.f32.mrf.mxu0
    %v1651 = vadd.f32 0.0, %v1650
    %v1652 = vpop.f32.mrf.mxu0
    %v1653 = vpop.f32.mrf.mxu0
    %v1654 = vadd.f32 0.0, %v1653
    %v1655 = vpop.f32.mrf.mxu0
    %1656 = vmatprep.mubr.bf16.mxu0 0
    %1657 = vmatmul.mubr.bf16.gmra.mxu0 %v956
    %v1658 = vpop.f32.mrf.mxu0
    %v1659 = vadd.f32 0.0, %v1658
    %v1660 = vpop.f32.mrf.mxu0
    %v1661 = vpop.f32.mrf.mxu0
    %v1662 = vadd.f32 0.0, %v1661
    %v1663 = vpop.f32.mrf.mxu0
    %1664 = vmatprep.mubr.bf16.mxu0 0
    %1665 = vmatmul.mubr.bf16.gmra.mxu0 %v959
    %v1666 = vpop.f32.mrf.mxu0
    %v1667 = vadd.f32 0.0, %v1666
    %v1668 = vpop.f32.mrf.mxu0
    %v1669 = vpop.f32.mrf.mxu0
    %v1670 = vadd.f32 0.0, %v1669
    %v1671 = vpop.f32.mrf.mxu0
    %1672 = vmatprep.mubr.bf16.mxu0 0
    %1673 = vmatmul.mubr.bf16.gmra.mxu0 %v962
    %v1674 = vpop.f32.mrf.mxu0
    %v1675 = vadd.f32 0.0, %v1674
    %v1676 = vpop.f32.mrf.mxu0
    %v1677 = vpop.f32.mrf.mxu0
    %v1678 = vadd.f32 0.0, %v1677
    %v1679 = vpop.f32.mrf.mxu0
    %1680 = vmatprep.mubr.bf16.mxu0 0
    %1681 = vmatmul.mubr.bf16.gmra.mxu0 %v965
    %v1682 = vpop.f32.mrf.mxu0
    %v1683 = vadd.f32 0.0, %v1682
    %v1684 = vpop.f32.mrf.mxu0
    %v1685 = vpop.f32.mrf.mxu0
    %v1686 = vadd.f32 0.0, %v1685
    %v1687 = vpop.f32.mrf.mxu0
    %1688 = vmatprep.mubr.bf16.mxu0 0
    %1689 = vmatmul.mubr.bf16.gmra.mxu0 %v968
    %v1690 = vpop.f32.mrf.mxu0
    %v1691 = vadd.f32 0.0, %v1690
    %v1692 = vpop.f32.mrf.mxu0
    %v1693 = vpop.f32.mrf.mxu0
    %v1694 = vadd.f32 0.0, %v1693
    %v1695 = vpop.f32.mrf.mxu0
    %1696 = vmatprep.mubr.bf16.mxu0 0
    %1697 = vmatmul.mubr.bf16.gmra.mxu0 %v971
    %v1698 = vpop.f32.mrf.mxu0
    %v1699 = vadd.f32 0.0, %v1698
    %v1700 = vpop.f32.mrf.mxu0
    %v1701 = vpop.f32.mrf.mxu0
    %v1702 = vadd.f32 0.0, %v1701
    %v1703 = vpop.f32.mrf.mxu0
    %1704 = vmatprep.mubr.bf16.mxu0 0
    %1705 = vmatmul.mubr.bf16.gmra.mxu0 %v974
    %v1706 = vpop.f32.mrf.mxu0
    %v1707 = vadd.f32 0.0, %v1706
    %v1708 = vpop.f32.mrf.mxu0
    %v1709 = vpop.f32.mrf.mxu0
    %v1710 = vadd.f32 0.0, %v1709
    %v1711 = vpop.f32.mrf.mxu0
    %1712 = vmatprep.mubr.bf16.mxu0 0
    %1713 = vmatmul.mubr.bf16.gmra.mxu0 %v977
    %v1714 = vpop.f32.mrf.mxu0
    %v1715 = vadd.f32 0.0, %v1714
    %v1716 = vpop.f32.mrf.mxu0
    %v1717 = vpop.f32.mrf.mxu0
    %v1718 = vadd.f32 0.0, %v1717
    %v1719 = vpop.f32.mrf.mxu0
    %1720 = vmatprep.mubr.bf16.mxu0 0
    %1721 = vmatmul.mubr.bf16.gmra.mxu0 %v980
    %v1722 = vpop.f32.mrf.mxu0
    %v1723 = vadd.f32 0.0, %v1722
    %v1724 = vpop.f32.mrf.mxu0
    %v1725 = vpop.f32.mrf.mxu0
    %v1726 = vadd.f32 0.0, %v1725
    %v1727 = vpop.f32.mrf.mxu0
    %1728 = vmatprep.mubr.bf16.mxu0 0
    %1729 = vmatmul.mubr.bf16.gmra.mxu0 %v983
    %v1730 = vpop.f32.mrf.mxu0
    %v1731 = vadd.f32 0.0, %v1730
    %v1732 = vpop.f32.mrf.mxu0
    %v1733 = vpop.f32.mrf.mxu0
    %v1734 = vadd.f32 0.0, %v1733
    %v1735 = vpop.f32.mrf.mxu0
    %1736 = vmatprep.mubr.bf16.mxu0 0
    %1737 = vmatmul.mubr.bf16.gmra.mxu0 %v986
    %v1738 = vpop.f32.mrf.mxu0
    %v1739 = vadd.f32 0.0, %v1738
    %v1740 = vpop.f32.mrf.mxu0
    %v1741 = vpop.f32.mrf.mxu0
    %v1742 = vadd.f32 0.0, %v1741
    %v1743 = vpop.f32.mrf.mxu0
    %1744 = vmatprep.mubr.bf16.mxu0 0
    %1745 = vmatmul.mubr.bf16.gmra.mxu0 %v989
    %v1746 = vpop.f32.mrf.mxu0
    %v1747 = vadd.f32 0.0, %v1746
    %v1748 = vpop.f32.mrf.mxu0
    %v1749 = vpop.f32.mrf.mxu0
    %v1750 = vadd.f32 0.0, %v1749
    %v1751 = vpop.f32.mrf.mxu0
    %1752 = vmatprep.mubr.bf16.mxu0 0
    %1753 = vmatmul.mubr.bf16.gmra.mxu0 %v992
    %v1754 = vpop.f32.mrf.mxu0
    %v1755 = vadd.f32 0.0, %v1754
    %v1756 = vpop.f32.mrf.mxu0
    %v1757 = vpop.f32.mrf.mxu0
    %v1758 = vadd.f32 0.0, %v1757
    %v1759 = vpop.f32.mrf.mxu0
    %1760 = vmatprep.mubr.bf16.mxu0 0
    %1761 = vmatmul.mubr.bf16.gmra.mxu0 %v995
    %v1762 = vpop.f32.mrf.mxu0
    %v1763 = vadd.f32 0.0, %v1762
    %v1764 = vpop.f32.mrf.mxu0
    %v1765 = vpop.f32.mrf.mxu0
    %v1766 = vadd.f32 0.0, %v1765
    %v1767 = vpop.f32.mrf.mxu0
    %1768 = vmatprep.mubr.bf16.mxu0 0
    %1769 = vmatmul.mubr.bf16.gmra.mxu0 %v998
    %v1770 = vpop.f32.mrf.mxu0
    %v1771 = vadd.f32 0.0, %v1770
    %v1772 = vpop.f32.mrf.mxu0
    %v1773 = vpop.f32.mrf.mxu0
    %v1774 = vadd.f32 0.0, %v1773
    %v1775 = vpop.f32.mrf.mxu0
    %1776 = vmatprep.mubr.bf16.mxu0 0
    %1777 = vmatmul.mubr.bf16.gmra.mxu0 %v1001
    %v1778 = vpop.f32.mrf.mxu0
    %v1779 = vadd.f32 0.0, %v1778
    %v1780 = vpop.f32.mrf.mxu0
    %v1781 = vpop.f32.mrf.mxu0
    %v1782 = vadd.f32 0.0, %v1781
    %v1783 = vpop.f32.mrf.mxu0
    %1784 = vmatprep.mubr.bf16.mxu0 0
    %1785 = vmatmul.mubr.bf16.gmra.mxu0 %v1004
    %v1786 = vpop.f32.mrf.mxu0
    %v1787 = vadd.f32 0.0, %v1786
    %v1788 = vpop.f32.mrf.mxu0
    %v1789 = vpop.f32.mrf.mxu0
    %v1790 = vadd.f32 0.0, %v1789
    %v1791 = vpop.f32.mrf.mxu0
    %1792 = vmatprep.mubr.bf16.mxu0 0
    %1793 = vmatmul.mubr.bf16.gmra.mxu0 %v1007
    %v1794 = vpop.f32.mrf.mxu0
    %v1795 = vadd.f32 0.0, %v1794
    %v1796 = vpop.f32.mrf.mxu0
    %v1797 = vpop.f32.mrf.mxu0
    %v1798 = vadd.f32 0.0, %v1797
    %v1799 = vpop.f32.mrf.mxu0
    %1800 = vmatprep.mubr.bf16.mxu0 0
    %1801 = vmatmul.mubr.bf16.gmra.mxu0 %v1010
    %v1802 = vpop.f32.mrf.mxu0
    %v1803 = vadd.f32 0.0, %v1802
    %v1804 = vpop.f32.mrf.mxu0
    %v1805 = vpop.f32.mrf.mxu0
    %v1806 = vadd.f32 0.0, %v1805
    %v1807 = vpop.f32.mrf.mxu0
    %1808 = vmatprep.mubr.bf16.mxu0 0
    %1809 = vmatmul.mubr.bf16.gmra.mxu0 %v1013
    %v1810 = vpop.f32.mrf.mxu0
    %v1811 = vadd.f32 0.0, %v1810
    %v1812 = vpop.f32.mrf.mxu0
    %v1813 = vpop.f32.mrf.mxu0
    %v1814 = vadd.f32 0.0, %v1813
    %v1815 = vpop.f32.mrf.mxu0
    %1816 = vmatprep.mubr.bf16.mxu0 0
    %1817 = vmatmul.mubr.bf16.gmra.mxu0 %v1016
    %v1818 = vpop.f32.mrf.mxu0
    %v1819 = vadd.f32 0.0, %v1818
    %v1820 = vpop.f32.mrf.mxu0
    %v1821 = vpop.f32.mrf.mxu0
    %v1822 = vadd.f32 0.0, %v1821
    %v1823 = vpop.f32.mrf.mxu0
    %1824 = vmatprep.mubr.bf16.mxu0 0
    %1825 = vmatmul.mubr.bf16.gmra.mxu0 %v1019
    %v1826 = vpop.f32.mrf.mxu0
    %v1827 = vadd.f32 0.0, %v1826
    %v1828 = vpop.f32.mrf.mxu0
    %v1829 = vpop.f32.mrf.mxu0
    %v1830 = vadd.f32 0.0, %v1829
    %v1831 = vpop.f32.mrf.mxu0
    %1832 = vmatprep.mubr.bf16.mxu0 0
    %1833 = vmatmul.mubr.bf16.gmra.mxu0 %v1022
    %v1834 = vpop.f32.mrf.mxu0
    %v1835 = vadd.f32 0.0, %v1834
    %v1836 = vpop.f32.mrf.mxu0
    %v1837 = vpop.f32.mrf.mxu0
    %v1838 = vadd.f32 0.0, %v1837
    %v1839 = vpop.f32.mrf.mxu0
    %1840 = vdwg.mxu0
    %vm1841 = vcmask 130048
    %v1842 = vsel %vm1841, %v1059, 0.0
    %v1843 = vsel %vm1841, %v1062, 0.0
    %v1844 = vadd.f32 %v1842, %v1843
    %v1845 = vsel %vm1841, %v1067, 0.0
    %v1846 = vadd.f32 %v1844, %v1845
    %v1847 = vsel %vm1841, %v1070, 0.0
    %v1848 = vadd.f32 %v1846, %v1847
    %v1849 = vsel %vm1841, %v1075, 0.0
    %v1850 = vadd.f32 %v1848, %v1849
    %v1851 = vsel %vm1841, %v1078, 0.0
    %v1852 = vadd.f32 %v1850, %v1851
    %v1853 = vsel %vm1841, %v1083, 0.0
    %v1854 = vadd.f32 %v1852, %v1853
    %v1855 = vsel %vm1841, %v1086, 0.0
    %v1856 = vadd.f32 %v1854, %v1855
    %v1857 = vsel %vm1841, %v1091, 0.0
    %v1858 = vadd.f32 %v1856, %v1857
    %v1859 = vsel %vm1841, %v1094, 0.0
    %v1860 = vadd.f32 %v1858, %v1859
    %v1861 = vsel %vm1841, %v1099, 0.0
    %v1862 = vadd.f32 %v1860, %v1861
    %v1863 = vsel %vm1841, %v1102, 0.0
    %v1864 = vadd.f32 %v1862, %v1863
    %v1865 = vsel %vm1841, %v1107, 0.0
    %v1866 = vadd.f32 %v1864, %v1865
    %v1867 = vsel %vm1841, %v1110, 0.0
    %v1868 = vadd.f32 %v1866, %v1867
    %v1869 = vsel %vm1841, %v1115, 0.0
    %v1870 = vadd.f32 %v1868, %v1869
    %v1871 = vsel %vm1841, %v1118, 0.0
    %v1872 = vadd.f32 %v1870, %v1871
    %v1873 = vsel %vm1841, %v1123, 0.0
    %v1874 = vadd.f32 %v1872, %v1873
    %v1875 = vsel %vm1841, %v1126, 0.0
    %v1876 = vadd.f32 %v1874, %v1875
    %v1877 = vsel %vm1841, %v1131, 0.0
    %v1878 = vadd.f32 %v1876, %v1877
    %v1879 = vsel %vm1841, %v1134, 0.0
    %v1880 = vadd.f32 %v1878, %v1879
    %v1881 = vsel %vm1841, %v1139, 0.0
    %v1882 = vadd.f32 %v1880, %v1881
    %v1883 = vsel %vm1841, %v1142, 0.0
    %v1884 = vadd.f32 %v1882, %v1883
    %v1885 = vsel %vm1841, %v1147, 0.0
    %v1886 = vadd.f32 %v1884, %v1885
    %v1887 = vsel %vm1841, %v1150, 0.0
    %v1888 = vadd.f32 %v1886, %v1887
    %v1889 = vsel %vm1841, %v1155, 0.0
    %v1890 = vadd.f32 %v1888, %v1889
    %v1891 = vsel %vm1841, %v1158, 0.0
    %v1892 = vadd.f32 %v1890, %v1891
    %v1893 = vsel %vm1841, %v1163, 0.0
    %v1894 = vadd.f32 %v1892, %v1893
    %v1895 = vsel %vm1841, %v1166, 0.0
    %v1896 = vadd.f32 %v1894, %v1895
    %v1897 = vsel %vm1841, %v1171, 0.0
    %v1898 = vadd.f32 %v1896, %v1897
    %v1899 = vsel %vm1841, %v1174, 0.0
    %v1900 = vadd.f32 %v1898, %v1899
    %v1901 = vsel %vm1841, %v1179, 0.0
    %v1902 = vadd.f32 %v1900, %v1901
    %v1903 = vsel %vm1841, %v1182, 0.0
    %v1904 = vadd.f32 %v1902, %v1903
    %v1905 = vsel %vm1841, %v1187, 0.0
    %v1906 = vadd.f32 %v1904, %v1905
    %v1907 = vsel %vm1841, %v1190, 0.0
    %v1908 = vadd.f32 %v1906, %v1907
    %v1909 = vsel %vm1841, %v1195, 0.0
    %v1910 = vadd.f32 %v1908, %v1909
    %v1911 = vsel %vm1841, %v1198, 0.0
    %v1912 = vadd.f32 %v1910, %v1911
    %v1913 = vsel %vm1841, %v1203, 0.0
    %v1914 = vadd.f32 %v1912, %v1913
    %v1915 = vsel %vm1841, %v1206, 0.0
    %v1916 = vadd.f32 %v1914, %v1915
    %v1917 = vsel %vm1841, %v1211, 0.0
    %v1918 = vadd.f32 %v1916, %v1917
    %v1919 = vsel %vm1841, %v1214, 0.0
    %v1920 = vadd.f32 %v1918, %v1919
    %v1921 = vsel %vm1841, %v1219, 0.0
    %v1922 = vadd.f32 %v1920, %v1921
    %v1923 = vsel %vm1841, %v1222, 0.0
    %v1924 = vadd.f32 %v1922, %v1923
    %v1925 = vsel %vm1841, %v1227, 0.0
    %v1926 = vadd.f32 %v1924, %v1925
    %v1927 = vsel %vm1841, %v1230, 0.0
    %v1928 = vadd.f32 %v1926, %v1927
    %v1929 = vsel %vm1841, %v1235, 0.0
    %v1930 = vadd.f32 %v1928, %v1929
    %v1931 = vsel %vm1841, %v1238, 0.0
    %v1932 = vadd.f32 %v1930, %v1931
    %v1933 = vsel %vm1841, %v1243, 0.0
    %v1934 = vadd.f32 %v1932, %v1933
    %v1935 = vsel %vm1841, %v1246, 0.0
    %v1936 = vadd.f32 %v1934, %v1935
    %v1937 = vsel %vm1841, %v1251, 0.0
    %v1938 = vadd.f32 %v1936, %v1937
    %v1939 = vsel %vm1841, %v1254, 0.0
    %v1940 = vadd.f32 %v1938, %v1939
    %v1941 = vsel %vm1841, %v1259, 0.0
    %v1942 = vadd.f32 %v1940, %v1941
    %v1943 = vsel %vm1841, %v1262, 0.0
    %v1944 = vadd.f32 %v1942, %v1943
    %v1945 = vsel %vm1841, %v1267, 0.0
    %v1946 = vadd.f32 %v1944, %v1945
    %v1947 = vsel %vm1841, %v1270, 0.0
    %v1948 = vadd.f32 %v1946, %v1947
    %v1949 = vsel %vm1841, %v1275, 0.0
    %v1950 = vadd.f32 %v1948, %v1949
    %v1951 = vsel %vm1841, %v1278, 0.0
    %v1952 = vadd.f32 %v1950, %v1951
    %v1953 = vsel %vm1841, %v1283, 0.0
    %v1954 = vadd.f32 %v1952, %v1953
    %v1955 = vsel %vm1841, %v1286, 0.0
    %v1956 = vadd.f32 %v1954, %v1955
    %v1957 = vsel %vm1841, %v1291, 0.0
    %v1958 = vadd.f32 %v1956, %v1957
    %v1959 = vsel %vm1841, %v1294, 0.0
    %v1960 = vadd.f32 %v1958, %v1959
    %v1961 = vsel %vm1841, %v1299, 0.0
    %v1962 = vadd.f32 %v1960, %v1961
    %v1963 = vsel %vm1841, %v1302, 0.0
    %v1964 = vadd.f32 %v1962, %v1963
    %v1965 = vsel %vm1841, %v1307, 0.0
    %v1966 = vadd.f32 %v1964, %v1965
    %v1967 = vsel %vm1841, %v1310, 0.0
    %v1968 = vadd.f32 %v1966, %v1967
    %v1969 = vsel %vm1841, %v1315, 0.0
    %v1970 = vadd.f32 %v1968, %v1969
    %v1971 = vsel %vm1841, %v1318, 0.0
    %v1972 = vadd.f32 %v1970, %v1971
    %v1973 = vsel %vm1841, %v1323, 0.0
    %v1974 = vadd.f32 %v1972, %v1973
    %v1975 = vsel %vm1841, %v1326, 0.0
    %v1976 = vadd.f32 %v1974, %v1975
    %v1977 = vsel %vm1841, %v1331, 0.0
    %v1978 = vadd.f32 %v1976, %v1977
    %v1979 = vsel %vm1841, %v1334, 0.0
    %v1980 = vadd.f32 %v1978, %v1979
    %v1981 = vsel %vm1841, %v1339, 0.0
    %v1982 = vadd.f32 %v1980, %v1981
    %v1983 = vsel %vm1841, %v1342, 0.0
    %v1984 = vadd.f32 %v1982, %v1983
    %v1985 = vsel %vm1841, %v1347, 0.0
    %v1986 = vadd.f32 %v1984, %v1985
    %v1987 = vsel %vm1841, %v1350, 0.0
    %v1988 = vadd.f32 %v1986, %v1987
    %v1989 = vsel %vm1841, %v1355, 0.0
    %v1990 = vadd.f32 %v1988, %v1989
    %v1991 = vsel %vm1841, %v1358, 0.0
    %v1992 = vadd.f32 %v1990, %v1991
    %v1993 = vsel %vm1841, %v1363, 0.0
    %v1994 = vadd.f32 %v1992, %v1993
    %v1995 = vsel %vm1841, %v1366, 0.0
    %v1996 = vadd.f32 %v1994, %v1995
    %v1997 = vsel %vm1841, %v1371, 0.0
    %v1998 = vadd.f32 %v1996, %v1997
    %v1999 = vsel %vm1841, %v1374, 0.0
    %v2000 = vadd.f32 %v1998, %v1999
    %v2001 = vsel %vm1841, %v1379, 0.0
    %v2002 = vadd.f32 %v2000, %v2001
    %v2003 = vsel %vm1841, %v1382, 0.0
    %v2004 = vadd.f32 %v2002, %v2003
    %v2005 = vsel %vm1841, %v1387, 0.0
    %v2006 = vadd.f32 %v2004, %v2005
    %v2007 = vsel %vm1841, %v1390, 0.0
    %v2008 = vadd.f32 %v2006, %v2007
    %v2009 = vsel %vm1841, %v1395, 0.0
    %v2010 = vadd.f32 %v2008, %v2009
    %v2011 = vsel %vm1841, %v1398, 0.0
    %v2012 = vadd.f32 %v2010, %v2011
    %v2013 = vsel %vm1841, %v1403, 0.0
    %v2014 = vadd.f32 %v2012, %v2013
    %v2015 = vsel %vm1841, %v1406, 0.0
    %v2016 = vadd.f32 %v2014, %v2015
    %v2017 = vsel %vm1841, %v1411, 0.0
    %v2018 = vadd.f32 %v2016, %v2017
    %v2019 = vsel %vm1841, %v1414, 0.0
    %v2020 = vadd.f32 %v2018, %v2019
    %v2021 = vsel %vm1841, %v1419, 0.0
    %v2022 = vadd.f32 %v2020, %v2021
    %v2023 = vsel %vm1841, %v1422, 0.0
    %v2024 = vadd.f32 %v2022, %v2023
    %v2025 = vsel %vm1841, %v1427, 0.0
    %v2026 = vadd.f32 %v2024, %v2025
    %v2027 = vsel %vm1841, %v1430, 0.0
    %v2028 = vadd.f32 %v2026, %v2027
    %v2029 = vsel %vm1841, %v1435, 0.0
    %v2030 = vadd.f32 %v2028, %v2029
    %v2031 = vsel %vm1841, %v1438, 0.0
    %v2032 = vadd.f32 %v2030, %v2031
    %v2033 = vsel %vm1841, %v1443, 0.0
    %v2034 = vadd.f32 %v2032, %v2033
    %v2035 = vsel %vm1841, %v1446, 0.0
    %v2036 = vadd.f32 %v2034, %v2035
    %v2037 = vsel %vm1841, %v1451, 0.0
    %v2038 = vadd.f32 %v2036, %v2037
    %v2039 = vsel %vm1841, %v1454, 0.0
    %v2040 = vadd.f32 %v2038, %v2039
    %v2041 = vsel %vm1841, %v1459, 0.0
    %v2042 = vadd.f32 %v2040, %v2041
    %v2043 = vsel %vm1841, %v1462, 0.0
    %v2044 = vadd.f32 %v2042, %v2043
    %v2045 = vsel %vm1841, %v1467, 0.0
    %v2046 = vadd.f32 %v2044, %v2045
    %v2047 = vsel %vm1841, %v1470, 0.0
    %v2048 = vadd.f32 %v2046, %v2047
    %v2049 = vsel %vm1841, %v1475, 0.0
    %v2050 = vadd.f32 %v2048, %v2049
    %v2051 = vsel %vm1841, %v1478, 0.0
    %v2052 = vadd.f32 %v2050, %v2051
    %v2053 = vsel %vm1841, %v1483, 0.0
    %v2054 = vadd.f32 %v2052, %v2053
    %v2055 = vsel %vm1841, %v1486, 0.0
    %v2056 = vadd.f32 %v2054, %v2055
    %v2057 = vsel %vm1841, %v1491, 0.0
    %v2058 = vadd.f32 %v2056, %v2057
    %v2059 = vsel %vm1841, %v1494, 0.0
    %v2060 = vadd.f32 %v2058, %v2059
    %v2061 = vsel %vm1841, %v1499, 0.0
    %v2062 = vadd.f32 %v2060, %v2061
    %v2063 = vsel %vm1841, %v1502, 0.0
    %v2064 = vadd.f32 %v2062, %v2063
    %v2065 = vsel %vm1841, %v1507, 0.0
    %v2066 = vadd.f32 %v2064, %v2065
    %v2067 = vsel %vm1841, %v1510, 0.0
    %v2068 = vadd.f32 %v2066, %v2067
    %v2069 = vsel %vm1841, %v1515, 0.0
    %v2070 = vadd.f32 %v2068, %v2069
    %v2071 = vsel %vm1841, %v1518, 0.0
    %v2072 = vadd.f32 %v2070, %v2071
    %v2073 = vsel %vm1841, %v1523, 0.0
    %v2074 = vadd.f32 %v2072, %v2073
    %v2075 = vsel %vm1841, %v1526, 0.0
    %v2076 = vadd.f32 %v2074, %v2075
    %v2077 = vsel %vm1841, %v1531, 0.0
    %v2078 = vadd.f32 %v2076, %v2077
    %v2079 = vsel %vm1841, %v1534, 0.0
    %v2080 = vadd.f32 %v2078, %v2079
    %v2081 = vsel %vm1841, %v1539, 0.0
    %v2082 = vadd.f32 %v2080, %v2081
    %v2083 = vsel %vm1841, %v1542, 0.0
    %v2084 = vadd.f32 %v2082, %v2083
    %v2085 = vsel %vm1841, %v1547, 0.0
    %v2086 = vadd.f32 %v2084, %v2085
    %v2087 = vsel %vm1841, %v1550, 0.0
    %v2088 = vadd.f32 %v2086, %v2087
    %v2089 = vsel %vm1841, %v1555, 0.0
    %v2090 = vadd.f32 %v2088, %v2089
    %v2091 = vsel %vm1841, %v1558, 0.0
    %v2092 = vadd.f32 %v2090, %v2091
    %v2093 = vsel %vm1841, %v1563, 0.0
    %v2094 = vadd.f32 %v2092, %v2093
    %v2095 = vsel %vm1841, %v1566, 0.0
    %v2096 = vadd.f32 %v2094, %v2095
    %v2097 = vsel %vm1841, %v1571, 0.0
    %v2098 = vadd.f32 %v2096, %v2097
    %v2099 = vsel %vm1841, %v1574, 0.0
    %v2100 = vadd.f32 %v2098, %v2099
    %v2101 = vsel %vm1841, %v1579, 0.0
    %v2102 = vadd.f32 %v2100, %v2101
    %v2103 = vsel %vm1841, %v1582, 0.0
    %v2104 = vadd.f32 %v2102, %v2103
    %v2105 = vsel %vm1841, %v1587, 0.0
    %v2106 = vadd.f32 %v2104, %v2105
    %v2107 = vsel %vm1841, %v1590, 0.0
    %v2108 = vadd.f32 %v2106, %v2107
    %v2109 = vsel %vm1841, %v1595, 0.0
    %v2110 = vadd.f32 %v2108, %v2109
    %v2111 = vsel %vm1841, %v1598, 0.0
    %v2112 = vadd.f32 %v2110, %v2111
    %v2113 = vsel %vm1841, %v1603, 0.0
    %v2114 = vadd.f32 %v2112, %v2113
    %v2115 = vsel %vm1841, %v1606, 0.0
    %v2116 = vadd.f32 %v2114, %v2115
    %v2117 = vsel %vm1841, %v1611, 0.0
    %v2118 = vadd.f32 %v2116, %v2117
    %v2119 = vsel %vm1841, %v1614, 0.0
    %v2120 = vadd.f32 %v2118, %v2119
    %v2121 = vsel %vm1841, %v1619, 0.0
    %v2122 = vadd.f32 %v2120, %v2121
    %v2123 = vsel %vm1841, %v1622, 0.0
    %v2124 = vadd.f32 %v2122, %v2123
    %v2125 = vsel %vm1841, %v1627, 0.0
    %v2126 = vadd.f32 %v2124, %v2125
    %v2127 = vsel %vm1841, %v1630, 0.0
    %v2128 = vadd.f32 %v2126, %v2127
    %v2129 = vsel %vm1841, %v1635, 0.0
    %v2130 = vadd.f32 %v2128, %v2129
    %v2131 = vsel %vm1841, %v1638, 0.0
    %v2132 = vadd.f32 %v2130, %v2131
    %v2133 = vsel %vm1841, %v1643, 0.0
    %v2134 = vadd.f32 %v2132, %v2133
    %v2135 = vsel %vm1841, %v1646, 0.0
    %v2136 = vadd.f32 %v2134, %v2135
    %v2137 = vsel %vm1841, %v1651, 0.0
    %v2138 = vadd.f32 %v2136, %v2137
    %v2139 = vsel %vm1841, %v1654, 0.0
    %v2140 = vadd.f32 %v2138, %v2139
    %v2141 = vsel %vm1841, %v1659, 0.0
    %v2142 = vadd.f32 %v2140, %v2141
    %v2143 = vsel %vm1841, %v1662, 0.0
    %v2144 = vadd.f32 %v2142, %v2143
    %v2145 = vsel %vm1841, %v1667, 0.0
    %v2146 = vadd.f32 %v2144, %v2145
    %v2147 = vsel %vm1841, %v1670, 0.0
    %v2148 = vadd.f32 %v2146, %v2147
    %v2149 = vsel %vm1841, %v1675, 0.0
    %v2150 = vadd.f32 %v2148, %v2149
    %v2151 = vsel %vm1841, %v1678, 0.0
    %v2152 = vadd.f32 %v2150, %v2151
    %v2153 = vsel %vm1841, %v1683, 0.0
    %v2154 = vadd.f32 %v2152, %v2153
    %v2155 = vsel %vm1841, %v1686, 0.0
    %v2156 = vadd.f32 %v2154, %v2155
    %v2157 = vsel %vm1841, %v1691, 0.0
    %v2158 = vadd.f32 %v2156, %v2157
    %v2159 = vsel %vm1841, %v1694, 0.0
    %v2160 = vadd.f32 %v2158, %v2159
    %v2161 = vsel %vm1841, %v1699, 0.0
    %v2162 = vadd.f32 %v2160, %v2161
    %v2163 = vsel %vm1841, %v1702, 0.0
    %v2164 = vadd.f32 %v2162, %v2163
    %v2165 = vsel %vm1841, %v1707, 0.0
    %v2166 = vadd.f32 %v2164, %v2165
    %v2167 = vsel %vm1841, %v1710, 0.0
    %v2168 = vadd.f32 %v2166, %v2167
    %v2169 = vsel %vm1841, %v1715, 0.0
    %v2170 = vadd.f32 %v2168, %v2169
    %v2171 = vsel %vm1841, %v1718, 0.0
    %v2172 = vadd.f32 %v2170, %v2171
    %v2173 = vsel %vm1841, %v1723, 0.0
    %v2174 = vadd.f32 %v2172, %v2173
    %v2175 = vsel %vm1841, %v1726, 0.0
    %v2176 = vadd.f32 %v2174, %v2175
    %v2177 = vsel %vm1841, %v1731, 0.0
    %v2178 = vadd.f32 %v2176, %v2177
    %v2179 = vsel %vm1841, %v1734, 0.0
    %v2180 = vadd.f32 %v2178, %v2179
    %v2181 = vsel %vm1841, %v1739, 0.0
    %v2182 = vadd.f32 %v2180, %v2181
    %v2183 = vsel %vm1841, %v1742, 0.0
    %v2184 = vadd.f32 %v2182, %v2183
    %v2185 = vsel %vm1841, %v1747, 0.0
    %v2186 = vadd.f32 %v2184, %v2185
    %v2187 = vsel %vm1841, %v1750, 0.0
    %v2188 = vadd.f32 %v2186, %v2187
    %v2189 = vsel %vm1841, %v1755, 0.0
    %v2190 = vadd.f32 %v2188, %v2189
    %v2191 = vsel %vm1841, %v1758, 0.0
    %v2192 = vadd.f32 %v2190, %v2191
    %v2193 = vsel %vm1841, %v1763, 0.0
    %v2194 = vadd.f32 %v2192, %v2193
    %v2195 = vsel %vm1841, %v1766, 0.0
    %v2196 = vadd.f32 %v2194, %v2195
    %v2197 = vsel %vm1841, %v1771, 0.0
    %v2198 = vadd.f32 %v2196, %v2197
    %v2199 = vsel %vm1841, %v1774, 0.0
    %v2200 = vadd.f32 %v2198, %v2199
    %v2201 = vsel %vm1841, %v1779, 0.0
    %v2202 = vadd.f32 %v2200, %v2201
    %v2203 = vsel %vm1841, %v1782, 0.0
    %v2204 = vadd.f32 %v2202, %v2203
    %v2205 = vsel %vm1841, %v1787, 0.0
    %v2206 = vadd.f32 %v2204, %v2205
    %v2207 = vsel %vm1841, %v1790, 0.0
    %v2208 = vadd.f32 %v2206, %v2207
    %v2209 = vsel %vm1841, %v1795, 0.0
    %v2210 = vadd.f32 %v2208, %v2209
    %v2211 = vsel %vm1841, %v1798, 0.0
    %v2212 = vadd.f32 %v2210, %v2211
    %v2213 = vsel %vm1841, %v1803, 0.0
    %v2214 = vadd.f32 %v2212, %v2213
    %v2215 = vsel %vm1841, %v1806, 0.0
    %v2216 = vadd.f32 %v2214, %v2215
    %v2217 = vsel %vm1841, %v1811, 0.0
    %v2218 = vadd.f32 %v2216, %v2217
    %v2219 = vsel %vm1841, %v1814, 0.0
    %v2220 = vadd.f32 %v2218, %v2219
    %v2221 = vsel %vm1841, %v1819, 0.0
    %v2222 = vadd.f32 %v2220, %v2221
    %v2223 = vsel %vm1841, %v1822, 0.0
    %v2224 = vadd.f32 %v2222, %v2223
    %v2225 = vsel %vm1841, %v1827, 0.0
    %v2226 = vadd.f32 %v2224, %v2225
    %v2227 = vsel %vm1841, %v1830, 0.0
    %v2228 = vadd.f32 %v2226, %v2227
    %v2229 = vsel %vm1841, %v1835, 0.0
    %v2230 = vadd.f32 %v2228, %v2229
    %v2231 = vsel %vm1841, %v1838, 0.0
    %v2232 = vadd.f32 %v2230, %v2231
    %v2233 = vrot.slane %v2232, 4
    %v2234 = vadd.f32 %v2232, %v2233
    %v2235 = vrot.slane %v2234, 2
    %v2236 = vadd.f32 %v2234, %v2235
    %v2237 = vrot.slane %v2236, 1
    %v2238 = vadd.f32 %v2236, %v2237
    %v2239 = vrcp.pop 1568.0
    %v2240 = vmul.f32 %v2238, %v2239
    %v2241 = vsub.f32 %v1059, %v2240
    %v2242 = vsub.f32 %v1062, %v2240
    %v2243 = vsub.f32 %v1067, %v2240
    %v2244 = vsub.f32 %v1070, %v2240
    %v2245 = vsub.f32 %v1075, %v2240
    %v2246 = vsub.f32 %v1078, %v2240
    %v2247 = vsub.f32 %v1083, %v2240
    %v2248 = vsub.f32 %v1086, %v2240
    %v2249 = vsub.f32 %v1091, %v2240
    %v2250 = vsub.f32 %v1094, %v2240
    %v2251 = vsub.f32 %v1099, %v2240
    %v2252 = vsub.f32 %v1102, %v2240
    %v2253 = vsub.f32 %v1107, %v2240
    %v2254 = vsub.f32 %v1110, %v2240
    %v2255 = vsub.f32 %v1115, %v2240
    %v2256 = vsub.f32 %v1118, %v2240
    %v2257 = vsub.f32 %v1123, %v2240
    %v2258 = vsub.f32 %v1126, %v2240
    %v2259 = vsub.f32 %v1131, %v2240
    %v2260 = vsub.f32 %v1134, %v2240
    %v2261 = vsub.f32 %v1139, %v2240
    %v2262 = vsub.f32 %v1142, %v2240
    %v2263 = vsub.f32 %v1147, %v2240
    %v2264 = vsub.f32 %v1150, %v2240
    %v2265 = vsub.f32 %v1155, %v2240
    %v2266 = vsub.f32 %v1158, %v2240
    %v2267 = vsub.f32 %v1163, %v2240
    %v2268 = vsub.f32 %v1166, %v2240
    %v2269 = vsub.f32 %v1171, %v2240
    %v2270 = vsub.f32 %v1174, %v2240
    %v2271 = vsub.f32 %v1179, %v2240
    %v2272 = vsub.f32 %v1182, %v2240
    %v2273 = vsub.f32 %v1187, %v2240
    %v2274 = vsub.f32 %v1190, %v2240
    %v2275 = vsub.f32 %v1195, %v2240
    %v2276 = vsub.f32 %v1198, %v2240
    %v2277 = vsub.f32 %v1203, %v2240
    %v2278 = vsub.f32 %v1206, %v2240
    %v2279 = vsub.f32 %v1211, %v2240
    %v2280 = vsub.f32 %v1214, %v2240
    %v2281 = vsub.f32 %v1219, %v2240
    %v2282 = vsub.f32 %v1222, %v2240
    %v2283 = vsub.f32 %v1227, %v2240
    %v2284 = vsub.f32 %v1230, %v2240
    %v2285 = vsub.f32 %v1235, %v2240
    %v2286 = vsub.f32 %v1238, %v2240
    %v2287 = vsub.f32 %v1243, %v2240
    %v2288 = vsub.f32 %v1246, %v2240
    %v2289 = vsub.f32 %v1251, %v2240
    %v2290 = vsub.f32 %v1254, %v2240
    %v2291 = vsub.f32 %v1259, %v2240
    %v2292 = vsub.f32 %v1262, %v2240
    %v2293 = vsub.f32 %v1267, %v2240
    %v2294 = vsub.f32 %v1270, %v2240
    %v2295 = vsub.f32 %v1275, %v2240
    %v2296 = vsub.f32 %v1278, %v2240
    %v2297 = vsub.f32 %v1283, %v2240
    %v2298 = vsub.f32 %v1286, %v2240
    %v2299 = vsub.f32 %v1291, %v2240
    %v2300 = vsub.f32 %v1294, %v2240
    %v2301 = vsub.f32 %v1299, %v2240
    %v2302 = vsub.f32 %v1302, %v2240
    %v2303 = vsub.f32 %v1307, %v2240
    %v2304 = vsub.f32 %v1310, %v2240
    %v2305 = vsub.f32 %v1315, %v2240
    %v2306 = vsub.f32 %v1318, %v2240
    %v2307 = vsub.f32 %v1323, %v2240
    %v2308 = vsub.f32 %v1326, %v2240
    %v2309 = vsub.f32 %v1331, %v2240
    %v2310 = vsub.f32 %v1334, %v2240
    %v2311 = vsub.f32 %v1339, %v2240
    %v2312 = vsub.f32 %v1342, %v2240
    %v2313 = vsub.f32 %v1347, %v2240
    %v2314 = vsub.f32 %v1350, %v2240
    %v2315 = vsub.f32 %v1355, %v2240
    %v2316 = vsub.f32 %v1358, %v2240
    %v2317 = vsub.f32 %v1363, %v2240
    %v2318 = vsub.f32 %v1366, %v2240
    %v2319 = vsub.f32 %v1371, %v2240
    %v2320 = vsub.f32 %v1374, %v2240
    %v2321 = vsub.f32 %v1379, %v2240
    %v2322 = vsub.f32 %v1382, %v2240
    %v2323 = vsub.f32 %v1387, %v2240
    %v2324 = vsub.f32 %v1390, %v2240
    %v2325 = vsub.f32 %v1395, %v2240
    %v2326 = vsub.f32 %v1398, %v2240
    %v2327 = vsub.f32 %v1403, %v2240
    %v2328 = vsub.f32 %v1406, %v2240
    %v2329 = vsub.f32 %v1411, %v2240
    %v2330 = vsub.f32 %v1414, %v2240
    %v2331 = vsub.f32 %v1419, %v2240
    %v2332 = vsub.f32 %v1422, %v2240
    %v2333 = vsub.f32 %v1427, %v2240
    %v2334 = vsub.f32 %v1430, %v2240
    %v2335 = vsub.f32 %v1435, %v2240
    %v2336 = vsub.f32 %v1438, %v2240
    %v2337 = vsub.f32 %v1443, %v2240
    %v2338 = vsub.f32 %v1446, %v2240
    %v2339 = vsub.f32 %v1451, %v2240
    %v2340 = vsub.f32 %v1454, %v2240
    %v2341 = vsub.f32 %v1459, %v2240
    %v2342 = vsub.f32 %v1462, %v2240
    %v2343 = vsub.f32 %v1467, %v2240
    %v2344 = vsub.f32 %v1470, %v2240
    %v2345 = vsub.f32 %v1475, %v2240
    %v2346 = vsub.f32 %v1478, %v2240
    %v2347 = vsub.f32 %v1483, %v2240
    %v2348 = vsub.f32 %v1486, %v2240
    %v2349 = vsub.f32 %v1491, %v2240
    %v2350 = vsub.f32 %v1494, %v2240
    %v2351 = vsub.f32 %v1499, %v2240
    %v2352 = vsub.f32 %v1502, %v2240
    %v2353 = vsub.f32 %v1507, %v2240
    %v2354 = vsub.f32 %v1510, %v2240
    %v2355 = vsub.f32 %v1515, %v2240
    %v2356 = vsub.f32 %v1518, %v2240
    %v2357 = vsub.f32 %v1523, %v2240
    %v2358 = vsub.f32 %v1526, %v2240
    %v2359 = vsub.f32 %v1531, %v2240
    %v2360 = vsub.f32 %v1534, %v2240
    %v2361 = vsub.f32 %v1539, %v2240
    %v2362 = vsub.f32 %v1542, %v2240
    %v2363 = vsub.f32 %v1547, %v2240
    %v2364 = vsub.f32 %v1550, %v2240
    %v2365 = vsub.f32 %v1555, %v2240
    %v2366 = vsub.f32 %v1558, %v2240
    %v2367 = vsub.f32 %v1563, %v2240
    %v2368 = vsub.f32 %v1566, %v2240
    %v2369 = vsub.f32 %v1571, %v2240
    %v2370 = vsub.f32 %v1574, %v2240
    %v2371 = vsub.f32 %v1579, %v2240
    %v2372 = vsub.f32 %v1582, %v2240
    %v2373 = vsub.f32 %v1587, %v2240
    %v2374 = vsub.f32 %v1590, %v2240
    %v2375 = vsub.f32 %v1595, %v2240
    %v2376 = vsub.f32 %v1598, %v2240
    %v2377 = vsub.f32 %v1603, %v2240
    %v2378 = vsub.f32 %v1606, %v2240
    %v2379 = vsub.f32 %v1611, %v2240
    %v2380 = vsub.f32 %v1614, %v2240
    %v2381 = vsub.f32 %v1619, %v2240
    %v2382 = vsub.f32 %v1622, %v2240
    %v2383 = vsub.f32 %v1627, %v2240
    %v2384 = vsub.f32 %v1630, %v2240
    %v2385 = vsub.f32 %v1635, %v2240
    %v2386 = vsub.f32 %v1638, %v2240
    %v2387 = vsub.f32 %v1643, %v2240
    %v2388 = vsub.f32 %v1646, %v2240
    %v2389 = vsub.f32 %v1651, %v2240
    %v2390 = vsub.f32 %v1654, %v2240
    %v2391 = vsub.f32 %v1659, %v2240
    %v2392 = vsub.f32 %v1662, %v2240
    %v2393 = vsub.f32 %v1667, %v2240
    %v2394 = vsub.f32 %v1670, %v2240
    %v2395 = vsub.f32 %v1675, %v2240
    %v2396 = vsub.f32 %v1678, %v2240
    %v2397 = vsub.f32 %v1683, %v2240
    %v2398 = vsub.f32 %v1686, %v2240
    %v2399 = vsub.f32 %v1691, %v2240
    %v2400 = vsub.f32 %v1694, %v2240
    %v2401 = vsub.f32 %v1699, %v2240
    %v2402 = vsub.f32 %v1702, %v2240
    %v2403 = vsub.f32 %v1707, %v2240
    %v2404 = vsub.f32 %v1710, %v2240
    %v2405 = vsub.f32 %v1715, %v2240
    %v2406 = vsub.f32 %v1718, %v2240
    %v2407 = vsub.f32 %v1723, %v2240
    %v2408 = vsub.f32 %v1726, %v2240
    %v2409 = vsub.f32 %v1731, %v2240
    %v2410 = vsub.f32 %v1734, %v2240
    %v2411 = vsub.f32 %v1739, %v2240
    %v2412 = vsub.f32 %v1742, %v2240
    %v2413 = vsub.f32 %v1747, %v2240
    %v2414 = vsub.f32 %v1750, %v2240
    %v2415 = vsub.f32 %v1755, %v2240
    %v2416 = vsub.f32 %v1758, %v2240
    %v2417 = vsub.f32 %v1763, %v2240
    %v2418 = vsub.f32 %v1766, %v2240
    %v2419 = vsub.f32 %v1771, %v2240
    %v2420 = vsub.f32 %v1774, %v2240
    %v2421 = vsub.f32 %v1779, %v2240
    %v2422 = vsub.f32 %v1782, %v2240
    %v2423 = vsub.f32 %v1787, %v2240
    %v2424 = vsub.f32 %v1790, %v2240
    %v2425 = vsub.f32 %v1795, %v2240
    %v2426 = vsub.f32 %v1798, %v2240
    %v2427 = vsub.f32 %v1803, %v2240
    %v2428 = vsub.f32 %v1806, %v2240
    %v2429 = vsub.f32 %v1811, %v2240
    %v2430 = vsub.f32 %v1814, %v2240
    %v2431 = vsub.f32 %v1819, %v2240
    %v2432 = vsub.f32 %v1822, %v2240
    %v2433 = vsub.f32 %v1827, %v2240
    %v2434 = vsub.f32 %v1830, %v2240
    %v2435 = vsub.f32 %v1835, %v2240
    %v2436 = vsub.f32 %v1838, %v2240
    %v2437 = vld [vmem:[#allocation2] sm:$0x1]
    %v2439 = vlaneseq
    %v2440 = vshrl.u32 %v2439, 7
    %v2441 = vsub.s32 0, %v2440
    %v2442 = vrot.slane %v2437, %v2441
    %v2444 = vadd.f32 %v2241, %v2442
    %v2445 = vadd.f32 %v2242, %v2442
    %v2446 = vadd.f32 %v2243, %v2442
    %v2447 = vadd.f32 %v2244, %v2442
    %v2448 = vadd.f32 %v2245, %v2442
    %v2449 = vadd.f32 %v2246, %v2442
    %v2450 = vadd.f32 %v2247, %v2442
    %v2451 = vadd.f32 %v2248, %v2442
    %v2452 = vadd.f32 %v2249, %v2442
    %v2453 = vadd.f32 %v2250, %v2442
    %v2454 = vadd.f32 %v2251, %v2442
    %v2455 = vadd.f32 %v2252, %v2442
    %v2456 = vadd.f32 %v2253, %v2442
    %v2457 = vadd.f32 %v2254, %v2442
    %v2458 = vadd.f32 %v2255, %v2442
    %v2459 = vadd.f32 %v2256, %v2442
    %v2460 = vadd.f32 %v2257, %v2442
    %v2461 = vadd.f32 %v2258, %v2442
    %v2462 = vadd.f32 %v2259, %v2442
    %v2463 = vadd.f32 %v2260, %v2442
    %v2464 = vadd.f32 %v2261, %v2442
    %v2465 = vadd.f32 %v2262, %v2442
    %v2466 = vadd.f32 %v2263, %v2442
    %v2467 = vadd.f32 %v2264, %v2442
    %v2468 = vadd.f32 %v2265, %v2442
    %v2469 = vadd.f32 %v2266, %v2442
    %v2470 = vadd.f32 %v2267, %v2442
    %v2471 = vadd.f32 %v2268, %v2442
    %v2472 = vadd.f32 %v2269, %v2442
    %v2473 = vadd.f32 %v2270, %v2442
    %v2474 = vadd.f32 %v2271, %v2442
    %v2475 = vadd.f32 %v2272, %v2442
    %v2476 = vadd.f32 %v2273, %v2442
    %v2477 = vadd.f32 %v2274, %v2442
    %v2478 = vadd.f32 %v2275, %v2442
    %v2479 = vadd.f32 %v2276, %v2442
    %v2480 = vadd.f32 %v2277, %v2442
    %v2481 = vadd.f32 %v2278, %v2442
    %v2482 = vadd.f32 %v2279, %v2442
    %v2483 = vadd.f32 %v2280, %v2442
    %v2484 = vadd.f32 %v2281, %v2442
    %v2485 = vadd.f32 %v2282, %v2442
    %v2486 = vadd.f32 %v2283, %v2442
    %v2487 = vadd.f32 %v2284, %v2442
    %v2488 = vadd.f32 %v2285, %v2442
    %v2489 = vadd.f32 %v2286, %v2442
    %v2490 = vadd.f32 %v2287, %v2442
    %v2491 = vadd.f32 %v2288, %v2442
    %v2492 = vadd.f32 %v2289, %v2442
    %v2493 = vadd.f32 %v2290, %v2442
    %v2494 = vadd.f32 %v2291, %v2442
    %v2495 = vadd.f32 %v2292, %v2442
    %v2496 = vadd.f32 %v2293, %v2442
    %v2497 = vadd.f32 %v2294, %v2442
    %v2498 = vadd.f32 %v2295, %v2442
    %v2499 = vadd.f32 %v2296, %v2442
    %v2500 = vadd.f32 %v2297, %v2442
    %v2501 = vadd.f32 %v2298, %v2442
    %v2502 = vadd.f32 %v2299, %v2442
    %v2503 = vadd.f32 %v2300, %v2442
    %v2504 = vadd.f32 %v2301, %v2442
    %v2505 = vadd.f32 %v2302, %v2442
    %v2506 = vadd.f32 %v2303, %v2442
    %v2507 = vadd.f32 %v2304, %v2442
    %v2508 = vadd.f32 %v2305, %v2442
    %v2509 = vadd.f32 %v2306, %v2442
    %v2510 = vadd.f32 %v2307, %v2442
    %v2511 = vadd.f32 %v2308, %v2442
    %v2512 = vadd.f32 %v2309, %v2442
    %v2513 = vadd.f32 %v2310, %v2442
    %v2514 = vadd.f32 %v2311, %v2442
    %v2515 = vadd.f32 %v2312, %v2442
    %v2516 = vadd.f32 %v2313, %v2442
    %v2517 = vadd.f32 %v2314, %v2442
    %v2518 = vadd.f32 %v2315, %v2442
    %v2519 = vadd.f32 %v2316, %v2442
    %v2520 = vadd.f32 %v2317, %v2442
    %v2521 = vadd.f32 %v2318, %v2442
    %v2522 = vadd.f32 %v2319, %v2442
    %v2523 = vadd.f32 %v2320, %v2442
    %v2524 = vadd.f32 %v2321, %v2442
    %v2525 = vadd.f32 %v2322, %v2442
    %v2526 = vadd.f32 %v2323, %v2442
    %v2527 = vadd.f32 %v2324, %v2442
    %v2528 = vadd.f32 %v2325, %v2442
    %v2529 = vadd.f32 %v2326, %v2442
    %v2530 = vadd.f32 %v2327, %v2442
    %v2531 = vadd.f32 %v2328, %v2442
    %v2532 = vadd.f32 %v2329, %v2442
    %v2533 = vadd.f32 %v2330, %v2442
    %v2534 = vadd.f32 %v2331, %v2442
    %v2535 = vadd.f32 %v2332, %v2442
    %v2536 = vadd.f32 %v2333, %v2442
    %v2537 = vadd.f32 %v2334, %v2442
    %v2538 = vadd.f32 %v2335, %v2442
    %v2539 = vadd.f32 %v2336, %v2442
    %v2540 = vadd.f32 %v2337, %v2442
    %v2541 = vadd.f32 %v2338, %v2442
    %v2542 = vadd.f32 %v2339, %v2442
    %v2543 = vadd.f32 %v2340, %v2442
    %v2544 = vadd.f32 %v2341, %v2442
    %v2545 = vadd.f32 %v2342, %v2442
    %v2546 = vadd.f32 %v2343, %v2442
    %v2547 = vadd.f32 %v2344, %v2442
    %v2548 = vadd.f32 %v2345, %v2442
    %v2549 = vadd.f32 %v2346, %v2442
    %v2550 = vadd.f32 %v2347, %v2442
    %v2551 = vadd.f32 %v2348, %v2442
    %v2552 = vadd.f32 %v2349, %v2442
    %v2553 = vadd.f32 %v2350, %v2442
    %v2554 = vadd.f32 %v2351, %v2442
    %v2555 = vadd.f32 %v2352, %v2442
    %v2556 = vadd.f32 %v2353, %v2442
    %v2557 = vadd.f32 %v2354, %v2442
    %v2558 = vadd.f32 %v2355, %v2442
    %v2559 = vadd.f32 %v2356, %v2442
    %v2560 = vadd.f32 %v2357, %v2442
    %v2561 = vadd.f32 %v2358, %v2442
    %v2562 = vadd.f32 %v2359, %v2442
    %v2563 = vadd.f32 %v2360, %v2442
    %v2564 = vadd.f32 %v2361, %v2442
    %v2565 = vadd.f32 %v2362, %v2442
    %v2566 = vadd.f32 %v2363, %v2442
    %v2567 = vadd.f32 %v2364, %v2442
    %v2568 = vadd.f32 %v2365, %v2442
    %v2569 = vadd.f32 %v2366, %v2442
    %v2570 = vadd.f32 %v2367, %v2442
    %v2571 = vadd.f32 %v2368, %v2442
    %v2572 = vadd.f32 %v2369, %v2442
    %v2573 = vadd.f32 %v2370, %v2442
    %v2574 = vadd.f32 %v2371, %v2442
    %v2575 = vadd.f32 %v2372, %v2442
    %v2576 = vadd.f32 %v2373, %v2442
    %v2577 = vadd.f32 %v2374, %v2442
    %v2578 = vadd.f32 %v2375, %v2442
    %v2579 = vadd.f32 %v2376, %v2442
    %v2580 = vadd.f32 %v2377, %v2442
    %v2581 = vadd.f32 %v2378, %v2442
    %v2582 = vadd.f32 %v2379, %v2442
    %v2583 = vadd.f32 %v2380, %v2442
    %v2584 = vadd.f32 %v2381, %v2442
    %v2585 = vadd.f32 %v2382, %v2442
    %v2586 = vadd.f32 %v2383, %v2442
    %v2587 = vadd.f32 %v2384, %v2442
    %v2588 = vadd.f32 %v2385, %v2442
    %v2589 = vadd.f32 %v2386, %v2442
    %v2590 = vadd.f32 %v2387, %v2442
    %v2591 = vadd.f32 %v2388, %v2442
    %v2592 = vadd.f32 %v2389, %v2442
    %v2593 = vadd.f32 %v2390, %v2442
    %v2594 = vadd.f32 %v2391, %v2442
    %v2595 = vadd.f32 %v2392, %v2442
    %v2596 = vadd.f32 %v2393, %v2442
    %v2597 = vadd.f32 %v2394, %v2442
    %v2598 = vadd.f32 %v2395, %v2442
    %v2599 = vadd.f32 %v2396, %v2442
    %v2600 = vadd.f32 %v2397, %v2442
    %v2601 = vadd.f32 %v2398, %v2442
    %v2602 = vadd.f32 %v2399, %v2442
    %v2603 = vadd.f32 %v2400, %v2442
    %v2604 = vadd.f32 %v2401, %v2442
    %v2605 = vadd.f32 %v2402, %v2442
    %v2606 = vadd.f32 %v2403, %v2442
    %v2607 = vadd.f32 %v2404, %v2442
    %v2608 = vadd.f32 %v2405, %v2442
    %v2609 = vadd.f32 %v2406, %v2442
    %v2610 = vadd.f32 %v2407, %v2442
    %v2611 = vadd.f32 %v2408, %v2442
    %v2612 = vadd.f32 %v2409, %v2442
    %v2613 = vadd.f32 %v2410, %v2442
    %v2614 = vadd.f32 %v2411, %v2442
    %v2615 = vadd.f32 %v2412, %v2442
    %v2616 = vadd.f32 %v2413, %v2442
    %v2617 = vadd.f32 %v2414, %v2442
    %v2618 = vadd.f32 %v2415, %v2442
    %v2619 = vadd.f32 %v2416, %v2442
    %v2620 = vadd.f32 %v2417, %v2442
    %v2621 = vadd.f32 %v2418, %v2442
    %v2622 = vadd.f32 %v2419, %v2442
    %v2623 = vadd.f32 %v2420, %v2442
    %v2624 = vadd.f32 %v2421, %v2442
    %v2625 = vadd.f32 %v2422, %v2442
    %v2626 = vadd.f32 %v2423, %v2442
    %v2627 = vadd.f32 %v2424, %v2442
    %v2628 = vadd.f32 %v2425, %v2442
    %v2629 = vadd.f32 %v2426, %v2442
    %v2630 = vadd.f32 %v2427, %v2442
    %v2631 = vadd.f32 %v2428, %v2442
    %v2632 = vadd.f32 %v2429, %v2442
    %v2633 = vadd.f32 %v2430, %v2442
    %v2634 = vadd.f32 %v2431, %v2442
    %v2635 = vadd.f32 %v2432, %v2442
    %v2636 = vadd.f32 %v2433, %v2442
    %v2637 = vadd.f32 %v2434, %v2442
    %v2638 = vadd.f32 %v2435, %v2442
    %v2639 = vadd.f32 %v2436, %v2442
    %v2640 = vmax.f32 %v2444, 0.0
    %v2641 = vmax.f32 %v2445, 0.0
    %v2642 = vmax.f32 %v2446, 0.0
    %v2643 = vmax.f32 %v2447, 0.0
    %v2644 = vmax.f32 %v2448, 0.0
    %v2645 = vmax.f32 %v2449, 0.0
    %v2646 = vmax.f32 %v2450, 0.0
    %v2647 = vmax.f32 %v2451, 0.0
    %v2648 = vmax.f32 %v2452, 0.0
    %v2649 = vmax.f32 %v2453, 0.0
    %v2650 = vmax.f32 %v2454, 0.0
    %v2651 = vmax.f32 %v2455, 0.0
    %v2652 = vmax.f32 %v2456, 0.0
    %v2653 = vmax.f32 %v2457, 0.0
    %v2654 = vmax.f32 %v2458, 0.0
    %v2655 = vmax.f32 %v2459, 0.0
    %v2656 = vmax.f32 %v2460, 0.0
    %v2657 = vmax.f32 %v2461, 0.0
    %v2658 = vmax.f32 %v2462, 0.0
    %v2659 = vmax.f32 %v2463, 0.0
    %v2660 = vmax.f32 %v2464, 0.0
    %v2661 = vmax.f32 %v2465, 0.0
    %v2662 = vmax.f32 %v2466, 0.0
    %v2663 = vmax.f32 %v2467, 0.0
    %v2664 = vmax.f32 %v2468, 0.0
    %v2665 = vmax.f32 %v2469, 0.0
    %v2666 = vmax.f32 %v2470, 0.0
    %v2667 = vmax.f32 %v2471, 0.0
    %v2668 = vmax.f32 %v2472, 0.0
    %v2669 = vmax.f32 %v2473, 0.0
    %v2670 = vmax.f32 %v2474, 0.0
    %v2671 = vmax.f32 %v2475, 0.0
    %v2672 = vmax.f32 %v2476, 0.0
    %v2673 = vmax.f32 %v2477, 0.0
    %v2674 = vmax.f32 %v2478, 0.0
    %v2675 = vmax.f32 %v2479, 0.0
    %v2676 = vmax.f32 %v2480, 0.0
    %v2677 = vmax.f32 %v2481, 0.0
    %v2678 = vmax.f32 %v2482, 0.0
    %v2679 = vmax.f32 %v2483, 0.0
    %v2680 = vmax.f32 %v2484, 0.0
    %v2681 = vmax.f32 %v2485, 0.0
    %v2682 = vmax.f32 %v2486, 0.0
    %v2683 = vmax.f32 %v2487, 0.0
    %v2684 = vmax.f32 %v2488, 0.0
    %v2685 = vmax.f32 %v2489, 0.0
    %v2686 = vmax.f32 %v2490, 0.0
    %v2687 = vmax.f32 %v2491, 0.0
    %v2688 = vmax.f32 %v2492, 0.0
    %v2689 = vmax.f32 %v2493, 0.0
    %v2690 = vmax.f32 %v2494, 0.0
    %v2691 = vmax.f32 %v2495, 0.0
    %v2692 = vmax.f32 %v2496, 0.0
    %v2693 = vmax.f32 %v2497, 0.0
    %v2694 = vmax.f32 %v2498, 0.0
    %v2695 = vmax.f32 %v2499, 0.0
    %v2696 = vmax.f32 %v2500, 0.0
    %v2697 = vmax.f32 %v2501, 0.0
    %v2698 = vmax.f32 %v2502, 0.0
    %v2699 = vmax.f32 %v2503, 0.0
    %v2700 = vmax.f32 %v2504, 0.0
    %v2701 = vmax.f32 %v2505, 0.0
    %v2702 = vmax.f32 %v2506, 0.0
    %v2703 = vmax.f32 %v2507, 0.0
    %v2704 = vmax.f32 %v2508, 0.0
    %v2705 = vmax.f32 %v2509, 0.0
    %v2706 = vmax.f32 %v2510, 0.0
    %v2707 = vmax.f32 %v2511, 0.0
    %v2708 = vmax.f32 %v2512, 0.0
    %v2709 = vmax.f32 %v2513, 0.0
    %v2710 = vmax.f32 %v2514, 0.0
    %v2711 = vmax.f32 %v2515, 0.0
    %v2712 = vmax.f32 %v2516, 0.0
    %v2713 = vmax.f32 %v2517, 0.0
    %v2714 = vmax.f32 %v2518, 0.0
    %v2715 = vmax.f32 %v2519, 0.0
    %v2716 = vmax.f32 %v2520, 0.0
    %v2717 = vmax.f32 %v2521, 0.0
    %v2718 = vmax.f32 %v2522, 0.0
    %v2719 = vmax.f32 %v2523, 0.0
    %v2720 = vmax.f32 %v2524, 0.0
    %v2721 = vmax.f32 %v2525, 0.0
    %v2722 = vmax.f32 %v2526, 0.0
    %v2723 = vmax.f32 %v2527, 0.0
    %v2724 = vmax.f32 %v2528, 0.0
    %v2725 = vmax.f32 %v2529, 0.0
    %v2726 = vmax.f32 %v2530, 0.0
    %v2727 = vmax.f32 %v2531, 0.0
    %v2728 = vmax.f32 %v2532, 0.0
    %v2729 = vmax.f32 %v2533, 0.0
    %v2730 = vmax.f32 %v2534, 0.0
    %v2731 = vmax.f32 %v2535, 0.0
    %v2732 = vmax.f32 %v2536, 0.0
    %v2733 = vmax.f32 %v2537, 0.0
    %v2734 = vmax.f32 %v2538, 0.0
    %v2735 = vmax.f32 %v2539, 0.0
    %v2736 = vmax.f32 %v2540, 0.0
    %v2737 = vmax.f32 %v2541, 0.0
    %v2738 = vmax.f32 %v2542, 0.0
    %v2739 = vmax.f32 %v2543, 0.0
    %v2740 = vmax.f32 %v2544, 0.0
    %v2741 = vmax.f32 %v2545, 0.0
    %v2742 = vmax.f32 %v2546, 0.0
    %v2743 = vmax.f32 %v2547, 0.0
    %v2744 = vmax.f32 %v2548, 0.0
    %v2745 = vmax.f32 %v2549, 0.0
    %v2746 = vmax.f32 %v2550, 0.0
    %v2747 = vmax.f32 %v2551, 0.0
    %v2748 = vmax.f32 %v2552, 0.0
    %v2749 = vmax.f32 %v2553, 0.0
    %v2750 = vmax.f32 %v2554, 0.0
    %v2751 = vmax.f32 %v2555, 0.0
    %v2752 = vmax.f32 %v2556, 0.0
    %v2753 = vmax.f32 %v2557, 0.0
    %v2754 = vmax.f32 %v2558, 0.0
    %v2755 = vmax.f32 %v2559, 0.0
    %v2756 = vmax.f32 %v2560, 0.0
    %v2757 = vmax.f32 %v2561, 0.0
    %v2758 = vmax.f32 %v2562, 0.0
    %v2759 = vmax.f32 %v2563, 0.0
    %v2760 = vmax.f32 %v2564, 0.0
    %v2761 = vmax.f32 %v2565, 0.0
    %v2762 = vmax.f32 %v2566, 0.0
    %v2763 = vmax.f32 %v2567, 0.0
    %v2764 = vmax.f32 %v2568, 0.0
    %v2765 = vmax.f32 %v2569, 0.0
    %v2766 = vmax.f32 %v2570, 0.0
    %v2767 = vmax.f32 %v2571, 0.0
    %v2768 = vmax.f32 %v2572, 0.0
    %v2769 = vmax.f32 %v2573, 0.0
    %v2770 = vmax.f32 %v2574, 0.0
    %v2771 = vmax.f32 %v2575, 0.0
    %v2772 = vmax.f32 %v2576, 0.0
    %v2773 = vmax.f32 %v2577, 0.0
    %v2774 = vmax.f32 %v2578, 0.0
    %v2775 = vmax.f32 %v2579, 0.0
    %v2776 = vmax.f32 %v2580, 0.0
    %v2777 = vmax.f32 %v2581, 0.0
    %v2778 = vmax.f32 %v2582, 0.0
    %v2779 = vmax.f32 %v2583, 0.0
    %v2780 = vmax.f32 %v2584, 0.0
    %v2781 = vmax.f32 %v2585, 0.0
    %v2782 = vmax.f32 %v2586, 0.0
    %v2783 = vmax.f32 %v2587, 0.0
    %v2784 = vmax.f32 %v2588, 0.0
    %v2785 = vmax.f32 %v2589, 0.0
    %v2786 = vmax.f32 %v2590, 0.0
    %v2787 = vmax.f32 %v2591, 0.0
    %v2788 = vmax.f32 %v2592, 0.0
    %v2789 = vmax.f32 %v2593, 0.0
    %v2790 = vmax.f32 %v2594, 0.0
    %v2791 = vmax.f32 %v2595, 0.0
    %v2792 = vmax.f32 %v2596, 0.0
    %v2793 = vmax.f32 %v2597, 0.0
    %v2794 = vmax.f32 %v2598, 0.0
    %v2795 = vmax.f32 %v2599, 0.0
    %v2796 = vmax.f32 %v2600, 0.0
    %v2797 = vmax.f32 %v2601, 0.0
    %v2798 = vmax.f32 %v2602, 0.0
    %v2799 = vmax.f32 %v2603, 0.0
    %v2800 = vmax.f32 %v2604, 0.0
    %v2801 = vmax.f32 %v2605, 0.0
    %v2802 = vmax.f32 %v2606, 0.0
    %v2803 = vmax.f32 %v2607, 0.0
    %v2804 = vmax.f32 %v2608, 0.0
    %v2805 = vmax.f32 %v2609, 0.0
    %v2806 = vmax.f32 %v2610, 0.0
    %v2807 = vmax.f32 %v2611, 0.0
    %v2808 = vmax.f32 %v2612, 0.0
    %v2809 = vmax.f32 %v2613, 0.0
    %v2810 = vmax.f32 %v2614, 0.0
    %v2811 = vmax.f32 %v2615, 0.0
    %v2812 = vmax.f32 %v2616, 0.0
    %v2813 = vmax.f32 %v2617, 0.0
    %v2814 = vmax.f32 %v2618, 0.0
    %v2815 = vmax.f32 %v2619, 0.0
    %v2816 = vmax.f32 %v2620, 0.0
    %v2817 = vmax.f32 %v2621, 0.0
    %v2818 = vmax.f32 %v2622, 0.0
    %v2819 = vmax.f32 %v2623, 0.0
    %v2820 = vmax.f32 %v2624, 0.0
    %v2821 = vmax.f32 %v2625, 0.0
    %v2822 = vmax.f32 %v2626, 0.0
    %v2823 = vmax.f32 %v2627, 0.0
    %v2824 = vmax.f32 %v2628, 0.0
    %v2825 = vmax.f32 %v2629, 0.0
    %v2826 = vmax.f32 %v2630, 0.0
    %v2827 = vmax.f32 %v2631, 0.0
    %v2828 = vmax.f32 %v2632, 0.0
    %v2829 = vmax.f32 %v2633, 0.0
    %v2830 = vmax.f32 %v2634, 0.0
    %v2831 = vmax.f32 %v2635, 0.0
    %v2832 = vmax.f32 %v2636, 0.0
    %v2833 = vmax.f32 %v2637, 0.0
    %v2834 = vmax.f32 %v2638, 0.0
    %v2835 = vmax.f32 %v2639, 0.0
    %v2836 = vpack.c.bf16 %v2641, %v2640
    %v2837 = vpack.c.bf16 %v2643, %v2642
    %v2838 = vpack.c.bf16 %v2645, %v2644
    %v2839 = vpack.c.bf16 %v2647, %v2646
    %v2840 = vpack.c.bf16 %v2649, %v2648
    %v2841 = vpack.c.bf16 %v2651, %v2650
    %v2842 = vpack.c.bf16 %v2653, %v2652
    %v2843 = vpack.c.bf16 %v2655, %v2654
    %v2844 = vpack.c.bf16 %v2657, %v2656
    %v2845 = vpack.c.bf16 %v2659, %v2658
    %v2846 = vpack.c.bf16 %v2661, %v2660
    %v2847 = vpack.c.bf16 %v2663, %v2662
    %v2848 = vpack.c.bf16 %v2665, %v2664
    %v2849 = vpack.c.bf16 %v2667, %v2666
    %v2850 = vpack.c.bf16 %v2669, %v2668
    %v2851 = vpack.c.bf16 %v2671, %v2670
    %v2852 = vpack.c.bf16 %v2673, %v2672
    %v2853 = vpack.c.bf16 %v2675, %v2674
    %v2854 = vpack.c.bf16 %v2677, %v2676
    %v2855 = vpack.c.bf16 %v2679, %v2678
    %v2856 = vpack.c.bf16 %v2681, %v2680
    %v2857 = vpack.c.bf16 %v2683, %v2682
    %v2858 = vpack.c.bf16 %v2685, %v2684
    %v2859 = vpack.c.bf16 %v2687, %v2686
    %v2860 = vpack.c.bf16 %v2689, %v2688
    %v2861 = vpack.c.bf16 %v2691, %v2690
    %v2862 = vpack.c.bf16 %v2693, %v2692
    %v2863 = vpack.c.bf16 %v2695, %v2694
    %v2864 = vpack.c.bf16 %v2697, %v2696
    %v2865 = vpack.c.bf16 %v2699, %v2698
    %v2866 = vpack.c.bf16 %v2701, %v2700
    %v2867 = vpack.c.bf16 %v2703, %v2702
    %v2868 = vpack.c.bf16 %v2705, %v2704
    %v2869 = vpack.c.bf16 %v2707, %v2706
    %v2870 = vpack.c.bf16 %v2709, %v2708
    %v2871 = vpack.c.bf16 %v2711, %v2710
    %v2872 = vpack.c.bf16 %v2713, %v2712
    %v2873 = vpack.c.bf16 %v2715, %v2714
    %v2874 = vpack.c.bf16 %v2717, %v2716
    %v2875 = vpack.c.bf16 %v2719, %v2718
    %v2876 = vpack.c.bf16 %v2721, %v2720
    %v2877 = vpack.c.bf16 %v2723, %v2722
    %v2878 = vpack.c.bf16 %v2725, %v2724
    %v2879 = vpack.c.bf16 %v2727, %v2726
    %v2880 = vpack.c.bf16 %v2729, %v2728
    %v2881 = vpack.c.bf16 %v2731, %v2730
    %v2882 = vpack.c.bf16 %v2733, %v2732
    %v2883 = vpack.c.bf16 %v2735, %v2734
    %v2884 = vpack.c.bf16 %v2737, %v2736
    %v2885 = vpack.c.bf16 %v2739, %v2738
    %v2886 = vpack.c.bf16 %v2741, %v2740
    %v2887 = vpack.c.bf16 %v2743, %v2742
    %v2888 = vpack.c.bf16 %v2745, %v2744
    %v2889 = vpack.c.bf16 %v2747, %v2746
    %v2890 = vpack.c.bf16 %v2749, %v2748
    %v2891 = vpack.c.bf16 %v2751, %v2750
    %v2892 = vpack.c.bf16 %v2753, %v2752
    %v2893 = vpack.c.bf16 %v2755, %v2754
    %v2894 = vpack.c.bf16 %v2757, %v2756
    %v2895 = vpack.c.bf16 %v2759, %v2758
    %v2896 = vpack.c.bf16 %v2761, %v2760
    %v2897 = vpack.c.bf16 %v2763, %v2762
    %v2898 = vpack.c.bf16 %v2765, %v2764
    %v2899 = vpack.c.bf16 %v2767, %v2766
    %v2900 = vpack.c.bf16 %v2769, %v2768
    %v2901 = vpack.c.bf16 %v2771, %v2770
    %v2902 = vpack.c.bf16 %v2773, %v2772
    %v2903 = vpack.c.bf16 %v2775, %v2774
    %v2904 = vpack.c.bf16 %v2777, %v2776
    %v2905 = vpack.c.bf16 %v2779, %v2778
    %v2906 = vpack.c.bf16 %v2781, %v2780
    %v2907 = vpack.c.bf16 %v2783, %v2782
    %v2908 = vpack.c.bf16 %v2785, %v2784
    %v2909 = vpack.c.bf16 %v2787, %v2786
    %v2910 = vpack.c.bf16 %v2789, %v2788
    %v2911 = vpack.c.bf16 %v2791, %v2790
    %v2912 = vpack.c.bf16 %v2793, %v2792
    %v2913 = vpack.c.bf16 %v2795, %v2794
    %v2914 = vpack.c.bf16 %v2797, %v2796
    %v2915 = vpack.c.bf16 %v2799, %v2798
    %v2916 = vpack.c.bf16 %v2801, %v2800
    %v2917 = vpack.c.bf16 %v2803, %v2802
    %v2918 = vpack.c.bf16 %v2805, %v2804
    %v2919 = vpack.c.bf16 %v2807, %v2806
    %v2920 = vpack.c.bf16 %v2809, %v2808
    %v2921 = vpack.c.bf16 %v2811, %v2810
    %v2922 = vpack.c.bf16 %v2813, %v2812
    %v2923 = vpack.c.bf16 %v2815, %v2814
    %v2924 = vpack.c.bf16 %v2817, %v2816
    %v2925 = vpack.c.bf16 %v2819, %v2818
    %v2926 = vpack.c.bf16 %v2821, %v2820
    %v2927 = vpack.c.bf16 %v2823, %v2822
    %v2928 = vpack.c.bf16 %v2825, %v2824
    %v2929 = vpack.c.bf16 %v2827, %v2826
    %v2930 = vpack.c.bf16 %v2829, %v2828
    %v2931 = vpack.c.bf16 %v2831, %v2830
    %v2932 = vpack.c.bf16 %v2833, %v2832
    %v2933 = vpack.c.bf16 %v2835, %v2834
    %v3032 = vunpack.c.l.b16 %v2836
    %v3033 = vunpack.c.h.b16 %v2836
    %v3034 = vunpack.c.l.b16 %v2837
    %v3035 = vunpack.c.h.b16 %v2837
    %v3036 = vunpack.c.l.b16 %v2838
    %v3037 = vunpack.c.h.b16 %v2838
    %v3038 = vunpack.c.l.b16 %v2839
    %v3039 = vunpack.c.h.b16 %v2839
    %v3040 = vunpack.c.l.b16 %v2840
    %v3041 = vunpack.c.h.b16 %v2840
    %v3042 = vunpack.c.l.b16 %v2841
    %v3043 = vunpack.c.h.b16 %v2841
    %v3044 = vunpack.c.l.b16 %v2842
    %v3045 = vunpack.c.h.b16 %v2842
    %v3046 = vunpack.c.l.b16 %v2843
    %v3047 = vunpack.c.h.b16 %v2843
    %v3048 = vunpack.c.l.b16 %v2844
    %v3049 = vunpack.c.h.b16 %v2844
    %v3050 = vunpack.c.l.b16 %v2845
    %v3051 = vunpack.c.h.b16 %v2845
    %v3052 = vunpack.c.l.b16 %v2846
    %v3053 = vunpack.c.h.b16 %v2846
    %v3054 = vunpack.c.l.b16 %v2847
    %v3055 = vunpack.c.h.b16 %v2847
    %v3056 = vunpack.c.l.b16 %v2848
    %v3057 = vunpack.c.h.b16 %v2848
    %v3058 = vunpack.c.l.b16 %v2849
    %v3059 = vunpack.c.h.b16 %v2849
    %v3060 = vunpack.c.l.b16 %v2850
    %v3061 = vunpack.c.h.b16 %v2850
    %v3062 = vunpack.c.l.b16 %v2851
    %v3063 = vunpack.c.h.b16 %v2851
    %v3064 = vunpack.c.l.b16 %v2852
    %v3065 = vunpack.c.h.b16 %v2852
    %v3066 = vunpack.c.l.b16 %v2853
    %v3067 = vunpack.c.h.b16 %v2853
    %v3068 = vunpack.c.l.b16 %v2854
    %v3069 = vunpack.c.h.b16 %v2854
    %v3070 = vunpack.c.l.b16 %v2855
    %v3071 = vunpack.c.h.b16 %v2855
    %v3072 = vunpack.c.l.b16 %v2856
    %v3073 = vunpack.c.h.b16 %v2856
    %v3074 = vunpack.c.l.b16 %v2857
    %v3075 = vunpack.c.h.b16 %v2857
    %v3076 = vunpack.c.l.b16 %v2858
    %v3077 = vunpack.c.h.b16 %v2858
    %v3078 = vunpack.c.l.b16 %v2859
    %v3079 = vunpack.c.h.b16 %v2859
    %v3080 = vunpack.c.l.b16 %v2860
    %v3081 = vunpack.c.h.b16 %v2860
    %v3082 = vunpack.c.l.b16 %v2861
    %v3083 = vunpack.c.h.b16 %v2861
    %v3084 = vunpack.c.l.b16 %v2862
    %v3085 = vunpack.c.h.b16 %v2862
    %v3086 = vunpack.c.l.b16 %v2863
    %v3087 = vunpack.c.h.b16 %v2863
    %v3088 = vunpack.c.l.b16 %v2864
    %v3089 = vunpack.c.h.b16 %v2864
    %v3090 = vunpack.c.l.b16 %v2865
    %v3091 = vunpack.c.h.b16 %v2865
    %v3092 = vunpack.c.l.b16 %v2866
    %v3093 = vunpack.c.h.b16 %v2866
    %v3094 = vunpack.c.l.b16 %v2867
    %v3095 = vunpack.c.h.b16 %v2867
    %v3096 = vunpack.c.l.b16 %v2868
    %v3097 = vunpack.c.h.b16 %v2868
    %v3098 = vunpack.c.l.b16 %v2869
    %v3099 = vunpack.c.h.b16 %v2869
    %v3100 = vunpack.c.l.b16 %v2870
    %v3101 = vunpack.c.h.b16 %v2870
    %v3102 = vunpack.c.l.b16 %v2871
    %v3103 = vunpack.c.h.b16 %v2871
    %v3104 = vunpack.c.l.b16 %v2872
    %v3105 = vunpack.c.h.b16 %v2872
    %v3106 = vunpack.c.l.b16 %v2873
    %v3107 = vunpack.c.h.b16 %v2873
    %v3108 = vunpack.c.l.b16 %v2874
    %v3109 = vunpack.c.h.b16 %v2874
    %v3110 = vunpack.c.l.b16 %v2875
    %v3111 = vunpack.c.h.b16 %v2875
    %v3112 = vunpack.c.l.b16 %v2876
    %v3113 = vunpack.c.h.b16 %v2876
    %v3114 = vunpack.c.l.b16 %v2877
    %v3115 = vunpack.c.h.b16 %v2877
    %v3116 = vunpack.c.l.b16 %v2878
    %v3117 = vunpack.c.h.b16 %v2878
    %v3118 = vunpack.c.l.b16 %v2879
    %v3119 = vunpack.c.h.b16 %v2879
    %v3120 = vunpack.c.l.b16 %v2880
    %v3121 = vunpack.c.h.b16 %v2880
    %v3122 = vunpack.c.l.b16 %v2881
    %v3123 = vunpack.c.h.b16 %v2881
    %v3124 = vunpack.c.l.b16 %v2882
    %v3125 = vunpack.c.h.b16 %v2882
    %v3126 = vunpack.c.l.b16 %v2883
    %v3127 = vunpack.c.h.b16 %v2883
    %v3128 = vunpack.c.l.b16 %v2884
    %v3129 = vunpack.c.h.b16 %v2884
    %v3130 = vunpack.c.l.b16 %v2885
    %v3131 = vunpack.c.h.b16 %v2885
    %v3132 = vunpack.c.l.b16 %v2886
    %v3133 = vunpack.c.h.b16 %v2886
    %v3134 = vunpack.c.l.b16 %v2887
    %v3135 = vunpack.c.h.b16 %v2887
    %v3136 = vunpack.c.l.b16 %v2888
    %v3137 = vunpack.c.h.b16 %v2888
    %v3138 = vunpack.c.l.b16 %v2889
    %v3139 = vunpack.c.h.b16 %v2889
    %v3140 = vunpack.c.l.b16 %v2890
    %v3141 = vunpack.c.h.b16 %v2890
    %v3142 = vunpack.c.l.b16 %v2891
    %v3143 = vunpack.c.h.b16 %v2891
    %v3144 = vunpack.c.l.b16 %v2892
    %v3145 = vunpack.c.h.b16 %v2892
    %v3146 = vunpack.c.l.b16 %v2893
    %v3147 = vunpack.c.h.b16 %v2893
    %v3148 = vunpack.c.l.b16 %v2894
    %v3149 = vunpack.c.h.b16 %v2894
    %v3150 = vunpack.c.l.b16 %v2895
    %v3151 = vunpack.c.h.b16 %v2895
    %v3152 = vunpack.c.l.b16 %v2896
    %v3153 = vunpack.c.h.b16 %v2896
    %v3154 = vunpack.c.l.b16 %v2897
    %v3155 = vunpack.c.h.b16 %v2897
    %v3156 = vunpack.c.l.b16 %v2898
    %v3157 = vunpack.c.h.b16 %v2898
    %v3158 = vunpack.c.l.b16 %v2899
    %v3159 = vunpack.c.h.b16 %v2899
    %v3160 = vunpack.c.l.b16 %v2900
    %v3161 = vunpack.c.h.b16 %v2900
    %v3162 = vunpack.c.l.b16 %v2901
    %v3163 = vunpack.c.h.b16 %v2901
    %v3164 = vunpack.c.l.b16 %v2902
    %v3165 = vunpack.c.h.b16 %v2902
    %v3166 = vunpack.c.l.b16 %v2903
    %v3167 = vunpack.c.h.b16 %v2903
    %v3168 = vunpack.c.l.b16 %v2904
    %v3169 = vunpack.c.h.b16 %v2904
    %v3170 = vunpack.c.l.b16 %v2905
    %v3171 = vunpack.c.h.b16 %v2905
    %v3172 = vunpack.c.l.b16 %v2906
    %v3173 = vunpack.c.h.b16 %v2906
    %v3174 = vunpack.c.l.b16 %v2907
    %v3175 = vunpack.c.h.b16 %v2907
    %v3176 = vunpack.c.l.b16 %v2908
    %v3177 = vunpack.c.h.b16 %v2908
    %v3178 = vunpack.c.l.b16 %v2909
    %v3179 = vunpack.c.h.b16 %v2909
    %v3180 = vunpack.c.l.b16 %v2910
    %v3181 = vunpack.c.h.b16 %v2910
    %v3182 = vunpack.c.l.b16 %v2911
    %v3183 = vunpack.c.h.b16 %v2911
    %v3184 = vunpack.c.l.b16 %v2912
    %v3185 = vunpack.c.h.b16 %v2912
    %v3186 = vunpack.c.l.b16 %v2913
    %v3187 = vunpack.c.h.b16 %v2913
    %v3188 = vunpack.c.l.b16 %v2914
    %v3189 = vunpack.c.h.b16 %v2914
    %v3190 = vunpack.c.l.b16 %v2915
    %v3191 = vunpack.c.h.b16 %v2915
    %v3192 = vunpack.c.l.b16 %v2916
    %v3193 = vunpack.c.h.b16 %v2916
    %v3194 = vunpack.c.l.b16 %v2917
    %v3195 = vunpack.c.h.b16 %v2917
    %v3196 = vunpack.c.l.b16 %v2918
    %v3197 = vunpack.c.h.b16 %v2918
    %v3198 = vunpack.c.l.b16 %v2919
    %v3199 = vunpack.c.h.b16 %v2919
    %v3200 = vunpack.c.l.b16 %v2920
    %v3201 = vunpack.c.h.b16 %v2920
    %v3202 = vunpack.c.l.b16 %v2921
    %v3203 = vunpack.c.h.b16 %v2921
    %v3204 = vunpack.c.l.b16 %v2922
    %v3205 = vunpack.c.h.b16 %v2922
    %v3206 = vunpack.c.l.b16 %v2923
    %v3207 = vunpack.c.h.b16 %v2923
    %v3208 = vunpack.c.l.b16 %v2924
    %v3209 = vunpack.c.h.b16 %v2924
    %v3210 = vunpack.c.l.b16 %v2925
    %v3211 = vunpack.c.h.b16 %v2925
    %v3212 = vunpack.c.l.b16 %v2926
    %v3213 = vunpack.c.h.b16 %v2926
    %v3214 = vunpack.c.l.b16 %v2927
    %v3215 = vunpack.c.h.b16 %v2927
    %v3216 = vunpack.c.l.b16 %v2928
    %v3217 = vunpack.c.h.b16 %v2928
    %v3218 = vunpack.c.l.b16 %v2929
    %v3219 = vunpack.c.h.b16 %v2929
    %v3220 = vunpack.c.l.b16 %v2930
    %v3221 = vunpack.c.h.b16 %v2930
    %v3222 = vunpack.c.l.b16 %v2931
    %v3223 = vunpack.c.h.b16 %v2931
    %v3224 = vunpack.c.l.b16 %v2932
    %v3225 = vunpack.c.h.b16 %v2932
    %v3226 = vunpack.c.l.b16 %v2933
    %v3227 = vunpack.c.h.b16 %v2933
    %v3228 = vpack.c.b16 %v3032, %v3032
    %v3229 = vpack.c.b16 %v3033, %v3033
    %v3230 = vpack.c.b16 %v3034, %v3034
    %v3231 = vpack.c.b16 %v3035, %v3035
    %v3232 = vpack.c.b16 %v3036, %v3036
    %v3233 = vpack.c.b16 %v3037, %v3037
    %v3234 = vpack.c.b16 %v3038, %v3038
    %v3235 = vpack.c.b16 %v3039, %v3039
    %v3236 = vpack.c.b16 %v3040, %v3040
    %v3237 = vpack.c.b16 %v3041, %v3041
    %v3238 = vpack.c.b16 %v3042, %v3042
    %v3239 = vpack.c.b16 %v3043, %v3043
    %v3240 = vpack.c.b16 %v3044, %v3044
    %v3241 = vpack.c.b16 %v3045, %v3045
    %v3242 = vpack.c.b16 %v3046, %v3046
    %v3243 = vpack.c.b16 %v3047, %v3047
    %v3244 = vpack.c.b16 %v3048, %v3048
    %v3245 = vpack.c.b16 %v3049, %v3049
    %v3246 = vpack.c.b16 %v3050, %v3050
    %v3247 = vpack.c.b16 %v3051, %v3051
    %v3248 = vpack.c.b16 %v3052, %v3052
    %v3249 = vpack.c.b16 %v3053, %v3053
    %v3250 = vpack.c.b16 %v3054, %v3054
    %v3251 = vpack.c.b16 %v3055, %v3055
    %v3252 = vpack.c.b16 %v3056, %v3056
    %v3253 = vpack.c.b16 %v3057, %v3057
    %v3254 = vpack.c.b16 %v3058, %v3058
    %v3255 = vpack.c.b16 %v3059, %v3059
    %v3256 = vpack.c.b16 %v3060, %v3060
    %v3257 = vpack.c.b16 %v3061, %v3061
    %v3258 = vpack.c.b16 %v3062, %v3062
    %v3259 = vpack.c.b16 %v3063, %v3063
    %v3260 = vpack.c.b16 %v3064, %v3064
    %v3261 = vpack.c.b16 %v3065, %v3065
    %v3262 = vpack.c.b16 %v3066, %v3066
    %v3263 = vpack.c.b16 %v3067, %v3067
    %v3264 = vpack.c.b16 %v3068, %v3068
    %v3265 = vpack.c.b16 %v3069, %v3069
    %v3266 = vpack.c.b16 %v3070, %v3070
    %v3267 = vpack.c.b16 %v3071, %v3071
    %v3268 = vpack.c.b16 %v3072, %v3072
    %v3269 = vpack.c.b16 %v3073, %v3073
    %v3270 = vpack.c.b16 %v3074, %v3074
    %v3271 = vpack.c.b16 %v3075, %v3075
    %v3272 = vpack.c.b16 %v3076, %v3076
    %v3273 = vpack.c.b16 %v3077, %v3077
    %v3274 = vpack.c.b16 %v3078, %v3078
    %v3275 = vpack.c.b16 %v3079, %v3079
    %v3276 = vpack.c.b16 %v3080, %v3080
    %v3277 = vpack.c.b16 %v3081, %v3081
    %v3278 = vpack.c.b16 %v3082, %v3082
    %v3279 = vpack.c.b16 %v3083, %v3083
    %v3280 = vpack.c.b16 %v3084, %v3084
    %v3281 = vpack.c.b16 %v3085, %v3085
    %v3282 = vpack.c.b16 %v3086, %v3086
    %v3283 = vpack.c.b16 %v3087, %v3087
    %v3284 = vpack.c.b16 %v3088, %v3088
    %v3285 = vpack.c.b16 %v3089, %v3089
    %v3286 = vpack.c.b16 %v3090, %v3090
    %v3287 = vpack.c.b16 %v3091, %v3091
    %v3288 = vpack.c.b16 %v3092, %v3092
    %v3289 = vpack.c.b16 %v3093, %v3093
    %v3290 = vpack.c.b16 %v3094, %v3094
    %v3291 = vpack.c.b16 %v3095, %v3095
    %v3292 = vpack.c.b16 %v3096, %v3096
    %v3293 = vpack.c.b16 %v3097, %v3097
    %v3294 = vpack.c.b16 %v3098, %v3098
    %v3295 = vpack.c.b16 %v3099, %v3099
    %v3296 = vpack.c.b16 %v3100, %v3100
    %v3297 = vpack.c.b16 %v3101, %v3101
    %v3298 = vpack.c.b16 %v3102, %v3102
    %v3299 = vpack.c.b16 %v3103, %v3103
    %v3300 = vpack.c.b16 %v3104, %v3104
    %v3301 = vpack.c.b16 %v3105, %v3105
    %v3302 = vpack.c.b16 %v3106, %v3106
    %v3303 = vpack.c.b16 %v3107, %v3107
    %v3304 = vpack.c.b16 %v3108, %v3108
    %v3305 = vpack.c.b16 %v3109, %v3109
    %v3306 = vpack.c.b16 %v3110, %v3110
    %v3307 = vpack.c.b16 %v3111, %v3111
    %v3308 = vpack.c.b16 %v3112, %v3112
    %v3309 = vpack.c.b16 %v3113, %v3113
    %v3310 = vpack.c.b16 %v3114, %v3114
    %v3311 = vpack.c.b16 %v3115, %v3115
    %v3312 = vpack.c.b16 %v3116, %v3116
    %v3313 = vpack.c.b16 %v3117, %v3117
    %v3314 = vpack.c.b16 %v3118, %v3118
    %v3315 = vpack.c.b16 %v3119, %v3119
    %v3316 = vpack.c.b16 %v3120, %v3120
    %v3317 = vpack.c.b16 %v3121, %v3121
    %v3318 = vpack.c.b16 %v3122, %v3122
    %v3319 = vpack.c.b16 %v3123, %v3123
    %v3320 = vpack.c.b16 %v3124, %v3124
    %v3321 = vpack.c.b16 %v3125, %v3125
    %v3322 = vpack.c.b16 %v3126, %v3126
    %v3323 = vpack.c.b16 %v3127, %v3127
    %v3324 = vpack.c.b16 %v3128, %v3128
    %v3325 = vpack.c.b16 %v3129, %v3129
    %v3326 = vpack.c.b16 %v3130, %v3130
    %v3327 = vpack.c.b16 %v3131, %v3131
    %v3328 = vpack.c.b16 %v3132, %v3132
    %v3329 = vpack.c.b16 %v3133, %v3133
    %v3330 = vpack.c.b16 %v3134, %v3134
    %v3331 = vpack.c.b16 %v3135, %v3135
    %v3332 = vpack.c.b16 %v3136, %v3136
    %v3333 = vpack.c.b16 %v3137, %v3137
    %v3334 = vpack.c.b16 %v3138, %v3138
    %v3335 = vpack.c.b16 %v3139, %v3139
    %v3336 = vpack.c.b16 %v3140, %v3140
    %v3337 = vpack.c.b16 %v3141, %v3141
    %v3338 = vpack.c.b16 %v3142, %v3142
    %v3339 = vpack.c.b16 %v3143, %v3143
    %v3340 = vpack.c.b16 %v3144, %v3144
    %v3341 = vpack.c.b16 %v3145, %v3145
    %v3342 = vpack.c.b16 %v3146, %v3146
    %v3343 = vpack.c.b16 %v3147, %v3147
    %v3344 = vpack.c.b16 %v3148, %v3148
    %v3345 = vpack.c.b16 %v3149, %v3149
    %v3346 = vpack.c.b16 %v3150, %v3150
    %v3347 = vpack.c.b16 %v3151, %v3151
    %v3348 = vpack.c.b16 %v3152, %v3152
    %v3349 = vpack.c.b16 %v3153, %v3153
    %v3350 = vpack.c.b16 %v3154, %v3154
    %v3351 = vpack.c.b16 %v3155, %v3155
    %v3352 = vpack.c.b16 %v3156, %v3156
    %v3353 = vpack.c.b16 %v3157, %v3157
    %v3354 = vpack.c.b16 %v3158, %v3158
    %v3355 = vpack.c.b16 %v3159, %v3159
    %v3356 = vpack.c.b16 %v3160, %v3160
    %v3357 = vpack.c.b16 %v3161, %v3161
    %v3358 = vpack.c.b16 %v3162, %v3162
    %v3359 = vpack.c.b16 %v3163, %v3163
    %v3360 = vpack.c.b16 %v3164, %v3164
    %v3361 = vpack.c.b16 %v3165, %v3165
    %v3362 = vpack.c.b16 %v3166, %v3166
    %v3363 = vpack.c.b16 %v3167, %v3167
    %v3364 = vpack.c.b16 %v3168, %v3168
    %v3365 = vpack.c.b16 %v3169, %v3169
    %v3366 = vpack.c.b16 %v3170, %v3170
    %v3367 = vpack.c.b16 %v3171, %v3171
    %v3368 = vpack.c.b16 %v3172, %v3172
    %v3369 = vpack.c.b16 %v3173, %v3173
    %v3370 = vpack.c.b16 %v3174, %v3174
    %v3371 = vpack.c.b16 %v3175, %v3175
    %v3372 = vpack.c.b16 %v3176, %v3176
    %v3373 = vpack.c.b16 %v3177, %v3177
    %v3374 = vpack.c.b16 %v3178, %v3178
    %v3375 = vpack.c.b16 %v3179, %v3179
    %v3376 = vpack.c.b16 %v3180, %v3180
    %v3377 = vpack.c.b16 %v3181, %v3181
    %v3378 = vpack.c.b16 %v3182, %v3182
    %v3379 = vpack.c.b16 %v3183, %v3183
    %v3380 = vpack.c.b16 %v3184, %v3184
    %v3381 = vpack.c.b16 %v3185, %v3185
    %v3382 = vpack.c.b16 %v3186, %v3186
    %v3383 = vpack.c.b16 %v3187, %v3187
    %v3384 = vpack.c.b16 %v3188, %v3188
    %v3385 = vpack.c.b16 %v3189, %v3189
    %v3386 = vpack.c.b16 %v3190, %v3190
    %v3387 = vpack.c.b16 %v3191, %v3191
    %v3388 = vpack.c.b16 %v3192, %v3192
    %v3389 = vpack.c.b16 %v3193, %v3193
    %v3390 = vpack.c.b16 %v3194, %v3194
    %v3391 = vpack.c.b16 %v3195, %v3195
    %v3392 = vpack.c.b16 %v3196, %v3196
    %v3393 = vpack.c.b16 %v3197, %v3197
    %v3394 = vpack.c.b16 %v3198, %v3198
    %v3395 = vpack.c.b16 %v3199, %v3199
    %v3396 = vpack.c.b16 %v3200, %v3200
    %v3397 = vpack.c.b16 %v3201, %v3201
    %v3398 = vpack.c.b16 %v3202, %v3202
    %v3399 = vpack.c.b16 %v3203, %v3203
    %v3400 = vpack.c.b16 %v3204, %v3204
    %v3401 = vpack.c.b16 %v3205, %v3205
    %v3402 = vpack.c.b16 %v3206, %v3206
    %v3403 = vpack.c.b16 %v3207, %v3207
    %v3404 = vpack.c.b16 %v3208, %v3208
    %v3405 = vpack.c.b16 %v3209, %v3209
    %v3406 = vpack.c.b16 %v3210, %v3210
    %v3407 = vpack.c.b16 %v3211, %v3211
    %v3408 = vpack.c.b16 %v3212, %v3212
    %v3409 = vpack.c.b16 %v3213, %v3213
    %v3410 = vpack.c.b16 %v3214, %v3214
    %v3411 = vpack.c.b16 %v3215, %v3215
    %v3412 = vpack.c.b16 %v3216, %v3216
    %v3413 = vpack.c.b16 %v3217, %v3217
    %v3414 = vpack.c.b16 %v3218, %v3218
    %v3415 = vpack.c.b16 %v3219, %v3219
    %v3416 = vpack.c.b16 %v3220, %v3220
    %v3417 = vpack.c.b16 %v3221, %v3221
    %v3418 = vpack.c.b16 %v3222, %v3222
    %v3419 = vpack.c.b16 %v3223, %v3223
    %v3420 = vpack.c.b16 %v3224, %v3224
    %v3421 = vpack.c.b16 %v3225, %v3225
    %v3422 = vpack.c.b16 %v3226, %v3226
    %v3423 = vpack.c.b16 %v3227, %v3227
    %vm3620 = vcmask 125952
    %3621 = vst.msk [vmem:[%s3] sm:$0xf] %vm3620, %v3228
    %3622 = vst.msk [vmem:[%s3 + $0x4] sm:$0xf] %vm3620, %v3229
    %3623 = vst.msk [vmem:[%s3 + $0x8] sm:$0xf] %vm3620, %v3230
    %3624 = vst.msk [vmem:[%s3 + $0xc] sm:$0xf] %vm3620, %v3231
    %3625 = vst.msk [vmem:[%s3 + $0x10] sm:$0xf] %vm3620, %v3232
    %3626 = vst.msk [vmem:[%s3 + $0x14] sm:$0xf] %vm3620, %v3233
    %3627 = vst.msk [vmem:[%s3 + $0x18] sm:$0xf] %vm3620, %v3234
    %3628 = vst.msk [vmem:[%s3 + $0x1c] sm:$0xf] %vm3620, %v3235
    %3629 = vst.msk [vmem:[%s3 + $0x20] sm:$0xf] %vm3620, %v3236
    %3630 = vst.msk [vmem:[%s3 + $0x24] sm:$0xf] %vm3620, %v3237
    %3631 = vst.msk [vmem:[%s3 + $0x28] sm:$0xf] %vm3620, %v3238
    %3632 = vst.msk [vmem:[%s3 + $0x2c] sm:$0xf] %vm3620, %v3239
    %3633 = vst.msk [vmem:[%s3 + $0x30] sm:$0xf] %vm3620, %v3240
    %3634 = vst.msk [vmem:[%s3 + $0x34] sm:$0xf] %vm3620, %v3241
    %3635 = vst.msk [vmem:[%s3 + $0x38] sm:$0xf] %vm3620, %v3242
    %3636 = vst.msk [vmem:[%s3 + $0x3c] sm:$0xf] %vm3620, %v3243
    %3637 = vst.msk [vmem:[%s3 + $0x40] sm:$0xf] %vm3620, %v3244
    %3638 = vst.msk [vmem:[%s3 + $0x44] sm:$0xf] %vm3620, %v3245
    %3639 = vst.msk [vmem:[%s3 + $0x48] sm:$0xf] %vm3620, %v3246
    %3640 = vst.msk [vmem:[%s3 + $0x4c] sm:$0xf] %vm3620, %v3247
    %3641 = vst.msk [vmem:[%s3 + $0x50] sm:$0xf] %vm3620, %v3248
    %3642 = vst.msk [vmem:[%s3 + $0x54] sm:$0xf] %vm3620, %v3249
    %3643 = vst.msk [vmem:[%s3 + $0x58] sm:$0xf] %vm3620, %v3250
    %3644 = vst.msk [vmem:[%s3 + $0x5c] sm:$0xf] %vm3620, %v3251
    %3645 = vst.msk [vmem:[%s3 + $0x60] sm:$0xf] %vm3620, %v3252
    %3646 = vst.msk [vmem:[%s3 + $0x64] sm:$0xf] %vm3620, %v3253
    %3647 = vst.msk [vmem:[%s3 + $0x68] sm:$0xf] %vm3620, %v3254
    %3648 = vst.msk [vmem:[%s3 + $0x6c] sm:$0xf] %vm3620, %v3255
    %3649 = vst.msk [vmem:[%s3 + $0x70] sm:$0xf] %vm3620, %v3256
    %3650 = vst.msk [vmem:[%s3 + $0x74] sm:$0xf] %vm3620, %v3257
    %3651 = vst.msk [vmem:[%s3 + $0x78] sm:$0xf] %vm3620, %v3258
    %3652 = vst.msk [vmem:[%s3 + $0x7c] sm:$0xf] %vm3620, %v3259
    %3653 = vst.msk [vmem:[%s3 + $0x80] sm:$0xf] %vm3620, %v3260
    %3654 = vst.msk [vmem:[%s3 + $0x84] sm:$0xf] %vm3620, %v3261
    %3655 = vst.msk [vmem:[%s3 + $0x88] sm:$0xf] %vm3620, %v3262
    %3656 = vst.msk [vmem:[%s3 + $0x8c] sm:$0xf] %vm3620, %v3263
    %3657 = vst.msk [vmem:[%s3 + $0x90] sm:$0xf] %vm3620, %v3264
    %3658 = vst.msk [vmem:[%s3 + $0x94] sm:$0xf] %vm3620, %v3265
    %3659 = vst.msk [vmem:[%s3 + $0x98] sm:$0xf] %vm3620, %v3266
    %3660 = vst.msk [vmem:[%s3 + $0x9c] sm:$0xf] %vm3620, %v3267
    %3661 = vst.msk [vmem:[%s3 + $0xa0] sm:$0xf] %vm3620, %v3268
    %3662 = vst.msk [vmem:[%s3 + $0xa4] sm:$0xf] %vm3620, %v3269
    %3663 = vst.msk [vmem:[%s3 + $0xa8] sm:$0xf] %vm3620, %v3270
    %3664 = vst.msk [vmem:[%s3 + $0xac] sm:$0xf] %vm3620, %v3271
    %3665 = vst.msk [vmem:[%s3 + $0xb0] sm:$0xf] %vm3620, %v3272
    %3666 = vst.msk [vmem:[%s3 + $0xb4] sm:$0xf] %vm3620, %v3273
    %3667 = vst.msk [vmem:[%s3 + $0xb8] sm:$0xf] %vm3620, %v3274
    %3668 = vst.msk [vmem:[%s3 + $0xbc] sm:$0xf] %vm3620, %v3275
    %3669 = vst.msk [vmem:[%s3 + $0xc0] sm:$0xf] %vm3620, %v3276
    %3670 = vst.msk [vmem:[%s3 + $0xc4] sm:$0xf] %vm3620, %v3277
    %3671 = vst.msk [vmem:[%s3 + $0xc8] sm:$0xf] %vm3620, %v3278
    %3672 = vst.msk [vmem:[%s3 + $0xcc] sm:$0xf] %vm3620, %v3279
    %3673 = vst.msk [vmem:[%s3 + $0xd0] sm:$0xf] %vm3620, %v3280
    %3674 = vst.msk [vmem:[%s3 + $0xd4] sm:$0xf] %vm3620, %v3281
    %3675 = vst.msk [vmem:[%s3 + $0xd8] sm:$0xf] %vm3620, %v3282
    %3676 = vst.msk [vmem:[%s3 + $0xdc] sm:$0xf] %vm3620, %v3283
    %3677 = vst.msk [vmem:[%s3 + $0xe0] sm:$0xf] %vm3620, %v3284
    %3678 = vst.msk [vmem:[%s3 + $0xe4] sm:$0xf] %vm3620, %v3285
    %3679 = vst.msk [vmem:[%s3 + $0xe8] sm:$0xf] %vm3620, %v3286
    %3680 = vst.msk [vmem:[%s3 + $0xec] sm:$0xf] %vm3620, %v3287
    %3681 = vst.msk [vmem:[%s3 + $0xf0] sm:$0xf] %vm3620, %v3288
    %3682 = vst.msk [vmem:[%s3 + $0xf4] sm:$0xf] %vm3620, %v3289
    %3683 = vst.msk [vmem:[%s3 + $0xf8] sm:$0xf] %vm3620, %v3290
    %3684 = vst.msk [vmem:[%s3 + $0xfc] sm:$0xf] %vm3620, %v3291
    %3685 = vst.msk [vmem:[%s3 + $0x100] sm:$0xf] %vm3620, %v3292
    %3686 = vst.msk [vmem:[%s3 + $0x104] sm:$0xf] %vm3620, %v3293
    %3687 = vst.msk [vmem:[%s3 + $0x108] sm:$0xf] %vm3620, %v3294
    %3688 = vst.msk [vmem:[%s3 + $0x10c] sm:$0xf] %vm3620, %v3295
    %3689 = vst.msk [vmem:[%s3 + $0x110] sm:$0xf] %vm3620, %v3296
    %3690 = vst.msk [vmem:[%s3 + $0x114] sm:$0xf] %vm3620, %v3297
    %3691 = vst.msk [vmem:[%s3 + $0x118] sm:$0xf] %vm3620, %v3298
    %3692 = vst.msk [vmem:[%s3 + $0x11c] sm:$0xf] %vm3620, %v3299
    %3693 = vst.msk [vmem:[%s3 + $0x120] sm:$0xf] %vm3620, %v3300
    %3694 = vst.msk [vmem:[%s3 + $0x124] sm:$0xf] %vm3620, %v3301
    %3695 = vst.msk [vmem:[%s3 + $0x128] sm:$0xf] %vm3620, %v3302
    %3696 = vst.msk [vmem:[%s3 + $0x12c] sm:$0xf] %vm3620, %v3303
    %3697 = vst.msk [vmem:[%s3 + $0x130] sm:$0xf] %vm3620, %v3304
    %3698 = vst.msk [vmem:[%s3 + $0x134] sm:$0xf] %vm3620, %v3305
    %3699 = vst.msk [vmem:[%s3 + $0x138] sm:$0xf] %vm3620, %v3306
    %3700 = vst.msk [vmem:[%s3 + $0x13c] sm:$0xf] %vm3620, %v3307
    %3701 = vst.msk [vmem:[%s3 + $0x140] sm:$0xf] %vm3620, %v3308
    %3702 = vst.msk [vmem:[%s3 + $0x144] sm:$0xf] %vm3620, %v3309
    %3703 = vst.msk [vmem:[%s3 + $0x148] sm:$0xf] %vm3620, %v3310
    %3704 = vst.msk [vmem:[%s3 + $0x14c] sm:$0xf] %vm3620, %v3311
    %3705 = vst.msk [vmem:[%s3 + $0x150] sm:$0xf] %vm3620, %v3312
    %3706 = vst.msk [vmem:[%s3 + $0x154] sm:$0xf] %vm3620, %v3313
    %3707 = vst.msk [vmem:[%s3 + $0x158] sm:$0xf] %vm3620, %v3314
    %3708 = vst.msk [vmem:[%s3 + $0x15c] sm:$0xf] %vm3620, %v3315
    %3709 = vst.msk [vmem:[%s3 + $0x160] sm:$0xf] %vm3620, %v3316
    %3710 = vst.msk [vmem:[%s3 + $0x164] sm:$0xf] %vm3620, %v3317
    %3711 = vst.msk [vmem:[%s3 + $0x168] sm:$0xf] %vm3620, %v3318
    %3712 = vst.msk [vmem:[%s3 + $0x16c] sm:$0xf] %vm3620, %v3319
    %3713 = vst.msk [vmem:[%s3 + $0x170] sm:$0xf] %vm3620, %v3320
    %3714 = vst.msk [vmem:[%s3 + $0x174] sm:$0xf] %vm3620, %v3321
    %3715 = vst.msk [vmem:[%s3 + $0x178] sm:$0xf] %vm3620, %v3322
    %3716 = vst.msk [vmem:[%s3 + $0x17c] sm:$0xf] %vm3620, %v3323
    %3717 = vst.msk [vmem:[%s3 + $0x180] sm:$0xf] %vm3620, %v3324
    %3718 = vst.msk [vmem:[%s3 + $0x184] sm:$0xf] %vm3620, %v3325
    %3719 = vst.msk [vmem:[%s3 + $0x188] sm:$0xf] %vm3620, %v3326
    %3720 = vst.msk [vmem:[%s3 + $0x18c] sm:$0xf] %vm3620, %v3327
    %3721 = vst.msk [vmem:[%s3 + $0x190] sm:$0xf] %vm3620, %v3328
    %3722 = vst.msk [vmem:[%s3 + $0x194] sm:$0xf] %vm3620, %v3329
    %3723 = vst.msk [vmem:[%s3 + $0x198] sm:$0xf] %vm3620, %v3330
    %3724 = vst.msk [vmem:[%s3 + $0x19c] sm:$0xf] %vm3620, %v3331
    %3725 = vst.msk [vmem:[%s3 + $0x1a0] sm:$0xf] %vm3620, %v3332
    %3726 = vst.msk [vmem:[%s3 + $0x1a4] sm:$0xf] %vm3620, %v3333
    %3727 = vst.msk [vmem:[%s3 + $0x1a8] sm:$0xf] %vm3620, %v3334
    %3728 = vst.msk [vmem:[%s3 + $0x1ac] sm:$0xf] %vm3620, %v3335
    %3729 = vst.msk [vmem:[%s3 + $0x1b0] sm:$0xf] %vm3620, %v3336
    %3730 = vst.msk [vmem:[%s3 + $0x1b4] sm:$0xf] %vm3620, %v3337
    %3731 = vst.msk [vmem:[%s3 + $0x1b8] sm:$0xf] %vm3620, %v3338
    %3732 = vst.msk [vmem:[%s3 + $0x1bc] sm:$0xf] %vm3620, %v3339
    %3733 = vst.msk [vmem:[%s3 + $0x1c0] sm:$0xf] %vm3620, %v3340
    %3734 = vst.msk [vmem:[%s3 + $0x1c4] sm:$0xf] %vm3620, %v3341
    %3735 = vst.msk [vmem:[%s3 + $0x1c8] sm:$0xf] %vm3620, %v3342
    %3736 = vst.msk [vmem:[%s3 + $0x1cc] sm:$0xf] %vm3620, %v3343
    %3737 = vst.msk [vmem:[%s3 + $0x1d0] sm:$0xf] %vm3620, %v3344
    %3738 = vst.msk [vmem:[%s3 + $0x1d4] sm:$0xf] %vm3620, %v3345
    %3739 = vst.msk [vmem:[%s3 + $0x1d8] sm:$0xf] %vm3620, %v3346
    %3740 = vst.msk [vmem:[%s3 + $0x1dc] sm:$0xf] %vm3620, %v3347
    %3741 = vst.msk [vmem:[%s3 + $0x1e0] sm:$0xf] %vm3620, %v3348
    %3742 = vst.msk [vmem:[%s3 + $0x1e4] sm:$0xf] %vm3620, %v3349
    %3743 = vst.msk [vmem:[%s3 + $0x1e8] sm:$0xf] %vm3620, %v3350
    %3744 = vst.msk [vmem:[%s3 + $0x1ec] sm:$0xf] %vm3620, %v3351
    %3745 = vst.msk [vmem:[%s3 + $0x1f0] sm:$0xf] %vm3620, %v3352
    %3746 = vst.msk [vmem:[%s3 + $0x1f4] sm:$0xf] %vm3620, %v3353
    %3747 = vst.msk [vmem:[%s3 + $0x1f8] sm:$0xf] %vm3620, %v3354
    %3748 = vst.msk [vmem:[%s3 + $0x1fc] sm:$0xf] %vm3620, %v3355
    %3749 = vst.msk [vmem:[%s3 + $0x200] sm:$0xf] %vm3620, %v3356
    %3750 = vst.msk [vmem:[%s3 + $0x204] sm:$0xf] %vm3620, %v3357
    %3751 = vst.msk [vmem:[%s3 + $0x208] sm:$0xf] %vm3620, %v3358
    %3752 = vst.msk [vmem:[%s3 + $0x20c] sm:$0xf] %vm3620, %v3359
    %3753 = vst.msk [vmem:[%s3 + $0x210] sm:$0xf] %vm3620, %v3360
    %3754 = vst.msk [vmem:[%s3 + $0x214] sm:$0xf] %vm3620, %v3361
    %3755 = vst.msk [vmem:[%s3 + $0x218] sm:$0xf] %vm3620, %v3362
    %3756 = vst.msk [vmem:[%s3 + $0x21c] sm:$0xf] %vm3620, %v3363
    %3757 = vst.msk [vmem:[%s3 + $0x220] sm:$0xf] %vm3620, %v3364
    %3758 = vst.msk [vmem:[%s3 + $0x224] sm:$0xf] %vm3620, %v3365
    %3759 = vst.msk [vmem:[%s3 + $0x228] sm:$0xf] %vm3620, %v3366
    %3760 = vst.msk [vmem:[%s3 + $0x22c] sm:$0xf] %vm3620, %v3367
    %3761 = vst.msk [vmem:[%s3 + $0x230] sm:$0xf] %vm3620, %v3368
    %3762 = vst.msk [vmem:[%s3 + $0x234] sm:$0xf] %vm3620, %v3369
    %3763 = vst.msk [vmem:[%s3 + $0x238] sm:$0xf] %vm3620, %v3370
    %3764 = vst.msk [vmem:[%s3 + $0x23c] sm:$0xf] %vm3620, %v3371
    %3765 = vst.msk [vmem:[%s3 + $0x240] sm:$0xf] %vm3620, %v3372
    %3766 = vst.msk [vmem:[%s3 + $0x244] sm:$0xf] %vm3620, %v3373
    %3767 = vst.msk [vmem:[%s3 + $0x248] sm:$0xf] %vm3620, %v3374
    %3768 = vst.msk [vmem:[%s3 + $0x24c] sm:$0xf] %vm3620, %v3375
    %3769 = vst.msk [vmem:[%s3 + $0x250] sm:$0xf] %vm3620, %v3376
    %3770 = vst.msk [vmem:[%s3 + $0x254] sm:$0xf] %vm3620, %v3377
    %3771 = vst.msk [vmem:[%s3 + $0x258] sm:$0xf] %vm3620, %v3378
    %3772 = vst.msk [vmem:[%s3 + $0x25c] sm:$0xf] %vm3620, %v3379
    %3773 = vst.msk [vmem:[%s3 + $0x260] sm:$0xf] %vm3620, %v3380
    %3774 = vst.msk [vmem:[%s3 + $0x264] sm:$0xf] %vm3620, %v3381
    %3775 = vst.msk [vmem:[%s3 + $0x268] sm:$0xf] %vm3620, %v3382
    %3776 = vst.msk [vmem:[%s3 + $0x26c] sm:$0xf] %vm3620, %v3383
    %3777 = vst.msk [vmem:[%s3 + $0x270] sm:$0xf] %vm3620, %v3384
    %3778 = vst.msk [vmem:[%s3 + $0x274] sm:$0xf] %vm3620, %v3385
    %3779 = vst.msk [vmem:[%s3 + $0x278] sm:$0xf] %vm3620, %v3386
    %3780 = vst.msk [vmem:[%s3 + $0x27c] sm:$0xf] %vm3620, %v3387
    %3781 = vst.msk [vmem:[%s3 + $0x280] sm:$0xf] %vm3620, %v3388
    %3782 = vst.msk [vmem:[%s3 + $0x284] sm:$0xf] %vm3620, %v3389
    %3783 = vst.msk [vmem:[%s3 + $0x288] sm:$0xf] %vm3620, %v3390
    %3784 = vst.msk [vmem:[%s3 + $0x28c] sm:$0xf] %vm3620, %v3391
    %3785 = vst.msk [vmem:[%s3 + $0x290] sm:$0xf] %vm3620, %v3392
    %3786 = vst.msk [vmem:[%s3 + $0x294] sm:$0xf] %vm3620, %v3393
    %3787 = vst.msk [vmem:[%s3 + $0x298] sm:$0xf] %vm3620, %v3394
    %3788 = vst.msk [vmem:[%s3 + $0x29c] sm:$0xf] %vm3620, %v3395
    %3789 = vst.msk [vmem:[%s3 + $0x2a0] sm:$0xf] %vm3620, %v3396
    %3790 = vst.msk [vmem:[%s3 + $0x2a4] sm:$0xf] %vm3620, %v3397
    %3791 = vst.msk [vmem:[%s3 + $0x2a8] sm:$0xf] %vm3620, %v3398
    %3792 = vst.msk [vmem:[%s3 + $0x2ac] sm:$0xf] %vm3620, %v3399
    %3793 = vst.msk [vmem:[%s3 + $0x2b0] sm:$0xf] %vm3620, %v3400
    %3794 = vst.msk [vmem:[%s3 + $0x2b4] sm:$0xf] %vm3620, %v3401
    %3795 = vst.msk [vmem:[%s3 + $0x2b8] sm:$0xf] %vm3620, %v3402
    %3796 = vst.msk [vmem:[%s3 + $0x2bc] sm:$0xf] %vm3620, %v3403
    %3797 = vst.msk [vmem:[%s3 + $0x2c0] sm:$0xf] %vm3620, %v3404
    %3798 = vst.msk [vmem:[%s3 + $0x2c4] sm:$0xf] %vm3620, %v3405
    %3799 = vst.msk [vmem:[%s3 + $0x2c8] sm:$0xf] %vm3620, %v3406
    %3800 = vst.msk [vmem:[%s3 + $0x2cc] sm:$0xf] %vm3620, %v3407
    %3801 = vst.msk [vmem:[%s3 + $0x2d0] sm:$0xf] %vm3620, %v3408
    %3802 = vst.msk [vmem:[%s3 + $0x2d4] sm:$0xf] %vm3620, %v3409
    %3803 = vst.msk [vmem:[%s3 + $0x2d8] sm:$0xf] %vm3620, %v3410
    %3804 = vst.msk [vmem:[%s3 + $0x2dc] sm:$0xf] %vm3620, %v3411
    %3805 = vst.msk [vmem:[%s3 + $0x2e0] sm:$0xf] %vm3620, %v3412
    %3806 = vst.msk [vmem:[%s3 + $0x2e4] sm:$0xf] %vm3620, %v3413
    %3807 = vst.msk [vmem:[%s3 + $0x2e8] sm:$0xf] %vm3620, %v3414
    %3808 = vst.msk [vmem:[%s3 + $0x2ec] sm:$0xf] %vm3620, %v3415
    %3809 = vst.msk [vmem:[%s3 + $0x2f0] sm:$0xf] %vm3620, %v3416
    %3810 = vst.msk [vmem:[%s3 + $0x2f4] sm:$0xf] %vm3620, %v3417
    %3811 = vst.msk [vmem:[%s3 + $0x2f8] sm:$0xf] %vm3620, %v3418
    %3812 = vst.msk [vmem:[%s3 + $0x2fc] sm:$0xf] %vm3620, %v3419
    %3813 = vst.msk [vmem:[%s3 + $0x300] sm:$0xf] %vm3620, %v3420
    %3814 = vst.msk [vmem:[%s3 + $0x304] sm:$0xf] %vm3620, %v3421
    %3815 = vst.msk [vmem:[%s3 + $0x308] sm:$0xf] %vm3620, %v3422
    %3816 = vst.msk [vmem:[%s3 + $0x30c] sm:$0xf] %vm3620, %v3423
    // Predicated region
    $region18: #{msn_convnet_forward.3} parent=1 // pred_check
      _
    $region19: #{msn_convnet_forward.3} parent=1 // pred_check_branch
      %3818 = sbr.rel (0) target = $region21
    $region20: #{msn_convnet_forward.3} parent=1 // pred_region
      _
    $region21: #{msn_convnet_forward.3} parent=1 // pred_fallthru
      _
    // Predicated region
    $region22: #{msn_convnet_forward.3} parent=1 // pred_check
      _
    $region23: #{msn_convnet_forward.3} parent=1 // pred_check_branch
      %3820 = sbr.rel (0) target = $region25
    $region24: #{msn_convnet_forward.3} parent=1 // pred_region
      _
    $region25: #{msn_convnet_forward.3} parent=1 // pred_fallthru
      _
    %3821 = vsyncpa [#allocation3], 1

// kernel: msn_convnet_forward.4
$region0: #{msn_convnet_forward.4}
  #allocation0 [shape = 'u32[]', space=smem, size = 0x4, offset = 0x4, fixed_abs, tag = 'smem constant byte address 0x4 - core index']
  #allocation1 [shape = 'u32[144,128]{1,0:T(1,128)}', space=vmem, size = 0x12000, scoped, tag = 'internal scratch']
  %s0 = inlined_call_operand.vmem [shape: bf16[1568,400], index: 0, kind: input, shape index: {}]
  %s1 = inlined_call_operand.vmem [shape: bf16[400,32], index: 1, kind: input, shape index: {}]
  %s2 = inlined_call_operand.vmem [shape: f32[1,32], index: 2, kind: input, shape index: {}]
  %s3 = inlined_call_operand.vmem [shape: bf16[1568,32], index: 3, kind: output, shape index: {}]
  %s4 = sld [smem:[#allocation0]]
  $region22: #{msn_convnet_forward.4} parent=0
    _
  %s6 = ssub.s32 1, %s4
  %s7 = scalar_select 0, %s6, %s4
  // Predicated region
  $region2: #{msn_convnet_forward.4} parent=0 // pred_check
    _
  $region3: #{msn_convnet_forward.4} parent=0 // pred_check_branch
    %9 = sbr.rel (0) target = $region5
  $region4: #{msn_convnet_forward.4} parent=0 // pred_region
    _
  $region5: #{msn_convnet_forward.4} parent=0 // pred_fallthru
    _
  // Predicated region
  $region6: #{msn_convnet_forward.4} parent=0 // pred_check
    _
  $region7: #{msn_convnet_forward.4} parent=0 // pred_check_branch
    %11 = sbr.rel (0) target = $region9
  $region8: #{msn_convnet_forward.4} parent=0 // pred_region
    _
  $region9: #{msn_convnet_forward.4} parent=0 // pred_fallthru
    _
  // Predicated region
  $region10: #{msn_convnet_forward.4} parent=0 // pred_check
    _
  $region11: #{msn_convnet_forward.4} parent=0 // pred_check_branch
    %13 = sbr.rel (0) target = $region13
  $region12: #{msn_convnet_forward.4} parent=0 // pred_region
    _
  $region13: #{msn_convnet_forward.4} parent=0 // pred_fallthru
    _
  %v15 = vld [vmem:[%s0] sm:$0xff]
  %v16 = vld [vmem:[%s0 + $0x8] sm:$0xff]
  %v17 = vld [vmem:[%s0 + $0x10] sm:$0xff]
  %v18 = vld [vmem:[%s0 + $0x18] sm:$0xff]
  %v19 = vld [vmem:[%s0 + $0x20] sm:$0xff]
  %v20 = vld [vmem:[%s0 + $0x28] sm:$0xff]
  %v21 = vld [vmem:[%s0 + $0x30] sm:$0xff]
  %v22 = vld [vmem:[%s0 + $0x38] sm:$0xff]
  %v23 = vld [vmem:[%s0 + $0x40] sm:$0xff]
  %v24 = vld [vmem:[%s0 + $0x48] sm:$0xff]
  %v25 = vld [vmem:[%s0 + $0x50] sm:$0xff]
  %v26 = vld [vmem:[%s0 + $0x58] sm:$0xff]
  %v27 = vld [vmem:[%s0 + $0x60] sm:$0xff]
  %v28 = vld [vmem:[%s0 + $0x68] sm:$0xff]
  %v29 = vld [vmem:[%s0 + $0x70] sm:$0xff]
  %v30 = vld [vmem:[%s0 + $0x78] sm:$0xff]
  %v31 = vld [vmem:[%s0 + $0x80] sm:$0xff]
  %v32 = vld [vmem:[%s0 + $0x88] sm:$0xff]
  %v33 = vld [vmem:[%s0 + $0x90] sm:$0xff]
  %v34 = vld [vmem:[%s0 + $0x98] sm:$0xff]
  %v35 = vld [vmem:[%s0 + $0xa0] sm:$0xff]
  %v36 = vld [vmem:[%s0 + $0xa8] sm:$0xff]
  %v37 = vld [vmem:[%s0 + $0xb0] sm:$0xff]
  %v38 = vld [vmem:[%s0 + $0xb8] sm:$0xff]
  %v39 = vld [vmem:[%s0 + $0xc0] sm:$0xff]
  %v40 = vld [vmem:[%s0 + $0xc8] sm:$0xff]
  %v41 = vld [vmem:[%s0 + $0xd0] sm:$0xff]
  %v42 = vld [vmem:[%s0 + $0xd8] sm:$0xff]
  %v43 = vld [vmem:[%s0 + $0xe0] sm:$0xff]
  %v44 = vld [vmem:[%s0 + $0xe8] sm:$0xff]
  %v45 = vld [vmem:[%s0 + $0xf0] sm:$0xff]
  %v46 = vld [vmem:[%s0 + $0xf8] sm:$0xff]
  %v47 = vld [vmem:[%s0 + $0x100] sm:$0xff]
  %v48 = vld [vmem:[%s0 + $0x108] sm:$0xff]
  %v49 = vld [vmem:[%s0 + $0x110] sm:$0xff]
  %v50 = vld [vmem:[%s0 + $0x118] sm:$0xff]
  %v51 = vld [vmem:[%s0 + $0x120] sm:$0xff]
  %v52 = vld [vmem:[%s0 + $0x128] sm:$0xff]
  %v53 = vld [vmem:[%s0 + $0x130] sm:$0xff]
  %v54 = vld [vmem:[%s0 + $0x138] sm:$0xff]
  %v55 = vld [vmem:[%s0 + $0x140] sm:$0xff]
  %v56 = vld [vmem:[%s0 + $0x148] sm:$0xff]
  %v57 = vld [vmem:[%s0 + $0x150] sm:$0xff]
  %v58 = vld [vmem:[%s0 + $0x158] sm:$0xff]
  %v59 = vld [vmem:[%s0 + $0x160] sm:$0xff]
  %v60 = vld [vmem:[%s0 + $0x168] sm:$0xff]
  %v61 = vld [vmem:[%s0 + $0x170] sm:$0xff]
  %v62 = vld [vmem:[%s0 + $0x178] sm:$0xff]
  %v63 = vld [vmem:[%s0 + $0x180] sm:$0xff]
  %v64 = vld [vmem:[%s0 + $0x188] sm:$0xff]
  %v65 = vld [vmem:[%s0 + $0x190] sm:$0xff]
  %v66 = vld [vmem:[%s0 + $0x198] sm:$0xff]
  %v67 = vld [vmem:[%s0 + $0x1a0] sm:$0xff]
  %v68 = vld [vmem:[%s0 + $0x1a8] sm:$0xff]
  %v69 = vld [vmem:[%s0 + $0x1b0] sm:$0xff]
  %v70 = vld [vmem:[%s0 + $0x1b8] sm:$0xff]
  %v71 = vld [vmem:[%s0 + $0x1c0] sm:$0xff]
  %v72 = vld [vmem:[%s0 + $0x1c8] sm:$0xff]
  %v73 = vld [vmem:[%s0 + $0x1d0] sm:$0xff]
  %v74 = vld [vmem:[%s0 + $0x1d8] sm:$0xff]
  %v75 = vld [vmem:[%s0 + $0x1e0] sm:$0xff]
  %v76 = vld [vmem:[%s0 + $0x1e8] sm:$0xff]
  %v77 = vld [vmem:[%s0 + $0x1f0] sm:$0xff]
  %v78 = vld [vmem:[%s0 + $0x1f8] sm:$0xff]
  %v79 = vld [vmem:[%s0 + $0x200] sm:$0xff]
  %v80 = vld [vmem:[%s0 + $0x208] sm:$0xff]
  %v81 = vld [vmem:[%s0 + $0x210] sm:$0xff]
  %v82 = vld [vmem:[%s0 + $0x218] sm:$0xff]
  %v83 = vld [vmem:[%s0 + $0x220] sm:$0xff]
  %v84 = vld [vmem:[%s0 + $0x228] sm:$0xff]
  %v85 = vld [vmem:[%s0 + $0x230] sm:$0xff]
  %v86 = vld [vmem:[%s0 + $0x238] sm:$0xff]
  %v87 = vld [vmem:[%s0 + $0x240] sm:$0xff]
  %v88 = vld [vmem:[%s0 + $0x248] sm:$0xff]
  %v89 = vld [vmem:[%s0 + $0x250] sm:$0xff]
  %v90 = vld [vmem:[%s0 + $0x258] sm:$0xff]
  %v91 = vld [vmem:[%s0 + $0x260] sm:$0xff]
  %v92 = vld [vmem:[%s0 + $0x268] sm:$0xff]
  %v93 = vld [vmem:[%s0 + $0x270] sm:$0xff]
  %v94 = vld [vmem:[%s0 + $0x278] sm:$0xff]
  %v95 = vld [vmem:[%s0 + $0x280] sm:$0xff]
  %v96 = vld [vmem:[%s0 + $0x288] sm:$0xff]
  %v97 = vld [vmem:[%s0 + $0x290] sm:$0xff]
  %v98 = vld [vmem:[%s0 + $0x298] sm:$0xff]
  %v99 = vld [vmem:[%s0 + $0x2a0] sm:$0xff]
  %v100 = vld [vmem:[%s0 + $0x2a8] sm:$0xff]
  %v101 = vld [vmem:[%s0 + $0x2b0] sm:$0xff]
  %v102 = vld [vmem:[%s0 + $0x2b8] sm:$0xff]
  %v103 = vld [vmem:[%s0 + $0x2c0] sm:$0xff]
  %v104 = vld [vmem:[%s0 + $0x2c8] sm:$0xff]
  %v105 = vld [vmem:[%s0 + $0x2d0] sm:$0xff]
  %v106 = vld [vmem:[%s0 + $0x2d8] sm:$0xff]
  %v107 = vld [vmem:[%s0 + $0x2e0] sm:$0xff]
  %v108 = vld [vmem:[%s0 + $0x2e8] sm:$0xff]
  %v109 = vld [vmem:[%s0 + $0x2f0] sm:$0xff]
  %v110 = vld [vmem:[%s0 + $0x2f8] sm:$0xff]
  %v111 = vld [vmem:[%s0 + $0x300] sm:$0xff]
  %v112 = vld [vmem:[%s0 + $0x308] sm:$0xff]
  %v113 = vld [vmem:[%s0 + $0x310] sm:$0xff]
  %v114 = vld [vmem:[%s0 + $0x318] sm:$0xff]
  %v115 = vld [vmem:[%s0 + $0x320] sm:$0xff]
  %v116 = vld [vmem:[%s0 + $0x328] sm:$0xff]
  %v117 = vld [vmem:[%s0 + $0x330] sm:$0xff]
  %v118 = vld [vmem:[%s0 + $0x338] sm:$0xff]
  %v119 = vld [vmem:[%s0 + $0x340] sm:$0xff]
  %v120 = vld [vmem:[%s0 + $0x348] sm:$0xff]
  %v121 = vld [vmem:[%s0 + $0x350] sm:$0xff]
  %v122 = vld [vmem:[%s0 + $0x358] sm:$0xff]
  %v123 = vld [vmem:[%s0 + $0x360] sm:$0xff]
  %v124 = vld [vmem:[%s0 + $0x368] sm:$0xff]
  %v125 = vld [vmem:[%s0 + $0x370] sm:$0xff]
  %v126 = vld [vmem:[%s0 + $0x378] sm:$0xff]
  %v127 = vld [vmem:[%s0 + $0x380] sm:$0xff]
  %v128 = vld [vmem:[%s0 + $0x388] sm:$0xff]
  %v129 = vld [vmem:[%s0 + $0x390] sm:$0xff]
  %v130 = vld [vmem:[%s0 + $0x398] sm:$0xff]
  %v131 = vld [vmem:[%s0 + $0x3a0] sm:$0xff]
  %v132 = vld [vmem:[%s0 + $0x3a8] sm:$0xff]
  %v133 = vld [vmem:[%s0 + $0x3b0] sm:$0xff]
  %v134 = vld [vmem:[%s0 + $0x3b8] sm:$0xff]
  %v135 = vld [vmem:[%s0 + $0x3c0] sm:$0xff]
  %v136 = vld [vmem:[%s0 + $0x3c8] sm:$0xff]
  %v137 = vld [vmem:[%s0 + $0x3d0] sm:$0xff]
  %v138 = vld [vmem:[%s0 + $0x3d8] sm:$0xff]
  %v139 = vld [vmem:[%s0 + $0x3e0] sm:$0xff]
  %v140 = vld [vmem:[%s0 + $0x3e8] sm:$0xff]
  %v141 = vld [vmem:[%s0 + $0x3f0] sm:$0xff]
  %v142 = vld [vmem:[%s0 + $0x3f8] sm:$0xff]
  %v143 = vld [vmem:[%s0 + $0x400] sm:$0xff]
  %v144 = vld [vmem:[%s0 + $0x408] sm:$0xff]
  %v145 = vld [vmem:[%s0 + $0x410] sm:$0xff]
  %v146 = vld [vmem:[%s0 + $0x418] sm:$0xff]
  %v147 = vld [vmem:[%s0 + $0x420] sm:$0xff]
  %v148 = vld [vmem:[%s0 + $0x428] sm:$0xff]
  %v149 = vld [vmem:[%s0 + $0x430] sm:$0xff]
  %v150 = vld [vmem:[%s0 + $0x438] sm:$0xff]
  %v151 = vld [vmem:[%s0 + $0x440] sm:$0xff]
  %v152 = vld [vmem:[%s0 + $0x448] sm:$0xff]
  %v153 = vld [vmem:[%s0 + $0x450] sm:$0xff]
  %v154 = vld [vmem:[%s0 + $0x458] sm:$0xff]
  %v155 = vld [vmem:[%s0 + $0x460] sm:$0xff]
  %v156 = vld [vmem:[%s0 + $0x468] sm:$0xff]
  %v157 = vld [vmem:[%s0 + $0x470] sm:$0xff]
  %v158 = vld [vmem:[%s0 + $0x478] sm:$0xff]
  %v159 = vld [vmem:[%s0 + $0x480] sm:$0xff]
  %v160 = vld [vmem:[%s0 + $0x488] sm:$0xff]
  %v161 = vld [vmem:[%s0 + $0x490] sm:$0xff]
  %v162 = vld [vmem:[%s0 + $0x498] sm:$0xff]
  %v163 = vld [vmem:[%s0 + $0x4a0] sm:$0xff]
  %v164 = vld [vmem:[%s0 + $0x4a8] sm:$0xff]
  %v165 = vld [vmem:[%s0 + $0x4b0] sm:$0xff]
  %v166 = vld [vmem:[%s0 + $0x4b8] sm:$0xff]
  %v167 = vld [vmem:[%s0 + $0x4c0] sm:$0xff]
  %v168 = vld [vmem:[%s0 + $0x4c8] sm:$0xff]
  %v169 = vld [vmem:[%s0 + $0x4d0] sm:$0xff]
  %v170 = vld [vmem:[%s0 + $0x4d8] sm:$0xff]
  %v171 = vld [vmem:[%s0 + $0x4e0] sm:$0xff]
  %v172 = vld [vmem:[%s0 + $0x4e8] sm:$0xff]
  %v173 = vld [vmem:[%s0 + $0x4f0] sm:$0xff]
  %v174 = vld [vmem:[%s0 + $0x4f8] sm:$0xff]
  %v175 = vld [vmem:[%s0 + $0x500] sm:$0xff]
  %v176 = vld [vmem:[%s0 + $0x508] sm:$0xff]
  %v177 = vld [vmem:[%s0 + $0x510] sm:$0xff]
  %v178 = vld [vmem:[%s0 + $0x518] sm:$0xff]
  %v179 = vld [vmem:[%s0 + $0x520] sm:$0xff]
  %v180 = vld [vmem:[%s0 + $0x528] sm:$0xff]
  %v181 = vld [vmem:[%s0 + $0x530] sm:$0xff]
  %v182 = vld [vmem:[%s0 + $0x538] sm:$0xff]
  %v183 = vld [vmem:[%s0 + $0x540] sm:$0xff]
  %v184 = vld [vmem:[%s0 + $0x548] sm:$0xff]
  %v185 = vld [vmem:[%s0 + $0x550] sm:$0xff]
  %v186 = vld [vmem:[%s0 + $0x558] sm:$0xff]
  %v187 = vld [vmem:[%s0 + $0x560] sm:$0xff]
  %v188 = vld [vmem:[%s0 + $0x568] sm:$0xff]
  %v189 = vld [vmem:[%s0 + $0x570] sm:$0xff]
  %v190 = vld [vmem:[%s0 + $0x578] sm:$0xff]
  %v191 = vld [vmem:[%s0 + $0x580] sm:$0xff]
  %v192 = vld [vmem:[%s0 + $0x588] sm:$0xff]
  %v193 = vld [vmem:[%s0 + $0x590] sm:$0xff]
  %v194 = vld [vmem:[%s0 + $0x598] sm:$0xff]
  %v195 = vld [vmem:[%s0 + $0x5a0] sm:$0xff]
  %v196 = vld [vmem:[%s0 + $0x5a8] sm:$0xff]
  %v197 = vld [vmem:[%s0 + $0x5b0] sm:$0xff]
  %v198 = vld [vmem:[%s0 + $0x5b8] sm:$0xff]
  %v199 = vld [vmem:[%s0 + $0x5c0] sm:$0xff]
  %v200 = vld [vmem:[%s0 + $0x5c8] sm:$0xff]
  %v201 = vld [vmem:[%s0 + $0x5d0] sm:$0xff]
  %v202 = vld [vmem:[%s0 + $0x5d8] sm:$0xff]
  %v203 = vld [vmem:[%s0 + $0x5e0] sm:$0xff]
  %v204 = vld [vmem:[%s0 + $0x5e8] sm:$0xff]
  %v205 = vld [vmem:[%s0 + $0x5f0] sm:$0xff]
  %v206 = vld [vmem:[%s0 + $0x5f8] sm:$0xff]
  %v207 = vld [vmem:[%s0 + $0x600] sm:$0xff]
  %v208 = vld [vmem:[%s0 + $0x608] sm:$0xff]
  %v209 = vld [vmem:[%s0 + $0x610] sm:$0xff]
  %v210 = vld [vmem:[%s0 + $0x618] sm:$0xff]
  %v211 = vld [vmem:[%s0 + $0x620] sm:$0xff]
  %v212 = vld [vmem:[%s0 + $0x628] sm:$0xff]
  %v213 = vld [vmem:[%s0 + $0x630] sm:$0xff]
  %v214 = vld [vmem:[%s0 + $0x638] sm:$0xff]
  %v215 = vld [vmem:[%s0 + $0x640] sm:$0xff]
  %v216 = vld [vmem:[%s0 + $0x648] sm:$0xff]
  %v217 = vld [vmem:[%s0 + $0x650] sm:$0xff]
  %v218 = vld [vmem:[%s0 + $0x658] sm:$0xff]
  %v219 = vld [vmem:[%s0 + $0x660] sm:$0xff]
  %v220 = vld [vmem:[%s0 + $0x668] sm:$0xff]
  %v221 = vld [vmem:[%s0 + $0x670] sm:$0xff]
  %v222 = vld [vmem:[%s0 + $0x678] sm:$0xff]
  %v223 = vld [vmem:[%s0 + $0x680] sm:$0xff]
  %v224 = vld [vmem:[%s0 + $0x688] sm:$0xff]
  %v225 = vld [vmem:[%s0 + $0x690] sm:$0xff]
  %v226 = vld [vmem:[%s0 + $0x698] sm:$0xff]
  %v227 = vld [vmem:[%s0 + $0x6a0] sm:$0xff]
  %v228 = vld [vmem:[%s0 + $0x6a8] sm:$0xff]
  %v229 = vld [vmem:[%s0 + $0x6b0] sm:$0xff]
  %v230 = vld [vmem:[%s0 + $0x6b8] sm:$0xff]
  %v231 = vld [vmem:[%s0 + $0x6c0] sm:$0xff]
  %v232 = vld [vmem:[%s0 + $0x6c8] sm:$0xff]
  %v233 = vld [vmem:[%s0 + $0x6d0] sm:$0xff]
  %v234 = vld [vmem:[%s0 + $0x6d8] sm:$0xff]
  %v235 = vld [vmem:[%s0 + $0x6e0] sm:$0xff]
  %v236 = vld [vmem:[%s0 + $0x6e8] sm:$0xff]
  %v237 = vld [vmem:[%s0 + $0x6f0] sm:$0xff]
  %v238 = vld [vmem:[%s0 + $0x6f8] sm:$0xff]
  %v239 = vld [vmem:[%s0 + $0x700] sm:$0xff]
  %v240 = vld [vmem:[%s0 + $0x708] sm:$0xff]
  %v241 = vld [vmem:[%s0 + $0x710] sm:$0xff]
  %v242 = vld [vmem:[%s0 + $0x718] sm:$0xff]
  %v243 = vld [vmem:[%s0 + $0x720] sm:$0xff]
  %v244 = vld [vmem:[%s0 + $0x728] sm:$0xff]
  %v245 = vld [vmem:[%s0 + $0x730] sm:$0xff]
  %v246 = vld [vmem:[%s0 + $0x738] sm:$0xff]
  %v247 = vld [vmem:[%s0 + $0x740] sm:$0xff]
  %v248 = vld [vmem:[%s0 + $0x748] sm:$0xff]
  %v249 = vld [vmem:[%s0 + $0x750] sm:$0xff]
  %v250 = vld [vmem:[%s0 + $0x758] sm:$0xff]
  %v251 = vld [vmem:[%s0 + $0x760] sm:$0xff]
  %v252 = vld [vmem:[%s0 + $0x768] sm:$0xff]
  %v253 = vld [vmem:[%s0 + $0x770] sm:$0xff]
  %v254 = vld [vmem:[%s0 + $0x778] sm:$0xff]
  %v255 = vld [vmem:[%s0 + $0x780] sm:$0xff]
  %v256 = vld [vmem:[%s0 + $0x788] sm:$0xff]
  %v257 = vld [vmem:[%s0 + $0x790] sm:$0xff]
  %v258 = vld [vmem:[%s0 + $0x798] sm:$0xff]
  %v259 = vld [vmem:[%s0 + $0x7a0] sm:$0xff]
  %v260 = vld [vmem:[%s0 + $0x7a8] sm:$0xff]
  %v261 = vld [vmem:[%s0 + $0x7b0] sm:$0xff]
  %v262 = vld [vmem:[%s0 + $0x7b8] sm:$0xff]
  %v263 = vld [vmem:[%s0 + $0x7c0] sm:$0xff]
  %v264 = vld [vmem:[%s0 + $0x7c8] sm:$0xff]
  %v265 = vld [vmem:[%s0 + $0x7d0] sm:$0xff]
  %v266 = vld [vmem:[%s0 + $0x7d8] sm:$0xff]
  %v267 = vld [vmem:[%s0 + $0x7e0] sm:$0xff]
  %v268 = vld [vmem:[%s0 + $0x7e8] sm:$0xff]
  %v269 = vld [vmem:[%s0 + $0x7f0] sm:$0xff]
  %v270 = vld [vmem:[%s0 + $0x7f8] sm:$0xff]
  %v271 = vld [vmem:[%s0 + $0x800] sm:$0xff]
  %v272 = vld [vmem:[%s0 + $0x808] sm:$0xff]
  %v273 = vld [vmem:[%s0 + $0x810] sm:$0xff]
  %v274 = vld [vmem:[%s0 + $0x818] sm:$0xff]
  %v275 = vld [vmem:[%s0 + $0x820] sm:$0xff]
  %v276 = vld [vmem:[%s0 + $0x828] sm:$0xff]
  %v277 = vld [vmem:[%s0 + $0x830] sm:$0xff]
  %v278 = vld [vmem:[%s0 + $0x838] sm:$0xff]
  %v279 = vld [vmem:[%s0 + $0x840] sm:$0xff]
  %v280 = vld [vmem:[%s0 + $0x848] sm:$0xff]
  %v281 = vld [vmem:[%s0 + $0x850] sm:$0xff]
  %v282 = vld [vmem:[%s0 + $0x858] sm:$0xff]
  %v283 = vld [vmem:[%s0 + $0x860] sm:$0xff]
  %v284 = vld [vmem:[%s0 + $0x868] sm:$0xff]
  %v285 = vld [vmem:[%s0 + $0x870] sm:$0xff]
  %v286 = vld [vmem:[%s0 + $0x878] sm:$0xff]
  %v287 = vld [vmem:[%s0 + $0x880] sm:$0xff]
  %v288 = vld [vmem:[%s0 + $0x888] sm:$0xff]
  %v289 = vld [vmem:[%s0 + $0x890] sm:$0xff]
  %v290 = vld [vmem:[%s0 + $0x898] sm:$0xff]
  %v291 = vld [vmem:[%s0 + $0x8a0] sm:$0xff]
  %v292 = vld [vmem:[%s0 + $0x8a8] sm:$0xff]
  %v293 = vld [vmem:[%s0 + $0x8b0] sm:$0xff]
  %v294 = vld [vmem:[%s0 + $0x8b8] sm:$0xff]
  %v295 = vld [vmem:[%s0 + $0x8c0] sm:$0xff]
  %v296 = vld [vmem:[%s0 + $0x8c8] sm:$0xff]
  %v297 = vld [vmem:[%s0 + $0x8d0] sm:$0xff]
  %v298 = vld [vmem:[%s0 + $0x8d8] sm:$0xff]
  %v299 = vld [vmem:[%s0 + $0x8e0] sm:$0xff]
  %v300 = vld [vmem:[%s0 + $0x8e8] sm:$0xff]
  %v301 = vld [vmem:[%s0 + $0x8f0] sm:$0xff]
  %v302 = vld [vmem:[%s0 + $0x8f8] sm:$0xff]
  %v303 = vld [vmem:[%s0 + $0x900] sm:$0xff]
  %v304 = vld [vmem:[%s0 + $0x908] sm:$0xff]
  %v305 = vld [vmem:[%s0 + $0x910] sm:$0xff]
  %v306 = vld [vmem:[%s0 + $0x918] sm:$0xff]
  %v307 = vld [vmem:[%s0 + $0x920] sm:$0xff]
  %v308 = vld [vmem:[%s0 + $0x928] sm:$0xff]
  %v309 = vld [vmem:[%s0 + $0x930] sm:$0xff]
  %v310 = vld [vmem:[%s0 + $0x938] sm:$0xff]
  %v311 = vld [vmem:[%s0 + $0x940] sm:$0xff]
  %v312 = vld [vmem:[%s0 + $0x948] sm:$0xff]
  %v313 = vld [vmem:[%s0 + $0x950] sm:$0xff]
  %v314 = vld [vmem:[%s0 + $0x958] sm:$0xff]
  %v315 = vld [vmem:[%s0 + $0x960] sm:$0xff]
  %v316 = vld [vmem:[%s0 + $0x968] sm:$0xff]
  %v317 = vld [vmem:[%s0 + $0x970] sm:$0xff]
  %v318 = vld [vmem:[%s0 + $0x978] sm:$0xff]
  %v319 = vld [vmem:[%s0 + $0x980] sm:$0xff]
  %v320 = vld [vmem:[%s0 + $0x988] sm:$0xff]
  %v321 = vld [vmem:[%s0 + $0x990] sm:$0xff]
  %v322 = vld [vmem:[%s0 + $0x998] sm:$0xff]
  %v323 = vld [vmem:[%s0 + $0x9a0] sm:$0xff]
  %v324 = vld [vmem:[%s0 + $0x9a8] sm:$0xff]
  %v325 = vld [vmem:[%s0 + $0x9b0] sm:$0xff]
  %v326 = vld [vmem:[%s0 + $0x9b8] sm:$0xff]
  %v327 = vld [vmem:[%s0 + $0x9c0] sm:$0xff]
  %v328 = vld [vmem:[%s0 + $0x9c8] sm:$0xff]
  %v329 = vld [vmem:[%s0 + $0x9d0] sm:$0xff]
  %v330 = vld [vmem:[%s0 + $0x9d8] sm:$0xff]
  %v331 = vld [vmem:[%s0 + $0x9e0] sm:$0xff]
  %v332 = vld [vmem:[%s0 + $0x9e8] sm:$0xff]
  %v333 = vld [vmem:[%s0 + $0x9f0] sm:$0xff]
  %v334 = vld [vmem:[%s0 + $0x9f8] sm:$0xff]
  %v335 = vld [vmem:[%s0 + $0xa00] sm:$0xff]
  %v336 = vld [vmem:[%s0 + $0xa08] sm:$0xff]
  %v337 = vld [vmem:[%s0 + $0xa10] sm:$0xff]
  %v338 = vld [vmem:[%s0 + $0xa18] sm:$0xff]
  %v339 = vld [vmem:[%s0 + $0xa20] sm:$0xff]
  %v340 = vld [vmem:[%s0 + $0xa28] sm:$0xff]
  %v341 = vld [vmem:[%s0 + $0xa30] sm:$0xff]
  %v342 = vld [vmem:[%s0 + $0xa38] sm:$0xff]
  %v343 = vld [vmem:[%s0 + $0xa40] sm:$0xff]
  %v344 = vld [vmem:[%s0 + $0xa48] sm:$0xff]
  %v345 = vld [vmem:[%s0 + $0xa50] sm:$0xff]
  %v346 = vld [vmem:[%s0 + $0xa58] sm:$0xff]
  %v347 = vld [vmem:[%s0 + $0xa60] sm:$0xff]
  %v348 = vld [vmem:[%s0 + $0xa68] sm:$0xff]
  %v349 = vld [vmem:[%s0 + $0xa70] sm:$0xff]
  %v350 = vld [vmem:[%s0 + $0xa78] sm:$0xff]
  %v351 = vld [vmem:[%s0 + $0xa80] sm:$0xff]
  %v352 = vld [vmem:[%s0 + $0xa88] sm:$0xff]
  %v353 = vld [vmem:[%s0 + $0xa90] sm:$0xff]
  %v354 = vld [vmem:[%s0 + $0xa98] sm:$0xff]
  %v355 = vld [vmem:[%s0 + $0xaa0] sm:$0xff]
  %v356 = vld [vmem:[%s0 + $0xaa8] sm:$0xff]
  %v357 = vld [vmem:[%s0 + $0xab0] sm:$0xff]
  %v358 = vld [vmem:[%s0 + $0xab8] sm:$0xff]
  %v359 = vld [vmem:[%s0 + $0xac0] sm:$0xff]
  %v360 = vld [vmem:[%s0 + $0xac8] sm:$0xff]
  %v361 = vld [vmem:[%s0 + $0xad0] sm:$0xff]
  %v362 = vld [vmem:[%s0 + $0xad8] sm:$0xff]
  %v363 = vld [vmem:[%s0 + $0xae0] sm:$0xff]
  %v364 = vld [vmem:[%s0 + $0xae8] sm:$0xff]
  %v365 = vld [vmem:[%s0 + $0xaf0] sm:$0xff]
  %v366 = vld [vmem:[%s0 + $0xaf8] sm:$0xff]
  %v367 = vld [vmem:[%s0 + $0xb00] sm:$0xff]
  %v368 = vld [vmem:[%s0 + $0xb08] sm:$0xff]
  %v369 = vld [vmem:[%s0 + $0xb10] sm:$0xff]
  %v370 = vld [vmem:[%s0 + $0xb18] sm:$0xff]
  %v371 = vld [vmem:[%s0 + $0xb20] sm:$0xff]
  %v372 = vld [vmem:[%s0 + $0xb28] sm:$0xff]
  %v373 = vld [vmem:[%s0 + $0xb30] sm:$0xff]
  %v374 = vld [vmem:[%s0 + $0xb38] sm:$0xff]
  %v375 = vld [vmem:[%s0 + $0xb40] sm:$0xff]
  %v376 = vld [vmem:[%s0 + $0xb48] sm:$0xff]
  %v377 = vld [vmem:[%s0 + $0xb50] sm:$0xff]
  %v378 = vld [vmem:[%s0 + $0xb58] sm:$0xff]
  %v379 = vld [vmem:[%s0 + $0xb60] sm:$0xff]
  %v380 = vld [vmem:[%s0 + $0xb68] sm:$0xff]
  %v381 = vld [vmem:[%s0 + $0xb70] sm:$0xff]
  %v382 = vld [vmem:[%s0 + $0xb78] sm:$0xff]
  %v383 = vld [vmem:[%s0 + $0xb80] sm:$0xff]
  %v384 = vld [vmem:[%s0 + $0xb88] sm:$0xff]
  %v385 = vld [vmem:[%s0 + $0xb90] sm:$0xff]
  %v386 = vld [vmem:[%s0 + $0xb98] sm:$0xff]
  %v387 = vld [vmem:[%s0 + $0xba0] sm:$0xff]
  %v388 = vld [vmem:[%s0 + $0xba8] sm:$0xff]
  %v389 = vld [vmem:[%s0 + $0xbb0] sm:$0xff]
  %v390 = vld [vmem:[%s0 + $0xbb8] sm:$0xff]
  %v391 = vld [vmem:[%s0 + $0xbc0] sm:$0xff]
  %v392 = vld [vmem:[%s0 + $0xbc8] sm:$0xff]
  %v393 = vld [vmem:[%s0 + $0xbd0] sm:$0xff]
  %v394 = vld [vmem:[%s0 + $0xbd8] sm:$0xff]
  %v395 = vld [vmem:[%s0 + $0xbe0] sm:$0xff]
  %v396 = vld [vmem:[%s0 + $0xbe8] sm:$0xff]
  %v397 = vld [vmem:[%s0 + $0xbf0] sm:$0xff]
  %v398 = vld [vmem:[%s0 + $0xbf8] sm:$0xff]
  %v399 = vld [vmem:[%s0 + $0xc00] sm:$0xff]
  %v400 = vld [vmem:[%s0 + $0xc08] sm:$0xff]
  %v401 = vld [vmem:[%s0 + $0xc10] sm:$0xff]
  %v402 = vld [vmem:[%s0 + $0xc18] sm:$0xff]
  %v403 = vld [vmem:[%s0 + $0xc20] sm:$0xff]
  %v404 = vld [vmem:[%s0 + $0xc28] sm:$0xff]
  %v405 = vld [vmem:[%s0 + $0xc30] sm:$0xff]
  %v406 = vld [vmem:[%s0 + $0xc38] sm:$0xff]
  %v407 = vld [vmem:[%s1] sm:$0xf]
  %v408 = vld [vmem:[%s1 + $0x4] sm:$0xf]
  %v409 = vld [vmem:[%s1 + $0x8] sm:$0xf]
  %v410 = vld [vmem:[%s1 + $0xc] sm:$0xf]
  %v411 = vld [vmem:[%s1 + $0x10] sm:$0xf]
  %v412 = vld [vmem:[%s1 + $0x14] sm:$0xf]
  %v413 = vld [vmem:[%s1 + $0x18] sm:$0xf]
  %v414 = vld [vmem:[%s1 + $0x1c] sm:$0xf]
  %v415 = vld [vmem:[%s1 + $0x20] sm:$0xf]
  %v416 = vld [vmem:[%s1 + $0x24] sm:$0xf]
  %v417 = vld [vmem:[%s1 + $0x28] sm:$0xf]
  %v418 = vld [vmem:[%s1 + $0x2c] sm:$0xf]
  %v419 = vld [vmem:[%s1 + $0x30] sm:$0xf]
  %v420 = vld [vmem:[%s1 + $0x34] sm:$0xf]
  %v421 = vld [vmem:[%s1 + $0x38] sm:$0xf]
  %v422 = vld [vmem:[%s1 + $0x3c] sm:$0xf]
  %v423 = vld [vmem:[%s1 + $0x40] sm:$0xf]
  %v424 = vld [vmem:[%s1 + $0x44] sm:$0xf]
  %v425 = vld [vmem:[%s1 + $0x48] sm:$0xf]
  %v426 = vld [vmem:[%s1 + $0x4c] sm:$0xf]
  %v427 = vld [vmem:[%s1 + $0x50] sm:$0xf]
  %v428 = vld [vmem:[%s1 + $0x54] sm:$0xf]
  %v429 = vld [vmem:[%s1 + $0x58] sm:$0xf]
  %v430 = vld [vmem:[%s1 + $0x5c] sm:$0xf]
  %v431 = vld [vmem:[%s1 + $0x60] sm:$0xf]
  %v432 = vld [vmem:[%s1 + $0x64] sm:$0xf]
  %v433 = vld [vmem:[%s1 + $0x68] sm:$0xf]
  %v434 = vld [vmem:[%s1 + $0x6c] sm:$0xf]
  %v435 = vld [vmem:[%s1 + $0x70] sm:$0xf]
  %v436 = vld [vmem:[%s1 + $0x74] sm:$0xf]
  %v437 = vld [vmem:[%s1 + $0x78] sm:$0xf]
  %v438 = vld [vmem:[%s1 + $0x7c] sm:$0xf]
  %v439 = vld [vmem:[%s1 + $0x80] sm:$0xf]
  %v440 = vld [vmem:[%s1 + $0x84] sm:$0xf]
  %v441 = vld [vmem:[%s1 + $0x88] sm:$0xf]
  %v442 = vld [vmem:[%s1 + $0x8c] sm:$0xf]
  %v443 = vld [vmem:[%s1 + $0x90] sm:$0xf]
  %v444 = vld [vmem:[%s1 + $0x94] sm:$0xf]
  %v445 = vld [vmem:[%s1 + $0x98] sm:$0xf]
  %v446 = vld [vmem:[%s1 + $0x9c] sm:$0xf]
  %v447 = vld [vmem:[%s1 + $0xa0] sm:$0xf]
  %v448 = vld [vmem:[%s1 + $0xa4] sm:$0xf]
  %v449 = vld [vmem:[%s1 + $0xa8] sm:$0xf]
  %v450 = vld [vmem:[%s1 + $0xac] sm:$0xf]
  %v451 = vld [vmem:[%s1 + $0xb0] sm:$0xf]
  %v452 = vld [vmem:[%s1 + $0xb4] sm:$0xf]
  %v453 = vld [vmem:[%s1 + $0xb8] sm:$0xf]
  %v454 = vld [vmem:[%s1 + $0xbc] sm:$0xf]
  %v455 = vld [vmem:[%s1 + $0xc0] sm:$0xf]
  %v456 = vld [vmem:[%s1 + $0xc4] sm:$0xf]
  %v849 = vunpack.c.l.b16 %v15
  %v850 = vunpack.c.h.b16 %v15
  %v851 = vunpack.c.l.b16 %v16
  %v852 = vunpack.c.h.b16 %v16
  %v853 = vunpack.c.l.b16 %v17
  %v854 = vunpack.c.h.b16 %v17
  %v855 = vunpack.c.l.b16 %v18
  %v856 = vunpack.c.h.b16 %v18
  %v857 = vunpack.c.l.b16 %v19
  %v858 = vunpack.c.h.b16 %v19
  %v859 = vunpack.c.l.b16 %v20
  %v860 = vunpack.c.h.b16 %v20
  %v861 = vunpack.c.l.b16 %v21
  %v862 = vunpack.c.h.b16 %v21
  %v863 = vunpack.c.l.b16 %v22
  %v864 = vunpack.c.h.b16 %v22
  %v865 = vunpack.c.l.b16 %v23
  %v866 = vunpack.c.h.b16 %v23
  %v867 = vunpack.c.l.b16 %v24
  %v868 = vunpack.c.h.b16 %v24
  %v869 = vunpack.c.l.b16 %v25
  %v870 = vunpack.c.h.b16 %v25
  %v871 = vunpack.c.l.b16 %v26
  %v872 = vunpack.c.h.b16 %v26
  %v873 = vunpack.c.l.b16 %v27
  %v874 = vunpack.c.h.b16 %v27
  %v875 = vunpack.c.l.b16 %v28
  %v876 = vunpack.c.h.b16 %v28
  %v877 = vunpack.c.l.b16 %v29
  %v878 = vunpack.c.h.b16 %v29
  %v879 = vunpack.c.l.b16 %v30
  %v880 = vunpack.c.h.b16 %v30
  %v881 = vunpack.c.l.b16 %v31
  %v882 = vunpack.c.h.b16 %v31
  %v883 = vunpack.c.l.b16 %v32
  %v884 = vunpack.c.h.b16 %v32
  %v885 = vunpack.c.l.b16 %v33
  %v886 = vunpack.c.h.b16 %v33
  %v887 = vunpack.c.l.b16 %v34
  %v888 = vunpack.c.h.b16 %v34
  %v889 = vunpack.c.l.b16 %v35
  %v890 = vunpack.c.h.b16 %v35
  %v891 = vunpack.c.l.b16 %v36
  %v892 = vunpack.c.h.b16 %v36
  %v893 = vunpack.c.l.b16 %v37
  %v894 = vunpack.c.h.b16 %v37
  %v895 = vunpack.c.l.b16 %v38
  %v896 = vunpack.c.h.b16 %v38
  %v897 = vunpack.c.l.b16 %v39
  %v898 = vunpack.c.h.b16 %v39
  %v899 = vunpack.c.l.b16 %v40
  %v900 = vunpack.c.h.b16 %v40
  %v901 = vunpack.c.l.b16 %v41
  %v902 = vunpack.c.h.b16 %v41
  %v903 = vunpack.c.l.b16 %v42
  %v904 = vunpack.c.h.b16 %v42
  %v905 = vunpack.c.l.b16 %v43
  %v906 = vunpack.c.h.b16 %v43
  %v907 = vunpack.c.l.b16 %v44
  %v908 = vunpack.c.h.b16 %v44
  %v909 = vunpack.c.l.b16 %v45
  %v910 = vunpack.c.h.b16 %v45
  %v911 = vunpack.c.l.b16 %v46
  %v912 = vunpack.c.h.b16 %v46
  %v913 = vunpack.c.l.b16 %v47
  %v914 = vunpack.c.h.b16 %v47
  %v915 = vunpack.c.l.b16 %v48
  %v916 = vunpack.c.h.b16 %v48
  %v917 = vunpack.c.l.b16 %v49
  %v918 = vunpack.c.h.b16 %v49
  %v919 = vunpack.c.l.b16 %v50
  %v920 = vunpack.c.h.b16 %v50
  %v921 = vunpack.c.l.b16 %v51
  %v922 = vunpack.c.h.b16 %v51
  %v923 = vunpack.c.l.b16 %v52
  %v924 = vunpack.c.h.b16 %v52
  %v925 = vunpack.c.l.b16 %v53
  %v926 = vunpack.c.h.b16 %v53
  %v927 = vunpack.c.l.b16 %v54
  %v928 = vunpack.c.h.b16 %v54
  %v929 = vunpack.c.l.b16 %v55
  %v930 = vunpack.c.h.b16 %v55
  %v931 = vunpack.c.l.b16 %v56
  %v932 = vunpack.c.h.b16 %v56
  %v933 = vunpack.c.l.b16 %v57
  %v934 = vunpack.c.h.b16 %v57
  %v935 = vunpack.c.l.b16 %v58
  %v936 = vunpack.c.h.b16 %v58
  %v937 = vunpack.c.l.b16 %v59
  %v938 = vunpack.c.h.b16 %v59
  %v939 = vunpack.c.l.b16 %v60
  %v940 = vunpack.c.h.b16 %v60
  %v941 = vunpack.c.l.b16 %v61
  %v942 = vunpack.c.h.b16 %v61
  %v943 = vunpack.c.l.b16 %v62
  %v944 = vunpack.c.h.b16 %v62
  %v945 = vunpack.c.l.b16 %v63
  %v946 = vunpack.c.h.b16 %v63
  %v947 = vunpack.c.l.b16 %v64
  %v948 = vunpack.c.h.b16 %v64
  %v949 = vunpack.c.l.b16 %v65
  %v950 = vunpack.c.h.b16 %v65
  %v951 = vunpack.c.l.b16 %v66
  %v952 = vunpack.c.h.b16 %v66
  %v953 = vunpack.c.l.b16 %v67
  %v954 = vunpack.c.h.b16 %v67
  %v955 = vunpack.c.l.b16 %v68
  %v956 = vunpack.c.h.b16 %v68
  %v957 = vunpack.c.l.b16 %v69
  %v958 = vunpack.c.h.b16 %v69
  %v959 = vunpack.c.l.b16 %v70
  %v960 = vunpack.c.h.b16 %v70
  %v961 = vunpack.c.l.b16 %v71
  %v962 = vunpack.c.h.b16 %v71
  %v963 = vunpack.c.l.b16 %v72
  %v964 = vunpack.c.h.b16 %v72
  %v965 = vunpack.c.l.b16 %v73
  %v966 = vunpack.c.h.b16 %v73
  %v967 = vunpack.c.l.b16 %v74
  %v968 = vunpack.c.h.b16 %v74
  %v969 = vunpack.c.l.b16 %v75
  %v970 = vunpack.c.h.b16 %v75
  %v971 = vunpack.c.l.b16 %v76
  %v972 = vunpack.c.h.b16 %v76
  %v973 = vunpack.c.l.b16 %v77
  %v974 = vunpack.c.h.b16 %v77
  %v975 = vunpack.c.l.b16 %v78
  %v976 = vunpack.c.h.b16 %v78
  %v977 = vunpack.c.l.b16 %v79
  %v978 = vunpack.c.h.b16 %v79
  %v979 = vunpack.c.l.b16 %v80
  %v980 = vunpack.c.h.b16 %v80
  %v981 = vunpack.c.l.b16 %v81
  %v982 = vunpack.c.h.b16 %v81
  %v983 = vunpack.c.l.b16 %v82
  %v984 = vunpack.c.h.b16 %v82
  %v985 = vunpack.c.l.b16 %v83
  %v986 = vunpack.c.h.b16 %v83
  %v987 = vunpack.c.l.b16 %v84
  %v988 = vunpack.c.h.b16 %v84
  %v989 = vunpack.c.l.b16 %v85
  %v990 = vunpack.c.h.b16 %v85
  %v991 = vunpack.c.l.b16 %v86
  %v992 = vunpack.c.h.b16 %v86
  %v993 = vunpack.c.l.b16 %v87
  %v994 = vunpack.c.h.b16 %v87
  %v995 = vunpack.c.l.b16 %v88
  %v996 = vunpack.c.h.b16 %v88
  %v997 = vunpack.c.l.b16 %v89
  %v998 = vunpack.c.h.b16 %v89
  %v999 = vunpack.c.l.b16 %v90
  %v1000 = vunpack.c.h.b16 %v90
  %v1001 = vunpack.c.l.b16 %v91
  %v1002 = vunpack.c.h.b16 %v91
  %v1003 = vunpack.c.l.b16 %v92
  %v1004 = vunpack.c.h.b16 %v92
  %v1005 = vunpack.c.l.b16 %v93
  %v1006 = vunpack.c.h.b16 %v93
  %v1007 = vunpack.c.l.b16 %v94
  %v1008 = vunpack.c.h.b16 %v94
  %v1009 = vunpack.c.l.b16 %v95
  %v1010 = vunpack.c.h.b16 %v95
  %v1011 = vunpack.c.l.b16 %v96
  %v1012 = vunpack.c.h.b16 %v96
  %v1013 = vunpack.c.l.b16 %v97
  %v1014 = vunpack.c.h.b16 %v97
  %v1015 = vunpack.c.l.b16 %v98
  %v1016 = vunpack.c.h.b16 %v98
  %v1017 = vunpack.c.l.b16 %v99
  %v1018 = vunpack.c.h.b16 %v99
  %v1019 = vunpack.c.l.b16 %v100
  %v1020 = vunpack.c.h.b16 %v100
  %v1021 = vunpack.c.l.b16 %v101
  %v1022 = vunpack.c.h.b16 %v101
  %v1023 = vunpack.c.l.b16 %v102
  %v1024 = vunpack.c.h.b16 %v102
  %v1025 = vunpack.c.l.b16 %v103
  %v1026 = vunpack.c.h.b16 %v103
  %v1027 = vunpack.c.l.b16 %v104
  %v1028 = vunpack.c.h.b16 %v104
  %v1029 = vunpack.c.l.b16 %v105
  %v1030 = vunpack.c.h.b16 %v105
  %v1031 = vunpack.c.l.b16 %v106
  %v1032 = vunpack.c.h.b16 %v106
  %v1033 = vunpack.c.l.b16 %v107
  %v1034 = vunpack.c.h.b16 %v107
  %v1035 = vunpack.c.l.b16 %v108
  %v1036 = vunpack.c.h.b16 %v108
  %v1037 = vunpack.c.l.b16 %v109
  %v1038 = vunpack.c.h.b16 %v109
  %v1039 = vunpack.c.l.b16 %v110
  %v1040 = vunpack.c.h.b16 %v110
  %v1041 = vunpack.c.l.b16 %v111
  %v1042 = vunpack.c.h.b16 %v111
  %v1043 = vunpack.c.l.b16 %v112
  %v1044 = vunpack.c.h.b16 %v112
  %v1045 = vunpack.c.l.b16 %v113
  %v1046 = vunpack.c.h.b16 %v113
  %v1047 = vunpack.c.l.b16 %v114
  %v1048 = vunpack.c.h.b16 %v114
  %v1049 = vunpack.c.l.b16 %v115
  %v1050 = vunpack.c.h.b16 %v115
  %v1051 = vunpack.c.l.b16 %v116
  %v1052 = vunpack.c.h.b16 %v116
  %v1053 = vunpack.c.l.b16 %v117
  %v1054 = vunpack.c.h.b16 %v117
  %v1055 = vunpack.c.l.b16 %v118
  %v1056 = vunpack.c.h.b16 %v118
  %v1057 = vunpack.c.l.b16 %v119
  %v1058 = vunpack.c.h.b16 %v119
  %v1059 = vunpack.c.l.b16 %v120
  %v1060 = vunpack.c.h.b16 %v120
  %v1061 = vunpack.c.l.b16 %v121
  %v1062 = vunpack.c.h.b16 %v121
  %v1063 = vunpack.c.l.b16 %v122
  %v1064 = vunpack.c.h.b16 %v122
  %v1065 = vunpack.c.l.b16 %v123
  %v1066 = vunpack.c.h.b16 %v123
  %v1067 = vunpack.c.l.b16 %v124
  %v1068 = vunpack.c.h.b16 %v124
  %v1069 = vunpack.c.l.b16 %v125
  %v1070 = vunpack.c.h.b16 %v125
  %v1071 = vunpack.c.l.b16 %v126
  %v1072 = vunpack.c.h.b16 %v126
  %v1073 = vunpack.c.l.b16 %v127
  %v1074 = vunpack.c.h.b16 %v127
  %v1075 = vunpack.c.l.b16 %v128
  %v1076 = vunpack.c.h.b16 %v128
  %v1077 = vunpack.c.l.b16 %v129
  %v1078 = vunpack.c.h.b16 %v129
  %v1079 = vunpack.c.l.b16 %v130
  %v1080 = vunpack.c.h.b16 %v130
  %v1081 = vunpack.c.l.b16 %v131
  %v1082 = vunpack.c.h.b16 %v131
  %v1083 = vunpack.c.l.b16 %v132
  %v1084 = vunpack.c.h.b16 %v132
  %v1085 = vunpack.c.l.b16 %v133
  %v1086 = vunpack.c.h.b16 %v133
  %v1087 = vunpack.c.l.b16 %v134
  %v1088 = vunpack.c.h.b16 %v134
  %v1089 = vunpack.c.l.b16 %v135
  %v1090 = vunpack.c.h.b16 %v135
  %v1091 = vunpack.c.l.b16 %v136
  %v1092 = vunpack.c.h.b16 %v136
  %v1093 = vunpack.c.l.b16 %v137
  %v1094 = vunpack.c.h.b16 %v137
  %v1095 = vunpack.c.l.b16 %v138
  %v1096 = vunpack.c.h.b16 %v138
  %v1097 = vunpack.c.l.b16 %v139
  %v1098 = vunpack.c.h.b16 %v139
  %v1099 = vunpack.c.l.b16 %v140
  %v1100 = vunpack.c.h.b16 %v140
  %v1101 = vunpack.c.l.b16 %v141
  %v1102 = vunpack.c.h.b16 %v141
  %v1103 = vunpack.c.l.b16 %v142
  %v1104 = vunpack.c.h.b16 %v142
  %v1105 = vunpack.c.l.b16 %v143
  %v1106 = vunpack.c.h.b16 %v143
  %v1107 = vunpack.c.l.b16 %v144
  %v1108 = vunpack.c.h.b16 %v144
  %v1109 = vunpack.c.l.b16 %v145
  %v1110 = vunpack.c.h.b16 %v145
  %v1111 = vunpack.c.l.b16 %v146
  %v1112 = vunpack.c.h.b16 %v146
  %v1113 = vunpack.c.l.b16 %v147
  %v1114 = vunpack.c.h.b16 %v147
  %v1115 = vunpack.c.l.b16 %v148
  %v1116 = vunpack.c.h.b16 %v148
  %v1117 = vunpack.c.l.b16 %v149
  %v1118 = vunpack.c.h.b16 %v149
  %v1119 = vunpack.c.l.b16 %v150
  %v1120 = vunpack.c.h.b16 %v150
  %v1121 = vunpack.c.l.b16 %v151
  %v1122 = vunpack.c.h.b16 %v151
  %v1123 = vunpack.c.l.b16 %v152
  %v1124 = vunpack.c.h.b16 %v152
  %v1125 = vunpack.c.l.b16 %v153
  %v1126 = vunpack.c.h.b16 %v153
  %v1127 = vunpack.c.l.b16 %v154
  %v1128 = vunpack.c.h.b16 %v154
  %v1129 = vunpack.c.l.b16 %v155
  %v1130 = vunpack.c.h.b16 %v155
  %v1131 = vunpack.c.l.b16 %v156
  %v1132 = vunpack.c.h.b16 %v156
  %v1133 = vunpack.c.l.b16 %v157
  %v1134 = vunpack.c.h.b16 %v157
  %v1135 = vunpack.c.l.b16 %v158
  %v1136 = vunpack.c.h.b16 %v158
  %v1137 = vunpack.c.l.b16 %v159
  %v1138 = vunpack.c.h.b16 %v159
  %v1139 = vunpack.c.l.b16 %v160
  %v1140 = vunpack.c.h.b16 %v160
  %v1141 = vunpack.c.l.b16 %v161
  %v1142 = vunpack.c.h.b16 %v161
  %v1143 = vunpack.c.l.b16 %v162
  %v1144 = vunpack.c.h.b16 %v162
  %v1145 = vunpack.c.l.b16 %v163
  %v1146 = vunpack.c.h.b16 %v163
  %v1147 = vunpack.c.l.b16 %v164
  %v1148 = vunpack.c.h.b16 %v164
  %v1149 = vunpack.c.l.b16 %v165
  %v1150 = vunpack.c.h.b16 %v165
  %v1151 = vunpack.c.l.b16 %v166
  %v1152 = vunpack.c.h.b16 %v166
  %v1153 = vunpack.c.l.b16 %v167
  %v1154 = vunpack.c.h.b16 %v167
  %v1155 = vunpack.c.l.b16 %v168
  %v1156 = vunpack.c.h.b16 %v168
  %v1157 = vunpack.c.l.b16 %v169
  %v1158 = vunpack.c.h.b16 %v169
  %v1159 = vunpack.c.l.b16 %v170
  %v1160 = vunpack.c.h.b16 %v170
  %v1161 = vunpack.c.l.b16 %v171
  %v1162 = vunpack.c.h.b16 %v171
  %v1163 = vunpack.c.l.b16 %v172
  %v1164 = vunpack.c.h.b16 %v172
  %v1165 = vunpack.c.l.b16 %v173
  %v1166 = vunpack.c.h.b16 %v173
  %v1167 = vunpack.c.l.b16 %v174
  %v1168 = vunpack.c.h.b16 %v174
  %v1169 = vunpack.c.l.b16 %v175
  %v1170 = vunpack.c.h.b16 %v175
  %v1171 = vunpack.c.l.b16 %v176
  %v1172 = vunpack.c.h.b16 %v176
  %v1173 = vunpack.c.l.b16 %v177
  %v1174 = vunpack.c.h.b16 %v177
  %v1175 = vunpack.c.l.b16 %v178
  %v1176 = vunpack.c.h.b16 %v178
  %v1177 = vunpack.c.l.b16 %v179
  %v1178 = vunpack.c.h.b16 %v179
  %v1179 = vunpack.c.l.b16 %v180
  %v1180 = vunpack.c.h.b16 %v180
  %v1181 = vunpack.c.l.b16 %v181
  %v1182 = vunpack.c.h.b16 %v181
  %v1183 = vunpack.c.l.b16 %v182
  %v1184 = vunpack.c.h.b16 %v182
  %v1185 = vunpack.c.l.b16 %v183
  %v1186 = vunpack.c.h.b16 %v183
  %v1187 = vunpack.c.l.b16 %v184
  %v1188 = vunpack.c.h.b16 %v184
  %v1189 = vunpack.c.l.b16 %v185
  %v1190 = vunpack.c.h.b16 %v185
  %v1191 = vunpack.c.l.b16 %v186
  %v1192 = vunpack.c.h.b16 %v186
  %v1193 = vunpack.c.l.b16 %v187
  %v1194 = vunpack.c.h.b16 %v187
  %v1195 = vunpack.c.l.b16 %v188
  %v1196 = vunpack.c.h.b16 %v188
  %v1197 = vunpack.c.l.b16 %v189
  %v1198 = vunpack.c.h.b16 %v189
  %v1199 = vunpack.c.l.b16 %v190
  %v1200 = vunpack.c.h.b16 %v190
  %v1201 = vunpack.c.l.b16 %v191
  %v1202 = vunpack.c.h.b16 %v191
  %v1203 = vunpack.c.l.b16 %v192
  %v1204 = vunpack.c.h.b16 %v192
  %v1205 = vunpack.c.l.b16 %v193
  %v1206 = vunpack.c.h.b16 %v193
  %v1207 = vunpack.c.l.b16 %v194
  %v1208 = vunpack.c.h.b16 %v194
  %v1209 = vunpack.c.l.b16 %v195
  %v1210 = vunpack.c.h.b16 %v195
  %v1211 = vunpack.c.l.b16 %v196
  %v1212 = vunpack.c.h.b16 %v196
  %v1213 = vunpack.c.l.b16 %v197
  %v1214 = vunpack.c.h.b16 %v197
  %v1215 = vunpack.c.l.b16 %v198
  %v1216 = vunpack.c.h.b16 %v198
  %v1217 = vunpack.c.l.b16 %v199
  %v1218 = vunpack.c.h.b16 %v199
  %v1219 = vunpack.c.l.b16 %v200
  %v1220 = vunpack.c.h.b16 %v200
  %v1221 = vunpack.c.l.b16 %v201
  %v1222 = vunpack.c.h.b16 %v201
  %v1223 = vunpack.c.l.b16 %v202
  %v1224 = vunpack.c.h.b16 %v202
  %v1225 = vunpack.c.l.b16 %v203
  %v1226 = vunpack.c.h.b16 %v203
  %v1227 = vunpack.c.l.b16 %v204
  %v1228 = vunpack.c.h.b16 %v204
  %v1229 = vunpack.c.l.b16 %v205
  %v1230 = vunpack.c.h.b16 %v205
  %v1231 = vunpack.c.l.b16 %v206
  %v1232 = vunpack.c.h.b16 %v206
  %v1233 = vunpack.c.l.b16 %v207
  %v1234 = vunpack.c.h.b16 %v207
  %v1235 = vunpack.c.l.b16 %v208
  %v1236 = vunpack.c.h.b16 %v208
  %v1237 = vunpack.c.l.b16 %v209
  %v1238 = vunpack.c.h.b16 %v209
  %v1239 = vunpack.c.l.b16 %v210
  %v1240 = vunpack.c.h.b16 %v210
  %v1241 = vunpack.c.l.b16 %v211
  %v1242 = vunpack.c.h.b16 %v211
  %v1243 = vunpack.c.l.b16 %v212
  %v1244 = vunpack.c.h.b16 %v212
  %v1245 = vunpack.c.l.b16 %v213
  %v1246 = vunpack.c.h.b16 %v213
  %v1247 = vunpack.c.l.b16 %v214
  %v1248 = vunpack.c.h.b16 %v214
  %v1249 = vunpack.c.l.b16 %v215
  %v1250 = vunpack.c.h.b16 %v215
  %v1251 = vunpack.c.l.b16 %v216
  %v1252 = vunpack.c.h.b16 %v216
  %v1253 = vunpack.c.l.b16 %v217
  %v1254 = vunpack.c.h.b16 %v217
  %v1255 = vunpack.c.l.b16 %v218
  %v1256 = vunpack.c.h.b16 %v218
  %v1257 = vunpack.c.l.b16 %v219
  %v1258 = vunpack.c.h.b16 %v219
  %v1259 = vunpack.c.l.b16 %v220
  %v1260 = vunpack.c.h.b16 %v220
  %v1261 = vunpack.c.l.b16 %v221
  %v1262 = vunpack.c.h.b16 %v221
  %v1263 = vunpack.c.l.b16 %v222
  %v1264 = vunpack.c.h.b16 %v222
  %v1265 = vunpack.c.l.b16 %v223
  %v1266 = vunpack.c.h.b16 %v223
  %v1267 = vunpack.c.l.b16 %v224
  %v1268 = vunpack.c.h.b16 %v224
  %v1269 = vunpack.c.l.b16 %v225
  %v1270 = vunpack.c.h.b16 %v225
  %v1271 = vunpack.c.l.b16 %v226
  %v1272 = vunpack.c.h.b16 %v226
  %v1273 = vunpack.c.l.b16 %v227
  %v1274 = vunpack.c.h.b16 %v227
  %v1275 = vunpack.c.l.b16 %v228
  %v1276 = vunpack.c.h.b16 %v228
  %v1277 = vunpack.c.l.b16 %v229
  %v1278 = vunpack.c.h.b16 %v229
  %v1279 = vunpack.c.l.b16 %v230
  %v1280 = vunpack.c.h.b16 %v230
  %v1281 = vunpack.c.l.b16 %v231
  %v1282 = vunpack.c.h.b16 %v231
  %v1283 = vunpack.c.l.b16 %v232
  %v1284 = vunpack.c.h.b16 %v232
  %v1285 = vunpack.c.l.b16 %v233
  %v1286 = vunpack.c.h.b16 %v233
  %v1287 = vunpack.c.l.b16 %v234
  %v1288 = vunpack.c.h.b16 %v234
  %v1289 = vunpack.c.l.b16 %v235
  %v1290 = vunpack.c.h.b16 %v235
  %v1291 = vunpack.c.l.b16 %v236
  %v1292 = vunpack.c.h.b16 %v236
  %v1293 = vunpack.c.l.b16 %v237
  %v1294 = vunpack.c.h.b16 %v237
  %v1295 = vunpack.c.l.b16 %v238
  %v1296 = vunpack.c.h.b16 %v238
  %v1297 = vunpack.c.l.b16 %v239
  %v1298 = vunpack.c.h.b16 %v239
  %v1299 = vunpack.c.l.b16 %v240
  %v1300 = vunpack.c.h.b16 %v240
  %v1301 = vunpack.c.l.b16 %v241
  %v1302 = vunpack.c.h.b16 %v241
  %v1303 = vunpack.c.l.b16 %v242
  %v1304 = vunpack.c.h.b16 %v242
  %v1305 = vunpack.c.l.b16 %v243
  %v1306 = vunpack.c.h.b16 %v243
  %v1307 = vunpack.c.l.b16 %v244
  %v1308 = vunpack.c.h.b16 %v244
  %v1309 = vunpack.c.l.b16 %v245
  %v1310 = vunpack.c.h.b16 %v245
  %v1311 = vunpack.c.l.b16 %v246
  %v1312 = vunpack.c.h.b16 %v246
  %v1313 = vunpack.c.l.b16 %v247
  %v1314 = vunpack.c.h.b16 %v247
  %v1315 = vunpack.c.l.b16 %v248
  %v1316 = vunpack.c.h.b16 %v248
  %v1317 = vunpack.c.l.b16 %v249
  %v1318 = vunpack.c.h.b16 %v249
  %v1319 = vunpack.c.l.b16 %v250
  %v1320 = vunpack.c.h.b16 %v250
  %v1321 = vunpack.c.l.b16 %v251
  %v1322 = vunpack.c.h.b16 %v251
  %v1323 = vunpack.c.l.b16 %v252
  %v1324 = vunpack.c.h.b16 %v252
  %v1325 = vunpack.c.l.b16 %v253
  %v1326 = vunpack.c.h.b16 %v253
  %v1327 = vunpack.c.l.b16 %v254
  %v1328 = vunpack.c.h.b16 %v254
  %v1329 = vunpack.c.l.b16 %v255
  %v1330 = vunpack.c.h.b16 %v255
  %v1331 = vunpack.c.l.b16 %v256
  %v1332 = vunpack.c.h.b16 %v256
  %v1333 = vunpack.c.l.b16 %v257
  %v1334 = vunpack.c.h.b16 %v257
  %v1335 = vunpack.c.l.b16 %v258
  %v1336 = vunpack.c.h.b16 %v258
  %v1337 = vunpack.c.l.b16 %v259
  %v1338 = vunpack.c.h.b16 %v259
  %v1339 = vunpack.c.l.b16 %v260
  %v1340 = vunpack.c.h.b16 %v260
  %v1341 = vunpack.c.l.b16 %v261
  %v1342 = vunpack.c.h.b16 %v261
  %v1343 = vunpack.c.l.b16 %v262
  %v1344 = vunpack.c.h.b16 %v262
  %v1345 = vunpack.c.l.b16 %v263
  %v1346 = vunpack.c.h.b16 %v263
  %v1347 = vunpack.c.l.b16 %v264
  %v1348 = vunpack.c.h.b16 %v264
  %v1349 = vunpack.c.l.b16 %v265
  %v1350 = vunpack.c.h.b16 %v265
  %v1351 = vunpack.c.l.b16 %v266
  %v1352 = vunpack.c.h.b16 %v266
  %v1353 = vunpack.c.l.b16 %v267
  %v1354 = vunpack.c.h.b16 %v267
  %v1355 = vunpack.c.l.b16 %v268
  %v1356 = vunpack.c.h.b16 %v268
  %v1357 = vunpack.c.l.b16 %v269
  %v1358 = vunpack.c.h.b16 %v269
  %v1359 = vunpack.c.l.b16 %v270
  %v1360 = vunpack.c.h.b16 %v270
  %v1361 = vunpack.c.l.b16 %v271
  %v1362 = vunpack.c.h.b16 %v271
  %v1363 = vunpack.c.l.b16 %v272
  %v1364 = vunpack.c.h.b16 %v272
  %v1365 = vunpack.c.l.b16 %v273
  %v1366 = vunpack.c.h.b16 %v273
  %v1367 = vunpack.c.l.b16 %v274
  %v1368 = vunpack.c.h.b16 %v274
  %v1369 = vunpack.c.l.b16 %v275
  %v1370 = vunpack.c.h.b16 %v275
  %v1371 = vunpack.c.l.b16 %v276
  %v1372 = vunpack.c.h.b16 %v276
  %v1373 = vunpack.c.l.b16 %v277
  %v1374 = vunpack.c.h.b16 %v277
  %v1375 = vunpack.c.l.b16 %v278
  %v1376 = vunpack.c.h.b16 %v278
  %v1377 = vunpack.c.l.b16 %v279
  %v1378 = vunpack.c.h.b16 %v279
  %v1379 = vunpack.c.l.b16 %v280
  %v1380 = vunpack.c.h.b16 %v280
  %v1381 = vunpack.c.l.b16 %v281
  %v1382 = vunpack.c.h.b16 %v281
  %v1383 = vunpack.c.l.b16 %v282
  %v1384 = vunpack.c.h.b16 %v282
  %v1385 = vunpack.c.l.b16 %v283
  %v1386 = vunpack.c.h.b16 %v283
  %v1387 = vunpack.c.l.b16 %v284
  %v1388 = vunpack.c.h.b16 %v284
  %v1389 = vunpack.c.l.b16 %v285
  %v1390 = vunpack.c.h.b16 %v285
  %v1391 = vunpack.c.l.b16 %v286
  %v1392 = vunpack.c.h.b16 %v286
  %v1393 = vunpack.c.l.b16 %v287
  %v1394 = vunpack.c.h.b16 %v287
  %v1395 = vunpack.c.l.b16 %v288
  %v1396 = vunpack.c.h.b16 %v288
  %v1397 = vunpack.c.l.b16 %v289
  %v1398 = vunpack.c.h.b16 %v289
  %v1399 = vunpack.c.l.b16 %v290
  %v1400 = vunpack.c.h.b16 %v290
  %v1401 = vunpack.c.l.b16 %v291
  %v1402 = vunpack.c.h.b16 %v291
  %v1403 = vunpack.c.l.b16 %v292
  %v1404 = vunpack.c.h.b16 %v292
  %v1405 = vunpack.c.l.b16 %v293
  %v1406 = vunpack.c.h.b16 %v293
  %v1407 = vunpack.c.l.b16 %v294
  %v1408 = vunpack.c.h.b16 %v294
  %v1409 = vunpack.c.l.b16 %v295
  %v1410 = vunpack.c.h.b16 %v295
  %v1411 = vunpack.c.l.b16 %v296
  %v1412 = vunpack.c.h.b16 %v296
  %v1413 = vunpack.c.l.b16 %v297
  %v1414 = vunpack.c.h.b16 %v297
  %v1415 = vunpack.c.l.b16 %v298
  %v1416 = vunpack.c.h.b16 %v298
  %v1417 = vunpack.c.l.b16 %v299
  %v1418 = vunpack.c.h.b16 %v299
  %v1419 = vunpack.c.l.b16 %v300
  %v1420 = vunpack.c.h.b16 %v300
  %v1421 = vunpack.c.l.b16 %v301
  %v1422 = vunpack.c.h.b16 %v301
  %v1423 = vunpack.c.l.b16 %v302
  %v1424 = vunpack.c.h.b16 %v302
  %v1425 = vunpack.c.l.b16 %v303
  %v1426 = vunpack.c.h.b16 %v303
  %v1427 = vunpack.c.l.b16 %v304
  %v1428 = vunpack.c.h.b16 %v304
  %v1429 = vunpack.c.l.b16 %v305
  %v1430 = vunpack.c.h.b16 %v305
  %v1431 = vunpack.c.l.b16 %v306
  %v1432 = vunpack.c.h.b16 %v306
  %v1433 = vunpack.c.l.b16 %v307
  %v1434 = vunpack.c.h.b16 %v307
  %v1435 = vunpack.c.l.b16 %v308
  %v1436 = vunpack.c.h.b16 %v308
  %v1437 = vunpack.c.l.b16 %v309
  %v1438 = vunpack.c.h.b16 %v309
  %v1439 = vunpack.c.l.b16 %v310
  %v1440 = vunpack.c.h.b16 %v310
  %v1441 = vunpack.c.l.b16 %v311
  %v1442 = vunpack.c.h.b16 %v311
  %v1443 = vunpack.c.l.b16 %v312
  %v1444 = vunpack.c.h.b16 %v312
  %v1445 = vunpack.c.l.b16 %v313
  %v1446 = vunpack.c.h.b16 %v313
  %v1447 = vunpack.c.l.b16 %v314
  %v1448 = vunpack.c.h.b16 %v314
  %v1449 = vunpack.c.l.b16 %v315
  %v1450 = vunpack.c.h.b16 %v315
  %v1451 = vunpack.c.l.b16 %v316
  %v1452 = vunpack.c.h.b16 %v316
  %v1453 = vunpack.c.l.b16 %v317
  %v1454 = vunpack.c.h.b16 %v317
  %v1455 = vunpack.c.l.b16 %v318
  %v1456 = vunpack.c.h.b16 %v318
  %v1457 = vunpack.c.l.b16 %v319
  %v1458 = vunpack.c.h.b16 %v319
  %v1459 = vunpack.c.l.b16 %v320
  %v1460 = vunpack.c.h.b16 %v320
  %v1461 = vunpack.c.l.b16 %v321
  %v1462 = vunpack.c.h.b16 %v321
  %v1463 = vunpack.c.l.b16 %v322
  %v1464 = vunpack.c.h.b16 %v322
  %v1465 = vunpack.c.l.b16 %v323
  %v1466 = vunpack.c.h.b16 %v323
  %v1467 = vunpack.c.l.b16 %v324
  %v1468 = vunpack.c.h.b16 %v324
  %v1469 = vunpack.c.l.b16 %v325
  %v1470 = vunpack.c.h.b16 %v325
  %v1471 = vunpack.c.l.b16 %v326
  %v1472 = vunpack.c.h.b16 %v326
  %v1473 = vunpack.c.l.b16 %v327
  %v1474 = vunpack.c.h.b16 %v327
  %v1475 = vunpack.c.l.b16 %v328
  %v1476 = vunpack.c.h.b16 %v328
  %v1477 = vunpack.c.l.b16 %v329
  %v1478 = vunpack.c.h.b16 %v329
  %v1479 = vunpack.c.l.b16 %v330
  %v1480 = vunpack.c.h.b16 %v330
  %v1481 = vunpack.c.l.b16 %v331
  %v1482 = vunpack.c.h.b16 %v331
  %v1483 = vunpack.c.l.b16 %v332
  %v1484 = vunpack.c.h.b16 %v332
  %v1485 = vunpack.c.l.b16 %v333
  %v1486 = vunpack.c.h.b16 %v333
  %v1487 = vunpack.c.l.b16 %v334
  %v1488 = vunpack.c.h.b16 %v334
  %v1489 = vunpack.c.l.b16 %v335
  %v1490 = vunpack.c.h.b16 %v335
  %v1491 = vunpack.c.l.b16 %v336
  %v1492 = vunpack.c.h.b16 %v336
  %v1493 = vunpack.c.l.b16 %v337
  %v1494 = vunpack.c.h.b16 %v337
  %v1495 = vunpack.c.l.b16 %v338
  %v1496 = vunpack.c.h.b16 %v338
  %v1497 = vunpack.c.l.b16 %v339
  %v1498 = vunpack.c.h.b16 %v339
  %v1499 = vunpack.c.l.b16 %v340
  %v1500 = vunpack.c.h.b16 %v340
  %v1501 = vunpack.c.l.b16 %v341
  %v1502 = vunpack.c.h.b16 %v341
  %v1503 = vunpack.c.l.b16 %v342
  %v1504 = vunpack.c.h.b16 %v342
  %v1505 = vunpack.c.l.b16 %v343
  %v1506 = vunpack.c.h.b16 %v343
  %v1507 = vunpack.c.l.b16 %v344
  %v1508 = vunpack.c.h.b16 %v344
  %v1509 = vunpack.c.l.b16 %v345
  %v1510 = vunpack.c.h.b16 %v345
  %v1511 = vunpack.c.l.b16 %v346
  %v1512 = vunpack.c.h.b16 %v346
  %v1513 = vunpack.c.l.b16 %v347
  %v1514 = vunpack.c.h.b16 %v347
  %v1515 = vunpack.c.l.b16 %v348
  %v1516 = vunpack.c.h.b16 %v348
  %v1517 = vunpack.c.l.b16 %v349
  %v1518 = vunpack.c.h.b16 %v349
  %v1519 = vunpack.c.l.b16 %v350
  %v1520 = vunpack.c.h.b16 %v350
  %v1521 = vunpack.c.l.b16 %v351
  %v1522 = vunpack.c.h.b16 %v351
  %v1523 = vunpack.c.l.b16 %v352
  %v1524 = vunpack.c.h.b16 %v352
  %v1525 = vunpack.c.l.b16 %v353
  %v1526 = vunpack.c.h.b16 %v353
  %v1527 = vunpack.c.l.b16 %v354
  %v1528 = vunpack.c.h.b16 %v354
  %v1529 = vunpack.c.l.b16 %v355
  %v1530 = vunpack.c.h.b16 %v355
  %v1531 = vunpack.c.l.b16 %v356
  %v1532 = vunpack.c.h.b16 %v356
  %v1533 = vunpack.c.l.b16 %v357
  %v1534 = vunpack.c.h.b16 %v357
  %v1535 = vunpack.c.l.b16 %v358
  %v1536 = vunpack.c.h.b16 %v358
  %v1537 = vunpack.c.l.b16 %v359
  %v1538 = vunpack.c.h.b16 %v359
  %v1539 = vunpack.c.l.b16 %v360
  %v1540 = vunpack.c.h.b16 %v360
  %v1541 = vunpack.c.l.b16 %v361
  %v1542 = vunpack.c.h.b16 %v361
  %v1543 = vunpack.c.l.b16 %v362
  %v1544 = vunpack.c.h.b16 %v362
  %v1545 = vunpack.c.l.b16 %v363
  %v1546 = vunpack.c.h.b16 %v363
  %v1547 = vunpack.c.l.b16 %v364
  %v1548 = vunpack.c.h.b16 %v364
  %v1549 = vunpack.c.l.b16 %v365
  %v1550 = vunpack.c.h.b16 %v365
  %v1551 = vunpack.c.l.b16 %v366
  %v1552 = vunpack.c.h.b16 %v366
  %v1553 = vunpack.c.l.b16 %v367
  %v1554 = vunpack.c.h.b16 %v367
  %v1555 = vunpack.c.l.b16 %v368
  %v1556 = vunpack.c.h.b16 %v368
  %v1557 = vunpack.c.l.b16 %v369
  %v1558 = vunpack.c.h.b16 %v369
  %v1559 = vunpack.c.l.b16 %v370
  %v1560 = vunpack.c.h.b16 %v370
  %v1561 = vunpack.c.l.b16 %v371
  %v1562 = vunpack.c.h.b16 %v371
  %v1563 = vunpack.c.l.b16 %v372
  %v1564 = vunpack.c.h.b16 %v372
  %v1565 = vunpack.c.l.b16 %v373
  %v1566 = vunpack.c.h.b16 %v373
  %v1567 = vunpack.c.l.b16 %v374
  %v1568 = vunpack.c.h.b16 %v374
  %v1569 = vunpack.c.l.b16 %v375
  %v1570 = vunpack.c.h.b16 %v375
  %v1571 = vunpack.c.l.b16 %v376
  %v1572 = vunpack.c.h.b16 %v376
  %v1573 = vunpack.c.l.b16 %v377
  %v1574 = vunpack.c.h.b16 %v377
  %v1575 = vunpack.c.l.b16 %v378
  %v1576 = vunpack.c.h.b16 %v378
  %v1577 = vunpack.c.l.b16 %v379
  %v1578 = vunpack.c.h.b16 %v379
  %v1579 = vunpack.c.l.b16 %v380
  %v1580 = vunpack.c.h.b16 %v380
  %v1581 = vunpack.c.l.b16 %v381
  %v1582 = vunpack.c.h.b16 %v381
  %v1583 = vunpack.c.l.b16 %v382
  %v1584 = vunpack.c.h.b16 %v382
  %v1585 = vunpack.c.l.b16 %v383
  %v1586 = vunpack.c.h.b16 %v383
  %v1587 = vunpack.c.l.b16 %v384
  %v1588 = vunpack.c.h.b16 %v384
  %v1589 = vunpack.c.l.b16 %v385
  %v1590 = vunpack.c.h.b16 %v385
  %v1591 = vunpack.c.l.b16 %v386
  %v1592 = vunpack.c.h.b16 %v386
  %v1593 = vunpack.c.l.b16 %v387
  %v1594 = vunpack.c.h.b16 %v387
  %v1595 = vunpack.c.l.b16 %v388
  %v1596 = vunpack.c.h.b16 %v388
  %v1597 = vunpack.c.l.b16 %v389
  %v1598 = vunpack.c.h.b16 %v389
  %v1599 = vunpack.c.l.b16 %v390
  %v1600 = vunpack.c.h.b16 %v390
  %v1601 = vunpack.c.l.b16 %v391
  %v1602 = vunpack.c.h.b16 %v391
  %v1603 = vunpack.c.l.b16 %v392
  %v1604 = vunpack.c.h.b16 %v392
  %v1605 = vunpack.c.l.b16 %v393
  %v1606 = vunpack.c.h.b16 %v393
  %v1607 = vunpack.c.l.b16 %v394
  %v1608 = vunpack.c.h.b16 %v394
  %v1609 = vunpack.c.l.b16 %v395
  %v1610 = vunpack.c.h.b16 %v395
  %v1611 = vunpack.c.l.b16 %v396
  %v1612 = vunpack.c.h.b16 %v396
  %v1613 = vunpack.c.l.b16 %v397
  %v1614 = vunpack.c.h.b16 %v397
  %v1615 = vunpack.c.l.b16 %v398
  %v1616 = vunpack.c.h.b16 %v398
  %v1617 = vunpack.c.l.b16 %v399
  %v1618 = vunpack.c.h.b16 %v399
  %v1619 = vunpack.c.l.b16 %v400
  %v1620 = vunpack.c.h.b16 %v400
  %v1621 = vunpack.c.l.b16 %v401
  %v1622 = vunpack.c.h.b16 %v401
  %v1623 = vunpack.c.l.b16 %v402
  %v1624 = vunpack.c.h.b16 %v402
  %v1625 = vunpack.c.l.b16 %v403
  %v1626 = vunpack.c.h.b16 %v403
  %v1627 = vunpack.c.l.b16 %v404
  %v1628 = vunpack.c.h.b16 %v404
  %v1629 = vunpack.c.l.b16 %v405
  %v1630 = vunpack.c.h.b16 %v405
  %v1631 = vunpack.c.l.b16 %v406
  %v1632 = vunpack.c.h.b16 %v406
  %v1633 = vpack.c.b16 %v853, %v849
  %v1634 = vpack.c.b16 %v854, %v850
  %v1635 = vpack.c.b16 %v855, %v851
  %v1636 = vpack.c.b16 %v856, %v852
  %v1637 = vpack.c.b16 %v861, %v857
  %v1638 = vpack.c.b16 %v862, %v858
  %v1639 = vpack.c.b16 %v863, %v859
  %v1640 = vpack.c.b16 %v864, %v860
  %v1641 = vpack.c.b16 %v869, %v865
  %v1642 = vpack.c.b16 %v870, %v866
  %v1643 = vpack.c.b16 %v871, %v867
  %v1644 = vpack.c.b16 %v872, %v868
  %v1645 = vpack.c.b16 %v877, %v873
  %v1646 = vpack.c.b16 %v878, %v874
  %v1647 = vpack.c.b16 %v879, %v875
  %v1648 = vpack.c.b16 %v880, %v876
  %v1649 = vpack.c.b16 %v885, %v881
  %v1650 = vpack.c.b16 %v886, %v882
  %v1651 = vpack.c.b16 %v887, %v883
  %v1652 = vpack.c.b16 %v888, %v884
  %v1653 = vpack.c.b16 %v893, %v889
  %v1654 = vpack.c.b16 %v894, %v890
  %v1655 = vpack.c.b16 %v895, %v891
  %v1656 = vpack.c.b16 %v896, %v892
  %v1657 = vpack.c.b16 %v901, %v897
  %v1658 = vpack.c.b16 %v902, %v898
  %v1659 = vpack.c.b16 %v903, %v899
  %v1660 = vpack.c.b16 %v904, %v900
  %v1661 = vpack.c.b16 %v909, %v905
  %v1662 = vpack.c.b16 %v910, %v906
  %v1663 = vpack.c.b16 %v911, %v907
  %v1664 = vpack.c.b16 %v912, %v908
  %v1665 = vpack.c.b16 %v917, %v913
  %v1666 = vpack.c.b16 %v918, %v914
  %v1667 = vpack.c.b16 %v919, %v915
  %v1668 = vpack.c.b16 %v920, %v916
  %v1669 = vpack.c.b16 %v925, %v921
  %v1670 = vpack.c.b16 %v926, %v922
  %v1671 = vpack.c.b16 %v927, %v923
  %v1672 = vpack.c.b16 %v928, %v924
  %v1673 = vpack.c.b16 %v933, %v929
  %v1674 = vpack.c.b16 %v934, %v930
  %v1675 = vpack.c.b16 %v935, %v931
  %v1676 = vpack.c.b16 %v936, %v932
  %v1677 = vpack.c.b16 %v941, %v937
  %v1678 = vpack.c.b16 %v942, %v938
  %v1679 = vpack.c.b16 %v943, %v939
  %v1680 = vpack.c.b16 %v944, %v940
  %v1681 = vpack.c.b16 %v949, %v945
  %v1682 = vpack.c.b16 %v950, %v946
  %v1683 = vpack.c.b16 %v951, %v947
  %v1684 = vpack.c.b16 %v952, %v948
  %v1685 = vpack.c.b16 %v957, %v953
  %v1686 = vpack.c.b16 %v958, %v954
  %v1687 = vpack.c.b16 %v959, %v955
  %v1688 = vpack.c.b16 %v960, %v956
  %v1689 = vpack.c.b16 %v965, %v961
  %v1690 = vpack.c.b16 %v966, %v962
  %v1691 = vpack.c.b16 %v967, %v963
  %v1692 = vpack.c.b16 %v968, %v964
  %v1693 = vpack.c.b16 %v973, %v969
  %v1694 = vpack.c.b16 %v974, %v970
  %v1695 = vpack.c.b16 %v975, %v971
  %v1696 = vpack.c.b16 %v976, %v972
  %v1697 = vpack.c.b16 %v981, %v977
  %v1698 = vpack.c.b16 %v982, %v978
  %v1699 = vpack.c.b16 %v983, %v979
  %v1700 = vpack.c.b16 %v984, %v980
  %v1701 = vpack.c.b16 %v989, %v985
  %v1702 = vpack.c.b16 %v990, %v986
  %v1703 = vpack.c.b16 %v991, %v987
  %v1704 = vpack.c.b16 %v992, %v988
  %v1705 = vpack.c.b16 %v997, %v993
  %v1706 = vpack.c.b16 %v998, %v994
  %v1707 = vpack.c.b16 %v999, %v995
  %v1708 = vpack.c.b16 %v1000, %v996
  %v1709 = vpack.c.b16 %v1005, %v1001
  %v1710 = vpack.c.b16 %v1006, %v1002
  %v1711 = vpack.c.b16 %v1007, %v1003
  %v1712 = vpack.c.b16 %v1008, %v1004
  %v1713 = vpack.c.b16 %v1013, %v1009
  %v1714 = vpack.c.b16 %v1014, %v1010
  %v1715 = vpack.c.b16 %v1015, %v1011
  %v1716 = vpack.c.b16 %v1016, %v1012
  %v1717 = vpack.c.b16 %v1021, %v1017
  %v1718 = vpack.c.b16 %v1022, %v1018
  %v1719 = vpack.c.b16 %v1023, %v1019
  %v1720 = vpack.c.b16 %v1024, %v1020
  %v1721 = vpack.c.b16 %v1029, %v1025
  %v1722 = vpack.c.b16 %v1030, %v1026
  %v1723 = vpack.c.b16 %v1031, %v1027
  %v1724 = vpack.c.b16 %v1032, %v1028
  %v1725 = vpack.c.b16 %v1037, %v1033
  %v1726 = vpack.c.b16 %v1038, %v1034
  %v1727 = vpack.c.b16 %v1039, %v1035
  %v1728 = vpack.c.b16 %v1040, %v1036
  %v1729 = vpack.c.b16 %v1045, %v1041
  %v1730 = vpack.c.b16 %v1046, %v1042
  %v1731 = vpack.c.b16 %v1047, %v1043
  %v1732 = vpack.c.b16 %v1048, %v1044
  %v1733 = vpack.c.b16 %v1053, %v1049
  %v1734 = vpack.c.b16 %v1054, %v1050
  %v1735 = vpack.c.b16 %v1055, %v1051
  %v1736 = vpack.c.b16 %v1056, %v1052
  %v1737 = vpack.c.b16 %v1061, %v1057
  %v1738 = vpack.c.b16 %v1062, %v1058
  %v1739 = vpack.c.b16 %v1063, %v1059
  %v1740 = vpack.c.b16 %v1064, %v1060
  %v1741 = vpack.c.b16 %v1069, %v1065
  %v1742 = vpack.c.b16 %v1070, %v1066
  %v1743 = vpack.c.b16 %v1071, %v1067
  %v1744 = vpack.c.b16 %v1072, %v1068
  %v1745 = vpack.c.b16 %v1077, %v1073
  %v1746 = vpack.c.b16 %v1078, %v1074
  %v1747 = vpack.c.b16 %v1079, %v1075
  %v1748 = vpack.c.b16 %v1080, %v1076
  %v1749 = vpack.c.b16 %v1085, %v1081
  %v1750 = vpack.c.b16 %v1086, %v1082
  %v1751 = vpack.c.b16 %v1087, %v1083
  %v1752 = vpack.c.b16 %v1088, %v1084
  %v1753 = vpack.c.b16 %v1093, %v1089
  %v1754 = vpack.c.b16 %v1094, %v1090
  %v1755 = vpack.c.b16 %v1095, %v1091
  %v1756 = vpack.c.b16 %v1096, %v1092
  %v1757 = vpack.c.b16 %v1101, %v1097
  %v1758 = vpack.c.b16 %v1102, %v1098
  %v1759 = vpack.c.b16 %v1103, %v1099
  %v1760 = vpack.c.b16 %v1104, %v1100
  %v1761 = vpack.c.b16 %v1109, %v1105
  %v1762 = vpack.c.b16 %v1110, %v1106
  %v1763 = vpack.c.b16 %v1111, %v1107
  %v1764 = vpack.c.b16 %v1112, %v1108
  %v1765 = vpack.c.b16 %v1117, %v1113
  %v1766 = vpack.c.b16 %v1118, %v1114
  %v1767 = vpack.c.b16 %v1119, %v1115
  %v1768 = vpack.c.b16 %v1120, %v1116
  %v1769 = vpack.c.b16 %v1125, %v1121
  %v1770 = vpack.c.b16 %v1126, %v1122
  %v1771 = vpack.c.b16 %v1127, %v1123
  %v1772 = vpack.c.b16 %v1128, %v1124
  %v1773 = vpack.c.b16 %v1133, %v1129
  %v1774 = vpack.c.b16 %v1134, %v1130
  %v1775 = vpack.c.b16 %v1135, %v1131
  %v1776 = vpack.c.b16 %v1136, %v1132
  %v1777 = vpack.c.b16 %v1141, %v1137
  %v1778 = vpack.c.b16 %v1142, %v1138
  %v1779 = vpack.c.b16 %v1143, %v1139
  %v1780 = vpack.c.b16 %v1144, %v1140
  %v1781 = vpack.c.b16 %v1149, %v1145
  %v1782 = vpack.c.b16 %v1150, %v1146
  %v1783 = vpack.c.b16 %v1151, %v1147
  %v1784 = vpack.c.b16 %v1152, %v1148
  %v1785 = vpack.c.b16 %v1157, %v1153
  %v1786 = vpack.c.b16 %v1158, %v1154
  %v1787 = vpack.c.b16 %v1159, %v1155
  %v1788 = vpack.c.b16 %v1160, %v1156
  %v1789 = vpack.c.b16 %v1165, %v1161
  %v1790 = vpack.c.b16 %v1166, %v1162
  %v1791 = vpack.c.b16 %v1167, %v1163
  %v1792 = vpack.c.b16 %v1168, %v1164
  %v1793 = vpack.c.b16 %v1173, %v1169
  %v1794 = vpack.c.b16 %v1174, %v1170
  %v1795 = vpack.c.b16 %v1175, %v1171
  %v1796 = vpack.c.b16 %v1176, %v1172
  %v1797 = vpack.c.b16 %v1181, %v1177
  %v1798 = vpack.c.b16 %v1182, %v1178
  %v1799 = vpack.c.b16 %v1183, %v1179
  %v1800 = vpack.c.b16 %v1184, %v1180
  %v1801 = vpack.c.b16 %v1189, %v1185
  %v1802 = vpack.c.b16 %v1190, %v1186
  %v1803 = vpack.c.b16 %v1191, %v1187
  %v1804 = vpack.c.b16 %v1192, %v1188
  %v1805 = vpack.c.b16 %v1197, %v1193
  %v1806 = vpack.c.b16 %v1198, %v1194
  %v1807 = vpack.c.b16 %v1199, %v1195
  %v1808 = vpack.c.b16 %v1200, %v1196
  %v1809 = vpack.c.b16 %v1205, %v1201
  %v1810 = vpack.c.b16 %v1206, %v1202
  %v1811 = vpack.c.b16 %v1207, %v1203
  %v1812 = vpack.c.b16 %v1208, %v1204
  %v1813 = vpack.c.b16 %v1213, %v1209
  %v1814 = vpack.c.b16 %v1214, %v1210
  %v1815 = vpack.c.b16 %v1215, %v1211
  %v1816 = vpack.c.b16 %v1216, %v1212
  %v1817 = vpack.c.b16 %v1221, %v1217
  %v1818 = vpack.c.b16 %v1222, %v1218
  %v1819 = vpack.c.b16 %v1223, %v1219
  %v1820 = vpack.c.b16 %v1224, %v1220
  %v1821 = vpack.c.b16 %v1229, %v1225
  %v1822 = vpack.c.b16 %v1230, %v1226
  %v1823 = vpack.c.b16 %v1231, %v1227
  %v1824 = vpack.c.b16 %v1232, %v1228
  %v1825 = vpack.c.b16 %v1237, %v1233
  %v1826 = vpack.c.b16 %v1238, %v1234
  %v1827 = vpack.c.b16 %v1239, %v1235
  %v1828 = vpack.c.b16 %v1240, %v1236
  %v1829 = vpack.c.b16 %v1245, %v1241
  %v1830 = vpack.c.b16 %v1246, %v1242
  %v1831 = vpack.c.b16 %v1247, %v1243
  %v1832 = vpack.c.b16 %v1248, %v1244
  %v1833 = vpack.c.b16 %v1253, %v1249
  %v1834 = vpack.c.b16 %v1254, %v1250
  %v1835 = vpack.c.b16 %v1255, %v1251
  %v1836 = vpack.c.b16 %v1256, %v1252
  %v1837 = vpack.c.b16 %v1261, %v1257
  %v1838 = vpack.c.b16 %v1262, %v1258
  %v1839 = vpack.c.b16 %v1263, %v1259
  %v1840 = vpack.c.b16 %v1264, %v1260
  %v1841 = vpack.c.b16 %v1269, %v1265
  %v1842 = vpack.c.b16 %v1270, %v1266
  %v1843 = vpack.c.b16 %v1271, %v1267
  %v1844 = vpack.c.b16 %v1272, %v1268
  %v1845 = vpack.c.b16 %v1277, %v1273
  %v1846 = vpack.c.b16 %v1278, %v1274
  %v1847 = vpack.c.b16 %v1279, %v1275
  %v1848 = vpack.c.b16 %v1280, %v1276
  %v1849 = vpack.c.b16 %v1285, %v1281
  %v1850 = vpack.c.b16 %v1286, %v1282
  %v1851 = vpack.c.b16 %v1287, %v1283
  %v1852 = vpack.c.b16 %v1288, %v1284
  %v1853 = vpack.c.b16 %v1293, %v1289
  %v1854 = vpack.c.b16 %v1294, %v1290
  %v1855 = vpack.c.b16 %v1295, %v1291
  %v1856 = vpack.c.b16 %v1296, %v1292
  %v1857 = vpack.c.b16 %v1301, %v1297
  %v1858 = vpack.c.b16 %v1302, %v1298
  %v1859 = vpack.c.b16 %v1303, %v1299
  %v1860 = vpack.c.b16 %v1304, %v1300
  %v1861 = vpack.c.b16 %v1309, %v1305
  %v1862 = vpack.c.b16 %v1310, %v1306
  %v1863 = vpack.c.b16 %v1311, %v1307
  %v1864 = vpack.c.b16 %v1312, %v1308
  %v1865 = vpack.c.b16 %v1317, %v1313
  %v1866 = vpack.c.b16 %v1318, %v1314
  %v1867 = vpack.c.b16 %v1319, %v1315
  %v1868 = vpack.c.b16 %v1320, %v1316
  %v1869 = vpack.c.b16 %v1325, %v1321
  %v1870 = vpack.c.b16 %v1326, %v1322
  %v1871 = vpack.c.b16 %v1327, %v1323
  %v1872 = vpack.c.b16 %v1328, %v1324
  %v1873 = vpack.c.b16 %v1333, %v1329
  %v1874 = vpack.c.b16 %v1334, %v1330
  %v1875 = vpack.c.b16 %v1335, %v1331
  %v1876 = vpack.c.b16 %v1336, %v1332
  %v1877 = vpack.c.b16 %v1341, %v1337
  %v1878 = vpack.c.b16 %v1342, %v1338
  %v1879 = vpack.c.b16 %v1343, %v1339
  %v1880 = vpack.c.b16 %v1344, %v1340
  %v1881 = vpack.c.b16 %v1349, %v1345
  %v1882 = vpack.c.b16 %v1350, %v1346
  %v1883 = vpack.c.b16 %v1351, %v1347
  %v1884 = vpack.c.b16 %v1352, %v1348
  %v1885 = vpack.c.b16 %v1357, %v1353
  %v1886 = vpack.c.b16 %v1358, %v1354
  %v1887 = vpack.c.b16 %v1359, %v1355
  %v1888 = vpack.c.b16 %v1360, %v1356
  %v1889 = vpack.c.b16 %v1365, %v1361
  %v1890 = vpack.c.b16 %v1366, %v1362
  %v1891 = vpack.c.b16 %v1367, %v1363
  %v1892 = vpack.c.b16 %v1368, %v1364
  %v1893 = vpack.c.b16 %v1373, %v1369
  %v1894 = vpack.c.b16 %v1374, %v1370
  %v1895 = vpack.c.b16 %v1375, %v1371
  %v1896 = vpack.c.b16 %v1376, %v1372
  %v1897 = vpack.c.b16 %v1381, %v1377
  %v1898 = vpack.c.b16 %v1382, %v1378
  %v1899 = vpack.c.b16 %v1383, %v1379
  %v1900 = vpack.c.b16 %v1384, %v1380
  %v1901 = vpack.c.b16 %v1389, %v1385
  %v1902 = vpack.c.b16 %v1390, %v1386
  %v1903 = vpack.c.b16 %v1391, %v1387
  %v1904 = vpack.c.b16 %v1392, %v1388
  %v1905 = vpack.c.b16 %v1397, %v1393
  %v1906 = vpack.c.b16 %v1398, %v1394
  %v1907 = vpack.c.b16 %v1399, %v1395
  %v1908 = vpack.c.b16 %v1400, %v1396
  %v1909 = vpack.c.b16 %v1405, %v1401
  %v1910 = vpack.c.b16 %v1406, %v1402
  %v1911 = vpack.c.b16 %v1407, %v1403
  %v1912 = vpack.c.b16 %v1408, %v1404
  %v1913 = vpack.c.b16 %v1413, %v1409
  %v1914 = vpack.c.b16 %v1414, %v1410
  %v1915 = vpack.c.b16 %v1415, %v1411
  %v1916 = vpack.c.b16 %v1416, %v1412
  %v1917 = vpack.c.b16 %v1421, %v1417
  %v1918 = vpack.c.b16 %v1422, %v1418
  %v1919 = vpack.c.b16 %v1423, %v1419
  %v1920 = vpack.c.b16 %v1424, %v1420
  %v1921 = vpack.c.b16 %v1429, %v1425
  %v1922 = vpack.c.b16 %v1430, %v1426
  %v1923 = vpack.c.b16 %v1431, %v1427
  %v1924 = vpack.c.b16 %v1432, %v1428
  %v1925 = vpack.c.b16 %v1437, %v1433
  %v1926 = vpack.c.b16 %v1438, %v1434
  %v1927 = vpack.c.b16 %v1439, %v1435
  %v1928 = vpack.c.b16 %v1440, %v1436
  %v1929 = vpack.c.b16 %v1445, %v1441
  %v1930 = vpack.c.b16 %v1446, %v1442
  %v1931 = vpack.c.b16 %v1447, %v1443
  %v1932 = vpack.c.b16 %v1448, %v1444
  %v1933 = vpack.c.b16 %v1453, %v1449
  %v1934 = vpack.c.b16 %v1454, %v1450
  %v1935 = vpack.c.b16 %v1455, %v1451
  %v1936 = vpack.c.b16 %v1456, %v1452
  %v1937 = vpack.c.b16 %v1461, %v1457
  %v1938 = vpack.c.b16 %v1462, %v1458
  %v1939 = vpack.c.b16 %v1463, %v1459
  %v1940 = vpack.c.b16 %v1464, %v1460
  %v1941 = vpack.c.b16 %v1469, %v1465
  %v1942 = vpack.c.b16 %v1470, %v1466
  %v1943 = vpack.c.b16 %v1471, %v1467
  %v1944 = vpack.c.b16 %v1472, %v1468
  %v1945 = vpack.c.b16 %v1477, %v1473
  %v1946 = vpack.c.b16 %v1478, %v1474
  %v1947 = vpack.c.b16 %v1479, %v1475
  %v1948 = vpack.c.b16 %v1480, %v1476
  %v1949 = vpack.c.b16 %v1485, %v1481
  %v1950 = vpack.c.b16 %v1486, %v1482
  %v1951 = vpack.c.b16 %v1487, %v1483
  %v1952 = vpack.c.b16 %v1488, %v1484
  %v1953 = vpack.c.b16 %v1493, %v1489
  %v1954 = vpack.c.b16 %v1494, %v1490
  %v1955 = vpack.c.b16 %v1495, %v1491
  %v1956 = vpack.c.b16 %v1496, %v1492
  %v1957 = vpack.c.b16 %v1501, %v1497
  %v1958 = vpack.c.b16 %v1502, %v1498
  %v1959 = vpack.c.b16 %v1503, %v1499
  %v1960 = vpack.c.b16 %v1504, %v1500
  %v1961 = vpack.c.b16 %v1509, %v1505
  %v1962 = vpack.c.b16 %v1510, %v1506
  %v1963 = vpack.c.b16 %v1511, %v1507
  %v1964 = vpack.c.b16 %v1512, %v1508
  %v1965 = vpack.c.b16 %v1517, %v1513
  %v1966 = vpack.c.b16 %v1518, %v1514
  %v1967 = vpack.c.b16 %v1519, %v1515
  %v1968 = vpack.c.b16 %v1520, %v1516
  %v1969 = vpack.c.b16 %v1525, %v1521
  %v1970 = vpack.c.b16 %v1526, %v1522
  %v1971 = vpack.c.b16 %v1527, %v1523
  %v1972 = vpack.c.b16 %v1528, %v1524
  %v1973 = vpack.c.b16 %v1533, %v1529
  %v1974 = vpack.c.b16 %v1534, %v1530
  %v1975 = vpack.c.b16 %v1535, %v1531
  %v1976 = vpack.c.b16 %v1536, %v1532
  %v1977 = vpack.c.b16 %v1541, %v1537
  %v1978 = vpack.c.b16 %v1542, %v1538
  %v1979 = vpack.c.b16 %v1543, %v1539
  %v1980 = vpack.c.b16 %v1544, %v1540
  %v1981 = vpack.c.b16 %v1549, %v1545
  %v1982 = vpack.c.b16 %v1550, %v1546
  %v1983 = vpack.c.b16 %v1551, %v1547
  %v1984 = vpack.c.b16 %v1552, %v1548
  %v1985 = vpack.c.b16 %v1557, %v1553
  %v1986 = vpack.c.b16 %v1558, %v1554
  %v1987 = vpack.c.b16 %v1559, %v1555
  %v1988 = vpack.c.b16 %v1560, %v1556
  %v1989 = vpack.c.b16 %v1565, %v1561
  %v1990 = vpack.c.b16 %v1566, %v1562
  %v1991 = vpack.c.b16 %v1567, %v1563
  %v1992 = vpack.c.b16 %v1568, %v1564
  %v1993 = vpack.c.b16 %v1573, %v1569
  %v1994 = vpack.c.b16 %v1574, %v1570
  %v1995 = vpack.c.b16 %v1575, %v1571
  %v1996 = vpack.c.b16 %v1576, %v1572
  %v1997 = vpack.c.b16 %v1581, %v1577
  %v1998 = vpack.c.b16 %v1582, %v1578
  %v1999 = vpack.c.b16 %v1583, %v1579
  %v2000 = vpack.c.b16 %v1584, %v1580
  %v2001 = vpack.c.b16 %v1589, %v1585
  %v2002 = vpack.c.b16 %v1590, %v1586
  %v2003 = vpack.c.b16 %v1591, %v1587
  %v2004 = vpack.c.b16 %v1592, %v1588
  %v2005 = vpack.c.b16 %v1597, %v1593
  %v2006 = vpack.c.b16 %v1598, %v1594
  %v2007 = vpack.c.b16 %v1599, %v1595
  %v2008 = vpack.c.b16 %v1600, %v1596
  %v2009 = vpack.c.b16 %v1605, %v1601
  %v2010 = vpack.c.b16 %v1606, %v1602
  %v2011 = vpack.c.b16 %v1607, %v1603
  %v2012 = vpack.c.b16 %v1608, %v1604
  %v2013 = vpack.c.b16 %v1613, %v1609
  %v2014 = vpack.c.b16 %v1614, %v1610
  %v2015 = vpack.c.b16 %v1615, %v1611
  %v2016 = vpack.c.b16 %v1616, %v1612
  %v2017 = vpack.c.b16 %v1621, %v1617
  %v2018 = vpack.c.b16 %v1622, %v1618
  %v2019 = vpack.c.b16 %v1623, %v1619
  %v2020 = vpack.c.b16 %v1624, %v1620
  %v2021 = vpack.c.b16 %v1629, %v1625
  %v2022 = vpack.c.b16 %v1630, %v1626
  %v2023 = vpack.c.b16 %v1631, %v1627
  %v2024 = vpack.c.b16 %v1632, %v1628
  %v2369 = vunpack.c.l.b16 %v407
  %v2370 = vunpack.c.l.b16 %v408
  %v2371 = vunpack.c.l.b16 %v409
  %v2372 = vunpack.c.l.b16 %v410
  %v2373 = vunpack.c.l.b16 %v411
  %v2374 = vunpack.c.l.b16 %v412
  %v2375 = vunpack.c.l.b16 %v413
  %v2376 = vunpack.c.l.b16 %v414
  %v2377 = vunpack.c.l.b16 %v415
  %v2378 = vunpack.c.l.b16 %v416
  %v2379 = vunpack.c.l.b16 %v417
  %v2380 = vunpack.c.l.b16 %v418
  %v2381 = vunpack.c.l.b16 %v419
  %v2382 = vunpack.c.l.b16 %v420
  %v2383 = vunpack.c.l.b16 %v421
  %v2384 = vunpack.c.l.b16 %v422
  %v2385 = vunpack.c.l.b16 %v423
  %v2386 = vunpack.c.l.b16 %v424
  %v2387 = vunpack.c.l.b16 %v425
  %v2388 = vunpack.c.l.b16 %v426
  %v2389 = vunpack.c.l.b16 %v427
  %v2390 = vunpack.c.l.b16 %v428
  %v2391 = vunpack.c.l.b16 %v429
  %v2392 = vunpack.c.l.b16 %v430
  %v2393 = vunpack.c.l.b16 %v431
  %v2394 = vunpack.c.l.b16 %v432
  %v2395 = vunpack.c.l.b16 %v433
  %v2396 = vunpack.c.l.b16 %v434
  %v2397 = vunpack.c.l.b16 %v435
  %v2398 = vunpack.c.l.b16 %v436
  %v2399 = vunpack.c.l.b16 %v437
  %v2400 = vunpack.c.l.b16 %v438
  %v2401 = vunpack.c.l.b16 %v439
  %v2402 = vunpack.c.l.b16 %v440
  %v2403 = vunpack.c.l.b16 %v441
  %v2404 = vunpack.c.l.b16 %v442
  %v2405 = vunpack.c.l.b16 %v443
  %v2406 = vunpack.c.l.b16 %v444
  %v2407 = vunpack.c.l.b16 %v445
  %v2408 = vunpack.c.l.b16 %v446
  %v2409 = vunpack.c.l.b16 %v447
  %v2410 = vunpack.c.l.b16 %v448
  %v2411 = vunpack.c.l.b16 %v449
  %v2412 = vunpack.c.l.b16 %v450
  %v2413 = vunpack.c.l.b16 %v451
  %v2414 = vunpack.c.l.b16 %v452
  %v2415 = vunpack.c.l.b16 %v453
  %v2416 = vunpack.c.l.b16 %v454
  %v2417 = vunpack.c.l.b16 %v455
  %v2418 = vunpack.c.l.b16 %v456
  %v2419 = vpack.c.b16 %v2370, %v2369
  %v2420 = vpack.c.b16 %v2372, %v2371
  %v2421 = vpack.c.b16 %v2374, %v2373
  %v2422 = vpack.c.b16 %v2376, %v2375
  %v2423 = vpack.c.b16 %v2378, %v2377
  %v2424 = vpack.c.b16 %v2380, %v2379
  %v2425 = vpack.c.b16 %v2382, %v2381
  %v2426 = vpack.c.b16 %v2384, %v2383
  %v2427 = vpack.c.b16 %v2386, %v2385
  %v2428 = vpack.c.b16 %v2388, %v2387
  %v2429 = vpack.c.b16 %v2390, %v2389
  %v2430 = vpack.c.b16 %v2392, %v2391
  %v2431 = vpack.c.b16 %v2394, %v2393
  %v2432 = vpack.c.b16 %v2396, %v2395
  %v2433 = vpack.c.b16 %v2398, %v2397
  %v2434 = vpack.c.b16 %v2400, %v2399
  %v2435 = vpack.c.b16 %v2402, %v2401
  %v2436 = vpack.c.b16 %v2404, %v2403
  %v2437 = vpack.c.b16 %v2406, %v2405
  %v2438 = vpack.c.b16 %v2408, %v2407
  %v2439 = vpack.c.b16 %v2410, %v2409
  %v2440 = vpack.c.b16 %v2412, %v2411
  %v2441 = vpack.c.b16 %v2414, %v2413
  %v2442 = vpack.c.b16 %v2416, %v2415
  %v2443 = vpack.c.b16 %v2418, %v2417
  %vm2469 = vcmask 130048
  %v2471 = vsel %vm2469, %v1636, 0
  %v2474 = vsel %vm2469, %v1640, 0
  %v2477 = vsel %vm2469, %v1644, 0
  %v2480 = vsel %vm2469, %v1648, 0
  %v2483 = vsel %vm2469, %v1652, 0
  %v2486 = vsel %vm2469, %v1656, 0
  %v2489 = vsel %vm2469, %v1660, 0
  %v2492 = vsel %vm2469, %v1664, 0
  %v2495 = vsel %vm2469, %v1668, 0
  %v2498 = vsel %vm2469, %v1672, 0
  %v2501 = vsel %vm2469, %v1676, 0
  %v2504 = vsel %vm2469, %v1680, 0
  %v2507 = vsel %vm2469, %v1684, 0
  %v2510 = vsel %vm2469, %v1688, 0
  %v2513 = vsel %vm2469, %v1692, 0
  %v2516 = vsel %vm2469, %v1696, 0
  %v2519 = vsel %vm2469, %v1700, 0
  %v2522 = vsel %vm2469, %v1704, 0
  %v2525 = vsel %vm2469, %v1708, 0
  %v2528 = vsel %vm2469, %v1712, 0
  %v2531 = vsel %vm2469, %v1716, 0
  %v2534 = vsel %vm2469, %v1720, 0
  %v2537 = vsel %vm2469, %v1724, 0
  %v2540 = vsel %vm2469, %v1728, 0
  %v2543 = vsel %vm2469, %v1732, 0
  %v2546 = vsel %vm2469, %v1736, 0
  %v2549 = vsel %vm2469, %v1740, 0
  %v2552 = vsel %vm2469, %v1744, 0
  %v2555 = vsel %vm2469, %v1748, 0
  %v2558 = vsel %vm2469, %v1752, 0
  %v2561 = vsel %vm2469, %v1756, 0
  %v2564 = vsel %vm2469, %v1760, 0
  %v2567 = vsel %vm2469, %v1764, 0
  %v2570 = vsel %vm2469, %v1768, 0
  %v2573 = vsel %vm2469, %v1772, 0
  %v2576 = vsel %vm2469, %v1776, 0
  %v2579 = vsel %vm2469, %v1780, 0
  %v2582 = vsel %vm2469, %v1784, 0
  %v2585 = vsel %vm2469, %v1788, 0
  %v2588 = vsel %vm2469, %v1792, 0
  %v2591 = vsel %vm2469, %v1796, 0
  %v2594 = vsel %vm2469, %v1800, 0
  %v2597 = vsel %vm2469, %v1804, 0
  %v2600 = vsel %vm2469, %v1808, 0
  %v2603 = vsel %vm2469, %v1812, 0
  %v2606 = vsel %vm2469, %v1816, 0
  %v2609 = vsel %vm2469, %v1820, 0
  %v2612 = vsel %vm2469, %v1824, 0
  %v2615 = vsel %vm2469, %v1828, 0
  %v2618 = vsel %vm2469, %v1832, 0
  %v2621 = vsel %vm2469, %v1836, 0
  %v2624 = vsel %vm2469, %v1840, 0
  %v2627 = vsel %vm2469, %v1844, 0
  %v2630 = vsel %vm2469, %v1848, 0
  %v2633 = vsel %vm2469, %v1852, 0
  %v2636 = vsel %vm2469, %v1856, 0
  %v2639 = vsel %vm2469, %v1860, 0
  %v2642 = vsel %vm2469, %v1864, 0
  %v2645 = vsel %vm2469, %v1868, 0
  %v2648 = vsel %vm2469, %v1872, 0
  %v2651 = vsel %vm2469, %v1876, 0
  %v2654 = vsel %vm2469, %v1880, 0
  %v2657 = vsel %vm2469, %v1884, 0
  %v2660 = vsel %vm2469, %v1888, 0
  %v2663 = vsel %vm2469, %v1892, 0
  %v2666 = vsel %vm2469, %v1896, 0
  %v2669 = vsel %vm2469, %v1900, 0
  %v2672 = vsel %vm2469, %v1904, 0
  %v2675 = vsel %vm2469, %v1908, 0
  %v2678 = vsel %vm2469, %v1912, 0
  %v2681 = vsel %vm2469, %v1916, 0
  %v2684 = vsel %vm2469, %v1920, 0
  %v2687 = vsel %vm2469, %v1924, 0
  %v2690 = vsel %vm2469, %v1928, 0
  %v2693 = vsel %vm2469, %v1932, 0
  %v2696 = vsel %vm2469, %v1936, 0
  %v2699 = vsel %vm2469, %v1940, 0
  %v2702 = vsel %vm2469, %v1944, 0
  %v2705 = vsel %vm2469, %v1948, 0
  %v2708 = vsel %vm2469, %v1952, 0
  %v2711 = vsel %vm2469, %v1956, 0
  %v2714 = vsel %vm2469, %v1960, 0
  %v2717 = vsel %vm2469, %v1964, 0
  %v2720 = vsel %vm2469, %v1968, 0
  %v2723 = vsel %vm2469, %v1972, 0
  %v2726 = vsel %vm2469, %v1976, 0
  %v2729 = vsel %vm2469, %v1980, 0
  %v2732 = vsel %vm2469, %v1984, 0
  %v2735 = vsel %vm2469, %v1988, 0
  %v2738 = vsel %vm2469, %v1992, 0
  %v2741 = vsel %vm2469, %v1996, 0
  %v2744 = vsel %vm2469, %v2000, 0
  %v2747 = vsel %vm2469, %v2004, 0
  %v2750 = vsel %vm2469, %v2008, 0
  %v2753 = vsel %vm2469, %v2012, 0
  %v2756 = vsel %vm2469, %v2016, 0
  %v2759 = vsel %vm2469, %v2020, 0
  %v2762 = vsel %vm2469, %v2024, 0
  %2764 = vmatprep.subr.bf16.mxu0 0
  %2765 = vmatpush1.bf16.msra.mxu0 %v2426
  %2766 = vmatprep.subr.bf16.mxu0 0
  %2767 = vmatpush1.bf16.msra.mxu0 %v2425
  %2768 = vmatprep.subr.bf16.mxu0 0
  %2769 = vmatpush1.bf16.msra.mxu0 %v2424
  %2770 = vmatprep.subr.bf16.mxu0 0
  %2771 = vmatpush1.bf16.msra.mxu0 %v2423
  %2772 = vmatprep.subr.bf16.mxu0 0
  %2773 = vmatpush1.bf16.msra.mxu0 %v2422
  %2774 = vmatprep.subr.bf16.mxu0 0
  %2775 = vmatpush1.bf16.msra.mxu0 %v2421
  %2776 = vmatprep.subr.bf16.mxu0 0
  %2777 = vmatpush1.bf16.msra.mxu0 %v2420
  %2778 = vmatprep.subr.bf16.mxu0 0
  %2779 = vmatpush1.bf16.msra.mxu0 %v2419
  %2780 = vmatprep.subr.bf16.mxu0 0
  %2781 = vmatpush2.bf16.msra.mxu0 %v2434
  %2782 = vmatprep.subr.bf16.mxu0 0
  %2783 = vmatpush2.bf16.msra.mxu0 %v2433
  %2784 = vmatprep.subr.bf16.mxu0 0
  %2785 = vmatpush2.bf16.msra.mxu0 %v2432
  %2786 = vmatprep.subr.bf16.mxu0 0
  %2787 = vmatpush2.bf16.msra.mxu0 %v2431
  %2788 = vmatprep.subr.bf16.mxu0 0
  %2789 = vmatpush2.bf16.msra.mxu0 %v2430
  %2790 = vmatprep.subr.bf16.mxu0 0
  %2791 = vmatpush2.bf16.msra.mxu0 %v2429
  %2792 = vmatprep.subr.bf16.mxu0 0
  %2793 = vmatpush2.bf16.msra.mxu0 %v2428
  %2794 = vmatprep.subr.bf16.mxu0 0
  %2795 = vmatpush2.bf16.msra.mxu0 %v2427
  %2796 = vmatprep.mubr.bf16.mxu0 %v1634
  %2797 = vmatmul.mubr.bf16.gmra.mxu0 %v1633
  %v2798 = vpop.f32.mrf.mxu0
  %v2799 = vadd.f32 0.0, %v2798
  %v2800 = vpop.f32.mrf.mxu0
  %v2801 = vpop.f32.mrf.mxu0
  %v2802 = vadd.f32 0.0, %v2801
  %v2803 = vpop.f32.mrf.mxu0
  %2804 = vmatprep.mubr.bf16.mxu0 %v1638
  %2805 = vmatmul.mubr.bf16.gmra.mxu0 %v1637
  %v2806 = vpop.f32.mrf.mxu0
  %v2807 = vadd.f32 0.0, %v2806
  %v2808 = vpop.f32.mrf.mxu0
  %v2809 = vpop.f32.mrf.mxu0
  %v2810 = vadd.f32 0.0, %v2809
  %v2811 = vpop.f32.mrf.mxu0
  %2812 = vmatprep.mubr.bf16.mxu0 %v1642
  %2813 = vmatmul.mubr.bf16.gmra.mxu0 %v1641
  %v2814 = vpop.f32.mrf.mxu0
  %v2815 = vadd.f32 0.0, %v2814
  %v2816 = vpop.f32.mrf.mxu0
  %v2817 = vpop.f32.mrf.mxu0
  %v2818 = vadd.f32 0.0, %v2817
  %v2819 = vpop.f32.mrf.mxu0
  %2820 = vmatprep.mubr.bf16.mxu0 %v1646
  %2821 = vmatmul.mubr.bf16.gmra.mxu0 %v1645
  %v2822 = vpop.f32.mrf.mxu0
  %v2823 = vadd.f32 0.0, %v2822
  %v2824 = vpop.f32.mrf.mxu0
  %v2825 = vpop.f32.mrf.mxu0
  %v2826 = vadd.f32 0.0, %v2825
  %v2827 = vpop.f32.mrf.mxu0
  %2828 = vmatprep.mubr.bf16.mxu0 %v1650
  %2829 = vmatmul.mubr.bf16.gmra.mxu0 %v1649
  %v2830 = vpop.f32.mrf.mxu0
  %v2831 = vadd.f32 0.0, %v2830
  %v2832 = vpop.f32.mrf.mxu0
  %v2833 = vpop.f32.mrf.mxu0
  %v2834 = vadd.f32 0.0, %v2833
  %v2835 = vpop.f32.mrf.mxu0
  %2836 = vmatprep.mubr.bf16.mxu0 %v1654
  %2837 = vmatmul.mubr.bf16.gmra.mxu0 %v1653
  %v2838 = vpop.f32.mrf.mxu0
  %v2839 = vadd.f32 0.0, %v2838
  %v2840 = vpop.f32.mrf.mxu0
  %v2841 = vpop.f32.mrf.mxu0
  %v2842 = vadd.f32 0.0, %v2841
  %v2843 = vpop.f32.mrf.mxu0
  %2844 = vmatprep.mubr.bf16.mxu0 %v1658
  %2845 = vmatmul.mubr.bf16.gmra.mxu0 %v1657
  %v2846 = vpop.f32.mrf.mxu0
  %v2847 = vadd.f32 0.0, %v2846
  %v2848 = vpop.f32.mrf.mxu0
  %v2849 = vpop.f32.mrf.mxu0
  %v2850 = vadd.f32 0.0, %v2849
  %v2851 = vpop.f32.mrf.mxu0
  %2852 = vmatprep.mubr.bf16.mxu0 %v1662
  %2853 = vmatmul.mubr.bf16.gmra.mxu0 %v1661
  %v2854 = vpop.f32.mrf.mxu0
  %v2855 = vadd.f32 0.0, %v2854
  %v2856 = vpop.f32.mrf.mxu0
  %v2857 = vpop.f32.mrf.mxu0
  %v2858 = vadd.f32 0.0, %v2857
  %v2859 = vpop.f32.mrf.mxu0
  %2860 = vmatprep.mubr.bf16.mxu0 %v1666
  %2861 = vmatmul.mubr.bf16.gmra.mxu0 %v1665
  %v2862 = vpop.f32.mrf.mxu0
  %v2863 = vadd.f32 0.0, %v2862
  %v2864 = vpop.f32.mrf.mxu0
  %v2865 = vpop.f32.mrf.mxu0
  %v2866 = vadd.f32 0.0, %v2865
  %v2867 = vpop.f32.mrf.mxu0
  %2868 = vmatprep.mubr.bf16.mxu0 %v1670
  %2869 = vmatmul.mubr.bf16.gmra.mxu0 %v1669
  %v2870 = vpop.f32.mrf.mxu0
  %v2871 = vadd.f32 0.0, %v2870
  %v2872 = vpop.f32.mrf.mxu0
  %v2873 = vpop.f32.mrf.mxu0
  %v2874 = vadd.f32 0.0, %v2873
  %v2875 = vpop.f32.mrf.mxu0
  %2876 = vmatprep.mubr.bf16.mxu0 %v1674
  %2877 = vmatmul.mubr.bf16.gmra.mxu0 %v1673
  %v2878 = vpop.f32.mrf.mxu0
  %v2879 = vadd.f32 0.0, %v2878
  %v2880 = vpop.f32.mrf.mxu0
  %v2881 = vpop.f32.mrf.mxu0
  %v2882 = vadd.f32 0.0, %v2881
  %v2883 = vpop.f32.mrf.mxu0
  %2884 = vmatprep.mubr.bf16.mxu0 %v1678
  %2885 = vmatmul.mubr.bf16.gmra.mxu0 %v1677
  %v2886 = vpop.f32.mrf.mxu0
  %v2887 = vadd.f32 0.0, %v2886
  %v2888 = vpop.f32.mrf.mxu0
  %v2889 = vpop.f32.mrf.mxu0
  %v2890 = vadd.f32 0.0, %v2889
  %v2891 = vpop.f32.mrf.mxu0
  %2892 = vmatprep.mubr.bf16.mxu0 %v1682
  %2893 = vmatmul.mubr.bf16.gmra.mxu0 %v1681
  %v2894 = vpop.f32.mrf.mxu0
  %v2895 = vadd.f32 0.0, %v2894
  %v2896 = vpop.f32.mrf.mxu0
  %v2897 = vpop.f32.mrf.mxu0
  %v2898 = vadd.f32 0.0, %v2897
  %v2899 = vpop.f32.mrf.mxu0
  %2900 = vmatprep.mubr.bf16.mxu0 %v1686
  %2901 = vmatmul.mubr.bf16.gmra.mxu0 %v1685
  %v2902 = vpop.f32.mrf.mxu0
  %v2903 = vadd.f32 0.0, %v2902
  %v2904 = vpop.f32.mrf.mxu0
  %v2905 = vpop.f32.mrf.mxu0
  %v2906 = vadd.f32 0.0, %v2905
  %v2907 = vpop.f32.mrf.mxu0
  %2908 = vmatprep.mubr.bf16.mxu0 %v1690
  %2909 = vmatmul.mubr.bf16.gmra.mxu0 %v1689
  %v2910 = vpop.f32.mrf.mxu0
  %v2911 = vadd.f32 0.0, %v2910
  %v2912 = vpop.f32.mrf.mxu0
  %v2913 = vpop.f32.mrf.mxu0
  %v2914 = vadd.f32 0.0, %v2913
  %v2915 = vpop.f32.mrf.mxu0
  %2916 = vmatprep.mubr.bf16.mxu0 %v1694
  %2917 = vmatmul.mubr.bf16.gmra.mxu0 %v1693
  %v2918 = vpop.f32.mrf.mxu0
  %v2919 = vadd.f32 0.0, %v2918
  %v2920 = vpop.f32.mrf.mxu0
  %v2921 = vpop.f32.mrf.mxu0
  %v2922 = vadd.f32 0.0, %v2921
  %v2923 = vpop.f32.mrf.mxu0
  %2924 = vmatprep.mubr.bf16.mxu0 %v1698
  %2925 = vmatmul.mubr.bf16.gmra.mxu0 %v1697
  %v2926 = vpop.f32.mrf.mxu0
  %v2927 = vadd.f32 0.0, %v2926
  %v2928 = vpop.f32.mrf.mxu0
  %v2929 = vpop.f32.mrf.mxu0
  %v2930 = vadd.f32 0.0, %v2929
  %v2931 = vpop.f32.mrf.mxu0
  %2932 = vmatprep.mubr.bf16.mxu0 %v1702
  %2933 = vmatmul.mubr.bf16.gmra.mxu0 %v1701
  %v2934 = vpop.f32.mrf.mxu0
  %v2935 = vadd.f32 0.0, %v2934
  %v2936 = vpop.f32.mrf.mxu0
  %v2937 = vpop.f32.mrf.mxu0
  %v2938 = vadd.f32 0.0, %v2937
  %v2939 = vpop.f32.mrf.mxu0
  %2940 = vmatprep.mubr.bf16.mxu0 %v1706
  %2941 = vmatmul.mubr.bf16.gmra.mxu0 %v1705
  %v2942 = vpop.f32.mrf.mxu0
  %v2943 = vadd.f32 0.0, %v2942
  %v2944 = vpop.f32.mrf.mxu0
  %v2945 = vpop.f32.mrf.mxu0
  %v2946 = vadd.f32 0.0, %v2945
  %v2947 = vpop.f32.mrf.mxu0
  %2948 = vmatprep.mubr.bf16.mxu0 %v1710
  %2949 = vmatmul.mubr.bf16.gmra.mxu0 %v1709
  %v2950 = vpop.f32.mrf.mxu0
  %v2951 = vadd.f32 0.0, %v2950
  %v2952 = vpop.f32.mrf.mxu0
  %v2953 = vpop.f32.mrf.mxu0
  %v2954 = vadd.f32 0.0, %v2953
  %v2955 = vpop.f32.mrf.mxu0
  %2956 = vmatprep.mubr.bf16.mxu0 %v1714
  %2957 = vmatmul.mubr.bf16.gmra.mxu0 %v1713
  %v2958 = vpop.f32.mrf.mxu0
  %v2959 = vadd.f32 0.0, %v2958
  %v2960 = vpop.f32.mrf.mxu0
  %v2961 = vpop.f32.mrf.mxu0
  %v2962 = vadd.f32 0.0, %v2961
  %v2963 = vpop.f32.mrf.mxu0
  %2964 = vmatprep.mubr.bf16.mxu0 %v1718
  %2965 = vmatmul.mubr.bf16.gmra.mxu0 %v1717
  %v2966 = vpop.f32.mrf.mxu0
  %v2967 = vadd.f32 0.0, %v2966
  %v2968 = vpop.f32.mrf.mxu0
  %v2969 = vpop.f32.mrf.mxu0
  %v2970 = vadd.f32 0.0, %v2969
  %v2971 = vpop.f32.mrf.mxu0
  %2972 = vmatprep.mubr.bf16.mxu0 %v1722
  %2973 = vmatmul.mubr.bf16.gmra.mxu0 %v1721
  %v2974 = vpop.f32.mrf.mxu0
  %v2975 = vadd.f32 0.0, %v2974
  %v2976 = vpop.f32.mrf.mxu0
  %v2977 = vpop.f32.mrf.mxu0
  %v2978 = vadd.f32 0.0, %v2977
  %v2979 = vpop.f32.mrf.mxu0
  %2980 = vmatprep.mubr.bf16.mxu0 %v1726
  %2981 = vmatmul.mubr.bf16.gmra.mxu0 %v1725
  %v2982 = vpop.f32.mrf.mxu0
  %v2983 = vadd.f32 0.0, %v2982
  %v2984 = vpop.f32.mrf.mxu0
  %v2985 = vpop.f32.mrf.mxu0
  %v2986 = vadd.f32 0.0, %v2985
  %v2987 = vpop.f32.mrf.mxu0
  %2988 = vmatprep.mubr.bf16.mxu0 %v1730
  %2989 = vmatmul.mubr.bf16.gmra.mxu0 %v1729
  %v2990 = vpop.f32.mrf.mxu0
  %v2991 = vadd.f32 0.0, %v2990
  %v2992 = vpop.f32.mrf.mxu0
  %v2993 = vpop.f32.mrf.mxu0
  %v2994 = vadd.f32 0.0, %v2993
  %v2995 = vpop.f32.mrf.mxu0
  %2996 = vmatprep.mubr.bf16.mxu0 %v1734
  %2997 = vmatmul.mubr.bf16.gmra.mxu0 %v1733
  %v2998 = vpop.f32.mrf.mxu0
  %v2999 = vadd.f32 0.0, %v2998
  %v3000 = vpop.f32.mrf.mxu0
  %v3001 = vpop.f32.mrf.mxu0
  %v3002 = vadd.f32 0.0, %v3001
  %v3003 = vpop.f32.mrf.mxu0
  %3004 = vmatprep.mubr.bf16.mxu0 %v1738
  %3005 = vmatmul.mubr.bf16.gmra.mxu0 %v1737
  %v3006 = vpop.f32.mrf.mxu0
  %v3007 = vadd.f32 0.0, %v3006
  %v3008 = vpop.f32.mrf.mxu0
  %v3009 = vpop.f32.mrf.mxu0
  %v3010 = vadd.f32 0.0, %v3009
  %v3011 = vpop.f32.mrf.mxu0
  %3012 = vmatprep.mubr.bf16.mxu0 %v1742
  %3013 = vmatmul.mubr.bf16.gmra.mxu0 %v1741
  %v3014 = vpop.f32.mrf.mxu0
  %v3015 = vadd.f32 0.0, %v3014
  %v3016 = vpop.f32.mrf.mxu0
  %v3017 = vpop.f32.mrf.mxu0
  %v3018 = vadd.f32 0.0, %v3017
  %v3019 = vpop.f32.mrf.mxu0
  %3020 = vmatprep.mubr.bf16.mxu0 %v1746
  %3021 = vmatmul.mubr.bf16.gmra.mxu0 %v1745
  %v3022 = vpop.f32.mrf.mxu0
  %v3023 = vadd.f32 0.0, %v3022
  %v3024 = vpop.f32.mrf.mxu0
  %v3025 = vpop.f32.mrf.mxu0
  %v3026 = vadd.f32 0.0, %v3025
  %v3027 = vpop.f32.mrf.mxu0
  %3028 = vmatprep.mubr.bf16.mxu0 %v1750
  %3029 = vmatmul.mubr.bf16.gmra.mxu0 %v1749
  %v3030 = vpop.f32.mrf.mxu0
  %v3031 = vadd.f32 0.0, %v3030
  %v3032 = vpop.f32.mrf.mxu0
  %v3033 = vpop.f32.mrf.mxu0
  %v3034 = vadd.f32 0.0, %v3033
  %v3035 = vpop.f32.mrf.mxu0
  %3036 = vmatprep.mubr.bf16.mxu0 %v1754
  %3037 = vmatmul.mubr.bf16.gmra.mxu0 %v1753
  %v3038 = vpop.f32.mrf.mxu0
  %v3039 = vadd.f32 0.0, %v3038
  %v3040 = vpop.f32.mrf.mxu0
  %v3041 = vpop.f32.mrf.mxu0
  %v3042 = vadd.f32 0.0, %v3041
  %v3043 = vpop.f32.mrf.mxu0
  %3044 = vmatprep.mubr.bf16.mxu0 %v1758
  %3045 = vmatmul.mubr.bf16.gmra.mxu0 %v1757
  %v3046 = vpop.f32.mrf.mxu0
  %v3047 = vadd.f32 0.0, %v3046
  %v3048 = vpop.f32.mrf.mxu0
  %v3049 = vpop.f32.mrf.mxu0
  %v3050 = vadd.f32 0.0, %v3049
  %v3051 = vpop.f32.mrf.mxu0
  %3052 = vmatprep.mubr.bf16.mxu0 %v1762
  %3053 = vmatmul.mubr.bf16.gmra.mxu0 %v1761
  %v3054 = vpop.f32.mrf.mxu0
  %v3055 = vadd.f32 0.0, %v3054
  %v3056 = vpop.f32.mrf.mxu0
  %v3057 = vpop.f32.mrf.mxu0
  %v3058 = vadd.f32 0.0, %v3057
  %v3059 = vpop.f32.mrf.mxu0
  %3060 = vmatprep.mubr.bf16.mxu0 %v1766
  %3061 = vmatmul.mubr.bf16.gmra.mxu0 %v1765
  %v3062 = vpop.f32.mrf.mxu0
  %v3063 = vadd.f32 0.0, %v3062
  %v3064 = vpop.f32.mrf.mxu0
  %v3065 = vpop.f32.mrf.mxu0
  %v3066 = vadd.f32 0.0, %v3065
  %v3067 = vpop.f32.mrf.mxu0
  %3068 = vmatprep.mubr.bf16.mxu0 %v1770
  %3069 = vmatmul.mubr.bf16.gmra.mxu0 %v1769
  %v3070 = vpop.f32.mrf.mxu0
  %v3071 = vadd.f32 0.0, %v3070
  %v3072 = vpop.f32.mrf.mxu0
  %v3073 = vpop.f32.mrf.mxu0
  %v3074 = vadd.f32 0.0, %v3073
  %v3075 = vpop.f32.mrf.mxu0
  %3076 = vmatprep.mubr.bf16.mxu0 %v1774
  %3077 = vmatmul.mubr.bf16.gmra.mxu0 %v1773
  %v3078 = vpop.f32.mrf.mxu0
  %v3079 = vadd.f32 0.0, %v3078
  %v3080 = vpop.f32.mrf.mxu0
  %v3081 = vpop.f32.mrf.mxu0
  %v3082 = vadd.f32 0.0, %v3081
  %v3083 = vpop.f32.mrf.mxu0
  %3084 = vmatprep.mubr.bf16.mxu0 %v1778
  %3085 = vmatmul.mubr.bf16.gmra.mxu0 %v1777
  %v3086 = vpop.f32.mrf.mxu0
  %v3087 = vadd.f32 0.0, %v3086
  %v3088 = vpop.f32.mrf.mxu0
  %v3089 = vpop.f32.mrf.mxu0
  %v3090 = vadd.f32 0.0, %v3089
  %v3091 = vpop.f32.mrf.mxu0
  %3092 = vmatprep.mubr.bf16.mxu0 %v1782
  %3093 = vmatmul.mubr.bf16.gmra.mxu0 %v1781
  %v3094 = vpop.f32.mrf.mxu0
  %v3095 = vadd.f32 0.0, %v3094
  %v3096 = vpop.f32.mrf.mxu0
  %v3097 = vpop.f32.mrf.mxu0
  %v3098 = vadd.f32 0.0, %v3097
  %v3099 = vpop.f32.mrf.mxu0
  %3100 = vmatprep.mubr.bf16.mxu0 %v1786
  %3101 = vmatmul.mubr.bf16.gmra.mxu0 %v1785
  %v3102 = vpop.f32.mrf.mxu0
  %v3103 = vadd.f32 0.0, %v3102
  %v3104 = vpop.f32.mrf.mxu0
  %v3105 = vpop.f32.mrf.mxu0
  %v3106 = vadd.f32 0.0, %v3105
  %v3107 = vpop.f32.mrf.mxu0
  %3108 = vmatprep.mubr.bf16.mxu0 %v1790
  %3109 = vmatmul.mubr.bf16.gmra.mxu0 %v1789
  %v3110 = vpop.f32.mrf.mxu0
  %v3111 = vadd.f32 0.0, %v3110
  %v3112 = vpop.f32.mrf.mxu0
  %v3113 = vpop.f32.mrf.mxu0
  %v3114 = vadd.f32 0.0, %v3113
  %v3115 = vpop.f32.mrf.mxu0
  %3116 = vmatprep.mubr.bf16.mxu0 %v1794
  %3117 = vmatmul.mubr.bf16.gmra.mxu0 %v1793
  %v3118 = vpop.f32.mrf.mxu0
  %v3119 = vadd.f32 0.0, %v3118
  %v3120 = vpop.f32.mrf.mxu0
  %v3121 = vpop.f32.mrf.mxu0
  %v3122 = vadd.f32 0.0, %v3121
  %v3123 = vpop.f32.mrf.mxu0
  %3124 = vmatprep.mubr.bf16.mxu0 %v1798
  %3125 = vmatmul.mubr.bf16.gmra.mxu0 %v1797
  %v3126 = vpop.f32.mrf.mxu0
  %v3127 = vadd.f32 0.0, %v3126
  %v3128 = vpop.f32.mrf.mxu0
  %v3129 = vpop.f32.mrf.mxu0
  %v3130 = vadd.f32 0.0, %v3129
  %v3131 = vpop.f32.mrf.mxu0
  %3132 = vmatprep.mubr.bf16.mxu0 %v1802
  %3133 = vmatmul.mubr.bf16.gmra.mxu0 %v1801
  %v3134 = vpop.f32.mrf.mxu0
  %v3135 = vadd.f32 0.0, %v3134
  %v3136 = vpop.f32.mrf.mxu0
  %v3137 = vpop.f32.mrf.mxu0
  %v3138 = vadd.f32 0.0, %v3137
  %v3139 = vpop.f32.mrf.mxu0
  %3140 = vmatprep.mubr.bf16.mxu0 %v1806
  %3141 = vmatmul.mubr.bf16.gmra.mxu0 %v1805
  %v3142 = vpop.f32.mrf.mxu0
  %v3143 = vadd.f32 0.0, %v3142
  %v3144 = vpop.f32.mrf.mxu0
  %v3145 = vpop.f32.mrf.mxu0
  %v3146 = vadd.f32 0.0, %v3145
  %v3147 = vpop.f32.mrf.mxu0
  %3148 = vmatprep.mubr.bf16.mxu0 %v1810
  %3149 = vmatmul.mubr.bf16.gmra.mxu0 %v1809
  %v3150 = vpop.f32.mrf.mxu0
  %v3151 = vadd.f32 0.0, %v3150
  %v3152 = vpop.f32.mrf.mxu0
  %v3153 = vpop.f32.mrf.mxu0
  %v3154 = vadd.f32 0.0, %v3153
  %v3155 = vpop.f32.mrf.mxu0
  %3156 = vmatprep.mubr.bf16.mxu0 %v1814
  %3157 = vmatmul.mubr.bf16.gmra.mxu0 %v1813
  %v3158 = vpop.f32.mrf.mxu0
  %v3159 = vadd.f32 0.0, %v3158
  %v3160 = vpop.f32.mrf.mxu0
  %v3161 = vpop.f32.mrf.mxu0
  %v3162 = vadd.f32 0.0, %v3161
  %v3163 = vpop.f32.mrf.mxu0
  %3164 = vmatprep.mubr.bf16.mxu0 %v1818
  %3165 = vmatmul.mubr.bf16.gmra.mxu0 %v1817
  %v3166 = vpop.f32.mrf.mxu0
  %v3167 = vadd.f32 0.0, %v3166
  %v3168 = vpop.f32.mrf.mxu0
  %v3169 = vpop.f32.mrf.mxu0
  %v3170 = vadd.f32 0.0, %v3169
  %v3171 = vpop.f32.mrf.mxu0
  %3172 = vmatprep.mubr.bf16.mxu0 %v1822
  %3173 = vmatmul.mubr.bf16.gmra.mxu0 %v1821
  %v3174 = vpop.f32.mrf.mxu0
  %v3175 = vadd.f32 0.0, %v3174
  %v3176 = vpop.f32.mrf.mxu0
  %v3177 = vpop.f32.mrf.mxu0
  %v3178 = vadd.f32 0.0, %v3177
  %v3179 = vpop.f32.mrf.mxu0
  %3180 = vmatprep.mubr.bf16.mxu0 %v1826
  %3181 = vmatmul.mubr.bf16.gmra.mxu0 %v1825
  %v3182 = vpop.f32.mrf.mxu0
  %v3183 = vadd.f32 0.0, %v3182
  %v3184 = vpop.f32.mrf.mxu0
  %v3185 = vpop.f32.mrf.mxu0
  %v3186 = vadd.f32 0.0, %v3185
  %v3187 = vpop.f32.mrf.mxu0
  %3188 = vmatprep.mubr.bf16.mxu0 %v1830
  %3189 = vmatmul.mubr.bf16.gmra.mxu0 %v1829
  %v3190 = vpop.f32.mrf.mxu0
  %v3191 = vadd.f32 0.0, %v3190
  %v3192 = vpop.f32.mrf.mxu0
  %v3193 = vpop.f32.mrf.mxu0
  %v3194 = vadd.f32 0.0, %v3193
  %v3195 = vpop.f32.mrf.mxu0
  %3196 = vmatprep.mubr.bf16.mxu0 %v1834
  %3197 = vmatmul.mubr.bf16.gmra.mxu0 %v1833
  %v3198 = vpop.f32.mrf.mxu0
  %v3199 = vadd.f32 0.0, %v3198
  %v3200 = vpop.f32.mrf.mxu0
  %v3201 = vpop.f32.mrf.mxu0
  %v3202 = vadd.f32 0.0, %v3201
  %v3203 = vpop.f32.mrf.mxu0
  %3204 = vmatprep.mubr.bf16.mxu0 %v1838
  %3205 = vmatmul.mubr.bf16.gmra.mxu0 %v1837
  %v3206 = vpop.f32.mrf.mxu0
  %v3207 = vadd.f32 0.0, %v3206
  %v3208 = vpop.f32.mrf.mxu0
  %v3209 = vpop.f32.mrf.mxu0
  %v3210 = vadd.f32 0.0, %v3209
  %v3211 = vpop.f32.mrf.mxu0
  %3212 = vmatprep.mubr.bf16.mxu0 %v1842
  %3213 = vmatmul.mubr.bf16.gmra.mxu0 %v1841
  %v3214 = vpop.f32.mrf.mxu0
  %v3215 = vadd.f32 0.0, %v3214
  %v3216 = vpop.f32.mrf.mxu0
  %v3217 = vpop.f32.mrf.mxu0
  %v3218 = vadd.f32 0.0, %v3217
  %v3219 = vpop.f32.mrf.mxu0
  %3220 = vmatprep.mubr.bf16.mxu0 %v1846
  %3221 = vmatmul.mubr.bf16.gmra.mxu0 %v1845
  %v3222 = vpop.f32.mrf.mxu0
  %v3223 = vadd.f32 0.0, %v3222
  %v3224 = vpop.f32.mrf.mxu0
  %v3225 = vpop.f32.mrf.mxu0
  %v3226 = vadd.f32 0.0, %v3225
  %v3227 = vpop.f32.mrf.mxu0
  %3228 = vmatprep.mubr.bf16.mxu0 %v1850
  %3229 = vmatmul.mubr.bf16.gmra.mxu0 %v1849
  %v3230 = vpop.f32.mrf.mxu0
  %v3231 = vadd.f32 0.0, %v3230
  %v3232 = vpop.f32.mrf.mxu0
  %v3233 = vpop.f32.mrf.mxu0
  %v3234 = vadd.f32 0.0, %v3233
  %v3235 = vpop.f32.mrf.mxu0
  %3236 = vmatprep.mubr.bf16.mxu0 %v1854
  %3237 = vmatmul.mubr.bf16.gmra.mxu0 %v1853
  %v3238 = vpop.f32.mrf.mxu0
  %v3239 = vadd.f32 0.0, %v3238
  %v3240 = vpop.f32.mrf.mxu0
  %v3241 = vpop.f32.mrf.mxu0
  %v3242 = vadd.f32 0.0, %v3241
  %v3243 = vpop.f32.mrf.mxu0
  %3244 = vmatprep.mubr.bf16.mxu0 %v1858
  %3245 = vmatmul.mubr.bf16.gmra.mxu0 %v1857
  %v3246 = vpop.f32.mrf.mxu0
  %v3247 = vadd.f32 0.0, %v3246
  %v3248 = vpop.f32.mrf.mxu0
  %v3249 = vpop.f32.mrf.mxu0
  %v3250 = vadd.f32 0.0, %v3249
  %v3251 = vpop.f32.mrf.mxu0
  %3252 = vmatprep.mubr.bf16.mxu0 %v1862
  %3253 = vmatmul.mubr.bf16.gmra.mxu0 %v1861
  %v3254 = vpop.f32.mrf.mxu0
  %v3255 = vadd.f32 0.0, %v3254
  %v3256 = vpop.f32.mrf.mxu0
  %v3257 = vpop.f32.mrf.mxu0
  %v3258 = vadd.f32 0.0, %v3257
  %v3259 = vpop.f32.mrf.mxu0
  %3260 = vmatprep.mubr.bf16.mxu0 %v1866
  %3261 = vmatmul.mubr.bf16.gmra.mxu0 %v1865
  %v3262 = vpop.f32.mrf.mxu0
  %v3263 = vadd.f32 0.0, %v3262
  %v3264 = vpop.f32.mrf.mxu0
  %v3265 = vpop.f32.mrf.mxu0
  %v3266 = vadd.f32 0.0, %v3265
  %v3267 = vpop.f32.mrf.mxu0
  %3268 = vmatprep.mubr.bf16.mxu0 %v1870
  %3269 = vmatmul.mubr.bf16.gmra.mxu0 %v1869
  %v3270 = vpop.f32.mrf.mxu0
  %v3271 = vadd.f32 0.0, %v3270
  %v3272 = vpop.f32.mrf.mxu0
  %v3273 = vpop.f32.mrf.mxu0
  %v3274 = vadd.f32 0.0, %v3273
  %v3275 = vpop.f32.mrf.mxu0
  %3276 = vmatprep.mubr.bf16.mxu0 %v1874
  %3277 = vmatmul.mubr.bf16.gmra.mxu0 %v1873
  %v3278 = vpop.f32.mrf.mxu0
  %v3279 = vadd.f32 0.0, %v3278
  %v3280 = vpop.f32.mrf.mxu0
  %v3281 = vpop.f32.mrf.mxu0
  %v3282 = vadd.f32 0.0, %v3281
  %v3283 = vpop.f32.mrf.mxu0
  %3284 = vmatprep.mubr.bf16.mxu0 %v1878
  %3285 = vmatmul.mubr.bf16.gmra.mxu0 %v1877
  %v3286 = vpop.f32.mrf.mxu0
  %v3287 = vadd.f32 0.0, %v3286
  %v3288 = vpop.f32.mrf.mxu0
  %v3289 = vpop.f32.mrf.mxu0
  %v3290 = vadd.f32 0.0, %v3289
  %v3291 = vpop.f32.mrf.mxu0
  %3292 = vmatprep.mubr.bf16.mxu0 %v1882
  %3293 = vmatmul.mubr.bf16.gmra.mxu0 %v1881
  %v3294 = vpop.f32.mrf.mxu0
  %v3295 = vadd.f32 0.0, %v3294
  %v3296 = vpop.f32.mrf.mxu0
  %v3297 = vpop.f32.mrf.mxu0
  %v3298 = vadd.f32 0.0, %v3297
  %v3299 = vpop.f32.mrf.mxu0
  %3300 = vmatprep.mubr.bf16.mxu0 %v1886
  %3301 = vmatmul.mubr.bf16.gmra.mxu0 %v1885
  %v3302 = vpop.f32.mrf.mxu0
  %v3303 = vadd.f32 0.0, %v3302
  %v3304 = vpop.f32.mrf.mxu0
  %v3305 = vpop.f32.mrf.mxu0
  %v3306 = vadd.f32 0.0, %v3305
  %v3307 = vpop.f32.mrf.mxu0
  %3308 = vmatprep.mubr.bf16.mxu0 %v1890
  %3309 = vmatmul.mubr.bf16.gmra.mxu0 %v1889
  %v3310 = vpop.f32.mrf.mxu0
  %v3311 = vadd.f32 0.0, %v3310
  %v3312 = vpop.f32.mrf.mxu0
  %v3313 = vpop.f32.mrf.mxu0
  %v3314 = vadd.f32 0.0, %v3313
  %v3315 = vpop.f32.mrf.mxu0
  %3316 = vmatprep.mubr.bf16.mxu0 %v1894
  %3317 = vmatmul.mubr.bf16.gmra.mxu0 %v1893
  %v3318 = vpop.f32.mrf.mxu0
  %v3319 = vadd.f32 0.0, %v3318
  %v3320 = vpop.f32.mrf.mxu0
  %v3321 = vpop.f32.mrf.mxu0
  %v3322 = vadd.f32 0.0, %v3321
  %v3323 = vpop.f32.mrf.mxu0
  %3324 = vmatprep.mubr.bf16.mxu0 %v1898
  %3325 = vmatmul.mubr.bf16.gmra.mxu0 %v1897
  %v3326 = vpop.f32.mrf.mxu0
  %v3327 = vadd.f32 0.0, %v3326
  %v3328 = vpop.f32.mrf.mxu0
  %v3329 = vpop.f32.mrf.mxu0
  %v3330 = vadd.f32 0.0, %v3329
  %v3331 = vpop.f32.mrf.mxu0
  %3332 = vmatprep.mubr.bf16.mxu0 %v1902
  %3333 = vmatmul.mubr.bf16.gmra.mxu0 %v1901
  %v3334 = vpop.f32.mrf.mxu0
  %v3335 = vadd.f32 0.0, %v3334
  %v3336 = vpop.f32.mrf.mxu0
  %v3337 = vpop.f32.mrf.mxu0
  %v3338 = vadd.f32 0.0, %v3337
  %v3339 = vpop.f32.mrf.mxu0
  %3340 = vmatprep.mubr.bf16.mxu0 %v1906
  %3341 = vmatmul.mubr.bf16.gmra.mxu0 %v1905
  %v3342 = vpop.f32.mrf.mxu0
  %v3343 = vadd.f32 0.0, %v3342
  %v3344 = vpop.f32.mrf.mxu0
  %v3345 = vpop.f32.mrf.mxu0
  %v3346 = vadd.f32 0.0, %v3345
  %v3347 = vpop.f32.mrf.mxu0
  %3348 = vmatprep.mubr.bf16.mxu0 %v1910
  %3349 = vmatmul.mubr.bf16.gmra.mxu0 %v1909
  %v3350 = vpop.f32.mrf.mxu0
  %v3351 = vadd.f32 0.0, %v3350
  %v3352 = vpop.f32.mrf.mxu0
  %v3353 = vpop.f32.mrf.mxu0
  %v3354 = vadd.f32 0.0, %v3353
  %v3355 = vpop.f32.mrf.mxu0
  %3356 = vmatprep.mubr.bf16.mxu0 %v1914
  %3357 = vmatmul.mubr.bf16.gmra.mxu0 %v1913
  %v3358 = vpop.f32.mrf.mxu0
  %v3359 = vadd.f32 0.0, %v3358
  %v3360 = vpop.f32.mrf.mxu0
  %v3361 = vpop.f32.mrf.mxu0
  %v3362 = vadd.f32 0.0, %v3361
  %v3363 = vpop.f32.mrf.mxu0
  %3364 = vmatprep.mubr.bf16.mxu0 %v1918
  %3365 = vmatmul.mubr.bf16.gmra.mxu0 %v1917
  %v3366 = vpop.f32.mrf.mxu0
  %v3367 = vadd.f32 0.0, %v3366
  %v3368 = vpop.f32.mrf.mxu0
  %v3369 = vpop.f32.mrf.mxu0
  %v3370 = vadd.f32 0.0, %v3369
  %v3371 = vpop.f32.mrf.mxu0
  %3372 = vmatprep.mubr.bf16.mxu0 %v1922
  %3373 = vmatmul.mubr.bf16.gmra.mxu0 %v1921
  %v3374 = vpop.f32.mrf.mxu0
  %v3375 = vadd.f32 0.0, %v3374
  %v3376 = vpop.f32.mrf.mxu0
  %v3377 = vpop.f32.mrf.mxu0
  %v3378 = vadd.f32 0.0, %v3377
  %v3379 = vpop.f32.mrf.mxu0
  %3380 = vmatprep.mubr.bf16.mxu0 %v1926
  %3381 = vmatmul.mubr.bf16.gmra.mxu0 %v1925
  %v3382 = vpop.f32.mrf.mxu0
  %v3383 = vadd.f32 0.0, %v3382
  %v3384 = vpop.f32.mrf.mxu0
  %v3385 = vpop.f32.mrf.mxu0
  %v3386 = vadd.f32 0.0, %v3385
  %v3387 = vpop.f32.mrf.mxu0
  %3388 = vmatprep.mubr.bf16.mxu0 %v1930
  %3389 = vmatmul.mubr.bf16.gmra.mxu0 %v1929
  %v3390 = vpop.f32.mrf.mxu0
  %v3391 = vadd.f32 0.0, %v3390
  %v3392 = vpop.f32.mrf.mxu0
  %v3393 = vpop.f32.mrf.mxu0
  %v3394 = vadd.f32 0.0, %v3393
  %v3395 = vpop.f32.mrf.mxu0
  %3396 = vmatprep.mubr.bf16.mxu0 %v1934
  %3397 = vmatmul.mubr.bf16.gmra.mxu0 %v1933
  %v3398 = vpop.f32.mrf.mxu0
  %v3399 = vadd.f32 0.0, %v3398
  %v3400 = vpop.f32.mrf.mxu0
  %v3401 = vpop.f32.mrf.mxu0
  %v3402 = vadd.f32 0.0, %v3401
  %v3403 = vpop.f32.mrf.mxu0
  %3404 = vmatprep.mubr.bf16.mxu0 %v1938
  %3405 = vmatmul.mubr.bf16.gmra.mxu0 %v1937
  %v3406 = vpop.f32.mrf.mxu0
  %v3407 = vadd.f32 0.0, %v3406
  %v3408 = vpop.f32.mrf.mxu0
  %v3409 = vpop.f32.mrf.mxu0
  %v3410 = vadd.f32 0.0, %v3409
  %v3411 = vpop.f32.mrf.mxu0
  %3412 = vmatprep.mubr.bf16.mxu0 %v1942
  %3413 = vmatmul.mubr.bf16.gmra.mxu0 %v1941
  %v3414 = vpop.f32.mrf.mxu0
  %v3415 = vadd.f32 0.0, %v3414
  %v3416 = vpop.f32.mrf.mxu0
  %v3417 = vpop.f32.mrf.mxu0
  %v3418 = vadd.f32 0.0, %v3417
  %v3419 = vpop.f32.mrf.mxu0
  %3420 = vmatprep.mubr.bf16.mxu0 %v1946
  %3421 = vmatmul.mubr.bf16.gmra.mxu0 %v1945
  %v3422 = vpop.f32.mrf.mxu0
  %v3423 = vadd.f32 0.0, %v3422
  %v3424 = vpop.f32.mrf.mxu0
  %v3425 = vpop.f32.mrf.mxu0
  %v3426 = vadd.f32 0.0, %v3425
  %v3427 = vpop.f32.mrf.mxu0
  %3428 = vmatprep.mubr.bf16.mxu0 %v1950
  %3429 = vmatmul.mubr.bf16.gmra.mxu0 %v1949
  %v3430 = vpop.f32.mrf.mxu0
  %v3431 = vadd.f32 0.0, %v3430
  %v3432 = vpop.f32.mrf.mxu0
  %v3433 = vpop.f32.mrf.mxu0
  %v3434 = vadd.f32 0.0, %v3433
  %v3435 = vpop.f32.mrf.mxu0
  %3436 = vmatprep.mubr.bf16.mxu0 %v1954
  %3437 = vmatmul.mubr.bf16.gmra.mxu0 %v1953
  %v3438 = vpop.f32.mrf.mxu0
  %v3439 = vadd.f32 0.0, %v3438
  %v3440 = vpop.f32.mrf.mxu0
  %v3441 = vpop.f32.mrf.mxu0
  %v3442 = vadd.f32 0.0, %v3441
  %v3443 = vpop.f32.mrf.mxu0
  %3444 = vmatprep.mubr.bf16.mxu0 %v1958
  %3445 = vmatmul.mubr.bf16.gmra.mxu0 %v1957
  %v3446 = vpop.f32.mrf.mxu0
  %v3447 = vadd.f32 0.0, %v3446
  %v3448 = vpop.f32.mrf.mxu0
  %v3449 = vpop.f32.mrf.mxu0
  %v3450 = vadd.f32 0.0, %v3449
  %v3451 = vpop.f32.mrf.mxu0
  %3452 = vmatprep.mubr.bf16.mxu0 %v1962
  %3453 = vmatmul.mubr.bf16.gmra.mxu0 %v1961
  %v3454 = vpop.f32.mrf.mxu0
  %v3455 = vadd.f32 0.0, %v3454
  %v3456 = vpop.f32.mrf.mxu0
  %v3457 = vpop.f32.mrf.mxu0
  %v3458 = vadd.f32 0.0, %v3457
  %v3459 = vpop.f32.mrf.mxu0
  %3460 = vmatprep.mubr.bf16.mxu0 %v1966
  %3461 = vmatmul.mubr.bf16.gmra.mxu0 %v1965
  %v3462 = vpop.f32.mrf.mxu0
  %v3463 = vadd.f32 0.0, %v3462
  %v3464 = vpop.f32.mrf.mxu0
  %v3465 = vpop.f32.mrf.mxu0
  %v3466 = vadd.f32 0.0, %v3465
  %v3467 = vpop.f32.mrf.mxu0
  %3468 = vmatprep.mubr.bf16.mxu0 %v1970
  %3469 = vmatmul.mubr.bf16.gmra.mxu0 %v1969
  %v3470 = vpop.f32.mrf.mxu0
  %v3471 = vadd.f32 0.0, %v3470
  %v3472 = vpop.f32.mrf.mxu0
  %v3473 = vpop.f32.mrf.mxu0
  %v3474 = vadd.f32 0.0, %v3473
  %v3475 = vpop.f32.mrf.mxu0
  %3476 = vmatprep.mubr.bf16.mxu0 %v1974
  %3477 = vmatmul.mubr.bf16.gmra.mxu0 %v1973
  %v3478 = vpop.f32.mrf.mxu0
  %v3479 = vadd.f32 0.0, %v3478
  %v3480 = vpop.f32.mrf.mxu0
  %v3481 = vpop.f32.mrf.mxu0
  %v3482 = vadd.f32 0.0, %v3481
  %v3483 = vpop.f32.mrf.mxu0
  %3484 = vmatprep.mubr.bf16.mxu0 %v1978
  %3485 = vmatmul.mubr.bf16.gmra.mxu0 %v1977
  %v3486 = vpop.f32.mrf.mxu0
  %v3487 = vadd.f32 0.0, %v3486
  %v3488 = vpop.f32.mrf.mxu0
  %v3489 = vpop.f32.mrf.mxu0
  %v3490 = vadd.f32 0.0, %v3489
  %v3491 = vpop.f32.mrf.mxu0
  %3492 = vmatprep.mubr.bf16.mxu0 %v1982
  %3493 = vmatmul.mubr.bf16.gmra.mxu0 %v1981
  %v3494 = vpop.f32.mrf.mxu0
  %v3495 = vadd.f32 0.0, %v3494
  %v3496 = vpop.f32.mrf.mxu0
  %v3497 = vpop.f32.mrf.mxu0
  %v3498 = vadd.f32 0.0, %v3497
  %v3499 = vpop.f32.mrf.mxu0
  %3500 = vmatprep.mubr.bf16.mxu0 %v1986
  %3501 = vmatmul.mubr.bf16.gmra.mxu0 %v1985
  %v3502 = vpop.f32.mrf.mxu0
  %v3503 = vadd.f32 0.0, %v3502
  %v3504 = vpop.f32.mrf.mxu0
  %v3505 = vpop.f32.mrf.mxu0
  %v3506 = vadd.f32 0.0, %v3505
  %v3507 = vpop.f32.mrf.mxu0
  %3508 = vmatprep.mubr.bf16.mxu0 %v1990
  %3509 = vmatmul.mubr.bf16.gmra.mxu0 %v1989
  %v3510 = vpop.f32.mrf.mxu0
  %v3511 = vadd.f32 0.0, %v3510
  %v3512 = vpop.f32.mrf.mxu0
  %v3513 = vpop.f32.mrf.mxu0
  %v3514 = vadd.f32 0.0, %v3513
  %v3515 = vpop.f32.mrf.mxu0
  %3516 = vmatprep.mubr.bf16.mxu0 %v1994
  %3517 = vmatmul.mubr.bf16.gmra.mxu0 %v1993
  %v3518 = vpop.f32.mrf.mxu0
  %v3519 = vadd.f32 0.0, %v3518
  %v3520 = vpop.f32.mrf.mxu0
  %v3521 = vpop.f32.mrf.mxu0
  %v3522 = vadd.f32 0.0, %v3521
  %v3523 = vpop.f32.mrf.mxu0
  %3524 = vmatprep.mubr.bf16.mxu0 %v1998
  %3525 = vmatmul.mubr.bf16.gmra.mxu0 %v1997
  %v3526 = vpop.f32.mrf.mxu0
  %v3527 = vadd.f32 0.0, %v3526
  %v3528 = vpop.f32.mrf.mxu0
  %v3529 = vpop.f32.mrf.mxu0
  %v3530 = vadd.f32 0.0, %v3529
  %v3531 = vpop.f32.mrf.mxu0
  %3532 = vmatprep.mubr.bf16.mxu0 %v2002
  %3533 = vmatmul.mubr.bf16.gmra.mxu0 %v2001
  %v3534 = vpop.f32.mrf.mxu0
  %v3535 = vadd.f32 0.0, %v3534
  %v3536 = vpop.f32.mrf.mxu0
  %v3537 = vpop.f32.mrf.mxu0
  %v3538 = vadd.f32 0.0, %v3537
  %v3539 = vpop.f32.mrf.mxu0
  %3540 = vmatprep.mubr.bf16.mxu0 %v2006
  %3541 = vmatmul.mubr.bf16.gmra.mxu0 %v2005
  %v3542 = vpop.f32.mrf.mxu0
  %v3543 = vadd.f32 0.0, %v3542
  %v3544 = vpop.f32.mrf.mxu0
  %v3545 = vpop.f32.mrf.mxu0
  %v3546 = vadd.f32 0.0, %v3545
  %v3547 = vpop.f32.mrf.mxu0
  %3548 = vmatprep.mubr.bf16.mxu0 %v2010
  %3549 = vmatmul.mubr.bf16.gmra.mxu0 %v2009
  %v3550 = vpop.f32.mrf.mxu0
  %v3551 = vadd.f32 0.0, %v3550
  %v3552 = vpop.f32.mrf.mxu0
  %v3553 = vpop.f32.mrf.mxu0
  %v3554 = vadd.f32 0.0, %v3553
  %v3555 = vpop.f32.mrf.mxu0
  %3556 = vmatprep.mubr.bf16.mxu0 %v2014
  %3557 = vmatmul.mubr.bf16.gmra.mxu0 %v2013
  %v3558 = vpop.f32.mrf.mxu0
  %v3559 = vadd.f32 0.0, %v3558
  %v3560 = vpop.f32.mrf.mxu0
  %v3561 = vpop.f32.mrf.mxu0
  %v3562 = vadd.f32 0.0, %v3561
  %v3563 = vpop.f32.mrf.mxu0
  %3564 = vmatprep.mubr.bf16.mxu0 %v2018
  %3565 = vmatmul.mubr.bf16.gmra.mxu0 %v2017
  %v3566 = vpop.f32.mrf.mxu0
  %v3567 = vadd.f32 0.0, %v3566
  %v3568 = vpop.f32.mrf.mxu0
  %v3569 = vpop.f32.mrf.mxu0
  %v3570 = vadd.f32 0.0, %v3569
  %v3571 = vpop.f32.mrf.mxu0
  %3572 = vmatprep.mubr.bf16.mxu0 %v2022
  %3573 = vmatmul.mubr.bf16.gmra.mxu0 %v2021
  %v3574 = vpop.f32.mrf.mxu0
  %v3575 = vadd.f32 0.0, %v3574
  %v3576 = vpop.f32.mrf.mxu0
  %v3577 = vpop.f32.mrf.mxu0
  %v3578 = vadd.f32 0.0, %v3577
  %v3579 = vpop.f32.mrf.mxu0
  %3580 = vdwg.mxu0
  %3581 = vmatprep.subr.bf16.mxu0 0
  %3582 = vmatpush1.bf16.msra.mxu0 %v2442
  %3583 = vmatprep.subr.bf16.mxu0 0
  %3584 = vmatpush1.bf16.msra.mxu0 %v2441
  %3585 = vmatprep.subr.bf16.mxu0 0
  %3586 = vmatpush1.bf16.msra.mxu0 %v2440
  %3587 = vmatprep.subr.bf16.mxu0 0
  %3588 = vmatpush1.bf16.msra.mxu0 %v2439
  %3589 = vmatprep.subr.bf16.mxu0 0
  %3590 = vmatpush1.bf16.msra.mxu0 %v2438
  %3591 = vmatprep.subr.bf16.mxu0 0
  %3592 = vmatpush1.bf16.msra.mxu0 %v2437
  %3593 = vmatprep.subr.bf16.mxu0 0
  %3594 = vmatpush1.bf16.msra.mxu0 %v2436
  %3595 = vmatprep.subr.bf16.mxu0 0
  %3596 = vmatpush1.bf16.msra.mxu0 %v2435
  %3597 = vmatprep.subr.bf16.mxu0 0
  %3598 = vmatpush2.bf16.msra.mxu0 0
  %3599 = vmatprep.subr.bf16.mxu0 0
  %3600 = vmatpush2.bf16.msra.mxu0 0
  %3601 = vmatprep.subr.bf16.mxu0 0
  %3602 = vmatpush2.bf16.msra.mxu0 0
  %3603 = vmatprep.subr.bf16.mxu0 0
  %3604 = vmatpush2.bf16.msra.mxu0 0
  %3605 = vmatprep.subr.bf16.mxu0 0
  %3606 = vmatpush2.bf16.msra.mxu0 0
  %3607 = vmatprep.subr.bf16.mxu0 0
  %3608 = vmatpush2.bf16.msra.mxu0 0
  %3609 = vmatprep.subr.bf16.mxu0 0
  %3610 = vmatpush2.bf16.msra.mxu0 0
  %3611 = vmatprep.subr.bf16.mxu0 0
  %3612 = vmatpush2.bf16.msra.mxu0 %v2443
  %3613 = vmatprep.mubr.bf16.mxu0 %v2471
  %3614 = vmatmul.mubr.bf16.gmra.mxu0 %v1635
  %v3615 = vpop.f32.mrf.mxu0
  %v3616 = vadd.f32 %v2799, %v3615
  %v3617 = vpop.f32.mrf.mxu0
  %v3618 = vpop.f32.mrf.mxu0
  %v3619 = vadd.f32 %v2802, %v3618
  %v3620 = vpop.f32.mrf.mxu0
  %3621 = vmatprep.mubr.bf16.mxu0 %v2474
  %3622 = vmatmul.mubr.bf16.gmra.mxu0 %v1639
  %v3623 = vpop.f32.mrf.mxu0
  %v3624 = vadd.f32 %v2807, %v3623
  %v3625 = vpop.f32.mrf.mxu0
  %v3626 = vpop.f32.mrf.mxu0
  %v3627 = vadd.f32 %v2810, %v3626
  %v3628 = vpop.f32.mrf.mxu0
  %3629 = vmatprep.mubr.bf16.mxu0 %v2477
  %3630 = vmatmul.mubr.bf16.gmra.mxu0 %v1643
  %v3631 = vpop.f32.mrf.mxu0
  %v3632 = vadd.f32 %v2815, %v3631
  %v3633 = vpop.f32.mrf.mxu0
  %v3634 = vpop.f32.mrf.mxu0
  %v3635 = vadd.f32 %v2818, %v3634
  %v3636 = vpop.f32.mrf.mxu0
  %3637 = vmatprep.mubr.bf16.mxu0 %v2480
  %3638 = vmatmul.mubr.bf16.gmra.mxu0 %v1647
  %v3639 = vpop.f32.mrf.mxu0
  %v3640 = vadd.f32 %v2823, %v3639
  %v3641 = vpop.f32.mrf.mxu0
  %v3642 = vpop.f32.mrf.mxu0
  %v3643 = vadd.f32 %v2826, %v3642
  %v3644 = vpop.f32.mrf.mxu0
  %3645 = vmatprep.mubr.bf16.mxu0 %v2483
  %3646 = vmatmul.mubr.bf16.gmra.mxu0 %v1651
  %v3647 = vpop.f32.mrf.mxu0
  %v3648 = vadd.f32 %v2831, %v3647
  %v3649 = vpop.f32.mrf.mxu0
  %v3650 = vpop.f32.mrf.mxu0
  %v3651 = vadd.f32 %v2834, %v3650
  %v3652 = vpop.f32.mrf.mxu0
  %3653 = vmatprep.mubr.bf16.mxu0 %v2486
  %3654 = vmatmul.mubr.bf16.gmra.mxu0 %v1655
  %v3655 = vpop.f32.mrf.mxu0
  %v3656 = vadd.f32 %v2839, %v3655
  %v3657 = vpop.f32.mrf.mxu0
  %v3658 = vpop.f32.mrf.mxu0
  %v3659 = vadd.f32 %v2842, %v3658
  %v3660 = vpop.f32.mrf.mxu0
  %3661 = vmatprep.mubr.bf16.mxu0 %v2489
  %3662 = vmatmul.mubr.bf16.gmra.mxu0 %v1659
  %v3663 = vpop.f32.mrf.mxu0
  %v3664 = vadd.f32 %v2847, %v3663
  %v3665 = vpop.f32.mrf.mxu0
  %v3666 = vpop.f32.mrf.mxu0
  %v3667 = vadd.f32 %v2850, %v3666
  %v3668 = vpop.f32.mrf.mxu0
  %3669 = vmatprep.mubr.bf16.mxu0 %v2492
  %3670 = vmatmul.mubr.bf16.gmra.mxu0 %v1663
  %v3671 = vpop.f32.mrf.mxu0
  %v3672 = vadd.f32 %v2855, %v3671
  %v3673 = vpop.f32.mrf.mxu0
  %v3674 = vpop.f32.mrf.mxu0
  %v3675 = vadd.f32 %v2858, %v3674
  %v3676 = vpop.f32.mrf.mxu0
  %3677 = vmatprep.mubr.bf16.mxu0 %v2495
  %3678 = vmatmul.mubr.bf16.gmra.mxu0 %v1667
  %v3679 = vpop.f32.mrf.mxu0
  %v3680 = vadd.f32 %v2863, %v3679
  %v3681 = vpop.f32.mrf.mxu0
  %v3682 = vpop.f32.mrf.mxu0
  %v3683 = vadd.f32 %v2866, %v3682
  %v3684 = vpop.f32.mrf.mxu0
  %3685 = vmatprep.mubr.bf16.mxu0 %v2498
  %3686 = vmatmul.mubr.bf16.gmra.mxu0 %v1671
  %v3687 = vpop.f32.mrf.mxu0
  %v3688 = vadd.f32 %v2871, %v3687
  %v3689 = vpop.f32.mrf.mxu0
  %v3690 = vpop.f32.mrf.mxu0
  %v3691 = vadd.f32 %v2874, %v3690
  %v3692 = vpop.f32.mrf.mxu0
  %3693 = vmatprep.mubr.bf16.mxu0 %v2501
  %3694 = vmatmul.mubr.bf16.gmra.mxu0 %v1675
  %v3695 = vpop.f32.mrf.mxu0
  %v3696 = vadd.f32 %v2879, %v3695
  %v3697 = vpop.f32.mrf.mxu0
  %v3698 = vpop.f32.mrf.mxu0
  %v3699 = vadd.f32 %v2882, %v3698
  %v3700 = vpop.f32.mrf.mxu0
  %3701 = vmatprep.mubr.bf16.mxu0 %v2504
  %3702 = vmatmul.mubr.bf16.gmra.mxu0 %v1679
  %v3703 = vpop.f32.mrf.mxu0
  %v3704 = vadd.f32 %v2887, %v3703
  %v3705 = vpop.f32.mrf.mxu0
  %v3706 = vpop.f32.mrf.mxu0
  %v3707 = vadd.f32 %v2890, %v3706
  %v3708 = vpop.f32.mrf.mxu0
  %3709 = vmatprep.mubr.bf16.mxu0 %v2507
  %3710 = vmatmul.mubr.bf16.gmra.mxu0 %v1683
  %v3711 = vpop.f32.mrf.mxu0
  %v3712 = vadd.f32 %v2895, %v3711
  %v3713 = vpop.f32.mrf.mxu0
  %v3714 = vpop.f32.mrf.mxu0
  %v3715 = vadd.f32 %v2898, %v3714
  %v3716 = vpop.f32.mrf.mxu0
  %3717 = vmatprep.mubr.bf16.mxu0 %v2510
  %3718 = vmatmul.mubr.bf16.gmra.mxu0 %v1687
  %v3719 = vpop.f32.mrf.mxu0
  %v3720 = vadd.f32 %v2903, %v3719
  %v3721 = vpop.f32.mrf.mxu0
  %v3722 = vpop.f32.mrf.mxu0
  %v3723 = vadd.f32 %v2906, %v3722
  %v3724 = vpop.f32.mrf.mxu0
  %3725 = vmatprep.mubr.bf16.mxu0 %v2513
  %3726 = vmatmul.mubr.bf16.gmra.mxu0 %v1691
  %v3727 = vpop.f32.mrf.mxu0
  %v3728 = vadd.f32 %v2911, %v3727
  %v3729 = vpop.f32.mrf.mxu0
  %v3730 = vpop.f32.mrf.mxu0
  %v3731 = vadd.f32 %v2914, %v3730
  %v3732 = vpop.f32.mrf.mxu0
  %3733 = vmatprep.mubr.bf16.mxu0 %v2516
  %3734 = vmatmul.mubr.bf16.gmra.mxu0 %v1695
  %v3735 = vpop.f32.mrf.mxu0
  %v3736 = vadd.f32 %v2919, %v3735
  %v3737 = vpop.f32.mrf.mxu0
  %v3738 = vpop.f32.mrf.mxu0
  %v3739 = vadd.f32 %v2922, %v3738
  %v3740 = vpop.f32.mrf.mxu0
  %3741 = vmatprep.mubr.bf16.mxu0 %v2519
  %3742 = vmatmul.mubr.bf16.gmra.mxu0 %v1699
  %v3743 = vpop.f32.mrf.mxu0
  %v3744 = vadd.f32 %v2927, %v3743
  %v3745 = vpop.f32.mrf.mxu0
  %v3746 = vpop.f32.mrf.mxu0
  %v3747 = vadd.f32 %v2930, %v3746
  %v3748 = vpop.f32.mrf.mxu0
  %3749 = vmatprep.mubr.bf16.mxu0 %v2522
  %3750 = vmatmul.mubr.bf16.gmra.mxu0 %v1703
  %v3751 = vpop.f32.mrf.mxu0
  %v3752 = vadd.f32 %v2935, %v3751
  %v3753 = vpop.f32.mrf.mxu0
  %v3754 = vpop.f32.mrf.mxu0
  %v3755 = vadd.f32 %v2938, %v3754
  %v3756 = vpop.f32.mrf.mxu0
  %3757 = vmatprep.mubr.bf16.mxu0 %v2525
  %3758 = vmatmul.mubr.bf16.gmra.mxu0 %v1707
  %v3759 = vpop.f32.mrf.mxu0
  %v3760 = vadd.f32 %v2943, %v3759
  %v3761 = vpop.f32.mrf.mxu0
  %v3762 = vpop.f32.mrf.mxu0
  %v3763 = vadd.f32 %v2946, %v3762
  %v3764 = vpop.f32.mrf.mxu0
  %3765 = vmatprep.mubr.bf16.mxu0 %v2528
  %3766 = vmatmul.mubr.bf16.gmra.mxu0 %v1711
  %v3767 = vpop.f32.mrf.mxu0
  %v3768 = vadd.f32 %v2951, %v3767
  %v3769 = vpop.f32.mrf.mxu0
  %v3770 = vpop.f32.mrf.mxu0
  %v3771 = vadd.f32 %v2954, %v3770
  %v3772 = vpop.f32.mrf.mxu0
  %3773 = vmatprep.mubr.bf16.mxu0 %v2531
  %3774 = vmatmul.mubr.bf16.gmra.mxu0 %v1715
  %v3775 = vpop.f32.mrf.mxu0
  %v3776 = vadd.f32 %v2959, %v3775
  %v3777 = vpop.f32.mrf.mxu0
  %v3778 = vpop.f32.mrf.mxu0
  %v3779 = vadd.f32 %v2962, %v3778
  %v3780 = vpop.f32.mrf.mxu0
  %3781 = vmatprep.mubr.bf16.mxu0 %v2534
  %3782 = vmatmul.mubr.bf16.gmra.mxu0 %v1719
  %v3783 = vpop.f32.mrf.mxu0
  %v3784 = vadd.f32 %v2967, %v3783
  %v3785 = vpop.f32.mrf.mxu0
  %v3786 = vpop.f32.mrf.mxu0
  %v3787 = vadd.f32 %v2970, %v3786
  %v3788 = vpop.f32.mrf.mxu0
  %3789 = vmatprep.mubr.bf16.mxu0 %v2537
  %3790 = vmatmul.mubr.bf16.gmra.mxu0 %v1723
  %v3791 = vpop.f32.mrf.mxu0
  %v3792 = vadd.f32 %v2975, %v3791
  %v3793 = vpop.f32.mrf.mxu0
  %v3794 = vpop.f32.mrf.mxu0
  %v3795 = vadd.f32 %v2978, %v3794
  %v3796 = vpop.f32.mrf.mxu0
  %3797 = vmatprep.mubr.bf16.mxu0 %v2540
  %3798 = vmatmul.mubr.bf16.gmra.mxu0 %v1727
  %v3799 = vpop.f32.mrf.mxu0
  %v3800 = vadd.f32 %v2983, %v3799
  %v3801 = vpop.f32.mrf.mxu0
  %v3802 = vpop.f32.mrf.mxu0
  %v3803 = vadd.f32 %v2986, %v3802
  %v3804 = vpop.f32.mrf.mxu0
  %3805 = vmatprep.mubr.bf16.mxu0 %v2543
  %3806 = vmatmul.mubr.bf16.gmra.mxu0 %v1731
  %v3807 = vpop.f32.mrf.mxu0
  %v3808 = vadd.f32 %v2991, %v3807
  %v3809 = vpop.f32.mrf.mxu0
  %v3810 = vpop.f32.mrf.mxu0
  %v3811 = vadd.f32 %v2994, %v3810
  %v3812 = vpop.f32.mrf.mxu0
  %3813 = vmatprep.mubr.bf16.mxu0 %v2546
  %3814 = vmatmul.mubr.bf16.gmra.mxu0 %v1735
  %v3815 = vpop.f32.mrf.mxu0
  %v3816 = vadd.f32 %v2999, %v3815
  %v3817 = vpop.f32.mrf.mxu0
  %v3818 = vpop.f32.mrf.mxu0
  %v3819 = vadd.f32 %v3002, %v3818
  %v3820 = vpop.f32.mrf.mxu0
  %3821 = vmatprep.mubr.bf16.mxu0 %v2549
  %3822 = vmatmul.mubr.bf16.gmra.mxu0 %v1739
  %v3823 = vpop.f32.mrf.mxu0
  %v3824 = vadd.f32 %v3007, %v3823
  %v3825 = vpop.f32.mrf.mxu0
  %v3826 = vpop.f32.mrf.mxu0
  %v3827 = vadd.f32 %v3010, %v3826
  %v3828 = vpop.f32.mrf.mxu0
  %3829 = vmatprep.mubr.bf16.mxu0 %v2552
  %3830 = vmatmul.mubr.bf16.gmra.mxu0 %v1743
  %v3831 = vpop.f32.mrf.mxu0
  %v3832 = vadd.f32 %v3015, %v3831
  %v3833 = vpop.f32.mrf.mxu0
  %v3834 = vpop.f32.mrf.mxu0
  %v3835 = vadd.f32 %v3018, %v3834
  %v3836 = vpop.f32.mrf.mxu0
  %3837 = vmatprep.mubr.bf16.mxu0 %v2555
  %3838 = vmatmul.mubr.bf16.gmra.mxu0 %v1747
  %v3839 = vpop.f32.mrf.mxu0
  %v3840 = vadd.f32 %v3023, %v3839
  %v3841 = vpop.f32.mrf.mxu0
  %v3842 = vpop.f32.mrf.mxu0
  %v3843 = vadd.f32 %v3026, %v3842
  %v3844 = vpop.f32.mrf.mxu0
  %3845 = vmatprep.mubr.bf16.mxu0 %v2558
  %3846 = vmatmul.mubr.bf16.gmra.mxu0 %v1751
  %v3847 = vpop.f32.mrf.mxu0
  %v3848 = vadd.f32 %v3031, %v3847
  %v3849 = vpop.f32.mrf.mxu0
  %v3850 = vpop.f32.mrf.mxu0
  %v3851 = vadd.f32 %v3034, %v3850
  %v3852 = vpop.f32.mrf.mxu0
  %3853 = vmatprep.mubr.bf16.mxu0 %v2561
  %3854 = vmatmul.mubr.bf16.gmra.mxu0 %v1755
  %v3855 = vpop.f32.mrf.mxu0
  %v3856 = vadd.f32 %v3039, %v3855
  %v3857 = vpop.f32.mrf.mxu0
  %v3858 = vpop.f32.mrf.mxu0
  %v3859 = vadd.f32 %v3042, %v3858
  %v3860 = vpop.f32.mrf.mxu0
  %3861 = vmatprep.mubr.bf16.mxu0 %v2564
  %3862 = vmatmul.mubr.bf16.gmra.mxu0 %v1759
  %v3863 = vpop.f32.mrf.mxu0
  %v3864 = vadd.f32 %v3047, %v3863
  %v3865 = vpop.f32.mrf.mxu0
  %v3866 = vpop.f32.mrf.mxu0
  %v3867 = vadd.f32 %v3050, %v3866
  %v3868 = vpop.f32.mrf.mxu0
  %3869 = vmatprep.mubr.bf16.mxu0 %v2567
  %3870 = vmatmul.mubr.bf16.gmra.mxu0 %v1763
  %v3871 = vpop.f32.mrf.mxu0
  %v3872 = vadd.f32 %v3055, %v3871
  %v3873 = vpop.f32.mrf.mxu0
  %v3874 = vpop.f32.mrf.mxu0
  %v3875 = vadd.f32 %v3058, %v3874
  %v3876 = vpop.f32.mrf.mxu0
  %3877 = vmatprep.mubr.bf16.mxu0 %v2570
  %3878 = vmatmul.mubr.bf16.gmra.mxu0 %v1767
  %v3879 = vpop.f32.mrf.mxu0
  %v3880 = vadd.f32 %v3063, %v3879
  %v3881 = vpop.f32.mrf.mxu0
  %v3882 = vpop.f32.mrf.mxu0
  %v3883 = vadd.f32 %v3066, %v3882
  %v3884 = vpop.f32.mrf.mxu0
  %3885 = vmatprep.mubr.bf16.mxu0 %v2573
  %3886 = vmatmul.mubr.bf16.gmra.mxu0 %v1771
  %v3887 = vpop.f32.mrf.mxu0
  %v3888 = vadd.f32 %v3071, %v3887
  %v3889 = vpop.f32.mrf.mxu0
  %v3890 = vpop.f32.mrf.mxu0
  %v3891 = vadd.f32 %v3074, %v3890
  %v3892 = vpop.f32.mrf.mxu0
  %3893 = vmatprep.mubr.bf16.mxu0 %v2576
  %3894 = vmatmul.mubr.bf16.gmra.mxu0 %v1775
  %v3895 = vpop.f32.mrf.mxu0
  %v3896 = vadd.f32 %v3079, %v3895
  %v3897 = vpop.f32.mrf.mxu0
  %v3898 = vpop.f32.mrf.mxu0
  %v3899 = vadd.f32 %v3082, %v3898
  %v3900 = vpop.f32.mrf.mxu0
  %3901 = vmatprep.mubr.bf16.mxu0 %v2579
  %3902 = vmatmul.mubr.bf16.gmra.mxu0 %v1779
  %v3903 = vpop.f32.mrf.mxu0
  %v3904 = vadd.f32 %v3087, %v3903
  %v3905 = vpop.f32.mrf.mxu0
  %v3906 = vpop.f32.mrf.mxu0
  %v3907 = vadd.f32 %v3090, %v3906
  %v3908 = vpop.f32.mrf.mxu0
  %3909 = vmatprep.mubr.bf16.mxu0 %v2582
  %3910 = vmatmul.mubr.bf16.gmra.mxu0 %v1783
  %v3911 = vpop.f32.mrf.mxu0
  %v3912 = vadd.f32 %v3095, %v3911
  %v3913 = vpop.f32.mrf.mxu0
  %v3914 = vpop.f32.mrf.mxu0
  %v3915 = vadd.f32 %v3098, %v3914
  %v3916 = vpop.f32.mrf.mxu0
  %3917 = vmatprep.mubr.bf16.mxu0 %v2585
  %3918 = vmatmul.mubr.bf16.gmra.mxu0 %v1787
  %v3919 = vpop.f32.mrf.mxu0
  %v3920 = vadd.f32 %v3103, %v3919
  %v3921 = vpop.f32.mrf.mxu0
  %v3922 = vpop.f32.mrf.mxu0
  %v3923 = vadd.f32 %v3106, %v3922
  %v3924 = vpop.f32.mrf.mxu0
  %3925 = vmatprep.mubr.bf16.mxu0 %v2588
  %3926 = vmatmul.mubr.bf16.gmra.mxu0 %v1791
  %v3927 = vpop.f32.mrf.mxu0
  %v3928 = vadd.f32 %v3111, %v3927
  %v3929 = vpop.f32.mrf.mxu0
  %v3930 = vpop.f32.mrf.mxu0
  %v3931 = vadd.f32 %v3114, %v3930
  %v3932 = vpop.f32.mrf.mxu0
  %3933 = vmatprep.mubr.bf16.mxu0 %v2591
  %3934 = vmatmul.mubr.bf16.gmra.mxu0 %v1795
  %v3935 = vpop.f32.mrf.mxu0
  %v3936 = vadd.f32 %v3119, %v3935
  %v3937 = vpop.f32.mrf.mxu0
  %v3938 = vpop.f32.mrf.mxu0
  %v3939 = vadd.f32 %v3122, %v3938
  %v3940 = vpop.f32.mrf.mxu0
  %3941 = vmatprep.mubr.bf16.mxu0 %v2594
  %3942 = vmatmul.mubr.bf16.gmra.mxu0 %v1799
  %v3943 = vpop.f32.mrf.mxu0
  %v3944 = vadd.f32 %v3127, %v3943
  %v3945 = vpop.f32.mrf.mxu0
  %v3946 = vpop.f32.mrf.mxu0
  %v3947 = vadd.f32 %v3130, %v3946
  %v3948 = vpop.f32.mrf.mxu0
  %3949 = vmatprep.mubr.bf16.mxu0 %v2597
  %3950 = vmatmul.mubr.bf16.gmra.mxu0 %v1803
  %v3951 = vpop.f32.mrf.mxu0
  %v3952 = vadd.f32 %v3135, %v3951
  %v3953 = vpop.f32.mrf.mxu0
  %v3954 = vpop.f32.mrf.mxu0
  %v3955 = vadd.f32 %v3138, %v3954
  %v3956 = vpop.f32.mrf.mxu0
  %3957 = vmatprep.mubr.bf16.mxu0 %v2600
  %3958 = vmatmul.mubr.bf16.gmra.mxu0 %v1807
  %v3959 = vpop.f32.mrf.mxu0
  %v3960 = vadd.f32 %v3143, %v3959
  %v3961 = vpop.f32.mrf.mxu0
  %v3962 = vpop.f32.mrf.mxu0
  %v3963 = vadd.f32 %v3146, %v3962
  %v3964 = vpop.f32.mrf.mxu0
  %3965 = vmatprep.mubr.bf16.mxu0 %v2603
  %3966 = vmatmul.mubr.bf16.gmra.mxu0 %v1811
  %v3967 = vpop.f32.mrf.mxu0
  %v3968 = vadd.f32 %v3151, %v3967
  %v3969 = vpop.f32.mrf.mxu0
  %v3970 = vpop.f32.mrf.mxu0
  %v3971 = vadd.f32 %v3154, %v3970
  %v3972 = vpop.f32.mrf.mxu0
  %3973 = vmatprep.mubr.bf16.mxu0 %v2606
  %3974 = vmatmul.mubr.bf16.gmra.mxu0 %v1815
  %v3975 = vpop.f32.mrf.mxu0
  %v3976 = vadd.f32 %v3159, %v3975
  %v3977 = vpop.f32.mrf.mxu0
  %v3978 = vpop.f32.mrf.mxu0
  %v3979 = vadd.f32 %v3162, %v3978
  %v3980 = vpop.f32.mrf.mxu0
  %3981 = vmatprep.mubr.bf16.mxu0 %v2609
  %3982 = vmatmul.mubr.bf16.gmra.mxu0 %v1819
  %v3983 = vpop.f32.mrf.mxu0
  %v3984 = vadd.f32 %v3167, %v3983
  %v3985 = vpop.f32.mrf.mxu0
  %v3986 = vpop.f32.mrf.mxu0
  %v3987 = vadd.f32 %v3170, %v3986
  %v3988 = vpop.f32.mrf.mxu0
  %3989 = vmatprep.mubr.bf16.mxu0 %v2612
  %3990 = vmatmul.mubr.bf16.gmra.mxu0 %v1823
  %v3991 = vpop.f32.mrf.mxu0
  %v3992 = vadd.f32 %v3175, %v3991
  %v3993 = vpop.f32.mrf.mxu0
  %v3994 = vpop.f32.mrf.mxu0
  %v3995 = vadd.f32 %v3178, %v3994
  %v3996 = vpop.f32.mrf.mxu0
  %3997 = vmatprep.mubr.bf16.mxu0 %v2615
  %3998 = vmatmul.mubr.bf16.gmra.mxu0 %v1827
  %v3999 = vpop.f32.mrf.mxu0
  %v4000 = vadd.f32 %v3183, %v3999
  %v4001 = vpop.f32.mrf.mxu0
  %v4002 = vpop.f32.mrf.mxu0
  %v4003 = vadd.f32 %v3186, %v4002
  %v4004 = vpop.f32.mrf.mxu0
  %4005 = vmatprep.mubr.bf16.mxu0 %v2618
  %4006 = vmatmul.mubr.bf16.gmra.mxu0 %v1831
  %v4007 = vpop.f32.mrf.mxu0
  %v4008 = vadd.f32 %v3191, %v4007
  %v4009 = vpop.f32.mrf.mxu0
  %v4010 = vpop.f32.mrf.mxu0
  %v4011 = vadd.f32 %v3194, %v4010
  %v4012 = vpop.f32.mrf.mxu0
  %4013 = vmatprep.mubr.bf16.mxu0 %v2621
  %4014 = vmatmul.mubr.bf16.gmra.mxu0 %v1835
  %v4015 = vpop.f32.mrf.mxu0
  %v4016 = vadd.f32 %v3199, %v4015
  %v4017 = vpop.f32.mrf.mxu0
  %v4018 = vpop.f32.mrf.mxu0
  %v4019 = vadd.f32 %v3202, %v4018
  %v4020 = vpop.f32.mrf.mxu0
  %4021 = vmatprep.mubr.bf16.mxu0 %v2624
  %4022 = vmatmul.mubr.bf16.gmra.mxu0 %v1839
  %v4023 = vpop.f32.mrf.mxu0
  %v4024 = vadd.f32 %v3207, %v4023
  %v4025 = vpop.f32.mrf.mxu0
  %v4026 = vpop.f32.mrf.mxu0
  %v4027 = vadd.f32 %v3210, %v4026
  %v4028 = vpop.f32.mrf.mxu0
  %4029 = vmatprep.mubr.bf16.mxu0 %v2627
  %4030 = vmatmul.mubr.bf16.gmra.mxu0 %v1843
  %v4031 = vpop.f32.mrf.mxu0
  %v4032 = vadd.f32 %v3215, %v4031
  %v4033 = vpop.f32.mrf.mxu0
  %v4034 = vpop.f32.mrf.mxu0
  %v4035 = vadd.f32 %v3218, %v4034
  %v4036 = vpop.f32.mrf.mxu0
  %4037 = vmatprep.mubr.bf16.mxu0 %v2630
  %4038 = vmatmul.mubr.bf16.gmra.mxu0 %v1847
  %v4039 = vpop.f32.mrf.mxu0
  %v4040 = vadd.f32 %v3223, %v4039
  %v4041 = vpop.f32.mrf.mxu0
  %v4042 = vpop.f32.mrf.mxu0
  %v4043 = vadd.f32 %v3226, %v4042
  %v4044 = vpop.f32.mrf.mxu0
  %4045 = vmatprep.mubr.bf16.mxu0 %v2633
  %4046 = vmatmul.mubr.bf16.gmra.mxu0 %v1851
  %v4047 = vpop.f32.mrf.mxu0
  %v4048 = vadd.f32 %v3231, %v4047
  %v4049 = vpop.f32.mrf.mxu0
  %v4050 = vpop.f32.mrf.mxu0
  %v4051 = vadd.f32 %v3234, %v4050
  %v4052 = vpop.f32.mrf.mxu0
  %4053 = vmatprep.mubr.bf16.mxu0 %v2636
  %4054 = vmatmul.mubr.bf16.gmra.mxu0 %v1855
  %v4055 = vpop.f32.mrf.mxu0
  %v4056 = vadd.f32 %v3239, %v4055
  %v4057 = vpop.f32.mrf.mxu0
  %v4058 = vpop.f32.mrf.mxu0
  %v4059 = vadd.f32 %v3242, %v4058
  %v4060 = vpop.f32.mrf.mxu0
  %4061 = vmatprep.mubr.bf16.mxu0 %v2639
  %4062 = vmatmul.mubr.bf16.gmra.mxu0 %v1859
  %v4063 = vpop.f32.mrf.mxu0
  %v4064 = vadd.f32 %v3247, %v4063
  %v4065 = vpop.f32.mrf.mxu0
  %v4066 = vpop.f32.mrf.mxu0
  %v4067 = vadd.f32 %v3250, %v4066
  %v4068 = vpop.f32.mrf.mxu0
  %4069 = vmatprep.mubr.bf16.mxu0 %v2642
  %4070 = vmatmul.mubr.bf16.gmra.mxu0 %v1863
  %v4071 = vpop.f32.mrf.mxu0
  %v4072 = vadd.f32 %v3255, %v4071
  %v4073 = vpop.f32.mrf.mxu0
  %v4074 = vpop.f32.mrf.mxu0
  %v4075 = vadd.f32 %v3258, %v4074
  %v4076 = vpop.f32.mrf.mxu0
  %4077 = vmatprep.mubr.bf16.mxu0 %v2645
  %4078 = vmatmul.mubr.bf16.gmra.mxu0 %v1867
  %v4079 = vpop.f32.mrf.mxu0
  %v4080 = vadd.f32 %v3263, %v4079
  %v4081 = vpop.f32.mrf.mxu0
  %v4082 = vpop.f32.mrf.mxu0
  %v4083 = vadd.f32 %v3266, %v4082
  %v4084 = vpop.f32.mrf.mxu0
  %4085 = vmatprep.mubr.bf16.mxu0 %v2648
  %4086 = vmatmul.mubr.bf16.gmra.mxu0 %v1871
  %v4087 = vpop.f32.mrf.mxu0
  %v4088 = vadd.f32 %v3271, %v4087
  %v4089 = vpop.f32.mrf.mxu0
  %v4090 = vpop.f32.mrf.mxu0
  %v4091 = vadd.f32 %v3274, %v4090
  %v4092 = vpop.f32.mrf.mxu0
  %4093 = vmatprep.mubr.bf16.mxu0 %v2651
  %4094 = vmatmul.mubr.bf16.gmra.mxu0 %v1875
  %v4095 = vpop.f32.mrf.mxu0
  %v4096 = vadd.f32 %v3279, %v4095
  %v4097 = vpop.f32.mrf.mxu0
  %v4098 = vpop.f32.mrf.mxu0
  %v4099 = vadd.f32 %v3282, %v4098
  %v4100 = vpop.f32.mrf.mxu0
  %4101 = vmatprep.mubr.bf16.mxu0 %v2654
  %4102 = vmatmul.mubr.bf16.gmra.mxu0 %v1879
  %v4103 = vpop.f32.mrf.mxu0
  %v4104 = vadd.f32 %v3287, %v4103
  %v4105 = vpop.f32.mrf.mxu0
  %v4106 = vpop.f32.mrf.mxu0
  %v4107 = vadd.f32 %v3290, %v4106
  %v4108 = vpop.f32.mrf.mxu0
  %4109 = vmatprep.mubr.bf16.mxu0 %v2657
  %4110 = vmatmul.mubr.bf16.gmra.mxu0 %v1883
  %v4111 = vpop.f32.mrf.mxu0
  %v4112 = vadd.f32 %v3295, %v4111
  %v4113 = vpop.f32.mrf.mxu0
  %v4114 = vpop.f32.mrf.mxu0
  %v4115 = vadd.f32 %v3298, %v4114
  %v4116 = vpop.f32.mrf.mxu0
  %4117 = vmatprep.mubr.bf16.mxu0 %v2660
  %4118 = vmatmul.mubr.bf16.gmra.mxu0 %v1887
  %v4119 = vpop.f32.mrf.mxu0
  %v4120 = vadd.f32 %v3303, %v4119
  %v4121 = vpop.f32.mrf.mxu0
  %v4122 = vpop.f32.mrf.mxu0
  %v4123 = vadd.f32 %v3306, %v4122
  %v4124 = vpop.f32.mrf.mxu0
  %4125 = vmatprep.mubr.bf16.mxu0 %v2663
  %4126 = vmatmul.mubr.bf16.gmra.mxu0 %v1891
  %v4127 = vpop.f32.mrf.mxu0
  %v4128 = vadd.f32 %v3311, %v4127
  %v4129 = vpop.f32.mrf.mxu0
  %v4130 = vpop.f32.mrf.mxu0
  %v4131 = vadd.f32 %v3314, %v4130
  %v4132 = vpop.f32.mrf.mxu0
  %4133 = vmatprep.mubr.bf16.mxu0 %v2666
  %4134 = vmatmul.mubr.bf16.gmra.mxu0 %v1895
  %v4135 = vpop.f32.mrf.mxu0
  %v4136 = vadd.f32 %v3319, %v4135
  %v4137 = vpop.f32.mrf.mxu0
  %v4138 = vpop.f32.mrf.mxu0
  %v4139 = vadd.f32 %v3322, %v4138
  %v4140 = vpop.f32.mrf.mxu0
  %4141 = vmatprep.mubr.bf16.mxu0 %v2669
  %4142 = vmatmul.mubr.bf16.gmra.mxu0 %v1899
  %v4143 = vpop.f32.mrf.mxu0
  %v4144 = vadd.f32 %v3327, %v4143
  %v4145 = vpop.f32.mrf.mxu0
  %v4146 = vpop.f32.mrf.mxu0
  %v4147 = vadd.f32 %v3330, %v4146
  %v4148 = vpop.f32.mrf.mxu0
  %4149 = vmatprep.mubr.bf16.mxu0 %v2672
  %4150 = vmatmul.mubr.bf16.gmra.mxu0 %v1903
  %v4151 = vpop.f32.mrf.mxu0
  %v4152 = vadd.f32 %v3335, %v4151
  %v4153 = vpop.f32.mrf.mxu0
  %v4154 = vpop.f32.mrf.mxu0
  %v4155 = vadd.f32 %v3338, %v4154
  %v4156 = vpop.f32.mrf.mxu0
  %4157 = vmatprep.mubr.bf16.mxu0 %v2675
  %4158 = vmatmul.mubr.bf16.gmra.mxu0 %v1907
  %v4159 = vpop.f32.mrf.mxu0
  %v4160 = vadd.f32 %v3343, %v4159
  %v4161 = vpop.f32.mrf.mxu0
  %v4162 = vpop.f32.mrf.mxu0
  %v4163 = vadd.f32 %v3346, %v4162
  %v4164 = vpop.f32.mrf.mxu0
  %4165 = vmatprep.mubr.bf16.mxu0 %v2678
  %4166 = vmatmul.mubr.bf16.gmra.mxu0 %v1911
  %v4167 = vpop.f32.mrf.mxu0
  %v4168 = vadd.f32 %v3351, %v4167
  %v4169 = vpop.f32.mrf.mxu0
  %v4170 = vpop.f32.mrf.mxu0
  %v4171 = vadd.f32 %v3354, %v4170
  %v4172 = vpop.f32.mrf.mxu0
  %4173 = vmatprep.mubr.bf16.mxu0 %v2681
  %4174 = vmatmul.mubr.bf16.gmra.mxu0 %v1915
  %v4175 = vpop.f32.mrf.mxu0
  %v4176 = vadd.f32 %v3359, %v4175
  %v4177 = vpop.f32.mrf.mxu0
  %v4178 = vpop.f32.mrf.mxu0
  %v4179 = vadd.f32 %v3362, %v4178
  %v4180 = vpop.f32.mrf.mxu0
  %4181 = vmatprep.mubr.bf16.mxu0 %v2684
  %4182 = vmatmul.mubr.bf16.gmra.mxu0 %v1919
  %v4183 = vpop.f32.mrf.mxu0
  %v4184 = vadd.f32 %v3367, %v4183
  %v4185 = vpop.f32.mrf.mxu0
  %v4186 = vpop.f32.mrf.mxu0
  %v4187 = vadd.f32 %v3370, %v4186
  %v4188 = vpop.f32.mrf.mxu0
  %4189 = vmatprep.mubr.bf16.mxu0 %v2687
  %4190 = vmatmul.mubr.bf16.gmra.mxu0 %v1923
  %v4191 = vpop.f32.mrf.mxu0
  %v4192 = vadd.f32 %v3375, %v4191
  %v4193 = vpop.f32.mrf.mxu0
  %v4194 = vpop.f32.mrf.mxu0
  %v4195 = vadd.f32 %v3378, %v4194
  %v4196 = vpop.f32.mrf.mxu0
  %4197 = vmatprep.mubr.bf16.mxu0 %v2690
  %4198 = vmatmul.mubr.bf16.gmra.mxu0 %v1927
  %v4199 = vpop.f32.mrf.mxu0
  %v4200 = vadd.f32 %v3383, %v4199
  %v4201 = vpop.f32.mrf.mxu0
  %v4202 = vpop.f32.mrf.mxu0
  %v4203 = vadd.f32 %v3386, %v4202
  %v4204 = vpop.f32.mrf.mxu0
  %4205 = vmatprep.mubr.bf16.mxu0 %v2693
  %4206 = vmatmul.mubr.bf16.gmra.mxu0 %v1931
  %v4207 = vpop.f32.mrf.mxu0
  %v4208 = vadd.f32 %v3391, %v4207
  %v4209 = vpop.f32.mrf.mxu0
  %v4210 = vpop.f32.mrf.mxu0
  %v4211 = vadd.f32 %v3394, %v4210
  %v4212 = vpop.f32.mrf.mxu0
  %4213 = vmatprep.mubr.bf16.mxu0 %v2696
  %4214 = vmatmul.mubr.bf16.gmra.mxu0 %v1935
  %v4215 = vpop.f32.mrf.mxu0
  %v4216 = vadd.f32 %v3399, %v4215
  %v4217 = vpop.f32.mrf.mxu0
  %v4218 = vpop.f32.mrf.mxu0
  %v4219 = vadd.f32 %v3402, %v4218
  %v4220 = vpop.f32.mrf.mxu0
  %4221 = vmatprep.mubr.bf16.mxu0 %v2699
  %4222 = vmatmul.mubr.bf16.gmra.mxu0 %v1939
  %v4223 = vpop.f32.mrf.mxu0
  %v4224 = vadd.f32 %v3407, %v4223
  %v4225 = vpop.f32.mrf.mxu0
  %v4226 = vpop.f32.mrf.mxu0
  %v4227 = vadd.f32 %v3410, %v4226
  %v4228 = vpop.f32.mrf.mxu0
  %4229 = vmatprep.mubr.bf16.mxu0 %v2702
  %4230 = vmatmul.mubr.bf16.gmra.mxu0 %v1943
  %v4231 = vpop.f32.mrf.mxu0
  %v4232 = vadd.f32 %v3415, %v4231
  %v4233 = vpop.f32.mrf.mxu0
  %v4234 = vpop.f32.mrf.mxu0
  %v4235 = vadd.f32 %v3418, %v4234
  %v4236 = vpop.f32.mrf.mxu0
  %4237 = vmatprep.mubr.bf16.mxu0 %v2705
  %4238 = vmatmul.mubr.bf16.gmra.mxu0 %v1947
  %v4239 = vpop.f32.mrf.mxu0
  %v4240 = vadd.f32 %v3423, %v4239
  %v4241 = vpop.f32.mrf.mxu0
  %v4242 = vpop.f32.mrf.mxu0
  %v4243 = vadd.f32 %v3426, %v4242
  %v4244 = vpop.f32.mrf.mxu0
  %4245 = vmatprep.mubr.bf16.mxu0 %v2708
  %4246 = vmatmul.mubr.bf16.gmra.mxu0 %v1951
  %v4247 = vpop.f32.mrf.mxu0
  %v4248 = vadd.f32 %v3431, %v4247
  %v4249 = vpop.f32.mrf.mxu0
  %v4250 = vpop.f32.mrf.mxu0
  %v4251 = vadd.f32 %v3434, %v4250
  %v4252 = vpop.f32.mrf.mxu0
  %4253 = vmatprep.mubr.bf16.mxu0 %v2711
  %4254 = vmatmul.mubr.bf16.gmra.mxu0 %v1955
  %v4255 = vpop.f32.mrf.mxu0
  %v4256 = vadd.f32 %v3439, %v4255
  %v4257 = vpop.f32.mrf.mxu0
  %v4258 = vpop.f32.mrf.mxu0
  %v4259 = vadd.f32 %v3442, %v4258
  %v4260 = vpop.f32.mrf.mxu0
  %4261 = vmatprep.mubr.bf16.mxu0 %v2714
  %4262 = vmatmul.mubr.bf16.gmra.mxu0 %v1959
  %v4263 = vpop.f32.mrf.mxu0
  %v4264 = vadd.f32 %v3447, %v4263
  %v4265 = vpop.f32.mrf.mxu0
  %v4266 = vpop.f32.mrf.mxu0
  %v4267 = vadd.f32 %v3450, %v4266
  %v4268 = vpop.f32.mrf.mxu0
  %4269 = vmatprep.mubr.bf16.mxu0 %v2717
  %4270 = vmatmul.mubr.bf16.gmra.mxu0 %v1963
  %v4271 = vpop.f32.mrf.mxu0
  %v4272 = vadd.f32 %v3455, %v4271
  %v4273 = vpop.f32.mrf.mxu0
  %v4274 = vpop.f32.mrf.mxu0
  %v4275 = vadd.f32 %v3458, %v4274
  %v4276 = vpop.f32.mrf.mxu0
  %4277 = vmatprep.mubr.bf16.mxu0 %v2720
  %4278 = vmatmul.mubr.bf16.gmra.mxu0 %v1967
  %v4279 = vpop.f32.mrf.mxu0
  %v4280 = vadd.f32 %v3463, %v4279
  %v4281 = vpop.f32.mrf.mxu0
  %v4282 = vpop.f32.mrf.mxu0
  %v4283 = vadd.f32 %v3466, %v4282
  %v4284 = vpop.f32.mrf.mxu0
  %4285 = vmatprep.mubr.bf16.mxu0 %v2723
  %4286 = vmatmul.mubr.bf16.gmra.mxu0 %v1971
  %v4287 = vpop.f32.mrf.mxu0
  %v4288 = vadd.f32 %v3471, %v4287
  %v4289 = vpop.f32.mrf.mxu0
  %v4290 = vpop.f32.mrf.mxu0
  %v4291 = vadd.f32 %v3474, %v4290
  %v4292 = vpop.f32.mrf.mxu0
  %4293 = vmatprep.mubr.bf16.mxu0 %v2726
  %4294 = vmatmul.mubr.bf16.gmra.mxu0 %v1975
  %v4295 = vpop.f32.mrf.mxu0
  %v4296 = vadd.f32 %v3479, %v4295
  %v4297 = vpop.f32.mrf.mxu0
  %v4298 = vpop.f32.mrf.mxu0
  %v4299 = vadd.f32 %v3482, %v4298
  %v4300 = vpop.f32.mrf.mxu0
  %4301 = vmatprep.mubr.bf16.mxu0 %v2729
  %4302 = vmatmul.mubr.bf16.gmra.mxu0 %v1979
  %v4303 = vpop.f32.mrf.mxu0
  %v4304 = vadd.f32 %v3487, %v4303
  %v4305 = vpop.f32.mrf.mxu0
  %v4306 = vpop.f32.mrf.mxu0
  %v4307 = vadd.f32 %v3490, %v4306
  %v4308 = vpop.f32.mrf.mxu0
  %4309 = vmatprep.mubr.bf16.mxu0 %v2732
  %4310 = vmatmul.mubr.bf16.gmra.mxu0 %v1983
  %v4311 = vpop.f32.mrf.mxu0
  %v4312 = vadd.f32 %v3495, %v4311
  %v4313 = vpop.f32.mrf.mxu0
  %v4314 = vpop.f32.mrf.mxu0
  %v4315 = vadd.f32 %v3498, %v4314
  %v4316 = vpop.f32.mrf.mxu0
  %4317 = vmatprep.mubr.bf16.mxu0 %v2735
  %4318 = vmatmul.mubr.bf16.gmra.mxu0 %v1987
  %v4319 = vpop.f32.mrf.mxu0
  %v4320 = vadd.f32 %v3503, %v4319
  %v4321 = vpop.f32.mrf.mxu0
  %v4322 = vpop.f32.mrf.mxu0
  %v4323 = vadd.f32 %v3506, %v4322
  %v4324 = vpop.f32.mrf.mxu0
  %4325 = vmatprep.mubr.bf16.mxu0 %v2738
  %4326 = vmatmul.mubr.bf16.gmra.mxu0 %v1991
  %v4327 = vpop.f32.mrf.mxu0
  %v4328 = vadd.f32 %v3511, %v4327
  %v4329 = vpop.f32.mrf.mxu0
  %v4330 = vpop.f32.mrf.mxu0
  %v4331 = vadd.f32 %v3514, %v4330
  %v4332 = vpop.f32.mrf.mxu0
  %4333 = vmatprep.mubr.bf16.mxu0 %v2741
  %4334 = vmatmul.mubr.bf16.gmra.mxu0 %v1995
  %v4335 = vpop.f32.mrf.mxu0
  %v4336 = vadd.f32 %v3519, %v4335
  %v4337 = vpop.f32.mrf.mxu0
  %v4338 = vpop.f32.mrf.mxu0
  %v4339 = vadd.f32 %v3522, %v4338
  %v4340 = vpop.f32.mrf.mxu0
  %4341 = vmatprep.mubr.bf16.mxu0 %v2744
  %4342 = vmatmul.mubr.bf16.gmra.mxu0 %v1999
  %v4343 = vpop.f32.mrf.mxu0
  %v4344 = vadd.f32 %v3527, %v4343
  %v4345 = vpop.f32.mrf.mxu0
  %v4346 = vpop.f32.mrf.mxu0
  %v4347 = vadd.f32 %v3530, %v4346
  %v4348 = vpop.f32.mrf.mxu0
  %4349 = vmatprep.mubr.bf16.mxu0 %v2747
  %4350 = vmatmul.mubr.bf16.gmra.mxu0 %v2003
  %v4351 = vpop.f32.mrf.mxu0
  %v4352 = vadd.f32 %v3535, %v4351
  %v4353 = vpop.f32.mrf.mxu0
  %v4354 = vpop.f32.mrf.mxu0
  %v4355 = vadd.f32 %v3538, %v4354
  %v4356 = vpop.f32.mrf.mxu0
  %4357 = vmatprep.mubr.bf16.mxu0 %v2750
  %4358 = vmatmul.mubr.bf16.gmra.mxu0 %v2007
  %v4359 = vpop.f32.mrf.mxu0
  %v4360 = vadd.f32 %v3543, %v4359
  %v4361 = vpop.f32.mrf.mxu0
  %v4362 = vpop.f32.mrf.mxu0
  %v4363 = vadd.f32 %v3546, %v4362
  %v4364 = vpop.f32.mrf.mxu0
  %4365 = vmatprep.mubr.bf16.mxu0 %v2753
  %4366 = vmatmul.mubr.bf16.gmra.mxu0 %v2011
  %v4367 = vpop.f32.mrf.mxu0
  %v4368 = vadd.f32 %v3551, %v4367
  %v4369 = vpop.f32.mrf.mxu0
  %v4370 = vpop.f32.mrf.mxu0
  %v4371 = vadd.f32 %v3554, %v4370
  %v4372 = vpop.f32.mrf.mxu0
  %4373 = vmatprep.mubr.bf16.mxu0 %v2756
  %4374 = vmatmul.mubr.bf16.gmra.mxu0 %v2015
  %v4375 = vpop.f32.mrf.mxu0
  %v4376 = vadd.f32 %v3559, %v4375
  %v4377 = vpop.f32.mrf.mxu0
  %v4378 = vpop.f32.mrf.mxu0
  %v4379 = vadd.f32 %v3562, %v4378
  %v4380 = vpop.f32.mrf.mxu0
  %4381 = vmatprep.mubr.bf16.mxu0 %v2759
  %4382 = vmatmul.mubr.bf16.gmra.mxu0 %v2019
  %v4383 = vpop.f32.mrf.mxu0
  %v4384 = vadd.f32 %v3567, %v4383
  %v4385 = vpop.f32.mrf.mxu0
  %v4386 = vpop.f32.mrf.mxu0
  %v4387 = vadd.f32 %v3570, %v4386
  %v4388 = vpop.f32.mrf.mxu0
  %4389 = vmatprep.mubr.bf16.mxu0 %v2762
  %4390 = vmatmul.mubr.bf16.gmra.mxu0 %v2023
  %v4391 = vpop.f32.mrf.mxu0
  %v4392 = vadd.f32 %v3575, %v4391
  %v4393 = vpop.f32.mrf.mxu0
  %v4394 = vpop.f32.mrf.mxu0
  %v4395 = vadd.f32 %v3578, %v4394
  %v4396 = vpop.f32.mrf.mxu0
  %4397 = vdwg.mxu0
  %vm4398 = vcmask 261120
  %v4399 = vsel %vm4398, %v3616, 0.0
  %v4400 = vsel %vm4398, %v3619, 0.0
  %v4401 = vadd.f32 %v4399, %v4400
  %v4402 = vsel %vm4398, %v3624, 0.0
  %v4403 = vadd.f32 %v4401, %v4402
  %v4404 = vsel %vm4398, %v3627, 0.0
  %v4405 = vadd.f32 %v4403, %v4404
  %v4406 = vsel %vm4398, %v3632, 0.0
  %v4407 = vadd.f32 %v4405, %v4406
  %v4408 = vsel %vm4398, %v3635, 0.0
  %v4409 = vadd.f32 %v4407, %v4408
  %v4410 = vsel %vm4398, %v3640, 0.0
  %v4411 = vadd.f32 %v4409, %v4410
  %v4412 = vsel %vm4398, %v3643, 0.0
  %v4413 = vadd.f32 %v4411, %v4412
  %v4414 = vsel %vm4398, %v3648, 0.0
  %v4415 = vadd.f32 %v4413, %v4414
  %v4416 = vsel %vm4398, %v3651, 0.0
  %v4417 = vadd.f32 %v4415, %v4416
  %v4418 = vsel %vm4398, %v3656, 0.0
  %v4419 = vadd.f32 %v4417, %v4418
  %v4420 = vsel %vm4398, %v3659, 0.0
  %v4421 = vadd.f32 %v4419, %v4420
  %v4422 = vsel %vm4398, %v3664, 0.0
  %v4423 = vadd.f32 %v4421, %v4422
  %v4424 = vsel %vm4398, %v3667, 0.0
  %v4425 = vadd.f32 %v4423, %v4424
  %v4426 = vsel %vm4398, %v3672, 0.0
  %v4427 = vadd.f32 %v4425, %v4426
  %v4428 = vsel %vm4398, %v3675, 0.0
  %v4429 = vadd.f32 %v4427, %v4428
  %v4430 = vsel %vm4398, %v3680, 0.0
  %v4431 = vadd.f32 %v4429, %v4430
  %v4432 = vsel %vm4398, %v3683, 0.0
  %v4433 = vadd.f32 %v4431, %v4432
  %v4434 = vsel %vm4398, %v3688, 0.0
  %v4435 = vadd.f32 %v4433, %v4434
  %v4436 = vsel %vm4398, %v3691, 0.0
  %v4437 = vadd.f32 %v4435, %v4436
  %v4438 = vsel %vm4398, %v3696, 0.0
  %v4439 = vadd.f32 %v4437, %v4438
  %v4440 = vsel %vm4398, %v3699, 0.0
  %v4441 = vadd.f32 %v4439, %v4440
  %v4442 = vsel %vm4398, %v3704, 0.0
  %v4443 = vadd.f32 %v4441, %v4442
  %v4444 = vsel %vm4398, %v3707, 0.0
  %v4445 = vadd.f32 %v4443, %v4444
  %v4446 = vsel %vm4398, %v3712, 0.0
  %v4447 = vadd.f32 %v4445, %v4446
  %v4448 = vsel %vm4398, %v3715, 0.0
  %v4449 = vadd.f32 %v4447, %v4448
  %v4450 = vsel %vm4398, %v3720, 0.0
  %v4451 = vadd.f32 %v4449, %v4450
  %v4452 = vsel %vm4398, %v3723, 0.0
  %v4453 = vadd.f32 %v4451, %v4452
  %v4454 = vsel %vm4398, %v3728, 0.0
  %v4455 = vadd.f32 %v4453, %v4454
  %v4456 = vsel %vm4398, %v3731, 0.0
  %v4457 = vadd.f32 %v4455, %v4456
  %v4458 = vsel %vm4398, %v3736, 0.0
  %v4459 = vadd.f32 %v4457, %v4458
  %v4460 = vsel %vm4398, %v3739, 0.0
  %v4461 = vadd.f32 %v4459, %v4460
  %v4462 = vsel %vm4398, %v3744, 0.0
  %v4463 = vadd.f32 %v4461, %v4462
  %v4464 = vsel %vm4398, %v3747, 0.0
  %v4465 = vadd.f32 %v4463, %v4464
  %v4466 = vsel %vm4398, %v3752, 0.0
  %v4467 = vadd.f32 %v4465, %v4466
  %v4468 = vsel %vm4398, %v3755, 0.0
  %v4469 = vadd.f32 %v4467, %v4468
  %v4470 = vsel %vm4398, %v3760, 0.0
  %v4471 = vadd.f32 %v4469, %v4470
  %v4472 = vsel %vm4398, %v3763, 0.0
  %v4473 = vadd.f32 %v4471, %v4472
  %v4474 = vsel %vm4398, %v3768, 0.0
  %v4475 = vadd.f32 %v4473, %v4474
  %v4476 = vsel %vm4398, %v3771, 0.0
  %v4477 = vadd.f32 %v4475, %v4476
  %v4478 = vsel %vm4398, %v3776, 0.0
  %v4479 = vadd.f32 %v4477, %v4478
  %v4480 = vsel %vm4398, %v3779, 0.0
  %v4481 = vadd.f32 %v4479, %v4480
  %v4482 = vsel %vm4398, %v3784, 0.0
  %v4483 = vadd.f32 %v4481, %v4482
  %v4484 = vsel %vm4398, %v3787, 0.0
  %v4485 = vadd.f32 %v4483, %v4484
  %v4486 = vsel %vm4398, %v3792, 0.0
  %v4487 = vadd.f32 %v4485, %v4486
  %v4488 = vsel %vm4398, %v3795, 0.0
  %v4489 = vadd.f32 %v4487, %v4488
  %v4490 = vsel %vm4398, %v3800, 0.0
  %v4491 = vadd.f32 %v4489, %v4490
  %v4492 = vsel %vm4398, %v3803, 0.0
  %v4493 = vadd.f32 %v4491, %v4492
  %v4494 = vsel %vm4398, %v3808, 0.0
  %v4495 = vadd.f32 %v4493, %v4494
  %v4496 = vsel %vm4398, %v3811, 0.0
  %v4497 = vadd.f32 %v4495, %v4496
  %v4498 = vsel %vm4398, %v3816, 0.0
  %v4499 = vadd.f32 %v4497, %v4498
  %v4500 = vsel %vm4398, %v3819, 0.0
  %v4501 = vadd.f32 %v4499, %v4500
  %v4502 = vsel %vm4398, %v3824, 0.0
  %v4503 = vadd.f32 %v4501, %v4502
  %v4504 = vsel %vm4398, %v3827, 0.0
  %v4505 = vadd.f32 %v4503, %v4504
  %v4506 = vsel %vm4398, %v3832, 0.0
  %v4507 = vadd.f32 %v4505, %v4506
  %v4508 = vsel %vm4398, %v3835, 0.0
  %v4509 = vadd.f32 %v4507, %v4508
  %v4510 = vsel %vm4398, %v3840, 0.0
  %v4511 = vadd.f32 %v4509, %v4510
  %v4512 = vsel %vm4398, %v3843, 0.0
  %v4513 = vadd.f32 %v4511, %v4512
  %v4514 = vsel %vm4398, %v3848, 0.0
  %v4515 = vadd.f32 %v4513, %v4514
  %v4516 = vsel %vm4398, %v3851, 0.0
  %v4517 = vadd.f32 %v4515, %v4516
  %v4518 = vsel %vm4398, %v3856, 0.0
  %v4519 = vadd.f32 %v4517, %v4518
  %v4520 = vsel %vm4398, %v3859, 0.0
  %v4521 = vadd.f32 %v4519, %v4520
  %v4522 = vsel %vm4398, %v3864, 0.0
  %v4523 = vadd.f32 %v4521, %v4522
  %v4524 = vsel %vm4398, %v3867, 0.0
  %v4525 = vadd.f32 %v4523, %v4524
  %v4526 = vsel %vm4398, %v3872, 0.0
  %v4527 = vadd.f32 %v4525, %v4526
  %v4528 = vsel %vm4398, %v3875, 0.0
  %v4529 = vadd.f32 %v4527, %v4528
  %v4530 = vsel %vm4398, %v3880, 0.0
  %v4531 = vadd.f32 %v4529, %v4530
  %v4532 = vsel %vm4398, %v3883, 0.0
  %v4533 = vadd.f32 %v4531, %v4532
  %v4534 = vsel %vm4398, %v3888, 0.0
  %v4535 = vadd.f32 %v4533, %v4534
  %v4536 = vsel %vm4398, %v3891, 0.0
  %v4537 = vadd.f32 %v4535, %v4536
  %v4538 = vsel %vm4398, %v3896, 0.0
  %v4539 = vadd.f32 %v4537, %v4538
  %v4540 = vsel %vm4398, %v3899, 0.0
  %v4541 = vadd.f32 %v4539, %v4540
  %v4542 = vsel %vm4398, %v3904, 0.0
  %v4543 = vadd.f32 %v4541, %v4542
  %v4544 = vsel %vm4398, %v3907, 0.0
  %v4545 = vadd.f32 %v4543, %v4544
  %v4546 = vsel %vm4398, %v3912, 0.0
  %v4547 = vadd.f32 %v4545, %v4546
  %v4548 = vsel %vm4398, %v3915, 0.0
  %v4549 = vadd.f32 %v4547, %v4548
  %v4550 = vsel %vm4398, %v3920, 0.0
  %v4551 = vadd.f32 %v4549, %v4550
  %v4552 = vsel %vm4398, %v3923, 0.0
  %v4553 = vadd.f32 %v4551, %v4552
  %v4554 = vsel %vm4398, %v3928, 0.0
  %v4555 = vadd.f32 %v4553, %v4554
  %v4556 = vsel %vm4398, %v3931, 0.0
  %v4557 = vadd.f32 %v4555, %v4556
  %v4558 = vsel %vm4398, %v3936, 0.0
  %v4559 = vadd.f32 %v4557, %v4558
  %v4560 = vsel %vm4398, %v3939, 0.0
  %v4561 = vadd.f32 %v4559, %v4560
  %v4562 = vsel %vm4398, %v3944, 0.0
  %v4563 = vadd.f32 %v4561, %v4562
  %v4564 = vsel %vm4398, %v3947, 0.0
  %v4565 = vadd.f32 %v4563, %v4564
  %v4566 = vsel %vm4398, %v3952, 0.0
  %v4567 = vadd.f32 %v4565, %v4566
  %v4568 = vsel %vm4398, %v3955, 0.0
  %v4569 = vadd.f32 %v4567, %v4568
  %v4570 = vsel %vm4398, %v3960, 0.0
  %v4571 = vadd.f32 %v4569, %v4570
  %v4572 = vsel %vm4398, %v3963, 0.0
  %v4573 = vadd.f32 %v4571, %v4572
  %v4574 = vsel %vm4398, %v3968, 0.0
  %v4575 = vadd.f32 %v4573, %v4574
  %v4576 = vsel %vm4398, %v3971, 0.0
  %v4577 = vadd.f32 %v4575, %v4576
  %v4578 = vsel %vm4398, %v3976, 0.0
  %v4579 = vadd.f32 %v4577, %v4578
  %v4580 = vsel %vm4398, %v3979, 0.0
  %v4581 = vadd.f32 %v4579, %v4580
  %v4582 = vsel %vm4398, %v3984, 0.0
  %v4583 = vadd.f32 %v4581, %v4582
  %v4584 = vsel %vm4398, %v3987, 0.0
  %v4585 = vadd.f32 %v4583, %v4584
  %v4586 = vsel %vm4398, %v3992, 0.0
  %v4587 = vadd.f32 %v4585, %v4586
  %v4588 = vsel %vm4398, %v3995, 0.0
  %v4589 = vadd.f32 %v4587, %v4588
  %v4590 = vsel %vm4398, %v4000, 0.0
  %v4591 = vadd.f32 %v4589, %v4590
  %v4592 = vsel %vm4398, %v4003, 0.0
  %v4593 = vadd.f32 %v4591, %v4592
  %v4594 = vsel %vm4398, %v4008, 0.0
  %v4595 = vadd.f32 %v4593, %v4594
  %v4596 = vsel %vm4398, %v4011, 0.0
  %v4597 = vadd.f32 %v4595, %v4596
  %v4598 = vsel %vm4398, %v4016, 0.0
  %v4599 = vadd.f32 %v4597, %v4598
  %v4600 = vsel %vm4398, %v4019, 0.0
  %v4601 = vadd.f32 %v4599, %v4600
  %v4602 = vsel %vm4398, %v4024, 0.0
  %v4603 = vadd.f32 %v4601, %v4602
  %v4604 = vsel %vm4398, %v4027, 0.0
  %v4605 = vadd.f32 %v4603, %v4604
  %v4606 = vsel %vm4398, %v4032, 0.0
  %v4607 = vadd.f32 %v4605, %v4606
  %v4608 = vsel %vm4398, %v4035, 0.0
  %v4609 = vadd.f32 %v4607, %v4608
  %v4610 = vsel %vm4398, %v4040, 0.0
  %v4611 = vadd.f32 %v4609, %v4610
  %v4612 = vsel %vm4398, %v4043, 0.0
  %v4613 = vadd.f32 %v4611, %v4612
  %v4614 = vsel %vm4398, %v4048, 0.0
  %v4615 = vadd.f32 %v4613, %v4614
  %v4616 = vsel %vm4398, %v4051, 0.0
  %v4617 = vadd.f32 %v4615, %v4616
  %v4618 = vsel %vm4398, %v4056, 0.0
  %v4619 = vadd.f32 %v4617, %v4618
  %v4620 = vsel %vm4398, %v4059, 0.0
  %v4621 = vadd.f32 %v4619, %v4620
  %v4622 = vsel %vm4398, %v4064, 0.0
  %v4623 = vadd.f32 %v4621, %v4622
  %v4624 = vsel %vm4398, %v4067, 0.0
  %v4625 = vadd.f32 %v4623, %v4624
  %v4626 = vsel %vm4398, %v4072, 0.0
  %v4627 = vadd.f32 %v4625, %v4626
  %v4628 = vsel %vm4398, %v4075, 0.0
  %v4629 = vadd.f32 %v4627, %v4628
  %v4630 = vsel %vm4398, %v4080, 0.0
  %v4631 = vadd.f32 %v4629, %v4630
  %v4632 = vsel %vm4398, %v4083, 0.0
  %v4633 = vadd.f32 %v4631, %v4632
  %v4634 = vsel %vm4398, %v4088, 0.0
  %v4635 = vadd.f32 %v4633, %v4634
  %v4636 = vsel %vm4398, %v4091, 0.0
  %v4637 = vadd.f32 %v4635, %v4636
  %v4638 = vsel %vm4398, %v4096, 0.0
  %v4639 = vadd.f32 %v4637, %v4638
  %v4640 = vsel %vm4398, %v4099, 0.0
  %v4641 = vadd.f32 %v4639, %v4640
  %v4642 = vsel %vm4398, %v4104, 0.0
  %v4643 = vadd.f32 %v4641, %v4642
  %v4644 = vsel %vm4398, %v4107, 0.0
  %v4645 = vadd.f32 %v4643, %v4644
  %v4646 = vsel %vm4398, %v4112, 0.0
  %v4647 = vadd.f32 %v4645, %v4646
  %v4648 = vsel %vm4398, %v4115, 0.0
  %v4649 = vadd.f32 %v4647, %v4648
  %v4650 = vsel %vm4398, %v4120, 0.0
  %v4651 = vadd.f32 %v4649, %v4650
  %v4652 = vsel %vm4398, %v4123, 0.0
  %v4653 = vadd.f32 %v4651, %v4652
  %v4654 = vsel %vm4398, %v4128, 0.0
  %v4655 = vadd.f32 %v4653, %v4654
  %v4656 = vsel %vm4398, %v4131, 0.0
  %v4657 = vadd.f32 %v4655, %v4656
  %v4658 = vsel %vm4398, %v4136, 0.0
  %v4659 = vadd.f32 %v4657, %v4658
  %v4660 = vsel %vm4398, %v4139, 0.0
  %v4661 = vadd.f32 %v4659, %v4660
  %v4662 = vsel %vm4398, %v4144, 0.0
  %v4663 = vadd.f32 %v4661, %v4662
  %v4664 = vsel %vm4398, %v4147, 0.0
  %v4665 = vadd.f32 %v4663, %v4664
  %v4666 = vsel %vm4398, %v4152, 0.0
  %v4667 = vadd.f32 %v4665, %v4666
  %v4668 = vsel %vm4398, %v4155, 0.0
  %v4669 = vadd.f32 %v4667, %v4668
  %v4670 = vsel %vm4398, %v4160, 0.0
  %v4671 = vadd.f32 %v4669, %v4670
  %v4672 = vsel %vm4398, %v4163, 0.0
  %v4673 = vadd.f32 %v4671, %v4672
  %v4674 = vsel %vm4398, %v4168, 0.0
  %v4675 = vadd.f32 %v4673, %v4674
  %v4676 = vsel %vm4398, %v4171, 0.0
  %v4677 = vadd.f32 %v4675, %v4676
  %v4678 = vsel %vm4398, %v4176, 0.0
  %v4679 = vadd.f32 %v4677, %v4678
  %v4680 = vsel %vm4398, %v4179, 0.0
  %v4681 = vadd.f32 %v4679, %v4680
  %v4682 = vsel %vm4398, %v4184, 0.0
  %v4683 = vadd.f32 %v4681, %v4682
  %v4684 = vsel %vm4398, %v4187, 0.0
  %v4685 = vadd.f32 %v4683, %v4684
  %v4686 = vsel %vm4398, %v4192, 0.0
  %v4687 = vadd.f32 %v4685, %v4686
  %v4688 = vsel %vm4398, %v4195, 0.0
  %v4689 = vadd.f32 %v4687, %v4688
  %v4690 = vsel %vm4398, %v4200, 0.0
  %v4691 = vadd.f32 %v4689, %v4690
  %v4692 = vsel %vm4398, %v4203, 0.0
  %v4693 = vadd.f32 %v4691, %v4692
  %v4694 = vsel %vm4398, %v4208, 0.0
  %v4695 = vadd.f32 %v4693, %v4694
  %v4696 = vsel %vm4398, %v4211, 0.0
  %v4697 = vadd.f32 %v4695, %v4696
  %v4698 = vsel %vm4398, %v4216, 0.0
  %v4699 = vadd.f32 %v4697, %v4698
  %v4700 = vsel %vm4398, %v4219, 0.0
  %v4701 = vadd.f32 %v4699, %v4700
  %v4702 = vsel %vm4398, %v4224, 0.0
  %v4703 = vadd.f32 %v4701, %v4702
  %v4704 = vsel %vm4398, %v4227, 0.0
  %v4705 = vadd.f32 %v4703, %v4704
  %v4706 = vsel %vm4398, %v4232, 0.0
  %v4707 = vadd.f32 %v4705, %v4706
  %v4708 = vsel %vm4398, %v4235, 0.0
  %v4709 = vadd.f32 %v4707, %v4708
  %v4710 = vsel %vm4398, %v4240, 0.0
  %v4711 = vadd.f32 %v4709, %v4710
  %v4712 = vsel %vm4398, %v4243, 0.0
  %v4713 = vadd.f32 %v4711, %v4712
  %v4714 = vsel %vm4398, %v4248, 0.0
  %v4715 = vadd.f32 %v4713, %v4714
  %v4716 = vsel %vm4398, %v4251, 0.0
  %v4717 = vadd.f32 %v4715, %v4716
  %v4718 = vsel %vm4398, %v4256, 0.0
  %v4719 = vadd.f32 %v4717, %v4718
  %v4720 = vsel %vm4398, %v4259, 0.0
  %v4721 = vadd.f32 %v4719, %v4720
  %v4722 = vsel %vm4398, %v4264, 0.0
  %v4723 = vadd.f32 %v4721, %v4722
  %v4724 = vsel %vm4398, %v4267, 0.0
  %v4725 = vadd.f32 %v4723, %v4724
  %v4726 = vsel %vm4398, %v4272, 0.0
  %v4727 = vadd.f32 %v4725, %v4726
  %v4728 = vsel %vm4398, %v4275, 0.0
  %v4729 = vadd.f32 %v4727, %v4728
  %v4730 = vsel %vm4398, %v4280, 0.0
  %v4731 = vadd.f32 %v4729, %v4730
  %v4732 = vsel %vm4398, %v4283, 0.0
  %v4733 = vadd.f32 %v4731, %v4732
  %v4734 = vsel %vm4398, %v4288, 0.0
  %v4735 = vadd.f32 %v4733, %v4734
  %v4736 = vsel %vm4398, %v4291, 0.0
  %v4737 = vadd.f32 %v4735, %v4736
  %v4738 = vsel %vm4398, %v4296, 0.0
  %v4739 = vadd.f32 %v4737, %v4738
  %v4740 = vsel %vm4398, %v4299, 0.0
  %v4741 = vadd.f32 %v4739, %v4740
  %v4742 = vsel %vm4398, %v4304, 0.0
  %v4743 = vadd.f32 %v4741, %v4742
  %v4744 = vsel %vm4398, %v4307, 0.0
  %v4745 = vadd.f32 %v4743, %v4744
  %v4746 = vsel %vm4398, %v4312, 0.0
  %v4747 = vadd.f32 %v4745, %v4746
  %v4748 = vsel %vm4398, %v4315, 0.0
  %v4749 = vadd.f32 %v4747, %v4748
  %v4750 = vsel %vm4398, %v4320, 0.0
  %v4751 = vadd.f32 %v4749, %v4750
  %v4752 = vsel %vm4398, %v4323, 0.0
  %v4753 = vadd.f32 %v4751, %v4752
  %v4754 = vsel %vm4398, %v4328, 0.0
  %v4755 = vadd.f32 %v4753, %v4754
  %v4756 = vsel %vm4398, %v4331, 0.0
  %v4757 = vadd.f32 %v4755, %v4756
  %v4758 = vsel %vm4398, %v4336, 0.0
  %v4759 = vadd.f32 %v4757, %v4758
  %v4760 = vsel %vm4398, %v4339, 0.0
  %v4761 = vadd.f32 %v4759, %v4760
  %v4762 = vsel %vm4398, %v4344, 0.0
  %v4763 = vadd.f32 %v4761, %v4762
  %v4764 = vsel %vm4398, %v4347, 0.0
  %v4765 = vadd.f32 %v4763, %v4764
  %v4766 = vsel %vm4398, %v4352, 0.0
  %v4767 = vadd.f32 %v4765, %v4766
  %v4768 = vsel %vm4398, %v4355, 0.0
  %v4769 = vadd.f32 %v4767, %v4768
  %v4770 = vsel %vm4398, %v4360, 0.0
  %v4771 = vadd.f32 %v4769, %v4770
  %v4772 = vsel %vm4398, %v4363, 0.0
  %v4773 = vadd.f32 %v4771, %v4772
  %v4774 = vsel %vm4398, %v4368, 0.0
  %v4775 = vadd.f32 %v4773, %v4774
  %v4776 = vsel %vm4398, %v4371, 0.0
  %v4777 = vadd.f32 %v4775, %v4776
  %v4778 = vsel %vm4398, %v4376, 0.0
  %v4779 = vadd.f32 %v4777, %v4778
  %v4780 = vsel %vm4398, %v4379, 0.0
  %v4781 = vadd.f32 %v4779, %v4780
  %v4782 = vsel %vm4398, %v4384, 0.0
  %v4783 = vadd.f32 %v4781, %v4782
  %v4784 = vsel %vm4398, %v4387, 0.0
  %v4785 = vadd.f32 %v4783, %v4784
  %v4786 = vsel %vm4398, %v4392, 0.0
  %v4787 = vadd.f32 %v4785, %v4786
  %v4788 = vsel %vm4398, %v4395, 0.0
  %v4789 = vadd.f32 %v4787, %v4788
  %v4790 = vrot.slane %v4789, 4
  %v4791 = vadd.f32 %v4789, %v4790
  %v4792 = vrot.slane %v4791, 2
  %v4793 = vadd.f32 %v4791, %v4792
  %v4794 = vrot.slane %v4793, 1
  %v4795 = vadd.f32 %v4793, %v4794
  %v4796 = vrcp.pop 1568.0
  %v4797 = vmul.f32 %v4795, %v4796
  %v4798 = vsub.f32 %v3616, %v4797
  %v4799 = vsub.f32 %v3619, %v4797
  %v4800 = vsub.f32 %v3624, %v4797
  %v4801 = vsub.f32 %v3627, %v4797
  %v4802 = vsub.f32 %v3632, %v4797
  %v4803 = vsub.f32 %v3635, %v4797
  %v4804 = vsub.f32 %v3640, %v4797
  %v4805 = vsub.f32 %v3643, %v4797
  %v4806 = vsub.f32 %v3648, %v4797
  %v4807 = vsub.f32 %v3651, %v4797
  %v4808 = vsub.f32 %v3656, %v4797
  %v4809 = vsub.f32 %v3659, %v4797
  %v4810 = vsub.f32 %v3664, %v4797
  %v4811 = vsub.f32 %v3667, %v4797
  %v4812 = vsub.f32 %v3672, %v4797
  %v4813 = vsub.f32 %v3675, %v4797
  %v4814 = vsub.f32 %v3680, %v4797
  %v4815 = vsub.f32 %v3683, %v4797
  %v4816 = vsub.f32 %v3688, %v4797
  %v4817 = vsub.f32 %v3691, %v4797
  %v4818 = vsub.f32 %v3696, %v4797
  %v4819 = vsub.f32 %v3699, %v4797
  %v4820 = vsub.f32 %v3704, %v4797
  %v4821 = vsub.f32 %v3707, %v4797
  %v4822 = vsub.f32 %v3712, %v4797
  %v4823 = vsub.f32 %v3715, %v4797
  %v4824 = vsub.f32 %v3720, %v4797
  %v4825 = vsub.f32 %v3723, %v4797
  %v4826 = vsub.f32 %v3728, %v4797
  %v4827 = vsub.f32 %v3731, %v4797
  %v4828 = vsub.f32 %v3736, %v4797
  %v4829 = vsub.f32 %v3739, %v4797
  %v4830 = vsub.f32 %v3744, %v4797
  %v4831 = vsub.f32 %v3747, %v4797
  %v4832 = vsub.f32 %v3752, %v4797
  %v4833 = vsub.f32 %v3755, %v4797
  %v4834 = vsub.f32 %v3760, %v4797
  %v4835 = vsub.f32 %v3763, %v4797
  %v4836 = vsub.f32 %v3768, %v4797
  %v4837 = vsub.f32 %v3771, %v4797
  %v4838 = vsub.f32 %v3776, %v4797
  %v4839 = vsub.f32 %v3779, %v4797
  %v4840 = vsub.f32 %v3784, %v4797
  %v4841 = vsub.f32 %v3787, %v4797
  %v4842 = vsub.f32 %v3792, %v4797
  %v4843 = vsub.f32 %v3795, %v4797
  %v4844 = vsub.f32 %v3800, %v4797
  %v4845 = vsub.f32 %v3803, %v4797
  %v4846 = vsub.f32 %v3808, %v4797
  %v4847 = vsub.f32 %v3811, %v4797
  %v4848 = vsub.f32 %v3816, %v4797
  %v4849 = vsub.f32 %v3819, %v4797
  %v4850 = vsub.f32 %v3824, %v4797
  %v4851 = vsub.f32 %v3827, %v4797
  %v4852 = vsub.f32 %v3832, %v4797
  %v4853 = vsub.f32 %v3835, %v4797
  %v4854 = vsub.f32 %v3840, %v4797
  %v4855 = vsub.f32 %v3843, %v4797
  %v4856 = vsub.f32 %v3848, %v4797
  %v4857 = vsub.f32 %v3851, %v4797
  %v4858 = vsub.f32 %v3856, %v4797
  %v4859 = vsub.f32 %v3859, %v4797
  %v4860 = vsub.f32 %v3864, %v4797
  %v4861 = vsub.f32 %v3867, %v4797
  %v4862 = vsub.f32 %v3872, %v4797
  %v4863 = vsub.f32 %v3875, %v4797
  %v4864 = vsub.f32 %v3880, %v4797
  %v4865 = vsub.f32 %v3883, %v4797
  %v4866 = vsub.f32 %v3888, %v4797
  %v4867 = vsub.f32 %v3891, %v4797
  %v4868 = vsub.f32 %v3896, %v4797
  %v4869 = vsub.f32 %v3899, %v4797
  %v4870 = vsub.f32 %v3904, %v4797
  %v4871 = vsub.f32 %v3907, %v4797
  %v4872 = vsub.f32 %v3912, %v4797
  %v4873 = vsub.f32 %v3915, %v4797
  %v4874 = vsub.f32 %v3920, %v4797
  %v4875 = vsub.f32 %v3923, %v4797
  %v4876 = vsub.f32 %v3928, %v4797
  %v4877 = vsub.f32 %v3931, %v4797
  %v4878 = vsub.f32 %v3936, %v4797
  %v4879 = vsub.f32 %v3939, %v4797
  %v4880 = vsub.f32 %v3944, %v4797
  %v4881 = vsub.f32 %v3947, %v4797
  %v4882 = vsub.f32 %v3952, %v4797
  %v4883 = vsub.f32 %v3955, %v4797
  %v4884 = vsub.f32 %v3960, %v4797
  %v4885 = vsub.f32 %v3963, %v4797
  %v4886 = vsub.f32 %v3968, %v4797
  %v4887 = vsub.f32 %v3971, %v4797
  %v4888 = vsub.f32 %v3976, %v4797
  %v4889 = vsub.f32 %v3979, %v4797
  %v4890 = vsub.f32 %v3984, %v4797
  %v4891 = vsub.f32 %v3987, %v4797
  %v4892 = vsub.f32 %v3992, %v4797
  %v4893 = vsub.f32 %v3995, %v4797
  %v4894 = vsub.f32 %v4000, %v4797
  %v4895 = vsub.f32 %v4003, %v4797
  %v4896 = vsub.f32 %v4008, %v4797
  %v4897 = vsub.f32 %v4011, %v4797
  %v4898 = vsub.f32 %v4016, %v4797
  %v4899 = vsub.f32 %v4019, %v4797
  %v4900 = vsub.f32 %v4024, %v4797
  %v4901 = vsub.f32 %v4027, %v4797
  %v4902 = vsub.f32 %v4032, %v4797
  %v4903 = vsub.f32 %v4035, %v4797
  %v4904 = vsub.f32 %v4040, %v4797
  %v4905 = vsub.f32 %v4043, %v4797
  %v4906 = vsub.f32 %v4048, %v4797
  %v4907 = vsub.f32 %v4051, %v4797
  %v4908 = vsub.f32 %v4056, %v4797
  %v4909 = vsub.f32 %v4059, %v4797
  %v4910 = vsub.f32 %v4064, %v4797
  %v4911 = vsub.f32 %v4067, %v4797
  %v4912 = vsub.f32 %v4072, %v4797
  %v4913 = vsub.f32 %v4075, %v4797
  %v4914 = vsub.f32 %v4080, %v4797
  %v4915 = vsub.f32 %v4083, %v4797
  %v4916 = vsub.f32 %v4088, %v4797
  %v4917 = vsub.f32 %v4091, %v4797
  %v4918 = vsub.f32 %v4096, %v4797
  %v4919 = vsub.f32 %v4099, %v4797
  %v4920 = vsub.f32 %v4104, %v4797
  %v4921 = vsub.f32 %v4107, %v4797
  %v4922 = vsub.f32 %v4112, %v4797
  %v4923 = vsub.f32 %v4115, %v4797
  %v4924 = vsub.f32 %v4120, %v4797
  %v4925 = vsub.f32 %v4123, %v4797
  %v4926 = vsub.f32 %v4128, %v4797
  %v4927 = vsub.f32 %v4131, %v4797
  %v4928 = vsub.f32 %v4136, %v4797
  %v4929 = vsub.f32 %v4139, %v4797
  %v4930 = vsub.f32 %v4144, %v4797
  %v4931 = vsub.f32 %v4147, %v4797
  %v4932 = vsub.f32 %v4152, %v4797
  %v4933 = vsub.f32 %v4155, %v4797
  %v4934 = vsub.f32 %v4160, %v4797
  %v4935 = vsub.f32 %v4163, %v4797
  %v4936 = vsub.f32 %v4168, %v4797
  %v4937 = vsub.f32 %v4171, %v4797
  %v4938 = vsub.f32 %v4176, %v4797
  %v4939 = vsub.f32 %v4179, %v4797
  %v4940 = vsub.f32 %v4184, %v4797
  %v4941 = vsub.f32 %v4187, %v4797
  %v4942 = vsub.f32 %v4192, %v4797
  %v4943 = vsub.f32 %v4195, %v4797
  %v4944 = vsub.f32 %v4200, %v4797
  %v4945 = vsub.f32 %v4203, %v4797
  %v4946 = vsub.f32 %v4208, %v4797
  %v4947 = vsub.f32 %v4211, %v4797
  %v4948 = vsub.f32 %v4216, %v4797
  %v4949 = vsub.f32 %v4219, %v4797
  %v4950 = vsub.f32 %v4224, %v4797
  %v4951 = vsub.f32 %v4227, %v4797
  %v4952 = vsub.f32 %v4232, %v4797
  %v4953 = vsub.f32 %v4235, %v4797
  %v4954 = vsub.f32 %v4240, %v4797
  %v4955 = vsub.f32 %v4243, %v4797
  %v4956 = vsub.f32 %v4248, %v4797
  %v4957 = vsub.f32 %v4251, %v4797
  %v4958 = vsub.f32 %v4256, %v4797
  %v4959 = vsub.f32 %v4259, %v4797
  %v4960 = vsub.f32 %v4264, %v4797
  %v4961 = vsub.f32 %v4267, %v4797
  %v4962 = vsub.f32 %v4272, %v4797
  %v4963 = vsub.f32 %v4275, %v4797
  %v4964 = vsub.f32 %v4280, %v4797
  %v4965 = vsub.f32 %v4283, %v4797
  %v4966 = vsub.f32 %v4288, %v4797
  %v4967 = vsub.f32 %v4291, %v4797
  %v4968 = vsub.f32 %v4296, %v4797
  %v4969 = vsub.f32 %v4299, %v4797
  %v4970 = vsub.f32 %v4304, %v4797
  %v4971 = vsub.f32 %v4307, %v4797
  %v4972 = vsub.f32 %v4312, %v4797
  %v4973 = vsub.f32 %v4315, %v4797
  %v4974 = vsub.f32 %v4320, %v4797
  %v4975 = vsub.f32 %v4323, %v4797
  %v4976 = vsub.f32 %v4328, %v4797
  %v4977 = vsub.f32 %v4331, %v4797
  %v4978 = vsub.f32 %v4336, %v4797
  %v4979 = vsub.f32 %v4339, %v4797
  %v4980 = vsub.f32 %v4344, %v4797
  %v4981 = vsub.f32 %v4347, %v4797
  %v4982 = vsub.f32 %v4352, %v4797
  %v4983 = vsub.f32 %v4355, %v4797
  %v4984 = vsub.f32 %v4360, %v4797
  %v4985 = vsub.f32 %v4363, %v4797
  %v4986 = vsub.f32 %v4368, %v4797
  %v4987 = vsub.f32 %v4371, %v4797
  %v4988 = vsub.f32 %v4376, %v4797
  %v4989 = vsub.f32 %v4379, %v4797
  %v4990 = vsub.f32 %v4384, %v4797
  %v4991 = vsub.f32 %v4387, %v4797
  %v4992 = vsub.f32 %v4392, %v4797
  %v4993 = vsub.f32 %v4395, %v4797
  %v4994 = vld [vmem:[%s2] sm:$0x1]
  %v4996 = vlaneseq
  %v4997 = vshrl.u32 %v4996, 7
  %v4998 = vsub.s32 0, %v4997
  %v4999 = vrot.slane %v4994, %v4998
  %v5001 = vadd.f32 %v4798, %v4999
  %v5002 = vadd.f32 %v4799, %v4999
  %v5003 = vadd.f32 %v4800, %v4999
  %v5004 = vadd.f32 %v4801, %v4999
  %v5005 = vadd.f32 %v4802, %v4999
  %v5006 = vadd.f32 %v4803, %v4999
  %v5007 = vadd.f32 %v4804, %v4999
  %v5008 = vadd.f32 %v4805, %v4999
  %v5009 = vadd.f32 %v4806, %v4999
  %v5010 = vadd.f32 %v4807, %v4999
  %v5011 = vadd.f32 %v4808, %v4999
  %v5012 = vadd.f32 %v4809, %v4999
  %v5013 = vadd.f32 %v4810, %v4999
  %v5014 = vadd.f32 %v4811, %v4999
  %v5015 = vadd.f32 %v4812, %v4999
  %v5016 = vadd.f32 %v4813, %v4999
  %v5017 = vadd.f32 %v4814, %v4999
  %v5018 = vadd.f32 %v4815, %v4999
  %v5019 = vadd.f32 %v4816, %v4999
  %v5020 = vadd.f32 %v4817, %v4999
  %v5021 = vadd.f32 %v4818, %v4999
  %v5022 = vadd.f32 %v4819, %v4999
  %v5023 = vadd.f32 %v4820, %v4999
  %v5024 = vadd.f32 %v4821, %v4999
  %v5025 = vadd.f32 %v4822, %v4999
  %v5026 = vadd.f32 %v4823, %v4999
  %v5027 = vadd.f32 %v4824, %v4999
  %v5028 = vadd.f32 %v4825, %v4999
  %v5029 = vadd.f32 %v4826, %v4999
  %v5030 = vadd.f32 %v4827, %v4999
  %v5031 = vadd.f32 %v4828, %v4999
  %v5032 = vadd.f32 %v4829, %v4999
  %v5033 = vadd.f32 %v4830, %v4999
  %v5034 = vadd.f32 %v4831, %v4999
  %v5035 = vadd.f32 %v4832, %v4999
  %v5036 = vadd.f32 %v4833, %v4999
  %v5037 = vadd.f32 %v4834, %v4999
  %v5038 = vadd.f32 %v4835, %v4999
  %v5039 = vadd.f32 %v4836, %v4999
  %v5040 = vadd.f32 %v4837, %v4999
  %v5041 = vadd.f32 %v4838, %v4999
  %v5042 = vadd.f32 %v4839, %v4999
  %v5043 = vadd.f32 %v4840, %v4999
  %v5044 = vadd.f32 %v4841, %v4999
  %v5045 = vadd.f32 %v4842, %v4999
  %v5046 = vadd.f32 %v4843, %v4999
  %v5047 = vadd.f32 %v4844, %v4999
  %v5048 = vadd.f32 %v4845, %v4999
  %v5049 = vadd.f32 %v4846, %v4999
  %v5050 = vadd.f32 %v4847, %v4999
  %v5051 = vadd.f32 %v4848, %v4999
  %v5052 = vadd.f32 %v4849, %v4999
  %v5053 = vadd.f32 %v4850, %v4999
  %v5054 = vadd.f32 %v4851, %v4999
  %v5055 = vadd.f32 %v4852, %v4999
  %v5056 = vadd.f32 %v4853, %v4999
  %v5057 = vadd.f32 %v4854, %v4999
  %v5058 = vadd.f32 %v4855, %v4999
  %v5059 = vadd.f32 %v4856, %v4999
  %v5060 = vadd.f32 %v4857, %v4999
  %v5061 = vadd.f32 %v4858, %v4999
  %v5062 = vadd.f32 %v4859, %v4999
  %v5063 = vadd.f32 %v4860, %v4999
  %v5064 = vadd.f32 %v4861, %v4999
  %v5065 = vadd.f32 %v4862, %v4999
  %v5066 = vadd.f32 %v4863, %v4999
  %v5067 = vadd.f32 %v4864, %v4999
  %v5068 = vadd.f32 %v4865, %v4999
  %v5069 = vadd.f32 %v4866, %v4999
  %v5070 = vadd.f32 %v4867, %v4999
  %v5071 = vadd.f32 %v4868, %v4999
  %v5072 = vadd.f32 %v4869, %v4999
  %v5073 = vadd.f32 %v4870, %v4999
  %v5074 = vadd.f32 %v4871, %v4999
  %v5075 = vadd.f32 %v4872, %v4999
  %v5076 = vadd.f32 %v4873, %v4999
  %v5077 = vadd.f32 %v4874, %v4999
  %v5078 = vadd.f32 %v4875, %v4999
  %v5079 = vadd.f32 %v4876, %v4999
  %v5080 = vadd.f32 %v4877, %v4999
  %v5081 = vadd.f32 %v4878, %v4999
  %v5082 = vadd.f32 %v4879, %v4999
  %v5083 = vadd.f32 %v4880, %v4999
  %v5084 = vadd.f32 %v4881, %v4999
  %v5085 = vadd.f32 %v4882, %v4999
  %v5086 = vadd.f32 %v4883, %v4999
  %v5087 = vadd.f32 %v4884, %v4999
  %v5088 = vadd.f32 %v4885, %v4999
  %v5089 = vadd.f32 %v4886, %v4999
  %v5090 = vadd.f32 %v4887, %v4999
  %v5091 = vadd.f32 %v4888, %v4999
  %v5092 = vadd.f32 %v4889, %v4999
  %v5093 = vadd.f32 %v4890, %v4999
  %v5094 = vadd.f32 %v4891, %v4999
  %v5095 = vadd.f32 %v4892, %v4999
  %v5096 = vadd.f32 %v4893, %v4999
  %v5097 = vadd.f32 %v4894, %v4999
  %v5098 = vadd.f32 %v4895, %v4999
  %v5099 = vadd.f32 %v4896, %v4999
  %v5100 = vadd.f32 %v4897, %v4999
  %v5101 = vadd.f32 %v4898, %v4999
  %v5102 = vadd.f32 %v4899, %v4999
  %v5103 = vadd.f32 %v4900, %v4999
  %v5104 = vadd.f32 %v4901, %v4999
  %v5105 = vadd.f32 %v4902, %v4999
  %v5106 = vadd.f32 %v4903, %v4999
  %v5107 = vadd.f32 %v4904, %v4999
  %v5108 = vadd.f32 %v4905, %v4999
  %v5109 = vadd.f32 %v4906, %v4999
  %v5110 = vadd.f32 %v4907, %v4999
  %v5111 = vadd.f32 %v4908, %v4999
  %v5112 = vadd.f32 %v4909, %v4999
  %v5113 = vadd.f32 %v4910, %v4999
  %v5114 = vadd.f32 %v4911, %v4999
  %v5115 = vadd.f32 %v4912, %v4999
  %v5116 = vadd.f32 %v4913, %v4999
  %v5117 = vadd.f32 %v4914, %v4999
  %v5118 = vadd.f32 %v4915, %v4999
  %v5119 = vadd.f32 %v4916, %v4999
  %v5120 = vadd.f32 %v4917, %v4999
  %v5121 = vadd.f32 %v4918, %v4999
  %v5122 = vadd.f32 %v4919, %v4999
  %v5123 = vadd.f32 %v4920, %v4999
  %v5124 = vadd.f32 %v4921, %v4999
  %v5125 = vadd.f32 %v4922, %v4999
  %v5126 = vadd.f32 %v4923, %v4999
  %v5127 = vadd.f32 %v4924, %v4999
  %v5128 = vadd.f32 %v4925, %v4999
  %v5129 = vadd.f32 %v4926, %v4999
  %v5130 = vadd.f32 %v4927, %v4999
  %v5131 = vadd.f32 %v4928, %v4999
  %v5132 = vadd.f32 %v4929, %v4999
  %v5133 = vadd.f32 %v4930, %v4999
  %v5134 = vadd.f32 %v4931, %v4999
  %v5135 = vadd.f32 %v4932, %v4999
  %v5136 = vadd.f32 %v4933, %v4999
  %v5137 = vadd.f32 %v4934, %v4999
  %v5138 = vadd.f32 %v4935, %v4999
  %v5139 = vadd.f32 %v4936, %v4999
  %v5140 = vadd.f32 %v4937, %v4999
  %v5141 = vadd.f32 %v4938, %v4999
  %v5142 = vadd.f32 %v4939, %v4999
  %v5143 = vadd.f32 %v4940, %v4999
  %v5144 = vadd.f32 %v4941, %v4999
  %v5145 = vadd.f32 %v4942, %v4999
  %v5146 = vadd.f32 %v4943, %v4999
  %v5147 = vadd.f32 %v4944, %v4999
  %v5148 = vadd.f32 %v4945, %v4999
  %v5149 = vadd.f32 %v4946, %v4999
  %v5150 = vadd.f32 %v4947, %v4999
  %v5151 = vadd.f32 %v4948, %v4999
  %v5152 = vadd.f32 %v4949, %v4999
  %v5153 = vadd.f32 %v4950, %v4999
  %v5154 = vadd.f32 %v4951, %v4999
  %v5155 = vadd.f32 %v4952, %v4999
  %v5156 = vadd.f32 %v4953, %v4999
  %v5157 = vadd.f32 %v4954, %v4999
  %v5158 = vadd.f32 %v4955, %v4999
  %v5159 = vadd.f32 %v4956, %v4999
  %v5160 = vadd.f32 %v4957, %v4999
  %v5161 = vadd.f32 %v4958, %v4999
  %v5162 = vadd.f32 %v4959, %v4999
  %v5163 = vadd.f32 %v4960, %v4999
  %v5164 = vadd.f32 %v4961, %v4999
  %v5165 = vadd.f32 %v4962, %v4999
  %v5166 = vadd.f32 %v4963, %v4999
  %v5167 = vadd.f32 %v4964, %v4999
  %v5168 = vadd.f32 %v4965, %v4999
  %v5169 = vadd.f32 %v4966, %v4999
  %v5170 = vadd.f32 %v4967, %v4999
  %v5171 = vadd.f32 %v4968, %v4999
  %v5172 = vadd.f32 %v4969, %v4999
  %v5173 = vadd.f32 %v4970, %v4999
  %v5174 = vadd.f32 %v4971, %v4999
  %v5175 = vadd.f32 %v4972, %v4999
  %v5176 = vadd.f32 %v4973, %v4999
  %v5177 = vadd.f32 %v4974, %v4999
  %v5178 = vadd.f32 %v4975, %v4999
  %v5179 = vadd.f32 %v4976, %v4999
  %v5180 = vadd.f32 %v4977, %v4999
  %v5181 = vadd.f32 %v4978, %v4999
  %v5182 = vadd.f32 %v4979, %v4999
  %v5183 = vadd.f32 %v4980, %v4999
  %v5184 = vadd.f32 %v4981, %v4999
  %v5185 = vadd.f32 %v4982, %v4999
  %v5186 = vadd.f32 %v4983, %v4999
  %v5187 = vadd.f32 %v4984, %v4999
  %v5188 = vadd.f32 %v4985, %v4999
  %v5189 = vadd.f32 %v4986, %v4999
  %v5190 = vadd.f32 %v4987, %v4999
  %v5191 = vadd.f32 %v4988, %v4999
  %v5192 = vadd.f32 %v4989, %v4999
  %v5193 = vadd.f32 %v4990, %v4999
  %v5194 = vadd.f32 %v4991, %v4999
  %v5195 = vadd.f32 %v4992, %v4999
  %v5196 = vadd.f32 %v4993, %v4999
  %v5197 = vmax.f32 %v5001, 0.0
  %v5198 = vmax.f32 %v5002, 0.0
  %v5199 = vmax.f32 %v5003, 0.0
  %v5200 = vmax.f32 %v5004, 0.0
  %v5201 = vmax.f32 %v5005, 0.0
  %v5202 = vmax.f32 %v5006, 0.0
  %v5203 = vmax.f32 %v5007, 0.0
  %v5204 = vmax.f32 %v5008, 0.0
  %v5205 = vmax.f32 %v5009, 0.0
  %v5206 = vmax.f32 %v5010, 0.0
  %v5207 = vmax.f32 %v5011, 0.0
  %v5208 = vmax.f32 %v5012, 0.0
  %v5209 = vmax.f32 %v5013, 0.0
  %v5210 = vmax.f32 %v5014, 0.0
  %v5211 = vmax.f32 %v5015, 0.0
  %v5212 = vmax.f32 %v5016, 0.0
  %v5213 = vmax.f32 %v5017, 0.0
  %v5214 = vmax.f32 %v5018, 0.0
  %v5215 = vmax.f32 %v5019, 0.0
  %v5216 = vmax.f32 %v5020, 0.0
  %v5217 = vmax.f32 %v5021, 0.0
  %v5218 = vmax.f32 %v5022, 0.0
  %v5219 = vmax.f32 %v5023, 0.0
  %v5220 = vmax.f32 %v5024, 0.0
  %v5221 = vmax.f32 %v5025, 0.0
  %v5222 = vmax.f32 %v5026, 0.0
  %v5223 = vmax.f32 %v5027, 0.0
  %v5224 = vmax.f32 %v5028, 0.0
  %v5225 = vmax.f32 %v5029, 0.0
  %v5226 = vmax.f32 %v5030, 0.0
  %v5227 = vmax.f32 %v5031, 0.0
  %v5228 = vmax.f32 %v5032, 0.0
  %v5229 = vmax.f32 %v5033, 0.0
  %v5230 = vmax.f32 %v5034, 0.0
  %v5231 = vmax.f32 %v5035, 0.0
  %v5232 = vmax.f32 %v5036, 0.0
  %v5233 = vmax.f32 %v5037, 0.0
  %v5234 = vmax.f32 %v5038, 0.0
  %v5235 = vmax.f32 %v5039, 0.0
  %v5236 = vmax.f32 %v5040, 0.0
  %v5237 = vmax.f32 %v5041, 0.0
  %v5238 = vmax.f32 %v5042, 0.0
  %v5239 = vmax.f32 %v5043, 0.0
  %v5240 = vmax.f32 %v5044, 0.0
  %v5241 = vmax.f32 %v5045, 0.0
  %v5242 = vmax.f32 %v5046, 0.0
  %v5243 = vmax.f32 %v5047, 0.0
  %v5244 = vmax.f32 %v5048, 0.0
  %v5245 = vmax.f32 %v5049, 0.0
  %v5246 = vmax.f32 %v5050, 0.0
  %v5247 = vmax.f32 %v5051, 0.0
  %v5248 = vmax.f32 %v5052, 0.0
  %v5249 = vmax.f32 %v5053, 0.0
  %v5250 = vmax.f32 %v5054, 0.0
  %v5251 = vmax.f32 %v5055, 0.0
  %v5252 = vmax.f32 %v5056, 0.0
  %v5253 = vmax.f32 %v5057, 0.0
  %v5254 = vmax.f32 %v5058, 0.0
  %v5255 = vmax.f32 %v5059, 0.0
  %v5256 = vmax.f32 %v5060, 0.0
  %v5257 = vmax.f32 %v5061, 0.0
  %v5258 = vmax.f32 %v5062, 0.0
  %v5259 = vmax.f32 %v5063, 0.0
  %v5260 = vmax.f32 %v5064, 0.0
  %v5261 = vmax.f32 %v5065, 0.0
  %v5262 = vmax.f32 %v5066, 0.0
  %v5263 = vmax.f32 %v5067, 0.0
  %v5264 = vmax.f32 %v5068, 0.0
  %v5265 = vmax.f32 %v5069, 0.0
  %v5266 = vmax.f32 %v5070, 0.0
  %v5267 = vmax.f32 %v5071, 0.0
  %v5268 = vmax.f32 %v5072, 0.0
  %v5269 = vmax.f32 %v5073, 0.0
  %v5270 = vmax.f32 %v5074, 0.0
  %v5271 = vmax.f32 %v5075, 0.0
  %v5272 = vmax.f32 %v5076, 0.0
  %v5273 = vmax.f32 %v5077, 0.0
  %v5274 = vmax.f32 %v5078, 0.0
  %v5275 = vmax.f32 %v5079, 0.0
  %v5276 = vmax.f32 %v5080, 0.0
  %v5277 = vmax.f32 %v5081, 0.0
  %v5278 = vmax.f32 %v5082, 0.0
  %v5279 = vmax.f32 %v5083, 0.0
  %v5280 = vmax.f32 %v5084, 0.0
  %v5281 = vmax.f32 %v5085, 0.0
  %v5282 = vmax.f32 %v5086, 0.0
  %v5283 = vmax.f32 %v5087, 0.0
  %v5284 = vmax.f32 %v5088, 0.0
  %v5285 = vmax.f32 %v5089, 0.0
  %v5286 = vmax.f32 %v5090, 0.0
  %v5287 = vmax.f32 %v5091, 0.0
  %v5288 = vmax.f32 %v5092, 0.0
  %v5289 = vmax.f32 %v5093, 0.0
  %v5290 = vmax.f32 %v5094, 0.0
  %v5291 = vmax.f32 %v5095, 0.0
  %v5292 = vmax.f32 %v5096, 0.0
  %v5293 = vmax.f32 %v5097, 0.0
  %v5294 = vmax.f32 %v5098, 0.0
  %v5295 = vmax.f32 %v5099, 0.0
  %v5296 = vmax.f32 %v5100, 0.0
  %v5297 = vmax.f32 %v5101, 0.0
  %v5298 = vmax.f32 %v5102, 0.0
  %v5299 = vmax.f32 %v5103, 0.0
  %v5300 = vmax.f32 %v5104, 0.0
  %v5301 = vmax.f32 %v5105, 0.0
  %v5302 = vmax.f32 %v5106, 0.0
  %v5303 = vmax.f32 %v5107, 0.0
  %v5304 = vmax.f32 %v5108, 0.0
  %v5305 = vmax.f32 %v5109, 0.0
  %v5306 = vmax.f32 %v5110, 0.0
  %v5307 = vmax.f32 %v5111, 0.0
  %v5308 = vmax.f32 %v5112, 0.0
  %v5309 = vmax.f32 %v5113, 0.0
  %v5310 = vmax.f32 %v5114, 0.0
  %v5311 = vmax.f32 %v5115, 0.0
  %v5312 = vmax.f32 %v5116, 0.0
  %v5313 = vmax.f32 %v5117, 0.0
  %v5314 = vmax.f32 %v5118, 0.0
  %v5315 = vmax.f32 %v5119, 0.0
  %v5316 = vmax.f32 %v5120, 0.0
  %v5317 = vmax.f32 %v5121, 0.0
  %v5318 = vmax.f32 %v5122, 0.0
  %v5319 = vmax.f32 %v5123, 0.0
  %v5320 = vmax.f32 %v5124, 0.0
  %v5321 = vmax.f32 %v5125, 0.0
  %v5322 = vmax.f32 %v5126, 0.0
  %v5323 = vmax.f32 %v5127, 0.0
  %v5324 = vmax.f32 %v5128, 0.0
  %v5325 = vmax.f32 %v5129, 0.0
  %v5326 = vmax.f32 %v5130, 0.0
  %v5327 = vmax.f32 %v5131, 0.0
  %v5328 = vmax.f32 %v5132, 0.0
  %v5329 = vmax.f32 %v5133, 0.0
  %v5330 = vmax.f32 %v5134, 0.0
  %v5331 = vmax.f32 %v5135, 0.0
  %v5332 = vmax.f32 %v5136, 0.0
  %v5333 = vmax.f32 %v5137, 0.0
  %v5334 = vmax.f32 %v5138, 0.0
  %v5335 = vmax.f32 %v5139, 0.0
  %v5336 = vmax.f32 %v5140, 0.0
  %v5337 = vmax.f32 %v5141, 0.0
  %v5338 = vmax.f32 %v5142, 0.0
  %v5339 = vmax.f32 %v5143, 0.0
  %v5340 = vmax.f32 %v5144, 0.0
  %v5341 = vmax.f32 %v5145, 0.0
  %v5342 = vmax.f32 %v5146, 0.0
  %v5343 = vmax.f32 %v5147, 0.0
  %v5344 = vmax.f32 %v5148, 0.0
  %v5345 = vmax.f32 %v5149, 0.0
  %v5346 = vmax.f32 %v5150, 0.0
  %v5347 = vmax.f32 %v5151, 0.0
  %v5348 = vmax.f32 %v5152, 0.0
  %v5349 = vmax.f32 %v5153, 0.0
  %v5350 = vmax.f32 %v5154, 0.0
  %v5351 = vmax.f32 %v5155, 0.0
  %v5352 = vmax.f32 %v5156, 0.0
  %v5353 = vmax.f32 %v5157, 0.0
  %v5354 = vmax.f32 %v5158, 0.0
  %v5355 = vmax.f32 %v5159, 0.0
  %v5356 = vmax.f32 %v5160, 0.0
  %v5357 = vmax.f32 %v5161, 0.0
  %v5358 = vmax.f32 %v5162, 0.0
  %v5359 = vmax.f32 %v5163, 0.0
  %v5360 = vmax.f32 %v5164, 0.0
  %v5361 = vmax.f32 %v5165, 0.0
  %v5362 = vmax.f32 %v5166, 0.0
  %v5363 = vmax.f32 %v5167, 0.0
  %v5364 = vmax.f32 %v5168, 0.0
  %v5365 = vmax.f32 %v5169, 0.0
  %v5366 = vmax.f32 %v5170, 0.0
  %v5367 = vmax.f32 %v5171, 0.0
  %v5368 = vmax.f32 %v5172, 0.0
  %v5369 = vmax.f32 %v5173, 0.0
  %v5370 = vmax.f32 %v5174, 0.0
  %v5371 = vmax.f32 %v5175, 0.0
  %v5372 = vmax.f32 %v5176, 0.0
  %v5373 = vmax.f32 %v5177, 0.0
  %v5374 = vmax.f32 %v5178, 0.0
  %v5375 = vmax.f32 %v5179, 0.0
  %v5376 = vmax.f32 %v5180, 0.0
  %v5377 = vmax.f32 %v5181, 0.0
  %v5378 = vmax.f32 %v5182, 0.0
  %v5379 = vmax.f32 %v5183, 0.0
  %v5380 = vmax.f32 %v5184, 0.0
  %v5381 = vmax.f32 %v5185, 0.0
  %v5382 = vmax.f32 %v5186, 0.0
  %v5383 = vmax.f32 %v5187, 0.0
  %v5384 = vmax.f32 %v5188, 0.0
  %v5385 = vmax.f32 %v5189, 0.0
  %v5386 = vmax.f32 %v5190, 0.0
  %v5387 = vmax.f32 %v5191, 0.0
  %v5388 = vmax.f32 %v5192, 0.0
  %v5389 = vmax.f32 %v5193, 0.0
  %v5390 = vmax.f32 %v5194, 0.0
  %v5391 = vmax.f32 %v5195, 0.0
  %v5392 = vmax.f32 %v5196, 0.0
  %v5393 = vpack.c.bf16 %v5198, %v5197
  %v5394 = vpack.c.bf16 %v5200, %v5199
  %v5395 = vpack.c.bf16 %v5202, %v5201
  %v5396 = vpack.c.bf16 %v5204, %v5203
  %v5397 = vpack.c.bf16 %v5206, %v5205
  %v5398 = vpack.c.bf16 %v5208, %v5207
  %v5399 = vpack.c.bf16 %v5210, %v5209
  %v5400 = vpack.c.bf16 %v5212, %v5211
  %v5401 = vpack.c.bf16 %v5214, %v5213
  %v5402 = vpack.c.bf16 %v5216, %v5215
  %v5403 = vpack.c.bf16 %v5218, %v5217
  %v5404 = vpack.c.bf16 %v5220, %v5219
  %v5405 = vpack.c.bf16 %v5222, %v5221
  %v5406 = vpack.c.bf16 %v5224, %v5223
  %v5407 = vpack.c.bf16 %v5226, %v5225
  %v5408 = vpack.c.bf16 %v5228, %v5227
  %v5409 = vpack.c.bf16 %v5230, %v5229
  %v5410 = vpack.c.bf16 %v5232, %v5231
  %v5411 = vpack.c.bf16 %v5234, %v5233
  %v5412 = vpack.c.bf16 %v5236, %v5235
  %v5413 = vpack.c.bf16 %v5238, %v5237
  %v5414 = vpack.c.bf16 %v5240, %v5239
  %v5415 = vpack.c.bf16 %v5242, %v5241
  %v5416 = vpack.c.bf16 %v5244, %v5243
  %v5417 = vpack.c.bf16 %v5246, %v5245
  %v5418 = vpack.c.bf16 %v5248, %v5247
  %v5419 = vpack.c.bf16 %v5250, %v5249
  %v5420 = vpack.c.bf16 %v5252, %v5251
  %v5421 = vpack.c.bf16 %v5254, %v5253
  %v5422 = vpack.c.bf16 %v5256, %v5255
  %v5423 = vpack.c.bf16 %v5258, %v5257
  %v5424 = vpack.c.bf16 %v5260, %v5259
  %v5425 = vpack.c.bf16 %v5262, %v5261
  %v5426 = vpack.c.bf16 %v5264, %v5263
  %v5427 = vpack.c.bf16 %v5266, %v5265
  %v5428 = vpack.c.bf16 %v5268, %v5267
  %v5429 = vpack.c.bf16 %v5270, %v5269
  %v5430 = vpack.c.bf16 %v5272, %v5271
  %v5431 = vpack.c.bf16 %v5274, %v5273
  %v5432 = vpack.c.bf16 %v5276, %v5275
  %v5433 = vpack.c.bf16 %v5278, %v5277
  %v5434 = vpack.c.bf16 %v5280, %v5279
  %v5435 = vpack.c.bf16 %v5282, %v5281
  %v5436 = vpack.c.bf16 %v5284, %v5283
  %v5437 = vpack.c.bf16 %v5286, %v5285
  %v5438 = vpack.c.bf16 %v5288, %v5287
  %v5439 = vpack.c.bf16 %v5290, %v5289
  %v5440 = vpack.c.bf16 %v5292, %v5291
  %v5441 = vpack.c.bf16 %v5294, %v5293
  %v5442 = vpack.c.bf16 %v5296, %v5295
  %v5443 = vpack.c.bf16 %v5298, %v5297
  %v5444 = vpack.c.bf16 %v5300, %v5299
  %v5445 = vpack.c.bf16 %v5302, %v5301
  %v5446 = vpack.c.bf16 %v5304, %v5303
  %v5447 = vpack.c.bf16 %v5306, %v5305
  %v5448 = vpack.c.bf16 %v5308, %v5307
  %v5449 = vpack.c.bf16 %v5310, %v5309
  %v5450 = vpack.c.bf16 %v5312, %v5311
  %v5451 = vpack.c.bf16 %v5314, %v5313
  %v5452 = vpack.c.bf16 %v5316, %v5315
  %v5453 = vpack.c.bf16 %v5318, %v5317
  %v5454 = vpack.c.bf16 %v5320, %v5319
  %v5455 = vpack.c.bf16 %v5322, %v5321
  %v5456 = vpack.c.bf16 %v5324, %v5323
  %v5457 = vpack.c.bf16 %v5326, %v5325
  %v5458 = vpack.c.bf16 %v5328, %v5327
  %v5459 = vpack.c.bf16 %v5330, %v5329
  %v5460 = vpack.c.bf16 %v5332, %v5331
  %v5461 = vpack.c.bf16 %v5334, %v5333
  %v5462 = vpack.c.bf16 %v5336, %v5335
  %v5463 = vpack.c.bf16 %v5338, %v5337
  %v5464 = vpack.c.bf16 %v5340, %v5339
  %v5465 = vpack.c.bf16 %v5342, %v5341
  %v5466 = vpack.c.bf16 %v5344, %v5343
  %v5467 = vpack.c.bf16 %v5346, %v5345
  %v5468 = vpack.c.bf16 %v5348, %v5347
  %v5469 = vpack.c.bf16 %v5350, %v5349
  %v5470 = vpack.c.bf16 %v5352, %v5351
  %v5471 = vpack.c.bf16 %v5354, %v5353
  %v5472 = vpack.c.bf16 %v5356, %v5355
  %v5473 = vpack.c.bf16 %v5358, %v5357
  %v5474 = vpack.c.bf16 %v5360, %v5359
  %v5475 = vpack.c.bf16 %v5362, %v5361
  %v5476 = vpack.c.bf16 %v5364, %v5363
  %v5477 = vpack.c.bf16 %v5366, %v5365
  %v5478 = vpack.c.bf16 %v5368, %v5367
  %v5479 = vpack.c.bf16 %v5370, %v5369
  %v5480 = vpack.c.bf16 %v5372, %v5371
  %v5481 = vpack.c.bf16 %v5374, %v5373
  %v5482 = vpack.c.bf16 %v5376, %v5375
  %v5483 = vpack.c.bf16 %v5378, %v5377
  %v5484 = vpack.c.bf16 %v5380, %v5379
  %v5485 = vpack.c.bf16 %v5382, %v5381
  %v5486 = vpack.c.bf16 %v5384, %v5383
  %v5487 = vpack.c.bf16 %v5386, %v5385
  %v5488 = vpack.c.bf16 %v5388, %v5387
  %v5489 = vpack.c.bf16 %v5390, %v5389
  %v5490 = vpack.c.bf16 %v5392, %v5391
  %v5589 = vunpack.c.l.b16 %v5393
  %v5590 = vunpack.c.h.b16 %v5393
  %v5591 = vunpack.c.l.b16 %v5394
  %v5592 = vunpack.c.h.b16 %v5394
  %v5593 = vunpack.c.l.b16 %v5395
  %v5594 = vunpack.c.h.b16 %v5395
  %v5595 = vunpack.c.l.b16 %v5396
  %v5596 = vunpack.c.h.b16 %v5396
  %v5597 = vunpack.c.l.b16 %v5397
  %v5598 = vunpack.c.h.b16 %v5397
  %v5599 = vunpack.c.l.b16 %v5398
  %v5600 = vunpack.c.h.b16 %v5398
  %v5601 = vunpack.c.l.b16 %v5399
  %v5602 = vunpack.c.h.b16 %v5399
  %v5603 = vunpack.c.l.b16 %v5400
  %v5604 = vunpack.c.h.b16 %v5400
  %v5605 = vunpack.c.l.b16 %v5401
  %v5606 = vunpack.c.h.b16 %v5401
  %v5607 = vunpack.c.l.b16 %v5402
  %v5608 = vunpack.c.h.b16 %v5402
  %v5609 = vunpack.c.l.b16 %v5403
  %v5610 = vunpack.c.h.b16 %v5403
  %v5611 = vunpack.c.l.b16 %v5404
  %v5612 = vunpack.c.h.b16 %v5404
  %v5613 = vunpack.c.l.b16 %v5405
  %v5614 = vunpack.c.h.b16 %v5405
  %v5615 = vunpack.c.l.b16 %v5406
  %v5616 = vunpack.c.h.b16 %v5406
  %v5617 = vunpack.c.l.b16 %v5407
  %v5618 = vunpack.c.h.b16 %v5407
  %v5619 = vunpack.c.l.b16 %v5408
  %v5620 = vunpack.c.h.b16 %v5408
  %v5621 = vunpack.c.l.b16 %v5409
  %v5622 = vunpack.c.h.b16 %v5409
  %v5623 = vunpack.c.l.b16 %v5410
  %v5624 = vunpack.c.h.b16 %v5410
  %v5625 = vunpack.c.l.b16 %v5411
  %v5626 = vunpack.c.h.b16 %v5411
  %v5627 = vunpack.c.l.b16 %v5412
  %v5628 = vunpack.c.h.b16 %v5412
  %v5629 = vunpack.c.l.b16 %v5413
  %v5630 = vunpack.c.h.b16 %v5413
  %v5631 = vunpack.c.l.b16 %v5414
  %v5632 = vunpack.c.h.b16 %v5414
  %v5633 = vunpack.c.l.b16 %v5415
  %v5634 = vunpack.c.h.b16 %v5415
  %v5635 = vunpack.c.l.b16 %v5416
  %v5636 = vunpack.c.h.b16 %v5416
  %v5637 = vunpack.c.l.b16 %v5417
  %v5638 = vunpack.c.h.b16 %v5417
  %v5639 = vunpack.c.l.b16 %v5418
  %v5640 = vunpack.c.h.b16 %v5418
  %v5641 = vunpack.c.l.b16 %v5419
  %v5642 = vunpack.c.h.b16 %v5419
  %v5643 = vunpack.c.l.b16 %v5420
  %v5644 = vunpack.c.h.b16 %v5420
  %v5645 = vunpack.c.l.b16 %v5421
  %v5646 = vunpack.c.h.b16 %v5421
  %v5647 = vunpack.c.l.b16 %v5422
  %v5648 = vunpack.c.h.b16 %v5422
  %v5649 = vunpack.c.l.b16 %v5423
  %v5650 = vunpack.c.h.b16 %v5423
  %v5651 = vunpack.c.l.b16 %v5424
  %v5652 = vunpack.c.h.b16 %v5424
  %v5653 = vunpack.c.l.b16 %v5425
  %v5654 = vunpack.c.h.b16 %v5425
  %v5655 = vunpack.c.l.b16 %v5426
  %v5656 = vunpack.c.h.b16 %v5426
  %v5657 = vunpack.c.l.b16 %v5427
  %v5658 = vunpack.c.h.b16 %v5427
  %v5659 = vunpack.c.l.b16 %v5428
  %v5660 = vunpack.c.h.b16 %v5428
  %v5661 = vunpack.c.l.b16 %v5429
  %v5662 = vunpack.c.h.b16 %v5429
  %v5663 = vunpack.c.l.b16 %v5430
  %v5664 = vunpack.c.h.b16 %v5430
  %v5665 = vunpack.c.l.b16 %v5431
  %v5666 = vunpack.c.h.b16 %v5431
  %v5667 = vunpack.c.l.b16 %v5432
  %v5668 = vunpack.c.h.b16 %v5432
  %v5669 = vunpack.c.l.b16 %v5433
  %v5670 = vunpack.c.h.b16 %v5433
  %v5671 = vunpack.c.l.b16 %v5434
  %v5672 = vunpack.c.h.b16 %v5434
  %v5673 = vunpack.c.l.b16 %v5435
  %v5674 = vunpack.c.h.b16 %v5435
  %v5675 = vunpack.c.l.b16 %v5436
  %v5676 = vunpack.c.h.b16 %v5436
  %v5677 = vunpack.c.l.b16 %v5437
  %v5678 = vunpack.c.h.b16 %v5437
  %v5679 = vunpack.c.l.b16 %v5438
  %v5680 = vunpack.c.h.b16 %v5438
  %v5681 = vunpack.c.l.b16 %v5439
  %v5682 = vunpack.c.h.b16 %v5439
  %v5683 = vunpack.c.l.b16 %v5440
  %v5684 = vunpack.c.h.b16 %v5440
  %v5685 = vunpack.c.l.b16 %v5441
  %v5686 = vunpack.c.h.b16 %v5441
  %v5687 = vunpack.c.l.b16 %v5442
  %v5688 = vunpack.c.h.b16 %v5442
  %v5689 = vunpack.c.l.b16 %v5443
  %v5690 = vunpack.c.h.b16 %v5443
  %v5691 = vunpack.c.l.b16 %v5444
  %v5692 = vunpack.c.h.b16 %v5444
  %v5693 = vunpack.c.l.b16 %v5445
  %v5694 = vunpack.c.h.b16 %v5445
  %v5695 = vunpack.c.l.b16 %v5446
  %v5696 = vunpack.c.h.b16 %v5446
  %v5697 = vunpack.c.l.b16 %v5447
  %v5698 = vunpack.c.h.b16 %v5447
  %v5699 = vunpack.c.l.b16 %v5448
  %v5700 = vunpack.c.h.b16 %v5448
  %v5701 = vunpack.c.l.b16 %v5449
  %v5702 = vunpack.c.h.b16 %v5449
  %v5703 = vunpack.c.l.b16 %v5450
  %v5704 = vunpack.c.h.b16 %v5450
  %v5705 = vunpack.c.l.b16 %v5451
  %v5706 = vunpack.c.h.b16 %v5451
  %v5707 = vunpack.c.l.b16 %v5452
  %v5708 = vunpack.c.h.b16 %v5452
  %v5709 = vunpack.c.l.b16 %v5453
  %v5710 = vunpack.c.h.b16 %v5453
  %v5711 = vunpack.c.l.b16 %v5454
  %v5712 = vunpack.c.h.b16 %v5454
  %v5713 = vunpack.c.l.b16 %v5455
  %v5714 = vunpack.c.h.b16 %v5455
  %v5715 = vunpack.c.l.b16 %v5456
  %v5716 = vunpack.c.h.b16 %v5456
  %v5717 = vunpack.c.l.b16 %v5457
  %v5718 = vunpack.c.h.b16 %v5457
  %v5719 = vunpack.c.l.b16 %v5458
  %v5720 = vunpack.c.h.b16 %v5458
  %v5721 = vunpack.c.l.b16 %v5459
  %v5722 = vunpack.c.h.b16 %v5459
  %v5723 = vunpack.c.l.b16 %v5460
  %v5724 = vunpack.c.h.b16 %v5460
  %v5725 = vunpack.c.l.b16 %v5461
  %v5726 = vunpack.c.h.b16 %v5461
  %v5727 = vunpack.c.l.b16 %v5462
  %v5728 = vunpack.c.h.b16 %v5462
  %v5729 = vunpack.c.l.b16 %v5463
  %v5730 = vunpack.c.h.b16 %v5463
  %v5731 = vunpack.c.l.b16 %v5464
  %v5732 = vunpack.c.h.b16 %v5464
  %v5733 = vunpack.c.l.b16 %v5465
  %v5734 = vunpack.c.h.b16 %v5465
  %v5735 = vunpack.c.l.b16 %v5466
  %v5736 = vunpack.c.h.b16 %v5466
  %v5737 = vunpack.c.l.b16 %v5467
  %v5738 = vunpack.c.h.b16 %v5467
  %v5739 = vunpack.c.l.b16 %v5468
  %v5740 = vunpack.c.h.b16 %v5468
  %v5741 = vunpack.c.l.b16 %v5469
  %v5742 = vunpack.c.h.b16 %v5469
  %v5743 = vunpack.c.l.b16 %v5470
  %v5744 = vunpack.c.h.b16 %v5470
  %v5745 = vunpack.c.l.b16 %v5471
  %v5746 = vunpack.c.h.b16 %v5471
  %v5747 = vunpack.c.l.b16 %v5472
  %v5748 = vunpack.c.h.b16 %v5472
  %v5749 = vunpack.c.l.b16 %v5473
  %v5750 = vunpack.c.h.b16 %v5473
  %v5751 = vunpack.c.l.b16 %v5474
  %v5752 = vunpack.c.h.b16 %v5474
  %v5753 = vunpack.c.l.b16 %v5475
  %v5754 = vunpack.c.h.b16 %v5475
  %v5755 = vunpack.c.l.b16 %v5476
  %v5756 = vunpack.c.h.b16 %v5476
  %v5757 = vunpack.c.l.b16 %v5477
  %v5758 = vunpack.c.h.b16 %v5477
  %v5759 = vunpack.c.l.b16 %v5478
  %v5760 = vunpack.c.h.b16 %v5478
  %v5761 = vunpack.c.l.b16 %v5479
  %v5762 = vunpack.c.h.b16 %v5479
  %v5763 = vunpack.c.l.b16 %v5480
  %v5764 = vunpack.c.h.b16 %v5480
  %v5765 = vunpack.c.l.b16 %v5481
  %v5766 = vunpack.c.h.b16 %v5481
  %v5767 = vunpack.c.l.b16 %v5482
  %v5768 = vunpack.c.h.b16 %v5482
  %v5769 = vunpack.c.l.b16 %v5483
  %v5770 = vunpack.c.h.b16 %v5483
  %v5771 = vunpack.c.l.b16 %v5484
  %v5772 = vunpack.c.h.b16 %v5484
  %v5773 = vunpack.c.l.b16 %v5485
  %v5774 = vunpack.c.h.b16 %v5485
  %v5775 = vunpack.c.l.b16 %v5486
  %v5776 = vunpack.c.h.b16 %v5486
  %v5777 = vunpack.c.l.b16 %v5487
  %v5778 = vunpack.c.h.b16 %v5487
  %v5779 = vunpack.c.l.b16 %v5488
  %v5780 = vunpack.c.h.b16 %v5488
  %v5781 = vunpack.c.l.b16 %v5489
  %v5782 = vunpack.c.h.b16 %v5489
  %v5783 = vunpack.c.l.b16 %v5490
  %v5784 = vunpack.c.h.b16 %v5490
  %v5785 = vpack.c.b16 %v5589, %v5589
  %v5786 = vpack.c.b16 %v5590, %v5590
  %v5787 = vpack.c.b16 %v5591, %v5591
  %v5788 = vpack.c.b16 %v5592, %v5592
  %v5789 = vpack.c.b16 %v5593, %v5593
  %v5790 = vpack.c.b16 %v5594, %v5594
  %v5791 = vpack.c.b16 %v5595, %v5595
  %v5792 = vpack.c.b16 %v5596, %v5596
  %v5793 = vpack.c.b16 %v5597, %v5597
  %v5794 = vpack.c.b16 %v5598, %v5598
  %v5795 = vpack.c.b16 %v5599, %v5599
  %v5796 = vpack.c.b16 %v5600, %v5600
  %v5797 = vpack.c.b16 %v5601, %v5601
  %v5798 = vpack.c.b16 %v5602, %v5602
  %v5799 = vpack.c.b16 %v5603, %v5603
  %v5800 = vpack.c.b16 %v5604, %v5604
  %v5801 = vpack.c.b16 %v5605, %v5605
  %v5802 = vpack.c.b16 %v5606, %v5606
  %v5803 = vpack.c.b16 %v5607, %v5607
  %v5804 = vpack.c.b16 %v5608, %v5608
  %v5805 = vpack.c.b16 %v5609, %v5609
  %v5806 = vpack.c.b16 %v5610, %v5610
  %v5807 = vpack.c.b16 %v5611, %v5611
  %v5808 = vpack.c.b16 %v5612, %v5612
  %v5809 = vpack.c.b16 %v5613, %v5613
  %v5810 = vpack.c.b16 %v5614, %v5614
  %v5811 = vpack.c.b16 %v5615, %v5615
  %v5812 = vpack.c.b16 %v5616, %v5616
  %v5813 = vpack.c.b16 %v5617, %v5617
  %v5814 = vpack.c.b16 %v5618, %v5618
  %v5815 = vpack.c.b16 %v5619, %v5619
  %v5816 = vpack.c.b16 %v5620, %v5620
  %v5817 = vpack.c.b16 %v5621, %v5621
  %v5818 = vpack.c.b16 %v5622, %v5622
  %v5819 = vpack.c.b16 %v5623, %v5623
  %v5820 = vpack.c.b16 %v5624, %v5624
  %v5821 = vpack.c.b16 %v5625, %v5625
  %v5822 = vpack.c.b16 %v5626, %v5626
  %v5823 = vpack.c.b16 %v5627, %v5627
  %v5824 = vpack.c.b16 %v5628, %v5628
  %v5825 = vpack.c.b16 %v5629, %v5629
  %v5826 = vpack.c.b16 %v5630, %v5630
  %v5827 = vpack.c.b16 %v5631, %v5631
  %v5828 = vpack.c.b16 %v5632, %v5632
  %v5829 = vpack.c.b16 %v5633, %v5633
  %v5830 = vpack.c.b16 %v5634, %v5634
  %v5831 = vpack.c.b16 %v5635, %v5635
  %v5832 = vpack.c.b16 %v5636, %v5636
  %v5833 = vpack.c.b16 %v5637, %v5637
  %v5834 = vpack.c.b16 %v5638, %v5638
  %v5835 = vpack.c.b16 %v5639, %v5639
  %v5836 = vpack.c.b16 %v5640, %v5640
  %v5837 = vpack.c.b16 %v5641, %v5641
  %v5838 = vpack.c.b16 %v5642, %v5642
  %v5839 = vpack.c.b16 %v5643, %v5643
  %v5840 = vpack.c.b16 %v5644, %v5644
  %v5841 = vpack.c.b16 %v5645, %v5645
  %v5842 = vpack.c.b16 %v5646, %v5646
  %v5843 = vpack.c.b16 %v5647, %v5647
  %v5844 = vpack.c.b16 %v5648, %v5648
  %v5845 = vpack.c.b16 %v5649, %v5649
  %v5846 = vpack.c.b16 %v5650, %v5650
  %v5847 = vpack.c.b16 %v5651, %v5651
  %v5848 = vpack.c.b16 %v5652, %v5652
  %v5849 = vpack.c.b16 %v5653, %v5653
  %v5850 = vpack.c.b16 %v5654, %v5654
  %v5851 = vpack.c.b16 %v5655, %v5655
  %v5852 = vpack.c.b16 %v5656, %v5656
  %v5853 = vpack.c.b16 %v5657, %v5657
  %v5854 = vpack.c.b16 %v5658, %v5658
  %v5855 = vpack.c.b16 %v5659, %v5659
  %v5856 = vpack.c.b16 %v5660, %v5660
  %v5857 = vpack.c.b16 %v5661, %v5661
  %v5858 = vpack.c.b16 %v5662, %v5662
  %v5859 = vpack.c.b16 %v5663, %v5663
  %v5860 = vpack.c.b16 %v5664, %v5664
  %v5861 = vpack.c.b16 %v5665, %v5665
  %v5862 = vpack.c.b16 %v5666, %v5666
  %v5863 = vpack.c.b16 %v5667, %v5667
  %v5864 = vpack.c.b16 %v5668, %v5668
  %v5865 = vpack.c.b16 %v5669, %v5669
  %v5866 = vpack.c.b16 %v5670, %v5670
  %v5867 = vpack.c.b16 %v5671, %v5671
  %v5868 = vpack.c.b16 %v5672, %v5672
  %v5869 = vpack.c.b16 %v5673, %v5673
  %v5870 = vpack.c.b16 %v5674, %v5674
  %v5871 = vpack.c.b16 %v5675, %v5675
  %v5872 = vpack.c.b16 %v5676, %v5676
  %v5873 = vpack.c.b16 %v5677, %v5677
  %v5874 = vpack.c.b16 %v5678, %v5678
  %v5875 = vpack.c.b16 %v5679, %v5679
  %v5876 = vpack.c.b16 %v5680, %v5680
  %v5877 = vpack.c.b16 %v5681, %v5681
  %v5878 = vpack.c.b16 %v5682, %v5682
  %v5879 = vpack.c.b16 %v5683, %v5683
  %v5880 = vpack.c.b16 %v5684, %v5684
  %v5881 = vpack.c.b16 %v5685, %v5685
  %v5882 = vpack.c.b16 %v5686, %v5686
  %v5883 = vpack.c.b16 %v5687, %v5687
  %v5884 = vpack.c.b16 %v5688, %v5688
  %v5885 = vpack.c.b16 %v5689, %v5689
  %v5886 = vpack.c.b16 %v5690, %v5690
  %v5887 = vpack.c.b16 %v5691, %v5691
  %v5888 = vpack.c.b16 %v5692, %v5692
  %v5889 = vpack.c.b16 %v5693, %v5693
  %v5890 = vpack.c.b16 %v5694, %v5694
  %v5891 = vpack.c.b16 %v5695, %v5695
  %v5892 = vpack.c.b16 %v5696, %v5696
  %v5893 = vpack.c.b16 %v5697, %v5697
  %v5894 = vpack.c.b16 %v5698, %v5698
  %v5895 = vpack.c.b16 %v5699, %v5699
  %v5896 = vpack.c.b16 %v5700, %v5700
  %v5897 = vpack.c.b16 %v5701, %v5701
  %v5898 = vpack.c.b16 %v5702, %v5702
  %v5899 = vpack.c.b16 %v5703, %v5703
  %v5900 = vpack.c.b16 %v5704, %v5704
  %v5901 = vpack.c.b16 %v5705, %v5705
  %v5902 = vpack.c.b16 %v5706, %v5706
  %v5903 = vpack.c.b16 %v5707, %v5707
  %v5904 = vpack.c.b16 %v5708, %v5708
  %v5905 = vpack.c.b16 %v5709, %v5709
  %v5906 = vpack.c.b16 %v5710, %v5710
  %v5907 = vpack.c.b16 %v5711, %v5711
  %v5908 = vpack.c.b16 %v5712, %v5712
  %v5909 = vpack.c.b16 %v5713, %v5713
  %v5910 = vpack.c.b16 %v5714, %v5714
  %v5911 = vpack.c.b16 %v5715, %v5715
  %v5912 = vpack.c.b16 %v5716, %v5716
  %v5913 = vpack.c.b16 %v5717, %v5717
  %v5914 = vpack.c.b16 %v5718, %v5718
  %v5915 = vpack.c.b16 %v5719, %v5719
  %v5916 = vpack.c.b16 %v5720, %v5720
  %v5917 = vpack.c.b16 %v5721, %v5721
  %v5918 = vpack.c.b16 %v5722, %v5722
  %v5919 = vpack.c.b16 %v5723, %v5723
  %v5920 = vpack.c.b16 %v5724, %v5724
  %v5921 = vpack.c.b16 %v5725, %v5725
  %v5922 = vpack.c.b16 %v5726, %v5726
  %v5923 = vpack.c.b16 %v5727, %v5727
  %v5924 = vpack.c.b16 %v5728, %v5728
  %v5925 = vpack.c.b16 %v5729, %v5729
  %v5926 = vpack.c.b16 %v5730, %v5730
  %v5927 = vpack.c.b16 %v5731, %v5731
  %v5928 = vpack.c.b16 %v5732, %v5732
  %v5929 = vpack.c.b16 %v5733, %v5733
  %v5930 = vpack.c.b16 %v5734, %v5734
  %v5931 = vpack.c.b16 %v5735, %v5735
  %v5932 = vpack.c.b16 %v5736, %v5736
  %v5933 = vpack.c.b16 %v5737, %v5737
  %v5934 = vpack.c.b16 %v5738, %v5738
  %v5935 = vpack.c.b16 %v5739, %v5739
  %v5936 = vpack.c.b16 %v5740, %v5740
  %v5937 = vpack.c.b16 %v5741, %v5741
  %v5938 = vpack.c.b16 %v5742, %v5742
  %v5939 = vpack.c.b16 %v5743, %v5743
  %v5940 = vpack.c.b16 %v5744, %v5744
  %v5941 = vpack.c.b16 %v5745, %v5745
  %v5942 = vpack.c.b16 %v5746, %v5746
  %v5943 = vpack.c.b16 %v5747, %v5747
  %v5944 = vpack.c.b16 %v5748, %v5748
  %v5945 = vpack.c.b16 %v5749, %v5749
  %v5946 = vpack.c.b16 %v5750, %v5750
  %v5947 = vpack.c.b16 %v5751, %v5751
  %v5948 = vpack.c.b16 %v5752, %v5752
  %v5949 = vpack.c.b16 %v5753, %v5753
  %v5950 = vpack.c.b16 %v5754, %v5754
  %v5951 = vpack.c.b16 %v5755, %v5755
  %v5952 = vpack.c.b16 %v5756, %v5756
  %v5953 = vpack.c.b16 %v5757, %v5757
  %v5954 = vpack.c.b16 %v5758, %v5758
  %v5955 = vpack.c.b16 %v5759, %v5759
  %v5956 = vpack.c.b16 %v5760, %v5760
  %v5957 = vpack.c.b16 %v5761, %v5761
  %v5958 = vpack.c.b16 %v5762, %v5762
  %v5959 = vpack.c.b16 %v5763, %v5763
  %v5960 = vpack.c.b16 %v5764, %v5764
  %v5961 = vpack.c.b16 %v5765, %v5765
  %v5962 = vpack.c.b16 %v5766, %v5766
  %v5963 = vpack.c.b16 %v5767, %v5767
  %v5964 = vpack.c.b16 %v5768, %v5768
  %v5965 = vpack.c.b16 %v5769, %v5769
  %v5966 = vpack.c.b16 %v5770, %v5770
  %v5967 = vpack.c.b16 %v5771, %v5771
  %v5968 = vpack.c.b16 %v5772, %v5772
  %v5969 = vpack.c.b16 %v5773, %v5773
  %v5970 = vpack.c.b16 %v5774, %v5774
  %v5971 = vpack.c.b16 %v5775, %v5775
  %v5972 = vpack.c.b16 %v5776, %v5776
  %v5973 = vpack.c.b16 %v5777, %v5777
  %v5974 = vpack.c.b16 %v5778, %v5778
  %v5975 = vpack.c.b16 %v5779, %v5779
  %v5976 = vpack.c.b16 %v5780, %v5780
  %v5977 = vpack.c.b16 %v5781, %v5781
  %v5978 = vpack.c.b16 %v5782, %v5782
  %v5979 = vpack.c.b16 %v5783, %v5783
  %v5980 = vpack.c.b16 %v5784, %v5784
  %vm6177 = vcmask 257024
  %6178 = vst.msk [vmem:[%s3] sm:$0xf] %vm6177, %v5785
  %6179 = vst.msk [vmem:[%s3 + $0x4] sm:$0xf] %vm6177, %v5786
  %6180 = vst.msk [vmem:[%s3 + $0x8] sm:$0xf] %vm6177, %v5787
  %6181 = vst.msk [vmem:[%s3 + $0xc] sm:$0xf] %vm6177, %v5788
  %6182 = vst.msk [vmem:[%s3 + $0x10] sm:$0xf] %vm6177, %v5789
  %6183 = vst.msk [vmem:[%s3 + $0x14] sm:$0xf] %vm6177, %v5790
  %6184 = vst.msk [vmem:[%s3 + $0x18] sm:$0xf] %vm6177, %v5791
  %6185 = vst.msk [vmem:[%s3 + $0x1c] sm:$0xf] %vm6177, %v5792
  %6186 = vst.msk [vmem:[%s3 + $0x20] sm:$0xf] %vm6177, %v5793
  %6187 = vst.msk [vmem:[%s3 + $0x24] sm:$0xf] %vm6177, %v5794
  %6188 = vst.msk [vmem:[%s3 + $0x28] sm:$0xf] %vm6177, %v5795
  %6189 = vst.msk [vmem:[%s3 + $0x2c] sm:$0xf] %vm6177, %v5796
  %6190 = vst.msk [vmem:[%s3 + $0x30] sm:$0xf] %vm6177, %v5797
  %6191 = vst.msk [vmem:[%s3 + $0x34] sm:$0xf] %vm6177, %v5798
  %6192 = vst.msk [vmem:[%s3 + $0x38] sm:$0xf] %vm6177, %v5799
  %6193 = vst.msk [vmem:[%s3 + $0x3c] sm:$0xf] %vm6177, %v5800
  %6194 = vst.msk [vmem:[%s3 + $0x40] sm:$0xf] %vm6177, %v5801
  %6195 = vst.msk [vmem:[%s3 + $0x44] sm:$0xf] %vm6177, %v5802
  %6196 = vst.msk [vmem:[%s3 + $0x48] sm:$0xf] %vm6177, %v5803
  %6197 = vst.msk [vmem:[%s3 + $0x4c] sm:$0xf] %vm6177, %v5804
  %6198 = vst.msk [vmem:[%s3 + $0x50] sm:$0xf] %vm6177, %v5805
  %6199 = vst.msk [vmem:[%s3 + $0x54] sm:$0xf] %vm6177, %v5806
  %6200 = vst.msk [vmem:[%s3 + $0x58] sm:$0xf] %vm6177, %v5807
  %6201 = vst.msk [vmem:[%s3 + $0x5c] sm:$0xf] %vm6177, %v5808
  %6202 = vst.msk [vmem:[%s3 + $0x60] sm:$0xf] %vm6177, %v5809
  %6203 = vst.msk [vmem:[%s3 + $0x64] sm:$0xf] %vm6177, %v5810
  %6204 = vst.msk [vmem:[%s3 + $0x68] sm:$0xf] %vm6177, %v5811
  %6205 = vst.msk [vmem:[%s3 + $0x6c] sm:$0xf] %vm6177, %v5812
  %6206 = vst.msk [vmem:[%s3 + $0x70] sm:$0xf] %vm6177, %v5813
  %6207 = vst.msk [vmem:[%s3 + $0x74] sm:$0xf] %vm6177, %v5814
  %6208 = vst.msk [vmem:[%s3 + $0x78] sm:$0xf] %vm6177, %v5815
  %6209 = vst.msk [vmem:[%s3 + $0x7c] sm:$0xf] %vm6177, %v5816
  %6210 = vst.msk [vmem:[%s3 + $0x80] sm:$0xf] %vm6177, %v5817
  %6211 = vst.msk [vmem:[%s3 + $0x84] sm:$0xf] %vm6177, %v5818
  %6212 = vst.msk [vmem:[%s3 + $0x88] sm:$0xf] %vm6177, %v5819
  %6213 = vst.msk [vmem:[%s3 + $0x8c] sm:$0xf] %vm6177, %v5820
  %6214 = vst.msk [vmem:[%s3 + $0x90] sm:$0xf] %vm6177, %v5821
  %6215 = vst.msk [vmem:[%s3 + $0x94] sm:$0xf] %vm6177, %v5822
  %6216 = vst.msk [vmem:[%s3 + $0x98] sm:$0xf] %vm6177, %v5823
  %6217 = vst.msk [vmem:[%s3 + $0x9c] sm:$0xf] %vm6177, %v5824
  %6218 = vst.msk [vmem:[%s3 + $0xa0] sm:$0xf] %vm6177, %v5825
  %6219 = vst.msk [vmem:[%s3 + $0xa4] sm:$0xf] %vm6177, %v5826
  %6220 = vst.msk [vmem:[%s3 + $0xa8] sm:$0xf] %vm6177, %v5827
  %6221 = vst.msk [vmem:[%s3 + $0xac] sm:$0xf] %vm6177, %v5828
  %6222 = vst.msk [vmem:[%s3 + $0xb0] sm:$0xf] %vm6177, %v5829
  %6223 = vst.msk [vmem:[%s3 + $0xb4] sm:$0xf] %vm6177, %v5830
  %6224 = vst.msk [vmem:[%s3 + $0xb8] sm:$0xf] %vm6177, %v5831
  %6225 = vst.msk [vmem:[%s3 + $0xbc] sm:$0xf] %vm6177, %v5832
  %6226 = vst.msk [vmem:[%s3 + $0xc0] sm:$0xf] %vm6177, %v5833
  %6227 = vst.msk [vmem:[%s3 + $0xc4] sm:$0xf] %vm6177, %v5834
  %6228 = vst.msk [vmem:[%s3 + $0xc8] sm:$0xf] %vm6177, %v5835
  %6229 = vst.msk [vmem:[%s3 + $0xcc] sm:$0xf] %vm6177, %v5836
  %6230 = vst.msk [vmem:[%s3 + $0xd0] sm:$0xf] %vm6177, %v5837
  %6231 = vst.msk [vmem:[%s3 + $0xd4] sm:$0xf] %vm6177, %v5838
  %6232 = vst.msk [vmem:[%s3 + $0xd8] sm:$0xf] %vm6177, %v5839
  %6233 = vst.msk [vmem:[%s3 + $0xdc] sm:$0xf] %vm6177, %v5840
  %6234 = vst.msk [vmem:[%s3 + $0xe0] sm:$0xf] %vm6177, %v5841
  %6235 = vst.msk [vmem:[%s3 + $0xe4] sm:$0xf] %vm6177, %v5842
  %6236 = vst.msk [vmem:[%s3 + $0xe8] sm:$0xf] %vm6177, %v5843
  %6237 = vst.msk [vmem:[%s3 + $0xec] sm:$0xf] %vm6177, %v5844
  %6238 = vst.msk [vmem:[%s3 + $0xf0] sm:$0xf] %vm6177, %v5845
  %6239 = vst.msk [vmem:[%s3 + $0xf4] sm:$0xf] %vm6177, %v5846
  %6240 = vst.msk [vmem:[%s3 + $0xf8] sm:$0xf] %vm6177, %v5847
  %6241 = vst.msk [vmem:[%s3 + $0xfc] sm:$0xf] %vm6177, %v5848
  %6242 = vst.msk [vmem:[%s3 + $0x100] sm:$0xf] %vm6177, %v5849
  %6243 = vst.msk [vmem:[%s3 + $0x104] sm:$0xf] %vm6177, %v5850
  %6244 = vst.msk [vmem:[%s3 + $0x108] sm:$0xf] %vm6177, %v5851
  %6245 = vst.msk [vmem:[%s3 + $0x10c] sm:$0xf] %vm6177, %v5852
  %6246 = vst.msk [vmem:[%s3 + $0x110] sm:$0xf] %vm6177, %v5853
  %6247 = vst.msk [vmem:[%s3 + $0x114] sm:$0xf] %vm6177, %v5854
  %6248 = vst.msk [vmem:[%s3 + $0x118] sm:$0xf] %vm6177, %v5855
  %6249 = vst.msk [vmem:[%s3 + $0x11c] sm:$0xf] %vm6177, %v5856
  %6250 = vst.msk [vmem:[%s3 + $0x120] sm:$0xf] %vm6177, %v5857
  %6251 = vst.msk [vmem:[%s3 + $0x124] sm:$0xf] %vm6177, %v5858
  %6252 = vst.msk [vmem:[%s3 + $0x128] sm:$0xf] %vm6177, %v5859
  %6253 = vst.msk [vmem:[%s3 + $0x12c] sm:$0xf] %vm6177, %v5860
  %6254 = vst.msk [vmem:[%s3 + $0x130] sm:$0xf] %vm6177, %v5861
  %6255 = vst.msk [vmem:[%s3 + $0x134] sm:$0xf] %vm6177, %v5862
  %6256 = vst.msk [vmem:[%s3 + $0x138] sm:$0xf] %vm6177, %v5863
  %6257 = vst.msk [vmem:[%s3 + $0x13c] sm:$0xf] %vm6177, %v5864
  %6258 = vst.msk [vmem:[%s3 + $0x140] sm:$0xf] %vm6177, %v5865
  %6259 = vst.msk [vmem:[%s3 + $0x144] sm:$0xf] %vm6177, %v5866
  %6260 = vst.msk [vmem:[%s3 + $0x148] sm:$0xf] %vm6177, %v5867
  %6261 = vst.msk [vmem:[%s3 + $0x14c] sm:$0xf] %vm6177, %v5868
  %6262 = vst.msk [vmem:[%s3 + $0x150] sm:$0xf] %vm6177, %v5869
  %6263 = vst.msk [vmem:[%s3 + $0x154] sm:$0xf] %vm6177, %v5870
  %6264 = vst.msk [vmem:[%s3 + $0x158] sm:$0xf] %vm6177, %v5871
  %6265 = vst.msk [vmem:[%s3 + $0x15c] sm:$0xf] %vm6177, %v5872
  %6266 = vst.msk [vmem:[%s3 + $0x160] sm:$0xf] %vm6177, %v5873
  %6267 = vst.msk [vmem:[%s3 + $0x164] sm:$0xf] %vm6177, %v5874
  %6268 = vst.msk [vmem:[%s3 + $0x168] sm:$0xf] %vm6177, %v5875
  %6269 = vst.msk [vmem:[%s3 + $0x16c] sm:$0xf] %vm6177, %v5876
  %6270 = vst.msk [vmem:[%s3 + $0x170] sm:$0xf] %vm6177, %v5877
  %6271 = vst.msk [vmem:[%s3 + $0x174] sm:$0xf] %vm6177, %v5878
  %6272 = vst.msk [vmem:[%s3 + $0x178] sm:$0xf] %vm6177, %v5879
  %6273 = vst.msk [vmem:[%s3 + $0x17c] sm:$0xf] %vm6177, %v5880
  %6274 = vst.msk [vmem:[%s3 + $0x180] sm:$0xf] %vm6177, %v5881
  %6275 = vst.msk [vmem:[%s3 + $0x184] sm:$0xf] %vm6177, %v5882
  %6276 = vst.msk [vmem:[%s3 + $0x188] sm:$0xf] %vm6177, %v5883
  %6277 = vst.msk [vmem:[%s3 + $0x18c] sm:$0xf] %vm6177, %v5884
  %6278 = vst.msk [vmem:[%s3 + $0x190] sm:$0xf] %vm6177, %v5885
  %6279 = vst.msk [vmem:[%s3 + $0x194] sm:$0xf] %vm6177, %v5886
  %6280 = vst.msk [vmem:[%s3 + $0x198] sm:$0xf] %vm6177, %v5887
  %6281 = vst.msk [vmem:[%s3 + $0x19c] sm:$0xf] %vm6177, %v5888
  %6282 = vst.msk [vmem:[%s3 + $0x1a0] sm:$0xf] %vm6177, %v5889
  %6283 = vst.msk [vmem:[%s3 + $0x1a4] sm:$0xf] %vm6177, %v5890
  %6284 = vst.msk [vmem:[%s3 + $0x1a8] sm:$0xf] %vm6177, %v5891
  %6285 = vst.msk [vmem:[%s3 + $0x1ac] sm:$0xf] %vm6177, %v5892
  %6286 = vst.msk [vmem:[%s3 + $0x1b0] sm:$0xf] %vm6177, %v5893
  %6287 = vst.msk [vmem:[%s3 + $0x1b4] sm:$0xf] %vm6177, %v5894
  %6288 = vst.msk [vmem:[%s3 + $0x1b8] sm:$0xf] %vm6177, %v5895
  %6289 = vst.msk [vmem:[%s3 + $0x1bc] sm:$0xf] %vm6177, %v5896
  %6290 = vst.msk [vmem:[%s3 + $0x1c0] sm:$0xf] %vm6177, %v5897
  %6291 = vst.msk [vmem:[%s3 + $0x1c4] sm:$0xf] %vm6177, %v5898
  %6292 = vst.msk [vmem:[%s3 + $0x1c8] sm:$0xf] %vm6177, %v5899
  %6293 = vst.msk [vmem:[%s3 + $0x1cc] sm:$0xf] %vm6177, %v5900
  %6294 = vst.msk [vmem:[%s3 + $0x1d0] sm:$0xf] %vm6177, %v5901
  %6295 = vst.msk [vmem:[%s3 + $0x1d4] sm:$0xf] %vm6177, %v5902
  %6296 = vst.msk [vmem:[%s3 + $0x1d8] sm:$0xf] %vm6177, %v5903
  %6297 = vst.msk [vmem:[%s3 + $0x1dc] sm:$0xf] %vm6177, %v5904
  %6298 = vst.msk [vmem:[%s3 + $0x1e0] sm:$0xf] %vm6177, %v5905
  %6299 = vst.msk [vmem:[%s3 + $0x1e4] sm:$0xf] %vm6177, %v5906
  %6300 = vst.msk [vmem:[%s3 + $0x1e8] sm:$0xf] %vm6177, %v5907
  %6301 = vst.msk [vmem:[%s3 + $0x1ec] sm:$0xf] %vm6177, %v5908
  %6302 = vst.msk [vmem:[%s3 + $0x1f0] sm:$0xf] %vm6177, %v5909
  %6303 = vst.msk [vmem:[%s3 + $0x1f4] sm:$0xf] %vm6177, %v5910
  %6304 = vst.msk [vmem:[%s3 + $0x1f8] sm:$0xf] %vm6177, %v5911
  %6305 = vst.msk [vmem:[%s3 + $0x1fc] sm:$0xf] %vm6177, %v5912
  %6306 = vst.msk [vmem:[%s3 + $0x200] sm:$0xf] %vm6177, %v5913
  %6307 = vst.msk [vmem:[%s3 + $0x204] sm:$0xf] %vm6177, %v5914
  %6308 = vst.msk [vmem:[%s3 + $0x208] sm:$0xf] %vm6177, %v5915
  %6309 = vst.msk [vmem:[%s3 + $0x20c] sm:$0xf] %vm6177, %v5916
  %6310 = vst.msk [vmem:[%s3 + $0x210] sm:$0xf] %vm6177, %v5917
  %6311 = vst.msk [vmem:[%s3 + $0x214] sm:$0xf] %vm6177, %v5918
  %6312 = vst.msk [vmem:[%s3 + $0x218] sm:$0xf] %vm6177, %v5919
  %6313 = vst.msk [vmem:[%s3 + $0x21c] sm:$0xf] %vm6177, %v5920
  %6314 = vst.msk [vmem:[%s3 + $0x220] sm:$0xf] %vm6177, %v5921
  %6315 = vst.msk [vmem:[%s3 + $0x224] sm:$0xf] %vm6177, %v5922
  %6316 = vst.msk [vmem:[%s3 + $0x228] sm:$0xf] %vm6177, %v5923
  %6317 = vst.msk [vmem:[%s3 + $0x22c] sm:$0xf] %vm6177, %v5924
  %6318 = vst.msk [vmem:[%s3 + $0x230] sm:$0xf] %vm6177, %v5925
  %6319 = vst.msk [vmem:[%s3 + $0x234] sm:$0xf] %vm6177, %v5926
  %6320 = vst.msk [vmem:[%s3 + $0x238] sm:$0xf] %vm6177, %v5927
  %6321 = vst.msk [vmem:[%s3 + $0x23c] sm:$0xf] %vm6177, %v5928
  %6322 = vst.msk [vmem:[%s3 + $0x240] sm:$0xf] %vm6177, %v5929
  %6323 = vst.msk [vmem:[%s3 + $0x244] sm:$0xf] %vm6177, %v5930
  %6324 = vst.msk [vmem:[%s3 + $0x248] sm:$0xf] %vm6177, %v5931
  %6325 = vst.msk [vmem:[%s3 + $0x24c] sm:$0xf] %vm6177, %v5932
  %6326 = vst.msk [vmem:[%s3 + $0x250] sm:$0xf] %vm6177, %v5933
  %6327 = vst.msk [vmem:[%s3 + $0x254] sm:$0xf] %vm6177, %v5934
  %6328 = vst.msk [vmem:[%s3 + $0x258] sm:$0xf] %vm6177, %v5935
  %6329 = vst.msk [vmem:[%s3 + $0x25c] sm:$0xf] %vm6177, %v5936
  %6330 = vst.msk [vmem:[%s3 + $0x260] sm:$0xf] %vm6177, %v5937
  %6331 = vst.msk [vmem:[%s3 + $0x264] sm:$0xf] %vm6177, %v5938
  %6332 = vst.msk [vmem:[%s3 + $0x268] sm:$0xf] %vm6177, %v5939
  %6333 = vst.msk [vmem:[%s3 + $0x26c] sm:$0xf] %vm6177, %v5940
  %6334 = vst.msk [vmem:[%s3 + $0x270] sm:$0xf] %vm6177, %v5941
  %6335 = vst.msk [vmem:[%s3 + $0x274] sm:$0xf] %vm6177, %v5942
  %6336 = vst.msk [vmem:[%s3 + $0x278] sm:$0xf] %vm6177, %v5943
  %6337 = vst.msk [vmem:[%s3 + $0x27c] sm:$0xf] %vm6177, %v5944
  %6338 = vst.msk [vmem:[%s3 + $0x280] sm:$0xf] %vm6177, %v5945
  %6339 = vst.msk [vmem:[%s3 + $0x284] sm:$0xf] %vm6177, %v5946
  %6340 = vst.msk [vmem:[%s3 + $0x288] sm:$0xf] %vm6177, %v5947
  %6341 = vst.msk [vmem:[%s3 + $0x28c] sm:$0xf] %vm6177, %v5948
  %6342 = vst.msk [vmem:[%s3 + $0x290] sm:$0xf] %vm6177, %v5949
  %6343 = vst.msk [vmem:[%s3 + $0x294] sm:$0xf] %vm6177, %v5950
  %6344 = vst.msk [vmem:[%s3 + $0x298] sm:$0xf] %vm6177, %v5951
  %6345 = vst.msk [vmem:[%s3 + $0x29c] sm:$0xf] %vm6177, %v5952
  %6346 = vst.msk [vmem:[%s3 + $0x2a0] sm:$0xf] %vm6177, %v5953
  %6347 = vst.msk [vmem:[%s3 + $0x2a4] sm:$0xf] %vm6177, %v5954
  %6348 = vst.msk [vmem:[%s3 + $0x2a8] sm:$0xf] %vm6177, %v5955
  %6349 = vst.msk [vmem:[%s3 + $0x2ac] sm:$0xf] %vm6177, %v5956
  %6350 = vst.msk [vmem:[%s3 + $0x2b0] sm:$0xf] %vm6177, %v5957
  %6351 = vst.msk [vmem:[%s3 + $0x2b4] sm:$0xf] %vm6177, %v5958
  %6352 = vst.msk [vmem:[%s3 + $0x2b8] sm:$0xf] %vm6177, %v5959
  %6353 = vst.msk [vmem:[%s3 + $0x2bc] sm:$0xf] %vm6177, %v5960
  %6354 = vst.msk [vmem:[%s3 + $0x2c0] sm:$0xf] %vm6177, %v5961
  %6355 = vst.msk [vmem:[%s3 + $0x2c4] sm:$0xf] %vm6177, %v5962
  %6356 = vst.msk [vmem:[%s3 + $0x2c8] sm:$0xf] %vm6177, %v5963
  %6357 = vst.msk [vmem:[%s3 + $0x2cc] sm:$0xf] %vm6177, %v5964
  %6358 = vst.msk [vmem:[%s3 + $0x2d0] sm:$0xf] %vm6177, %v5965
  %6359 = vst.msk [vmem:[%s3 + $0x2d4] sm:$0xf] %vm6177, %v5966
  %6360 = vst.msk [vmem:[%s3 + $0x2d8] sm:$0xf] %vm6177, %v5967
  %6361 = vst.msk [vmem:[%s3 + $0x2dc] sm:$0xf] %vm6177, %v5968
  %6362 = vst.msk [vmem:[%s3 + $0x2e0] sm:$0xf] %vm6177, %v5969
  %6363 = vst.msk [vmem:[%s3 + $0x2e4] sm:$0xf] %vm6177, %v5970
  %6364 = vst.msk [vmem:[%s3 + $0x2e8] sm:$0xf] %vm6177, %v5971
  %6365 = vst.msk [vmem:[%s3 + $0x2ec] sm:$0xf] %vm6177, %v5972
  %6366 = vst.msk [vmem:[%s3 + $0x2f0] sm:$0xf] %vm6177, %v5973
  %6367 = vst.msk [vmem:[%s3 + $0x2f4] sm:$0xf] %vm6177, %v5974
  %6368 = vst.msk [vmem:[%s3 + $0x2f8] sm:$0xf] %vm6177, %v5975
  %6369 = vst.msk [vmem:[%s3 + $0x2fc] sm:$0xf] %vm6177, %v5976
  %6370 = vst.msk [vmem:[%s3 + $0x300] sm:$0xf] %vm6177, %v5977
  %6371 = vst.msk [vmem:[%s3 + $0x304] sm:$0xf] %vm6177, %v5978
  %6372 = vst.msk [vmem:[%s3 + $0x308] sm:$0xf] %vm6177, %v5979
  %6373 = vst.msk [vmem:[%s3 + $0x30c] sm:$0xf] %vm6177, %v5980
  // Predicated region
  $region14: #{msn_convnet_forward.4} parent=0 // pred_check
    _
  $region15: #{msn_convnet_forward.4} parent=0 // pred_check_branch
    %6375 = sbr.rel (0) target = $region17
  $region16: #{msn_convnet_forward.4} parent=0 // pred_region
    _
  $region17: #{msn_convnet_forward.4} parent=0 // pred_fallthru
    _
  // Predicated region
  $region18: #{msn_convnet_forward.4} parent=0 // pred_check
    _
  $region19: #{msn_convnet_forward.4} parent=0 // pred_check_branch
    %6377 = sbr.rel (0) target = $region21
  $region20: #{msn_convnet_forward.4} parent=0 // pred_region
    _
  $region21: #{msn_convnet_forward.4} parent=0 // pred_fallthru
    _

// kernel: msn_convnet_forward.5
$region0: #{msn_convnet_forward.5}
  #allocation0 [shape = 'u32[]', space=smem, size = 0x4, offset = 0x4, fixed_abs, tag = 'smem constant byte address 0x4 - core index']
  #allocation1 [shape = 'u32[144,128]{1,0:T(1,128)}', space=vmem, size = 0x12000, scoped, tag = 'internal scratch']
  #allocation2 [shape = 'f32[2,10]{1,0:T(2,128)}', space=vmem, size = 0x400, scoped, tag = 'scratch operand']
  %s0 = inlined_call_operand.vmem [shape: bf16[2,25088], index: 0, kind: input, shape index: {}]
  %s1 = inlined_call_operand.vmem [shape: bf16[25088,10], index: 1, kind: input, shape index: {}]
  %s2 = inlined_call_operand.vmem [shape: f32[1,10], index: 2, kind: input, shape index: {}]
  %s3 = inlined_call_operand.hbm [shape: f32[2,10], index: 3, kind: output, shape index: {}]
  %s4 = sld [smem:[#allocation0]]
  $region53: #{msn_convnet_forward.5} parent=0
    _
  %s6 = ssub.s32 1, %s4
  %s7 = scalar_select 0, %s6, %s4
  $region1: #{msn_convnet_forward.5} parent=0
    #allocation3 [shape = 'u8[1024]{0}', space=vmem, size = 0x400, scoped, tag = 'output window, operand 0, single buffered']
    #allocation4 [shape = 's32[2]{0}', space=sflag, size = 0x8, scoped, tag = 'scoped memory for msn_convnet_forward.5']
    %8 = vsyncpa [#allocation4], 0
    loop: start=0, step=1, limit=6
    $region2: #{msn_convnet_forward.5} parent=1 // loop_pre_header
      _
    $region3: #{msn_convnet_forward.5} parent=1 // loop_header
      %s10 = sphi 0, %s14
      %p11 = scmp.ge.s32.totalorder %s10, 6
      %s20 = sphi 0, %s22
      %s23 = sphi 0, %s20
      %s24 = sphi 0, %s23
      %s40 = sphi 0, %s24
      %s46 = sphi 0, %s48
      %s49 = sphi 0, %s46
      %s50 = sphi 0, %s49
      %s66 = sphi 0, %s50
      %s70 = sphi 0, %s70
      %s72 = sphi 0, %s70
      %s73 = sphi 0, %s72
      %s87 = sphi 0, %s73
      %s91 = sphi 0, %s91
      %s93 = sphi 0, %s91
      %s94 = sphi 0, %s93
      %s108 = sphi 0, %s94
    $region4: #{msn_convnet_forward.5} parent=1 // loop_header_branch
      %13 = sbr.rel (%p11) target = $region8
    $region5: #{msn_convnet_forward.5} parent=1 // loop_body
      %s15 = ssub.s32 %s10, 1
      %s16 = ssub.s32 %s10, 2
      %s17 = sadd.s32 %s10, 1
      %s18 = ssub.s32 %s10, %s17
      %p19 = scmp.eq.s32.totalorder %s18, 0
      %s21 = sadd.s32 %s20, 1
      %s22 = scalar_select %p19, %s20, %s21
      %p25 = pneg %p19
      %p26 = scmp.eq.s32.totalorder %s10, 3
      %p27 = por %p25, %p26
      %p28 = scmp.ne.s32.totalorder %s20, %s23
      %p29 = scmp.eq.s32.totalorder %s10, 0
      %p30 = por %p28, %p29
      %p31 = scmp.ne.s32.totalorder %s20, %s23
      %p32 = scmp.eq.s32.totalorder %s15, 3
      %p33 = por %p31, %p32
      %p34 = scmp.ne.s32.totalorder %s23, %s24
      %p35 = scmp.eq.s32.totalorder %s15, 0
      %p36 = por %p34, %p35
      %p37 = scmp.ne.s32.totalorder %s23, %s24
      %p38 = scmp.eq.s32.totalorder %s16, 3
      %p39 = por %p37, %p38
      %p41 = scmp.ne.s32.totalorder %s24, %s40
      %p42 = scmp.eq.s32.totalorder %s16, 0
      %p43 = por %p41, %p42
      %s44 = ssub.s32 %s10, %s17
      %p45 = scmp.eq.s32.totalorder %s44, 0
      %s47 = sadd.s32 %s46, 1
      %s48 = scalar_select %p45, %s46, %s47
      %p51 = pneg %p45
      %p52 = scmp.eq.s32.totalorder %s10, 3
      %p53 = por %p51, %p52
      %p54 = scmp.ne.s32.totalorder %s46, %s49
      %p55 = scmp.eq.s32.totalorder %s10, 0
      %p56 = por %p54, %p55
      %p57 = scmp.ne.s32.totalorder %s46, %s49
      %p58 = scmp.eq.s32.totalorder %s15, 3
      %p59 = por %p57, %p58
      %p60 = scmp.ne.s32.totalorder %s49, %s50
      %p61 = scmp.eq.s32.totalorder %s15, 0
      %p62 = por %p60, %p61
      %p63 = scmp.ne.s32.totalorder %s49, %s50
      %p64 = scmp.eq.s32.totalorder %s16, 3
      %p65 = por %p63, %p64
      %p67 = scmp.ne.s32.totalorder %s50, %s66
      %p68 = scmp.eq.s32.totalorder %s16, 0
      %p69 = por %p67, %p68
      %s71 = sadd.s32 %s70, 1
      %p74 = scmp.eq.s32.totalorder %s10, 3
      %p75 = scmp.ne.s32.totalorder %s70, %s72
      %p76 = scmp.eq.s32.totalorder %s10, 0
      %p77 = por %p75, %p76
      %p78 = scmp.ne.s32.totalorder %s70, %s72
      %p79 = scmp.eq.s32.totalorder %s15, 3
      %p80 = por %p78, %p79
      %p81 = scmp.ne.s32.totalorder %s72, %s73
      %p82 = scmp.eq.s32.totalorder %s15, 0
      %p83 = por %p81, %p82
      %p84 = scmp.ne.s32.totalorder %s72, %s73
      %p85 = scmp.eq.s32.totalorder %s16, 3
      %p86 = por %p84, %p85
      %p88 = scmp.ne.s32.totalorder %s73, %s87
      %p89 = scmp.eq.s32.totalorder %s16, 0
      %p90 = por %p88, %p89
      %s92 = sadd.s32 %s91, 1
      %p95 = scmp.eq.s32.totalorder %s10, 3
      %p96 = scmp.ne.s32.totalorder %s91, %s93
      %p97 = scmp.eq.s32.totalorder %s10, 0
      %p98 = por %p96, %p97
      %p99 = scmp.ne.s32.totalorder %s91, %s93
      %p100 = scmp.eq.s32.totalorder %s15, 3
      %p101 = por %p99, %p100
      %p102 = scmp.ne.s32.totalorder %s93, %s94
      %p103 = scmp.eq.s32.totalorder %s15, 0
      %p104 = por %p102, %p103
      %p105 = scmp.ne.s32.totalorder %s93, %s94
      %p106 = scmp.eq.s32.totalorder %s16, 3
      %p107 = por %p105, %p106
      %p109 = scmp.ne.s32.totalorder %s94, %s108
      %p110 = scmp.eq.s32.totalorder %s16, 0
      %p111 = por %p109, %p110
      %p112 = scmp.le.s32.totalorder 1, %s10
      %p113 = scmp.lt.s32.totalorder %s10, 5
      %p114 = pnand %p112, %p113
      %p115 = pneg %p114
      // Predicated region
      $region9: #{msn_convnet_forward.5} parent=5 // pred_check
        _
      $region10: #{msn_convnet_forward.5} parent=5 // pred_check_branch
        %117 = sbr.rel (%p114) target = $region12
      $region11: #{msn_convnet_forward.5} parent=5 // pred_region
        %s118 = ssub.s32 %s10, 1
        // Predicated region
        $region13: #{msn_convnet_forward.5} parent=11 // pred_check
          %p119 = pneg %p83
        $region14: #{msn_convnet_forward.5} parent=11 // pred_check_branch
          %121 = sbr.rel (%p119) target = $region16
        $region15: #{msn_convnet_forward.5} parent=11 // pred_region
          _
        $region16: #{msn_convnet_forward.5} parent=11 // pred_fallthru
          _
      $region12: #{msn_convnet_forward.5} parent=5 // pred_fallthru
        _
      %p122 = scmp.lt.s32.totalorder %s10, 4
      // Predicated region
      $region17: #{msn_convnet_forward.5} parent=5 // pred_check
        %p123 = pneg %p122
      $region18: #{msn_convnet_forward.5} parent=5 // pred_check_branch
        %125 = sbr.rel (%p123) target = $region20
      $region19: #{msn_convnet_forward.5} parent=5 // pred_region
        // Predicated region
        $region21: #{msn_convnet_forward.5} parent=19 // pred_check
          %p126 = pneg %p30
        $region22: #{msn_convnet_forward.5} parent=19 // pred_check_branch
          %128 = sbr.rel (%p126) target = $region24
        $region23: #{msn_convnet_forward.5} parent=19 // pred_region
          %s129 = smul.u32 49, %s10
          %p130 = scmp.lt.s32.totalorder %s129, 195
          %s131 = scalar_select %p130, %s129, 195
          %s132 = scalar_lea.vmem %s0, %s131
          %s133 = smul.u32 49, %s10
        $region24: #{msn_convnet_forward.5} parent=19 // pred_fallthru
          _
        // Predicated region
        $region25: #{msn_convnet_forward.5} parent=19 // pred_check
          %p134 = pneg %p56
        $region26: #{msn_convnet_forward.5} parent=19 // pred_check_branch
          %136 = sbr.rel (%p134) target = $region28
        $region27: #{msn_convnet_forward.5} parent=19 // pred_region
          %s137 = smul.u32 784, %s10
          %p138 = scmp.lt.s32.totalorder %s137, 3135
          %s139 = scalar_select %p138, %s137, 3135
          %s140 = smul.addr %s139, 4
          %s141 = scalar_lea.vmem %s1, %s140
          %s142 = smul.u32 784, %s10
        $region28: #{msn_convnet_forward.5} parent=19 // pred_fallthru
          _
      $region20: #{msn_convnet_forward.5} parent=5 // pred_fallthru
        _
      %p143 = scmp.le.s32.totalorder 1, %s10
      %p144 = scmp.lt.s32.totalorder %s10, 5
      %p145 = pnand %p143, %p144
      %p146 = pneg %p145
      // Predicated region
      $region29: #{msn_convnet_forward.5} parent=5 // pred_check
        _
      $region30: #{msn_convnet_forward.5} parent=5 // pred_check_branch
        %148 = sbr.rel (%p145) target = $region32
      $region31: #{msn_convnet_forward.5} parent=5 // pred_region
        %s149 = ssub.s32 %s10, 1
        %s150 = smul.u32 49, %s15
        %p151 = scmp.lt.s32.totalorder %s150, 195
        %s152 = scalar_select %p151, %s150, 195
        %s153 = scalar_lea.vmem %s0, %s152
        %p154 = pneg %p36
        %p155 = pneg %p33
        %s156 = smul.u32 784, %s15
        %p157 = scmp.lt.s32.totalorder %s156, 3135
        %s158 = scalar_select %p157, %s156, 3135
        %s159 = smul.addr %s158, 4
        %s160 = scalar_lea.vmem %s1, %s159
        %p161 = pneg %p62
        %p162 = pneg %p59
        %p163 = pneg %p83
        %p164 = pneg %p80
        %p165 = pneg %p104
        %p166 = pneg %p101
        %s167 = smul.u32 49, %s15
        %p168 = scmp.lt.s32.totalorder %s167, 195
        %s169 = scalar_select %p168, %s167, 195
        %s170 = scalar_lea.vmem %s0, %s169
        %s171 = smul.u32 49, %s15
        %s172 = smul.u32 784, %s15
        %p173 = scmp.lt.s32.totalorder %s172, 3135
        %s174 = scalar_select %p173, %s172, 3135
        %s175 = smul.addr %s174, 4
        %s176 = scalar_lea.vmem %s1, %s175
        %s177 = smul.u32 784, %s15
        %p179 = scmp.eq.s32.totalorder %s15, 0
        // Predicated region
        $region33: #{msn_convnet_forward.5} parent=31 // pred_check
          %p180 = pneg %p179
        $region34: #{msn_convnet_forward.5} parent=31 // pred_check_branch
          %182 = sbr.rel (%p180) target = $region36
        $region35: #{msn_convnet_forward.5} parent=31 // pred_region
          %vm183 = vcmask 74752
          %184 = vst.msk [vmem:[#allocation2] sm:$0x3] %vm183, 0.0
        $region36: #{msn_convnet_forward.5} parent=31 // pred_fallthru
          _
        %v185 = vld [vmem:[#allocation2] sm:$0x3]
        %v186 = vld [vmem:[%s170] sm:$0xff]
        %v187 = vld [vmem:[%s170 + $0x8] sm:$0xff]
        %v188 = vld [vmem:[%s170 + $0x10] sm:$0xff]
        %v189 = vld [vmem:[%s170 + $0x18] sm:$0xff]
        %v190 = vld [vmem:[%s170 + $0x20] sm:$0xff]
        %v191 = vld [vmem:[%s170 + $0x28] sm:$0xff]
        %v192 = vld [vmem:[%s170 + $0x30] sm:$0x1]
        %v193 = vld [vmem:[%s176] sm:$0xf]
        %v194 = vld [vmem:[%s176 + $0x4] sm:$0xf]
        %v195 = vld [vmem:[%s176 + $0x8] sm:$0xf]
        %v196 = vld [vmem:[%s176 + $0xc] sm:$0xf]
        %v197 = vld [vmem:[%s176 + $0x10] sm:$0xf]
        %v198 = vld [vmem:[%s176 + $0x14] sm:$0xf]
        %v199 = vld [vmem:[%s176 + $0x18] sm:$0xf]
        %v200 = vld [vmem:[%s176 + $0x1c] sm:$0xf]
        %v201 = vld [vmem:[%s176 + $0x20] sm:$0xf]
        %v202 = vld [vmem:[%s176 + $0x24] sm:$0xf]
        %v203 = vld [vmem:[%s176 + $0x28] sm:$0xf]
        %v204 = vld [vmem:[%s176 + $0x2c] sm:$0xf]
        %v205 = vld [vmem:[%s176 + $0x30] sm:$0xf]
        %v206 = vld [vmem:[%s176 + $0x34] sm:$0xf]
        %v207 = vld [vmem:[%s176 + $0x38] sm:$0xf]
        %v208 = vld [vmem:[%s176 + $0x3c] sm:$0xf]
        %v209 = vld [vmem:[%s176 + $0x40] sm:$0xf]
        %v210 = vld [vmem:[%s176 + $0x44] sm:$0xf]
        %v211 = vld [vmem:[%s176 + $0x48] sm:$0xf]
        %v212 = vld [vmem:[%s176 + $0x4c] sm:$0xf]
        %v213 = vld [vmem:[%s176 + $0x50] sm:$0xf]
        %v214 = vld [vmem:[%s176 + $0x54] sm:$0xf]
        %v215 = vld [vmem:[%s176 + $0x58] sm:$0xf]
        %v216 = vld [vmem:[%s176 + $0x5c] sm:$0xf]
        %v217 = vld [vmem:[%s176 + $0x60] sm:$0xf]
        %v218 = vld [vmem:[%s176 + $0x64] sm:$0xf]
        %v219 = vld [vmem:[%s176 + $0x68] sm:$0xf]
        %v220 = vld [vmem:[%s176 + $0x6c] sm:$0xf]
        %v221 = vld [vmem:[%s176 + $0x70] sm:$0xf]
        %v222 = vld [vmem:[%s176 + $0x74] sm:$0xf]
        %v223 = vld [vmem:[%s176 + $0x78] sm:$0xf]
        %v224 = vld [vmem:[%s176 + $0x7c] sm:$0xf]
        %v225 = vld [vmem:[%s176 + $0x80] sm:$0xf]
        %v226 = vld [vmem:[%s176 + $0x84] sm:$0xf]
        %v227 = vld [vmem:[%s176 + $0x88] sm:$0xf]
        %v228 = vld [vmem:[%s176 + $0x8c] sm:$0xf]
        %v229 = vld [vmem:[%s176 + $0x90] sm:$0xf]
        %v230 = vld [vmem:[%s176 + $0x94] sm:$0xf]
        %v231 = vld [vmem:[%s176 + $0x98] sm:$0xf]
        %v232 = vld [vmem:[%s176 + $0x9c] sm:$0xf]
        %v233 = vld [vmem:[%s176 + $0xa0] sm:$0xf]
        %v234 = vld [vmem:[%s176 + $0xa4] sm:$0xf]
        %v235 = vld [vmem:[%s176 + $0xa8] sm:$0xf]
        %v236 = vld [vmem:[%s176 + $0xac] sm:$0xf]
        %v237 = vld [vmem:[%s176 + $0xb0] sm:$0xf]
        %v238 = vld [vmem:[%s176 + $0xb4] sm:$0xf]
        %v239 = vld [vmem:[%s176 + $0xb8] sm:$0xf]
        %v240 = vld [vmem:[%s176 + $0xbc] sm:$0xf]
        %v241 = vld [vmem:[%s176 + $0xc0] sm:$0xf]
        %v242 = vld [vmem:[%s176 + $0xc4] sm:$0xf]
        %v243 = vld [vmem:[%s176 + $0xc8] sm:$0xf]
        %v244 = vld [vmem:[%s176 + $0xcc] sm:$0xf]
        %v245 = vld [vmem:[%s176 + $0xd0] sm:$0xf]
        %v246 = vld [vmem:[%s176 + $0xd4] sm:$0xf]
        %v247 = vld [vmem:[%s176 + $0xd8] sm:$0xf]
        %v248 = vld [vmem:[%s176 + $0xdc] sm:$0xf]
        %v249 = vld [vmem:[%s176 + $0xe0] sm:$0xf]
        %v250 = vld [vmem:[%s176 + $0xe4] sm:$0xf]
        %v251 = vld [vmem:[%s176 + $0xe8] sm:$0xf]
        %v252 = vld [vmem:[%s176 + $0xec] sm:$0xf]
        %v253 = vld [vmem:[%s176 + $0xf0] sm:$0xf]
        %v254 = vld [vmem:[%s176 + $0xf4] sm:$0xf]
        %v255 = vld [vmem:[%s176 + $0xf8] sm:$0xf]
        %v256 = vld [vmem:[%s176 + $0xfc] sm:$0xf]
        %v257 = vld [vmem:[%s176 + $0x100] sm:$0xf]
        %v258 = vld [vmem:[%s176 + $0x104] sm:$0xf]
        %v259 = vld [vmem:[%s176 + $0x108] sm:$0xf]
        %v260 = vld [vmem:[%s176 + $0x10c] sm:$0xf]
        %v261 = vld [vmem:[%s176 + $0x110] sm:$0xf]
        %v262 = vld [vmem:[%s176 + $0x114] sm:$0xf]
        %v263 = vld [vmem:[%s176 + $0x118] sm:$0xf]
        %v264 = vld [vmem:[%s176 + $0x11c] sm:$0xf]
        %v265 = vld [vmem:[%s176 + $0x120] sm:$0xf]
        %v266 = vld [vmem:[%s176 + $0x124] sm:$0xf]
        %v267 = vld [vmem:[%s176 + $0x128] sm:$0xf]
        %v268 = vld [vmem:[%s176 + $0x12c] sm:$0xf]
        %v269 = vld [vmem:[%s176 + $0x130] sm:$0xf]
        %v270 = vld [vmem:[%s176 + $0x134] sm:$0xf]
        %v271 = vld [vmem:[%s176 + $0x138] sm:$0xf]
        %v272 = vld [vmem:[%s176 + $0x13c] sm:$0xf]
        %v273 = vld [vmem:[%s176 + $0x140] sm:$0xf]
        %v274 = vld [vmem:[%s176 + $0x144] sm:$0xf]
        %v275 = vld [vmem:[%s176 + $0x148] sm:$0xf]
        %v276 = vld [vmem:[%s176 + $0x14c] sm:$0xf]
        %v277 = vld [vmem:[%s176 + $0x150] sm:$0xf]
        %v278 = vld [vmem:[%s176 + $0x154] sm:$0xf]
        %v279 = vld [vmem:[%s176 + $0x158] sm:$0xf]
        %v280 = vld [vmem:[%s176 + $0x15c] sm:$0xf]
        %v281 = vld [vmem:[%s176 + $0x160] sm:$0xf]
        %v282 = vld [vmem:[%s176 + $0x164] sm:$0xf]
        %v283 = vld [vmem:[%s176 + $0x168] sm:$0xf]
        %v284 = vld [vmem:[%s176 + $0x16c] sm:$0xf]
        %v285 = vld [vmem:[%s176 + $0x170] sm:$0xf]
        %v286 = vld [vmem:[%s176 + $0x174] sm:$0xf]
        %v287 = vld [vmem:[%s176 + $0x178] sm:$0xf]
        %v288 = vld [vmem:[%s176 + $0x17c] sm:$0xf]
        %v289 = vld [vmem:[%s176 + $0x180] sm:$0xf]
        %v290 = vld [vmem:[%s176 + $0x184] sm:$0xf]
        %v291 = vld [vmem:[%s176 + $0x188] sm:$0xf]
        %v292 = vld [vmem:[%s176 + $0x18c] sm:$0xf]
        %v293 = vld [vmem:[%s176 + $0x190] sm:$0xf]
        %v294 = vld [vmem:[%s176 + $0x194] sm:$0xf]
        %v295 = vld [vmem:[%s176 + $0x198] sm:$0xf]
        %v296 = vld [vmem:[%s176 + $0x19c] sm:$0xf]
        %v297 = vld [vmem:[%s176 + $0x1a0] sm:$0xf]
        %v298 = vld [vmem:[%s176 + $0x1a4] sm:$0xf]
        %v299 = vld [vmem:[%s176 + $0x1a8] sm:$0xf]
        %v300 = vld [vmem:[%s176 + $0x1ac] sm:$0xf]
        %v301 = vld [vmem:[%s176 + $0x1b0] sm:$0xf]
        %v302 = vld [vmem:[%s176 + $0x1b4] sm:$0xf]
        %v303 = vld [vmem:[%s176 + $0x1b8] sm:$0xf]
        %v304 = vld [vmem:[%s176 + $0x1bc] sm:$0xf]
        %v305 = vld [vmem:[%s176 + $0x1c0] sm:$0xf]
        %v306 = vld [vmem:[%s176 + $0x1c4] sm:$0xf]
        %v307 = vld [vmem:[%s176 + $0x1c8] sm:$0xf]
        %v308 = vld [vmem:[%s176 + $0x1cc] sm:$0xf]
        %v309 = vld [vmem:[%s176 + $0x1d0] sm:$0xf]
        %v310 = vld [vmem:[%s176 + $0x1d4] sm:$0xf]
        %v311 = vld [vmem:[%s176 + $0x1d8] sm:$0xf]
        %v312 = vld [vmem:[%s176 + $0x1dc] sm:$0xf]
        %v313 = vld [vmem:[%s176 + $0x1e0] sm:$0xf]
        %v314 = vld [vmem:[%s176 + $0x1e4] sm:$0xf]
        %v315 = vld [vmem:[%s176 + $0x1e8] sm:$0xf]
        %v316 = vld [vmem:[%s176 + $0x1ec] sm:$0xf]
        %v317 = vld [vmem:[%s176 + $0x1f0] sm:$0xf]
        %v318 = vld [vmem:[%s176 + $0x1f4] sm:$0xf]
        %v319 = vld [vmem:[%s176 + $0x1f8] sm:$0xf]
        %v320 = vld [vmem:[%s176 + $0x1fc] sm:$0xf]
        %v321 = vld [vmem:[%s176 + $0x200] sm:$0xf]
        %v322 = vld [vmem:[%s176 + $0x204] sm:$0xf]
        %v323 = vld [vmem:[%s176 + $0x208] sm:$0xf]
        %v324 = vld [vmem:[%s176 + $0x20c] sm:$0xf]
        %v325 = vld [vmem:[%s176 + $0x210] sm:$0xf]
        %v326 = vld [vmem:[%s176 + $0x214] sm:$0xf]
        %v327 = vld [vmem:[%s176 + $0x218] sm:$0xf]
        %v328 = vld [vmem:[%s176 + $0x21c] sm:$0xf]
        %v329 = vld [vmem:[%s176 + $0x220] sm:$0xf]
        %v330 = vld [vmem:[%s176 + $0x224] sm:$0xf]
        %v331 = vld [vmem:[%s176 + $0x228] sm:$0xf]
        %v332 = vld [vmem:[%s176 + $0x22c] sm:$0xf]
        %v333 = vld [vmem:[%s176 + $0x230] sm:$0xf]
        %v334 = vld [vmem:[%s176 + $0x234] sm:$0xf]
        %v335 = vld [vmem:[%s176 + $0x238] sm:$0xf]
        %v336 = vld [vmem:[%s176 + $0x23c] sm:$0xf]
        %v337 = vld [vmem:[%s176 + $0x240] sm:$0xf]
        %v338 = vld [vmem:[%s176 + $0x244] sm:$0xf]
        %v339 = vld [vmem:[%s176 + $0x248] sm:$0xf]
        %v340 = vld [vmem:[%s176 + $0x24c] sm:$0xf]
        %v341 = vld [vmem:[%s176 + $0x250] sm:$0xf]
        %v342 = vld [vmem:[%s176 + $0x254] sm:$0xf]
        %v343 = vld [vmem:[%s176 + $0x258] sm:$0xf]
        %v344 = vld [vmem:[%s176 + $0x25c] sm:$0xf]
        %v345 = vld [vmem:[%s176 + $0x260] sm:$0xf]
        %v346 = vld [vmem:[%s176 + $0x264] sm:$0xf]
        %v347 = vld [vmem:[%s176 + $0x268] sm:$0xf]
        %v348 = vld [vmem:[%s176 + $0x26c] sm:$0xf]
        %v349 = vld [vmem:[%s176 + $0x270] sm:$0xf]
        %v350 = vld [vmem:[%s176 + $0x274] sm:$0xf]
        %v351 = vld [vmem:[%s176 + $0x278] sm:$0xf]
        %v352 = vld [vmem:[%s176 + $0x27c] sm:$0xf]
        %v353 = vld [vmem:[%s176 + $0x280] sm:$0xf]
        %v354 = vld [vmem:[%s176 + $0x284] sm:$0xf]
        %v355 = vld [vmem:[%s176 + $0x288] sm:$0xf]
        %v356 = vld [vmem:[%s176 + $0x28c] sm:$0xf]
        %v357 = vld [vmem:[%s176 + $0x290] sm:$0xf]
        %v358 = vld [vmem:[%s176 + $0x294] sm:$0xf]
        %v359 = vld [vmem:[%s176 + $0x298] sm:$0xf]
        %v360 = vld [vmem:[%s176 + $0x29c] sm:$0xf]
        %v361 = vld [vmem:[%s176 + $0x2a0] sm:$0xf]
        %v362 = vld [vmem:[%s176 + $0x2a4] sm:$0xf]
        %v363 = vld [vmem:[%s176 + $0x2a8] sm:$0xf]
        %v364 = vld [vmem:[%s176 + $0x2ac] sm:$0xf]
        %v365 = vld [vmem:[%s176 + $0x2b0] sm:$0xf]
        %v366 = vld [vmem:[%s176 + $0x2b4] sm:$0xf]
        %v367 = vld [vmem:[%s176 + $0x2b8] sm:$0xf]
        %v368 = vld [vmem:[%s176 + $0x2bc] sm:$0xf]
        %v369 = vld [vmem:[%s176 + $0x2c0] sm:$0xf]
        %v370 = vld [vmem:[%s176 + $0x2c4] sm:$0xf]
        %v371 = vld [vmem:[%s176 + $0x2c8] sm:$0xf]
        %v372 = vld [vmem:[%s176 + $0x2cc] sm:$0xf]
        %v373 = vld [vmem:[%s176 + $0x2d0] sm:$0xf]
        %v374 = vld [vmem:[%s176 + $0x2d4] sm:$0xf]
        %v375 = vld [vmem:[%s176 + $0x2d8] sm:$0xf]
        %v376 = vld [vmem:[%s176 + $0x2dc] sm:$0xf]
        %v377 = vld [vmem:[%s176 + $0x2e0] sm:$0xf]
        %v378 = vld [vmem:[%s176 + $0x2e4] sm:$0xf]
        %v379 = vld [vmem:[%s176 + $0x2e8] sm:$0xf]
        %v380 = vld [vmem:[%s176 + $0x2ec] sm:$0xf]
        %v381 = vld [vmem:[%s176 + $0x2f0] sm:$0xf]
        %v382 = vld [vmem:[%s176 + $0x2f4] sm:$0xf]
        %v383 = vld [vmem:[%s176 + $0x2f8] sm:$0xf]
        %v384 = vld [vmem:[%s176 + $0x2fc] sm:$0xf]
        %v385 = vld [vmem:[%s176 + $0x300] sm:$0xf]
        %v386 = vld [vmem:[%s176 + $0x304] sm:$0xf]
        %v387 = vld [vmem:[%s176 + $0x308] sm:$0xf]
        %v388 = vld [vmem:[%s176 + $0x30c] sm:$0xf]
        %v389 = vld [vmem:[%s176 + $0x310] sm:$0xf]
        %v390 = vld [vmem:[%s176 + $0x314] sm:$0xf]
        %v391 = vld [vmem:[%s176 + $0x318] sm:$0xf]
        %v392 = vld [vmem:[%s176 + $0x31c] sm:$0xf]
        %v393 = vld [vmem:[%s176 + $0x320] sm:$0xf]
        %v394 = vld [vmem:[%s176 + $0x324] sm:$0xf]
        %v395 = vld [vmem:[%s176 + $0x328] sm:$0xf]
        %v396 = vld [vmem:[%s176 + $0x32c] sm:$0xf]
        %v397 = vld [vmem:[%s176 + $0x330] sm:$0xf]
        %v398 = vld [vmem:[%s176 + $0x334] sm:$0xf]
        %v399 = vld [vmem:[%s176 + $0x338] sm:$0xf]
        %v400 = vld [vmem:[%s176 + $0x33c] sm:$0xf]
        %v401 = vld [vmem:[%s176 + $0x340] sm:$0xf]
        %v402 = vld [vmem:[%s176 + $0x344] sm:$0xf]
        %v403 = vld [vmem:[%s176 + $0x348] sm:$0xf]
        %v404 = vld [vmem:[%s176 + $0x34c] sm:$0xf]
        %v405 = vld [vmem:[%s176 + $0x350] sm:$0xf]
        %v406 = vld [vmem:[%s176 + $0x354] sm:$0xf]
        %v407 = vld [vmem:[%s176 + $0x358] sm:$0xf]
        %v408 = vld [vmem:[%s176 + $0x35c] sm:$0xf]
        %v409 = vld [vmem:[%s176 + $0x360] sm:$0xf]
        %v410 = vld [vmem:[%s176 + $0x364] sm:$0xf]
        %v411 = vld [vmem:[%s176 + $0x368] sm:$0xf]
        %v412 = vld [vmem:[%s176 + $0x36c] sm:$0xf]
        %v413 = vld [vmem:[%s176 + $0x370] sm:$0xf]
        %v414 = vld [vmem:[%s176 + $0x374] sm:$0xf]
        %v415 = vld [vmem:[%s176 + $0x378] sm:$0xf]
        %v416 = vld [vmem:[%s176 + $0x37c] sm:$0xf]
        %v417 = vld [vmem:[%s176 + $0x380] sm:$0xf]
        %v418 = vld [vmem:[%s176 + $0x384] sm:$0xf]
        %v419 = vld [vmem:[%s176 + $0x388] sm:$0xf]
        %v420 = vld [vmem:[%s176 + $0x38c] sm:$0xf]
        %v421 = vld [vmem:[%s176 + $0x390] sm:$0xf]
        %v422 = vld [vmem:[%s176 + $0x394] sm:$0xf]
        %v423 = vld [vmem:[%s176 + $0x398] sm:$0xf]
        %v424 = vld [vmem:[%s176 + $0x39c] sm:$0xf]
        %v425 = vld [vmem:[%s176 + $0x3a0] sm:$0xf]
        %v426 = vld [vmem:[%s176 + $0x3a4] sm:$0xf]
        %v427 = vld [vmem:[%s176 + $0x3a8] sm:$0xf]
        %v428 = vld [vmem:[%s176 + $0x3ac] sm:$0xf]
        %v429 = vld [vmem:[%s176 + $0x3b0] sm:$0xf]
        %v430 = vld [vmem:[%s176 + $0x3b4] sm:$0xf]
        %v431 = vld [vmem:[%s176 + $0x3b8] sm:$0xf]
        %v432 = vld [vmem:[%s176 + $0x3bc] sm:$0xf]
        %v433 = vld [vmem:[%s176 + $0x3c0] sm:$0xf]
        %v434 = vld [vmem:[%s176 + $0x3c4] sm:$0xf]
        %v435 = vld [vmem:[%s176 + $0x3c8] sm:$0xf]
        %v436 = vld [vmem:[%s176 + $0x3cc] sm:$0xf]
        %v437 = vld [vmem:[%s176 + $0x3d0] sm:$0xf]
        %v438 = vld [vmem:[%s176 + $0x3d4] sm:$0xf]
        %v439 = vld [vmem:[%s176 + $0x3d8] sm:$0xf]
        %v440 = vld [vmem:[%s176 + $0x3dc] sm:$0xf]
        %v441 = vld [vmem:[%s176 + $0x3e0] sm:$0xf]
        %v442 = vld [vmem:[%s176 + $0x3e4] sm:$0xf]
        %v443 = vld [vmem:[%s176 + $0x3e8] sm:$0xf]
        %v444 = vld [vmem:[%s176 + $0x3ec] sm:$0xf]
        %v445 = vld [vmem:[%s176 + $0x3f0] sm:$0xf]
        %v446 = vld [vmem:[%s176 + $0x3f4] sm:$0xf]
        %v447 = vld [vmem:[%s176 + $0x3f8] sm:$0xf]
        %v448 = vld [vmem:[%s176 + $0x3fc] sm:$0xf]
        %v449 = vld [vmem:[%s176 + $0x400] sm:$0xf]
        %v450 = vld [vmem:[%s176 + $0x404] sm:$0xf]
        %v451 = vld [vmem:[%s176 + $0x408] sm:$0xf]
        %v452 = vld [vmem:[%s176 + $0x40c] sm:$0xf]
        %v453 = vld [vmem:[%s176 + $0x410] sm:$0xf]
        %v454 = vld [vmem:[%s176 + $0x414] sm:$0xf]
        %v455 = vld [vmem:[%s176 + $0x418] sm:$0xf]
        %v456 = vld [vmem:[%s176 + $0x41c] sm:$0xf]
        %v457 = vld [vmem:[%s176 + $0x420] sm:$0xf]
        %v458 = vld [vmem:[%s176 + $0x424] sm:$0xf]
        %v459 = vld [vmem:[%s176 + $0x428] sm:$0xf]
        %v460 = vld [vmem:[%s176 + $0x42c] sm:$0xf]
        %v461 = vld [vmem:[%s176 + $0x430] sm:$0xf]
        %v462 = vld [vmem:[%s176 + $0x434] sm:$0xf]
        %v463 = vld [vmem:[%s176 + $0x438] sm:$0xf]
        %v464 = vld [vmem:[%s176 + $0x43c] sm:$0xf]
        %v465 = vld [vmem:[%s176 + $0x440] sm:$0xf]
        %v466 = vld [vmem:[%s176 + $0x444] sm:$0xf]
        %v467 = vld [vmem:[%s176 + $0x448] sm:$0xf]
        %v468 = vld [vmem:[%s176 + $0x44c] sm:$0xf]
        %v469 = vld [vmem:[%s176 + $0x450] sm:$0xf]
        %v470 = vld [vmem:[%s176 + $0x454] sm:$0xf]
        %v471 = vld [vmem:[%s176 + $0x458] sm:$0xf]
        %v472 = vld [vmem:[%s176 + $0x45c] sm:$0xf]
        %v473 = vld [vmem:[%s176 + $0x460] sm:$0xf]
        %v474 = vld [vmem:[%s176 + $0x464] sm:$0xf]
        %v475 = vld [vmem:[%s176 + $0x468] sm:$0xf]
        %v476 = vld [vmem:[%s176 + $0x46c] sm:$0xf]
        %v477 = vld [vmem:[%s176 + $0x470] sm:$0xf]
        %v478 = vld [vmem:[%s176 + $0x474] sm:$0xf]
        %v479 = vld [vmem:[%s176 + $0x478] sm:$0xf]
        %v480 = vld [vmem:[%s176 + $0x47c] sm:$0xf]
        %v481 = vld [vmem:[%s176 + $0x480] sm:$0xf]
        %v482 = vld [vmem:[%s176 + $0x484] sm:$0xf]
        %v483 = vld [vmem:[%s176 + $0x488] sm:$0xf]
        %v484 = vld [vmem:[%s176 + $0x48c] sm:$0xf]
        %v485 = vld [vmem:[%s176 + $0x490] sm:$0xf]
        %v486 = vld [vmem:[%s176 + $0x494] sm:$0xf]
        %v487 = vld [vmem:[%s176 + $0x498] sm:$0xf]
        %v488 = vld [vmem:[%s176 + $0x49c] sm:$0xf]
        %v489 = vld [vmem:[%s176 + $0x4a0] sm:$0xf]
        %v490 = vld [vmem:[%s176 + $0x4a4] sm:$0xf]
        %v491 = vld [vmem:[%s176 + $0x4a8] sm:$0xf]
        %v492 = vld [vmem:[%s176 + $0x4ac] sm:$0xf]
        %v493 = vld [vmem:[%s176 + $0x4b0] sm:$0xf]
        %v494 = vld [vmem:[%s176 + $0x4b4] sm:$0xf]
        %v495 = vld [vmem:[%s176 + $0x4b8] sm:$0xf]
        %v496 = vld [vmem:[%s176 + $0x4bc] sm:$0xf]
        %v497 = vld [vmem:[%s176 + $0x4c0] sm:$0xf]
        %v498 = vld [vmem:[%s176 + $0x4c4] sm:$0xf]
        %v499 = vld [vmem:[%s176 + $0x4c8] sm:$0xf]
        %v500 = vld [vmem:[%s176 + $0x4cc] sm:$0xf]
        %v501 = vld [vmem:[%s176 + $0x4d0] sm:$0xf]
        %v502 = vld [vmem:[%s176 + $0x4d4] sm:$0xf]
        %v503 = vld [vmem:[%s176 + $0x4d8] sm:$0xf]
        %v504 = vld [vmem:[%s176 + $0x4dc] sm:$0xf]
        %v505 = vld [vmem:[%s176 + $0x4e0] sm:$0xf]
        %v506 = vld [vmem:[%s176 + $0x4e4] sm:$0xf]
        %v507 = vld [vmem:[%s176 + $0x4e8] sm:$0xf]
        %v508 = vld [vmem:[%s176 + $0x4ec] sm:$0xf]
        %v509 = vld [vmem:[%s176 + $0x4f0] sm:$0xf]
        %v510 = vld [vmem:[%s176 + $0x4f4] sm:$0xf]
        %v511 = vld [vmem:[%s176 + $0x4f8] sm:$0xf]
        %v512 = vld [vmem:[%s176 + $0x4fc] sm:$0xf]
        %v513 = vld [vmem:[%s176 + $0x500] sm:$0xf]
        %v514 = vld [vmem:[%s176 + $0x504] sm:$0xf]
        %v515 = vld [vmem:[%s176 + $0x508] sm:$0xf]
        %v516 = vld [vmem:[%s176 + $0x50c] sm:$0xf]
        %v517 = vld [vmem:[%s176 + $0x510] sm:$0xf]
        %v518 = vld [vmem:[%s176 + $0x514] sm:$0xf]
        %v519 = vld [vmem:[%s176 + $0x518] sm:$0xf]
        %v520 = vld [vmem:[%s176 + $0x51c] sm:$0xf]
        %v521 = vld [vmem:[%s176 + $0x520] sm:$0xf]
        %v522 = vld [vmem:[%s176 + $0x524] sm:$0xf]
        %v523 = vld [vmem:[%s176 + $0x528] sm:$0xf]
        %v524 = vld [vmem:[%s176 + $0x52c] sm:$0xf]
        %v525 = vld [vmem:[%s176 + $0x530] sm:$0xf]
        %v526 = vld [vmem:[%s176 + $0x534] sm:$0xf]
        %v527 = vld [vmem:[%s176 + $0x538] sm:$0xf]
        %v528 = vld [vmem:[%s176 + $0x53c] sm:$0xf]
        %v529 = vld [vmem:[%s176 + $0x540] sm:$0xf]
        %v530 = vld [vmem:[%s176 + $0x544] sm:$0xf]
        %v531 = vld [vmem:[%s176 + $0x548] sm:$0xf]
        %v532 = vld [vmem:[%s176 + $0x54c] sm:$0xf]
        %v533 = vld [vmem:[%s176 + $0x550] sm:$0xf]
        %v534 = vld [vmem:[%s176 + $0x554] sm:$0xf]
        %v535 = vld [vmem:[%s176 + $0x558] sm:$0xf]
        %v536 = vld [vmem:[%s176 + $0x55c] sm:$0xf]
        %v537 = vld [vmem:[%s176 + $0x560] sm:$0xf]
        %v538 = vld [vmem:[%s176 + $0x564] sm:$0xf]
        %v539 = vld [vmem:[%s176 + $0x568] sm:$0xf]
        %v540 = vld [vmem:[%s176 + $0x56c] sm:$0xf]
        %v541 = vld [vmem:[%s176 + $0x570] sm:$0xf]
        %v542 = vld [vmem:[%s176 + $0x574] sm:$0xf]
        %v543 = vld [vmem:[%s176 + $0x578] sm:$0xf]
        %v544 = vld [vmem:[%s176 + $0x57c] sm:$0xf]
        %v545 = vld [vmem:[%s176 + $0x580] sm:$0xf]
        %v546 = vld [vmem:[%s176 + $0x584] sm:$0xf]
        %v547 = vld [vmem:[%s176 + $0x588] sm:$0xf]
        %v548 = vld [vmem:[%s176 + $0x58c] sm:$0xf]
        %v549 = vld [vmem:[%s176 + $0x590] sm:$0xf]
        %v550 = vld [vmem:[%s176 + $0x594] sm:$0xf]
        %v551 = vld [vmem:[%s176 + $0x598] sm:$0xf]
        %v552 = vld [vmem:[%s176 + $0x59c] sm:$0xf]
        %v553 = vld [vmem:[%s176 + $0x5a0] sm:$0xf]
        %v554 = vld [vmem:[%s176 + $0x5a4] sm:$0xf]
        %v555 = vld [vmem:[%s176 + $0x5a8] sm:$0xf]
        %v556 = vld [vmem:[%s176 + $0x5ac] sm:$0xf]
        %v557 = vld [vmem:[%s176 + $0x5b0] sm:$0xf]
        %v558 = vld [vmem:[%s176 + $0x5b4] sm:$0xf]
        %v559 = vld [vmem:[%s176 + $0x5b8] sm:$0xf]
        %v560 = vld [vmem:[%s176 + $0x5bc] sm:$0xf]
        %v561 = vld [vmem:[%s176 + $0x5c0] sm:$0xf]
        %v562 = vld [vmem:[%s176 + $0x5c4] sm:$0xf]
        %v563 = vld [vmem:[%s176 + $0x5c8] sm:$0xf]
        %v564 = vld [vmem:[%s176 + $0x5cc] sm:$0xf]
        %v565 = vld [vmem:[%s176 + $0x5d0] sm:$0xf]
        %v566 = vld [vmem:[%s176 + $0x5d4] sm:$0xf]
        %v567 = vld [vmem:[%s176 + $0x5d8] sm:$0xf]
        %v568 = vld [vmem:[%s176 + $0x5dc] sm:$0xf]
        %v569 = vld [vmem:[%s176 + $0x5e0] sm:$0xf]
        %v570 = vld [vmem:[%s176 + $0x5e4] sm:$0xf]
        %v571 = vld [vmem:[%s176 + $0x5e8] sm:$0xf]
        %v572 = vld [vmem:[%s176 + $0x5ec] sm:$0xf]
        %v573 = vld [vmem:[%s176 + $0x5f0] sm:$0xf]
        %v574 = vld [vmem:[%s176 + $0x5f4] sm:$0xf]
        %v575 = vld [vmem:[%s176 + $0x5f8] sm:$0xf]
        %v576 = vld [vmem:[%s176 + $0x5fc] sm:$0xf]
        %v577 = vld [vmem:[%s176 + $0x600] sm:$0xf]
        %v578 = vld [vmem:[%s176 + $0x604] sm:$0xf]
        %v579 = vld [vmem:[%s176 + $0x608] sm:$0xf]
        %v580 = vld [vmem:[%s176 + $0x60c] sm:$0xf]
        %v581 = vld [vmem:[%s176 + $0x610] sm:$0xf]
        %v582 = vld [vmem:[%s176 + $0x614] sm:$0xf]
        %v583 = vld [vmem:[%s176 + $0x618] sm:$0xf]
        %v584 = vld [vmem:[%s176 + $0x61c] sm:$0xf]
        %v585 = vld [vmem:[%s176 + $0x620] sm:$0xf]
        %v586 = vld [vmem:[%s176 + $0x624] sm:$0xf]
        %v587 = vld [vmem:[%s176 + $0x628] sm:$0xf]
        %v588 = vld [vmem:[%s176 + $0x62c] sm:$0xf]
        %v589 = vld [vmem:[%s176 + $0x630] sm:$0xf]
        %v590 = vld [vmem:[%s176 + $0x634] sm:$0xf]
        %v591 = vld [vmem:[%s176 + $0x638] sm:$0xf]
        %v592 = vld [vmem:[%s176 + $0x63c] sm:$0xf]
        %v593 = vld [vmem:[%s176 + $0x640] sm:$0xf]
        %v594 = vld [vmem:[%s176 + $0x644] sm:$0xf]
        %v595 = vld [vmem:[%s176 + $0x648] sm:$0xf]
        %v596 = vld [vmem:[%s176 + $0x64c] sm:$0xf]
        %v597 = vld [vmem:[%s176 + $0x650] sm:$0xf]
        %v598 = vld [vmem:[%s176 + $0x654] sm:$0xf]
        %v599 = vld [vmem:[%s176 + $0x658] sm:$0xf]
        %v600 = vld [vmem:[%s176 + $0x65c] sm:$0xf]
        %v601 = vld [vmem:[%s176 + $0x660] sm:$0xf]
        %v602 = vld [vmem:[%s176 + $0x664] sm:$0xf]
        %v603 = vld [vmem:[%s176 + $0x668] sm:$0xf]
        %v604 = vld [vmem:[%s176 + $0x66c] sm:$0xf]
        %v605 = vld [vmem:[%s176 + $0x670] sm:$0xf]
        %v606 = vld [vmem:[%s176 + $0x674] sm:$0xf]
        %v607 = vld [vmem:[%s176 + $0x678] sm:$0xf]
        %v608 = vld [vmem:[%s176 + $0x67c] sm:$0xf]
        %v609 = vld [vmem:[%s176 + $0x680] sm:$0xf]
        %v610 = vld [vmem:[%s176 + $0x684] sm:$0xf]
        %v611 = vld [vmem:[%s176 + $0x688] sm:$0xf]
        %v612 = vld [vmem:[%s176 + $0x68c] sm:$0xf]
        %v613 = vld [vmem:[%s176 + $0x690] sm:$0xf]
        %v614 = vld [vmem:[%s176 + $0x694] sm:$0xf]
        %v615 = vld [vmem:[%s176 + $0x698] sm:$0xf]
        %v616 = vld [vmem:[%s176 + $0x69c] sm:$0xf]
        %v617 = vld [vmem:[%s176 + $0x6a0] sm:$0xf]
        %v618 = vld [vmem:[%s176 + $0x6a4] sm:$0xf]
        %v619 = vld [vmem:[%s176 + $0x6a8] sm:$0xf]
        %v620 = vld [vmem:[%s176 + $0x6ac] sm:$0xf]
        %v621 = vld [vmem:[%s176 + $0x6b0] sm:$0xf]
        %v622 = vld [vmem:[%s176 + $0x6b4] sm:$0xf]
        %v623 = vld [vmem:[%s176 + $0x6b8] sm:$0xf]
        %v624 = vld [vmem:[%s176 + $0x6bc] sm:$0xf]
        %v625 = vld [vmem:[%s176 + $0x6c0] sm:$0xf]
        %v626 = vld [vmem:[%s176 + $0x6c4] sm:$0xf]
        %v627 = vld [vmem:[%s176 + $0x6c8] sm:$0xf]
        %v628 = vld [vmem:[%s176 + $0x6cc] sm:$0xf]
        %v629 = vld [vmem:[%s176 + $0x6d0] sm:$0xf]
        %v630 = vld [vmem:[%s176 + $0x6d4] sm:$0xf]
        %v631 = vld [vmem:[%s176 + $0x6d8] sm:$0xf]
        %v632 = vld [vmem:[%s176 + $0x6dc] sm:$0xf]
        %v633 = vld [vmem:[%s176 + $0x6e0] sm:$0xf]
        %v634 = vld [vmem:[%s176 + $0x6e4] sm:$0xf]
        %v635 = vld [vmem:[%s176 + $0x6e8] sm:$0xf]
        %v636 = vld [vmem:[%s176 + $0x6ec] sm:$0xf]
        %v637 = vld [vmem:[%s176 + $0x6f0] sm:$0xf]
        %v638 = vld [vmem:[%s176 + $0x6f4] sm:$0xf]
        %v639 = vld [vmem:[%s176 + $0x6f8] sm:$0xf]
        %v640 = vld [vmem:[%s176 + $0x6fc] sm:$0xf]
        %v641 = vld [vmem:[%s176 + $0x700] sm:$0xf]
        %v642 = vld [vmem:[%s176 + $0x704] sm:$0xf]
        %v643 = vld [vmem:[%s176 + $0x708] sm:$0xf]
        %v644 = vld [vmem:[%s176 + $0x70c] sm:$0xf]
        %v645 = vld [vmem:[%s176 + $0x710] sm:$0xf]
        %v646 = vld [vmem:[%s176 + $0x714] sm:$0xf]
        %v647 = vld [vmem:[%s176 + $0x718] sm:$0xf]
        %v648 = vld [vmem:[%s176 + $0x71c] sm:$0xf]
        %v649 = vld [vmem:[%s176 + $0x720] sm:$0xf]
        %v650 = vld [vmem:[%s176 + $0x724] sm:$0xf]
        %v651 = vld [vmem:[%s176 + $0x728] sm:$0xf]
        %v652 = vld [vmem:[%s176 + $0x72c] sm:$0xf]
        %v653 = vld [vmem:[%s176 + $0x730] sm:$0xf]
        %v654 = vld [vmem:[%s176 + $0x734] sm:$0xf]
        %v655 = vld [vmem:[%s176 + $0x738] sm:$0xf]
        %v656 = vld [vmem:[%s176 + $0x73c] sm:$0xf]
        %v657 = vld [vmem:[%s176 + $0x740] sm:$0xf]
        %v658 = vld [vmem:[%s176 + $0x744] sm:$0xf]
        %v659 = vld [vmem:[%s176 + $0x748] sm:$0xf]
        %v660 = vld [vmem:[%s176 + $0x74c] sm:$0xf]
        %v661 = vld [vmem:[%s176 + $0x750] sm:$0xf]
        %v662 = vld [vmem:[%s176 + $0x754] sm:$0xf]
        %v663 = vld [vmem:[%s176 + $0x758] sm:$0xf]
        %v664 = vld [vmem:[%s176 + $0x75c] sm:$0xf]
        %v665 = vld [vmem:[%s176 + $0x760] sm:$0xf]
        %v666 = vld [vmem:[%s176 + $0x764] sm:$0xf]
        %v667 = vld [vmem:[%s176 + $0x768] sm:$0xf]
        %v668 = vld [vmem:[%s176 + $0x76c] sm:$0xf]
        %v669 = vld [vmem:[%s176 + $0x770] sm:$0xf]
        %v670 = vld [vmem:[%s176 + $0x774] sm:$0xf]
        %v671 = vld [vmem:[%s176 + $0x778] sm:$0xf]
        %v672 = vld [vmem:[%s176 + $0x77c] sm:$0xf]
        %v673 = vld [vmem:[%s176 + $0x780] sm:$0xf]
        %v674 = vld [vmem:[%s176 + $0x784] sm:$0xf]
        %v675 = vld [vmem:[%s176 + $0x788] sm:$0xf]
        %v676 = vld [vmem:[%s176 + $0x78c] sm:$0xf]
        %v677 = vld [vmem:[%s176 + $0x790] sm:$0xf]
        %v678 = vld [vmem:[%s176 + $0x794] sm:$0xf]
        %v679 = vld [vmem:[%s176 + $0x798] sm:$0xf]
        %v680 = vld [vmem:[%s176 + $0x79c] sm:$0xf]
        %v681 = vld [vmem:[%s176 + $0x7a0] sm:$0xf]
        %v682 = vld [vmem:[%s176 + $0x7a4] sm:$0xf]
        %v683 = vld [vmem:[%s176 + $0x7a8] sm:$0xf]
        %v684 = vld [vmem:[%s176 + $0x7ac] sm:$0xf]
        %v685 = vld [vmem:[%s176 + $0x7b0] sm:$0xf]
        %v686 = vld [vmem:[%s176 + $0x7b4] sm:$0xf]
        %v687 = vld [vmem:[%s176 + $0x7b8] sm:$0xf]
        %v688 = vld [vmem:[%s176 + $0x7bc] sm:$0xf]
        %v689 = vld [vmem:[%s176 + $0x7c0] sm:$0xf]
        %v690 = vld [vmem:[%s176 + $0x7c4] sm:$0xf]
        %v691 = vld [vmem:[%s176 + $0x7c8] sm:$0xf]
        %v692 = vld [vmem:[%s176 + $0x7cc] sm:$0xf]
        %v693 = vld [vmem:[%s176 + $0x7d0] sm:$0xf]
        %v694 = vld [vmem:[%s176 + $0x7d4] sm:$0xf]
        %v695 = vld [vmem:[%s176 + $0x7d8] sm:$0xf]
        %v696 = vld [vmem:[%s176 + $0x7dc] sm:$0xf]
        %v697 = vld [vmem:[%s176 + $0x7e0] sm:$0xf]
        %v698 = vld [vmem:[%s176 + $0x7e4] sm:$0xf]
        %v699 = vld [vmem:[%s176 + $0x7e8] sm:$0xf]
        %v700 = vld [vmem:[%s176 + $0x7ec] sm:$0xf]
        %v701 = vld [vmem:[%s176 + $0x7f0] sm:$0xf]
        %v702 = vld [vmem:[%s176 + $0x7f4] sm:$0xf]
        %v703 = vld [vmem:[%s176 + $0x7f8] sm:$0xf]
        %v704 = vld [vmem:[%s176 + $0x7fc] sm:$0xf]
        %v705 = vld [vmem:[%s176 + $0x800] sm:$0xf]
        %v706 = vld [vmem:[%s176 + $0x804] sm:$0xf]
        %v707 = vld [vmem:[%s176 + $0x808] sm:$0xf]
        %v708 = vld [vmem:[%s176 + $0x80c] sm:$0xf]
        %v709 = vld [vmem:[%s176 + $0x810] sm:$0xf]
        %v710 = vld [vmem:[%s176 + $0x814] sm:$0xf]
        %v711 = vld [vmem:[%s176 + $0x818] sm:$0xf]
        %v712 = vld [vmem:[%s176 + $0x81c] sm:$0xf]
        %v713 = vld [vmem:[%s176 + $0x820] sm:$0xf]
        %v714 = vld [vmem:[%s176 + $0x824] sm:$0xf]
        %v715 = vld [vmem:[%s176 + $0x828] sm:$0xf]
        %v716 = vld [vmem:[%s176 + $0x82c] sm:$0xf]
        %v717 = vld [vmem:[%s176 + $0x830] sm:$0xf]
        %v718 = vld [vmem:[%s176 + $0x834] sm:$0xf]
        %v719 = vld [vmem:[%s176 + $0x838] sm:$0xf]
        %v720 = vld [vmem:[%s176 + $0x83c] sm:$0xf]
        %v721 = vld [vmem:[%s176 + $0x840] sm:$0xf]
        %v722 = vld [vmem:[%s176 + $0x844] sm:$0xf]
        %v723 = vld [vmem:[%s176 + $0x848] sm:$0xf]
        %v724 = vld [vmem:[%s176 + $0x84c] sm:$0xf]
        %v725 = vld [vmem:[%s176 + $0x850] sm:$0xf]
        %v726 = vld [vmem:[%s176 + $0x854] sm:$0xf]
        %v727 = vld [vmem:[%s176 + $0x858] sm:$0xf]
        %v728 = vld [vmem:[%s176 + $0x85c] sm:$0xf]
        %v729 = vld [vmem:[%s176 + $0x860] sm:$0xf]
        %v730 = vld [vmem:[%s176 + $0x864] sm:$0xf]
        %v731 = vld [vmem:[%s176 + $0x868] sm:$0xf]
        %v732 = vld [vmem:[%s176 + $0x86c] sm:$0xf]
        %v733 = vld [vmem:[%s176 + $0x870] sm:$0xf]
        %v734 = vld [vmem:[%s176 + $0x874] sm:$0xf]
        %v735 = vld [vmem:[%s176 + $0x878] sm:$0xf]
        %v736 = vld [vmem:[%s176 + $0x87c] sm:$0xf]
        %v737 = vld [vmem:[%s176 + $0x880] sm:$0xf]
        %v738 = vld [vmem:[%s176 + $0x884] sm:$0xf]
        %v739 = vld [vmem:[%s176 + $0x888] sm:$0xf]
        %v740 = vld [vmem:[%s176 + $0x88c] sm:$0xf]
        %v741 = vld [vmem:[%s176 + $0x890] sm:$0xf]
        %v742 = vld [vmem:[%s176 + $0x894] sm:$0xf]
        %v743 = vld [vmem:[%s176 + $0x898] sm:$0xf]
        %v744 = vld [vmem:[%s176 + $0x89c] sm:$0xf]
        %v745 = vld [vmem:[%s176 + $0x8a0] sm:$0xf]
        %v746 = vld [vmem:[%s176 + $0x8a4] sm:$0xf]
        %v747 = vld [vmem:[%s176 + $0x8a8] sm:$0xf]
        %v748 = vld [vmem:[%s176 + $0x8ac] sm:$0xf]
        %v749 = vld [vmem:[%s176 + $0x8b0] sm:$0xf]
        %v750 = vld [vmem:[%s176 + $0x8b4] sm:$0xf]
        %v751 = vld [vmem:[%s176 + $0x8b8] sm:$0xf]
        %v752 = vld [vmem:[%s176 + $0x8bc] sm:$0xf]
        %v753 = vld [vmem:[%s176 + $0x8c0] sm:$0xf]
        %v754 = vld [vmem:[%s176 + $0x8c4] sm:$0xf]
        %v755 = vld [vmem:[%s176 + $0x8c8] sm:$0xf]
        %v756 = vld [vmem:[%s176 + $0x8cc] sm:$0xf]
        %v757 = vld [vmem:[%s176 + $0x8d0] sm:$0xf]
        %v758 = vld [vmem:[%s176 + $0x8d4] sm:$0xf]
        %v759 = vld [vmem:[%s176 + $0x8d8] sm:$0xf]
        %v760 = vld [vmem:[%s176 + $0x8dc] sm:$0xf]
        %v761 = vld [vmem:[%s176 + $0x8e0] sm:$0xf]
        %v762 = vld [vmem:[%s176 + $0x8e4] sm:$0xf]
        %v763 = vld [vmem:[%s176 + $0x8e8] sm:$0xf]
        %v764 = vld [vmem:[%s176 + $0x8ec] sm:$0xf]
        %v765 = vld [vmem:[%s176 + $0x8f0] sm:$0xf]
        %v766 = vld [vmem:[%s176 + $0x8f4] sm:$0xf]
        %v767 = vld [vmem:[%s176 + $0x8f8] sm:$0xf]
        %v768 = vld [vmem:[%s176 + $0x8fc] sm:$0xf]
        %v769 = vld [vmem:[%s176 + $0x900] sm:$0xf]
        %v770 = vld [vmem:[%s176 + $0x904] sm:$0xf]
        %v771 = vld [vmem:[%s176 + $0x908] sm:$0xf]
        %v772 = vld [vmem:[%s176 + $0x90c] sm:$0xf]
        %v773 = vld [vmem:[%s176 + $0x910] sm:$0xf]
        %v774 = vld [vmem:[%s176 + $0x914] sm:$0xf]
        %v775 = vld [vmem:[%s176 + $0x918] sm:$0xf]
        %v776 = vld [vmem:[%s176 + $0x91c] sm:$0xf]
        %v777 = vld [vmem:[%s176 + $0x920] sm:$0xf]
        %v778 = vld [vmem:[%s176 + $0x924] sm:$0xf]
        %v779 = vld [vmem:[%s176 + $0x928] sm:$0xf]
        %v780 = vld [vmem:[%s176 + $0x92c] sm:$0xf]
        %v781 = vld [vmem:[%s176 + $0x930] sm:$0xf]
        %v782 = vld [vmem:[%s176 + $0x934] sm:$0xf]
        %v783 = vld [vmem:[%s176 + $0x938] sm:$0xf]
        %v784 = vld [vmem:[%s176 + $0x93c] sm:$0xf]
        %v785 = vld [vmem:[%s176 + $0x940] sm:$0xf]
        %v786 = vld [vmem:[%s176 + $0x944] sm:$0xf]
        %v787 = vld [vmem:[%s176 + $0x948] sm:$0xf]
        %v788 = vld [vmem:[%s176 + $0x94c] sm:$0xf]
        %v789 = vld [vmem:[%s176 + $0x950] sm:$0xf]
        %v790 = vld [vmem:[%s176 + $0x954] sm:$0xf]
        %v791 = vld [vmem:[%s176 + $0x958] sm:$0xf]
        %v792 = vld [vmem:[%s176 + $0x95c] sm:$0xf]
        %v793 = vld [vmem:[%s176 + $0x960] sm:$0xf]
        %v794 = vld [vmem:[%s176 + $0x964] sm:$0xf]
        %v795 = vld [vmem:[%s176 + $0x968] sm:$0xf]
        %v796 = vld [vmem:[%s176 + $0x96c] sm:$0xf]
        %v797 = vld [vmem:[%s176 + $0x970] sm:$0xf]
        %v798 = vld [vmem:[%s176 + $0x974] sm:$0xf]
        %v799 = vld [vmem:[%s176 + $0x978] sm:$0xf]
        %v800 = vld [vmem:[%s176 + $0x97c] sm:$0xf]
        %v801 = vld [vmem:[%s176 + $0x980] sm:$0xf]
        %v802 = vld [vmem:[%s176 + $0x984] sm:$0xf]
        %v803 = vld [vmem:[%s176 + $0x988] sm:$0xf]
        %v804 = vld [vmem:[%s176 + $0x98c] sm:$0xf]
        %v805 = vld [vmem:[%s176 + $0x990] sm:$0xf]
        %v806 = vld [vmem:[%s176 + $0x994] sm:$0xf]
        %v807 = vld [vmem:[%s176 + $0x998] sm:$0xf]
        %v808 = vld [vmem:[%s176 + $0x99c] sm:$0xf]
        %v809 = vld [vmem:[%s176 + $0x9a0] sm:$0xf]
        %v810 = vld [vmem:[%s176 + $0x9a4] sm:$0xf]
        %v811 = vld [vmem:[%s176 + $0x9a8] sm:$0xf]
        %v812 = vld [vmem:[%s176 + $0x9ac] sm:$0xf]
        %v813 = vld [vmem:[%s176 + $0x9b0] sm:$0xf]
        %v814 = vld [vmem:[%s176 + $0x9b4] sm:$0xf]
        %v815 = vld [vmem:[%s176 + $0x9b8] sm:$0xf]
        %v816 = vld [vmem:[%s176 + $0x9bc] sm:$0xf]
        %v817 = vld [vmem:[%s176 + $0x9c0] sm:$0xf]
        %v818 = vld [vmem:[%s176 + $0x9c4] sm:$0xf]
        %v819 = vld [vmem:[%s176 + $0x9c8] sm:$0xf]
        %v820 = vld [vmem:[%s176 + $0x9cc] sm:$0xf]
        %v821 = vld [vmem:[%s176 + $0x9d0] sm:$0xf]
        %v822 = vld [vmem:[%s176 + $0x9d4] sm:$0xf]
        %v823 = vld [vmem:[%s176 + $0x9d8] sm:$0xf]
        %v824 = vld [vmem:[%s176 + $0x9dc] sm:$0xf]
        %v825 = vld [vmem:[%s176 + $0x9e0] sm:$0xf]
        %v826 = vld [vmem:[%s176 + $0x9e4] sm:$0xf]
        %v827 = vld [vmem:[%s176 + $0x9e8] sm:$0xf]
        %v828 = vld [vmem:[%s176 + $0x9ec] sm:$0xf]
        %v829 = vld [vmem:[%s176 + $0x9f0] sm:$0xf]
        %v830 = vld [vmem:[%s176 + $0x9f4] sm:$0xf]
        %v831 = vld [vmem:[%s176 + $0x9f8] sm:$0xf]
        %v832 = vld [vmem:[%s176 + $0x9fc] sm:$0xf]
        %v833 = vld [vmem:[%s176 + $0xa00] sm:$0xf]
        %v834 = vld [vmem:[%s176 + $0xa04] sm:$0xf]
        %v835 = vld [vmem:[%s176 + $0xa08] sm:$0xf]
        %v836 = vld [vmem:[%s176 + $0xa0c] sm:$0xf]
        %v837 = vld [vmem:[%s176 + $0xa10] sm:$0xf]
        %v838 = vld [vmem:[%s176 + $0xa14] sm:$0xf]
        %v839 = vld [vmem:[%s176 + $0xa18] sm:$0xf]
        %v840 = vld [vmem:[%s176 + $0xa1c] sm:$0xf]
        %v841 = vld [vmem:[%s176 + $0xa20] sm:$0xf]
        %v842 = vld [vmem:[%s176 + $0xa24] sm:$0xf]
        %v843 = vld [vmem:[%s176 + $0xa28] sm:$0xf]
        %v844 = vld [vmem:[%s176 + $0xa2c] sm:$0xf]
        %v845 = vld [vmem:[%s176 + $0xa30] sm:$0xf]
        %v846 = vld [vmem:[%s176 + $0xa34] sm:$0xf]
        %v847 = vld [vmem:[%s176 + $0xa38] sm:$0xf]
        %v848 = vld [vmem:[%s176 + $0xa3c] sm:$0xf]
        %v849 = vld [vmem:[%s176 + $0xa40] sm:$0xf]
        %v850 = vld [vmem:[%s176 + $0xa44] sm:$0xf]
        %v851 = vld [vmem:[%s176 + $0xa48] sm:$0xf]
        %v852 = vld [vmem:[%s176 + $0xa4c] sm:$0xf]
        %v853 = vld [vmem:[%s176 + $0xa50] sm:$0xf]
        %v854 = vld [vmem:[%s176 + $0xa54] sm:$0xf]
        %v855 = vld [vmem:[%s176 + $0xa58] sm:$0xf]
        %v856 = vld [vmem:[%s176 + $0xa5c] sm:$0xf]
        %v857 = vld [vmem:[%s176 + $0xa60] sm:$0xf]
        %v858 = vld [vmem:[%s176 + $0xa64] sm:$0xf]
        %v859 = vld [vmem:[%s176 + $0xa68] sm:$0xf]
        %v860 = vld [vmem:[%s176 + $0xa6c] sm:$0xf]
        %v861 = vld [vmem:[%s176 + $0xa70] sm:$0xf]
        %v862 = vld [vmem:[%s176 + $0xa74] sm:$0xf]
        %v863 = vld [vmem:[%s176 + $0xa78] sm:$0xf]
        %v864 = vld [vmem:[%s176 + $0xa7c] sm:$0xf]
        %v865 = vld [vmem:[%s176 + $0xa80] sm:$0xf]
        %v866 = vld [vmem:[%s176 + $0xa84] sm:$0xf]
        %v867 = vld [vmem:[%s176 + $0xa88] sm:$0xf]
        %v868 = vld [vmem:[%s176 + $0xa8c] sm:$0xf]
        %v869 = vld [vmem:[%s176 + $0xa90] sm:$0xf]
        %v870 = vld [vmem:[%s176 + $0xa94] sm:$0xf]
        %v871 = vld [vmem:[%s176 + $0xa98] sm:$0xf]
        %v872 = vld [vmem:[%s176 + $0xa9c] sm:$0xf]
        %v873 = vld [vmem:[%s176 + $0xaa0] sm:$0xf]
        %v874 = vld [vmem:[%s176 + $0xaa4] sm:$0xf]
        %v875 = vld [vmem:[%s176 + $0xaa8] sm:$0xf]
        %v876 = vld [vmem:[%s176 + $0xaac] sm:$0xf]
        %v877 = vld [vmem:[%s176 + $0xab0] sm:$0xf]
        %v878 = vld [vmem:[%s176 + $0xab4] sm:$0xf]
        %v879 = vld [vmem:[%s176 + $0xab8] sm:$0xf]
        %v880 = vld [vmem:[%s176 + $0xabc] sm:$0xf]
        %v881 = vld [vmem:[%s176 + $0xac0] sm:$0xf]
        %v882 = vld [vmem:[%s176 + $0xac4] sm:$0xf]
        %v883 = vld [vmem:[%s176 + $0xac8] sm:$0xf]
        %v884 = vld [vmem:[%s176 + $0xacc] sm:$0xf]
        %v885 = vld [vmem:[%s176 + $0xad0] sm:$0xf]
        %v886 = vld [vmem:[%s176 + $0xad4] sm:$0xf]
        %v887 = vld [vmem:[%s176 + $0xad8] sm:$0xf]
        %v888 = vld [vmem:[%s176 + $0xadc] sm:$0xf]
        %v889 = vld [vmem:[%s176 + $0xae0] sm:$0xf]
        %v890 = vld [vmem:[%s176 + $0xae4] sm:$0xf]
        %v891 = vld [vmem:[%s176 + $0xae8] sm:$0xf]
        %v892 = vld [vmem:[%s176 + $0xaec] sm:$0xf]
        %v893 = vld [vmem:[%s176 + $0xaf0] sm:$0xf]
        %v894 = vld [vmem:[%s176 + $0xaf4] sm:$0xf]
        %v895 = vld [vmem:[%s176 + $0xaf8] sm:$0xf]
        %v896 = vld [vmem:[%s176 + $0xafc] sm:$0xf]
        %v897 = vld [vmem:[%s176 + $0xb00] sm:$0xf]
        %v898 = vld [vmem:[%s176 + $0xb04] sm:$0xf]
        %v899 = vld [vmem:[%s176 + $0xb08] sm:$0xf]
        %v900 = vld [vmem:[%s176 + $0xb0c] sm:$0xf]
        %v901 = vld [vmem:[%s176 + $0xb10] sm:$0xf]
        %v902 = vld [vmem:[%s176 + $0xb14] sm:$0xf]
        %v903 = vld [vmem:[%s176 + $0xb18] sm:$0xf]
        %v904 = vld [vmem:[%s176 + $0xb1c] sm:$0xf]
        %v905 = vld [vmem:[%s176 + $0xb20] sm:$0xf]
        %v906 = vld [vmem:[%s176 + $0xb24] sm:$0xf]
        %v907 = vld [vmem:[%s176 + $0xb28] sm:$0xf]
        %v908 = vld [vmem:[%s176 + $0xb2c] sm:$0xf]
        %v909 = vld [vmem:[%s176 + $0xb30] sm:$0xf]
        %v910 = vld [vmem:[%s176 + $0xb34] sm:$0xf]
        %v911 = vld [vmem:[%s176 + $0xb38] sm:$0xf]
        %v912 = vld [vmem:[%s176 + $0xb3c] sm:$0xf]
        %v913 = vld [vmem:[%s176 + $0xb40] sm:$0xf]
        %v914 = vld [vmem:[%s176 + $0xb44] sm:$0xf]
        %v915 = vld [vmem:[%s176 + $0xb48] sm:$0xf]
        %v916 = vld [vmem:[%s176 + $0xb4c] sm:$0xf]
        %v917 = vld [vmem:[%s176 + $0xb50] sm:$0xf]
        %v918 = vld [vmem:[%s176 + $0xb54] sm:$0xf]
        %v919 = vld [vmem:[%s176 + $0xb58] sm:$0xf]
        %v920 = vld [vmem:[%s176 + $0xb5c] sm:$0xf]
        %v921 = vld [vmem:[%s176 + $0xb60] sm:$0xf]
        %v922 = vld [vmem:[%s176 + $0xb64] sm:$0xf]
        %v923 = vld [vmem:[%s176 + $0xb68] sm:$0xf]
        %v924 = vld [vmem:[%s176 + $0xb6c] sm:$0xf]
        %v925 = vld [vmem:[%s176 + $0xb70] sm:$0xf]
        %v926 = vld [vmem:[%s176 + $0xb74] sm:$0xf]
        %v927 = vld [vmem:[%s176 + $0xb78] sm:$0xf]
        %v928 = vld [vmem:[%s176 + $0xb7c] sm:$0xf]
        %v929 = vld [vmem:[%s176 + $0xb80] sm:$0xf]
        %v930 = vld [vmem:[%s176 + $0xb84] sm:$0xf]
        %v931 = vld [vmem:[%s176 + $0xb88] sm:$0xf]
        %v932 = vld [vmem:[%s176 + $0xb8c] sm:$0xf]
        %v933 = vld [vmem:[%s176 + $0xb90] sm:$0xf]
        %v934 = vld [vmem:[%s176 + $0xb94] sm:$0xf]
        %v935 = vld [vmem:[%s176 + $0xb98] sm:$0xf]
        %v936 = vld [vmem:[%s176 + $0xb9c] sm:$0xf]
        %v937 = vld [vmem:[%s176 + $0xba0] sm:$0xf]
        %v938 = vld [vmem:[%s176 + $0xba4] sm:$0xf]
        %v939 = vld [vmem:[%s176 + $0xba8] sm:$0xf]
        %v940 = vld [vmem:[%s176 + $0xbac] sm:$0xf]
        %v941 = vld [vmem:[%s176 + $0xbb0] sm:$0xf]
        %v942 = vld [vmem:[%s176 + $0xbb4] sm:$0xf]
        %v943 = vld [vmem:[%s176 + $0xbb8] sm:$0xf]
        %v944 = vld [vmem:[%s176 + $0xbbc] sm:$0xf]
        %v945 = vld [vmem:[%s176 + $0xbc0] sm:$0xf]
        %v946 = vld [vmem:[%s176 + $0xbc4] sm:$0xf]
        %v947 = vld [vmem:[%s176 + $0xbc8] sm:$0xf]
        %v948 = vld [vmem:[%s176 + $0xbcc] sm:$0xf]
        %v949 = vld [vmem:[%s176 + $0xbd0] sm:$0xf]
        %v950 = vld [vmem:[%s176 + $0xbd4] sm:$0xf]
        %v951 = vld [vmem:[%s176 + $0xbd8] sm:$0xf]
        %v952 = vld [vmem:[%s176 + $0xbdc] sm:$0xf]
        %v953 = vld [vmem:[%s176 + $0xbe0] sm:$0xf]
        %v954 = vld [vmem:[%s176 + $0xbe4] sm:$0xf]
        %v955 = vld [vmem:[%s176 + $0xbe8] sm:$0xf]
        %v956 = vld [vmem:[%s176 + $0xbec] sm:$0xf]
        %v957 = vld [vmem:[%s176 + $0xbf0] sm:$0xf]
        %v958 = vld [vmem:[%s176 + $0xbf4] sm:$0xf]
        %v959 = vld [vmem:[%s176 + $0xbf8] sm:$0xf]
        %v960 = vld [vmem:[%s176 + $0xbfc] sm:$0xf]
        %v961 = vld [vmem:[%s176 + $0xc00] sm:$0xf]
        %v962 = vld [vmem:[%s176 + $0xc04] sm:$0xf]
        %v963 = vld [vmem:[%s176 + $0xc08] sm:$0xf]
        %v964 = vld [vmem:[%s176 + $0xc0c] sm:$0xf]
        %v965 = vld [vmem:[%s176 + $0xc10] sm:$0xf]
        %v966 = vld [vmem:[%s176 + $0xc14] sm:$0xf]
        %v967 = vld [vmem:[%s176 + $0xc18] sm:$0xf]
        %v968 = vld [vmem:[%s176 + $0xc1c] sm:$0xf]
        %v969 = vld [vmem:[%s176 + $0xc20] sm:$0xf]
        %v970 = vld [vmem:[%s176 + $0xc24] sm:$0xf]
        %v971 = vld [vmem:[%s176 + $0xc28] sm:$0xf]
        %v972 = vld [vmem:[%s176 + $0xc2c] sm:$0xf]
        %v973 = vld [vmem:[%s176 + $0xc30] sm:$0xf]
        %v974 = vld [vmem:[%s176 + $0xc34] sm:$0xf]
        %v975 = vld [vmem:[%s176 + $0xc38] sm:$0xf]
        %v976 = vld [vmem:[%s176 + $0xc3c] sm:$0xf]
        %v984 = vcombine.high %v186, %v186
        %v986 = vunpack.c.l.s4 1966171168
        %v987 = vunpack.c.0.s8 %v986
        %v988 = vlaneseq
        %v989 = vshrl.u32 %v988, 7
        %v990 = vsub.s32 %v987, %v989
        %v991 = vrot.slane %v186, %v990
        %v993 = vunpack.c.l.s4 1966171168
        %v994 = vunpack.c.0.s8 %v993
        %v995 = vlaneseq
        %v996 = vshrl.u32 %v995, 7
        %v997 = vsub.s32 %v994, %v996
        %v998 = vrot.slane %v984, %v997
        %v999 = vcombine.high %v991, %v991
        %v1000 = vcombine.high %v998, %v998
        %v1002 = vunpack.c.l.s4 1966171168
        %v1003 = vunpack.c.0.s8 %v1002
        %v1004 = vlaneseq
        %v1005 = vshrl.u32 %v1004, 7
        %v1006 = vsub.s32 %v1003, %v1005
        %v1007 = vrot.slane %v991, %v1006
        %v1009 = vunpack.c.l.s4 1966171168
        %v1010 = vunpack.c.0.s8 %v1009
        %v1011 = vlaneseq
        %v1012 = vshrl.u32 %v1011, 7
        %v1013 = vsub.s32 %v1010, %v1012
        %v1014 = vrot.slane %v998, %v1013
        %v1016 = vunpack.c.l.s4 1966171168
        %v1017 = vunpack.c.0.s8 %v1016
        %v1018 = vlaneseq
        %v1019 = vshrl.u32 %v1018, 7
        %v1020 = vsub.s32 %v1017, %v1019
        %v1021 = vrot.slane %v999, %v1020
        %v1023 = vunpack.c.l.s4 1966171168
        %v1024 = vunpack.c.0.s8 %v1023
        %v1025 = vlaneseq
        %v1026 = vshrl.u32 %v1025, 7
        %v1027 = vsub.s32 %v1024, %v1026
        %v1028 = vrot.slane %v1000, %v1027
        %v1029 = vcombine.high %v1007, %v1007
        %v1030 = vcombine.high %v1014, %v1014
        %v1031 = vcombine.high %v1021, %v1021
        %v1032 = vcombine.high %v1028, %v1028
        %v1033 = vcombine.high %v187, %v187
        %v1035 = vunpack.c.l.s4 1966171168
        %v1036 = vunpack.c.0.s8 %v1035
        %v1037 = vlaneseq
        %v1038 = vshrl.u32 %v1037, 7
        %v1039 = vsub.s32 %v1036, %v1038
        %v1040 = vrot.slane %v187, %v1039
        %v1042 = vunpack.c.l.s4 1966171168
        %v1043 = vunpack.c.0.s8 %v1042
        %v1044 = vlaneseq
        %v1045 = vshrl.u32 %v1044, 7
        %v1046 = vsub.s32 %v1043, %v1045
        %v1047 = vrot.slane %v1033, %v1046
        %v1048 = vcombine.high %v1040, %v1040
        %v1049 = vcombine.high %v1047, %v1047
        %v1051 = vunpack.c.l.s4 1966171168
        %v1052 = vunpack.c.0.s8 %v1051
        %v1053 = vlaneseq
        %v1054 = vshrl.u32 %v1053, 7
        %v1055 = vsub.s32 %v1052, %v1054
        %v1056 = vrot.slane %v1040, %v1055
        %v1058 = vunpack.c.l.s4 1966171168
        %v1059 = vunpack.c.0.s8 %v1058
        %v1060 = vlaneseq
        %v1061 = vshrl.u32 %v1060, 7
        %v1062 = vsub.s32 %v1059, %v1061
        %v1063 = vrot.slane %v1047, %v1062
        %v1065 = vunpack.c.l.s4 1966171168
        %v1066 = vunpack.c.0.s8 %v1065
        %v1067 = vlaneseq
        %v1068 = vshrl.u32 %v1067, 7
        %v1069 = vsub.s32 %v1066, %v1068
        %v1070 = vrot.slane %v1048, %v1069
        %v1072 = vunpack.c.l.s4 1966171168
        %v1073 = vunpack.c.0.s8 %v1072
        %v1074 = vlaneseq
        %v1075 = vshrl.u32 %v1074, 7
        %v1076 = vsub.s32 %v1073, %v1075
        %v1077 = vrot.slane %v1049, %v1076
        %v1078 = vcombine.high %v1056, %v1056
        %v1079 = vcombine.high %v1063, %v1063
        %v1080 = vcombine.high %v1070, %v1070
        %v1081 = vcombine.high %v1077, %v1077
        %v1082 = vcombine.high %v188, %v188
        %v1084 = vunpack.c.l.s4 1966171168
        %v1085 = vunpack.c.0.s8 %v1084
        %v1086 = vlaneseq
        %v1087 = vshrl.u32 %v1086, 7
        %v1088 = vsub.s32 %v1085, %v1087
        %v1089 = vrot.slane %v188, %v1088
        %v1091 = vunpack.c.l.s4 1966171168
        %v1092 = vunpack.c.0.s8 %v1091
        %v1093 = vlaneseq
        %v1094 = vshrl.u32 %v1093, 7
        %v1095 = vsub.s32 %v1092, %v1094
        %v1096 = vrot.slane %v1082, %v1095
        %v1097 = vcombine.high %v1089, %v1089
        %v1098 = vcombine.high %v1096, %v1096
        %v1100 = vunpack.c.l.s4 1966171168
        %v1101 = vunpack.c.0.s8 %v1100
        %v1102 = vlaneseq
        %v1103 = vshrl.u32 %v1102, 7
        %v1104 = vsub.s32 %v1101, %v1103
        %v1105 = vrot.slane %v1089, %v1104
        %v1107 = vunpack.c.l.s4 1966171168
        %v1108 = vunpack.c.0.s8 %v1107
        %v1109 = vlaneseq
        %v1110 = vshrl.u32 %v1109, 7
        %v1111 = vsub.s32 %v1108, %v1110
        %v1112 = vrot.slane %v1096, %v1111
        %v1114 = vunpack.c.l.s4 1966171168
        %v1115 = vunpack.c.0.s8 %v1114
        %v1116 = vlaneseq
        %v1117 = vshrl.u32 %v1116, 7
        %v1118 = vsub.s32 %v1115, %v1117
        %v1119 = vrot.slane %v1097, %v1118
        %v1121 = vunpack.c.l.s4 1966171168
        %v1122 = vunpack.c.0.s8 %v1121
        %v1123 = vlaneseq
        %v1124 = vshrl.u32 %v1123, 7
        %v1125 = vsub.s32 %v1122, %v1124
        %v1126 = vrot.slane %v1098, %v1125
        %v1127 = vcombine.high %v1105, %v1105
        %v1128 = vcombine.high %v1112, %v1112
        %v1129 = vcombine.high %v1119, %v1119
        %v1130 = vcombine.high %v1126, %v1126
        %v1131 = vcombine.high %v189, %v189
        %v1133 = vunpack.c.l.s4 1966171168
        %v1134 = vunpack.c.0.s8 %v1133
        %v1135 = vlaneseq
        %v1136 = vshrl.u32 %v1135, 7
        %v1137 = vsub.s32 %v1134, %v1136
        %v1138 = vrot.slane %v189, %v1137
        %v1140 = vunpack.c.l.s4 1966171168
        %v1141 = vunpack.c.0.s8 %v1140
        %v1142 = vlaneseq
        %v1143 = vshrl.u32 %v1142, 7
        %v1144 = vsub.s32 %v1141, %v1143
        %v1145 = vrot.slane %v1131, %v1144
        %v1146 = vcombine.high %v1138, %v1138
        %v1147 = vcombine.high %v1145, %v1145
        %v1149 = vunpack.c.l.s4 1966171168
        %v1150 = vunpack.c.0.s8 %v1149
        %v1151 = vlaneseq
        %v1152 = vshrl.u32 %v1151, 7
        %v1153 = vsub.s32 %v1150, %v1152
        %v1154 = vrot.slane %v1138, %v1153
        %v1156 = vunpack.c.l.s4 1966171168
        %v1157 = vunpack.c.0.s8 %v1156
        %v1158 = vlaneseq
        %v1159 = vshrl.u32 %v1158, 7
        %v1160 = vsub.s32 %v1157, %v1159
        %v1161 = vrot.slane %v1145, %v1160
        %v1163 = vunpack.c.l.s4 1966171168
        %v1164 = vunpack.c.0.s8 %v1163
        %v1165 = vlaneseq
        %v1166 = vshrl.u32 %v1165, 7
        %v1167 = vsub.s32 %v1164, %v1166
        %v1168 = vrot.slane %v1146, %v1167
        %v1170 = vunpack.c.l.s4 1966171168
        %v1171 = vunpack.c.0.s8 %v1170
        %v1172 = vlaneseq
        %v1173 = vshrl.u32 %v1172, 7
        %v1174 = vsub.s32 %v1171, %v1173
        %v1175 = vrot.slane %v1147, %v1174
        %v1176 = vcombine.high %v1154, %v1154
        %v1177 = vcombine.high %v1161, %v1161
        %v1178 = vcombine.high %v1168, %v1168
        %v1179 = vcombine.high %v1175, %v1175
        %v1180 = vcombine.high %v190, %v190
        %v1182 = vunpack.c.l.s4 1966171168
        %v1183 = vunpack.c.0.s8 %v1182
        %v1184 = vlaneseq
        %v1185 = vshrl.u32 %v1184, 7
        %v1186 = vsub.s32 %v1183, %v1185
        %v1187 = vrot.slane %v190, %v1186
        %v1189 = vunpack.c.l.s4 1966171168
        %v1190 = vunpack.c.0.s8 %v1189
        %v1191 = vlaneseq
        %v1192 = vshrl.u32 %v1191, 7
        %v1193 = vsub.s32 %v1190, %v1192
        %v1194 = vrot.slane %v1180, %v1193
        %v1195 = vcombine.high %v1187, %v1187
        %v1196 = vcombine.high %v1194, %v1194
        %v1198 = vunpack.c.l.s4 1966171168
        %v1199 = vunpack.c.0.s8 %v1198
        %v1200 = vlaneseq
        %v1201 = vshrl.u32 %v1200, 7
        %v1202 = vsub.s32 %v1199, %v1201
        %v1203 = vrot.slane %v1187, %v1202
        %v1205 = vunpack.c.l.s4 1966171168
        %v1206 = vunpack.c.0.s8 %v1205
        %v1207 = vlaneseq
        %v1208 = vshrl.u32 %v1207, 7
        %v1209 = vsub.s32 %v1206, %v1208
        %v1210 = vrot.slane %v1194, %v1209
        %v1212 = vunpack.c.l.s4 1966171168
        %v1213 = vunpack.c.0.s8 %v1212
        %v1214 = vlaneseq
        %v1215 = vshrl.u32 %v1214, 7
        %v1216 = vsub.s32 %v1213, %v1215
        %v1217 = vrot.slane %v1195, %v1216
        %v1219 = vunpack.c.l.s4 1966171168
        %v1220 = vunpack.c.0.s8 %v1219
        %v1221 = vlaneseq
        %v1222 = vshrl.u32 %v1221, 7
        %v1223 = vsub.s32 %v1220, %v1222
        %v1224 = vrot.slane %v1196, %v1223
        %v1225 = vcombine.high %v1203, %v1203
        %v1226 = vcombine.high %v1210, %v1210
        %v1227 = vcombine.high %v1217, %v1217
        %v1228 = vcombine.high %v1224, %v1224
        %v1229 = vcombine.high %v191, %v191
        %v1231 = vunpack.c.l.s4 1966171168
        %v1232 = vunpack.c.0.s8 %v1231
        %v1233 = vlaneseq
        %v1234 = vshrl.u32 %v1233, 7
        %v1235 = vsub.s32 %v1232, %v1234
        %v1236 = vrot.slane %v191, %v1235
        %v1238 = vunpack.c.l.s4 1966171168
        %v1239 = vunpack.c.0.s8 %v1238
        %v1240 = vlaneseq
        %v1241 = vshrl.u32 %v1240, 7
        %v1242 = vsub.s32 %v1239, %v1241
        %v1243 = vrot.slane %v1229, %v1242
        %v1244 = vcombine.high %v1236, %v1236
        %v1245 = vcombine.high %v1243, %v1243
        %v1247 = vunpack.c.l.s4 1966171168
        %v1248 = vunpack.c.0.s8 %v1247
        %v1249 = vlaneseq
        %v1250 = vshrl.u32 %v1249, 7
        %v1251 = vsub.s32 %v1248, %v1250
        %v1252 = vrot.slane %v1236, %v1251
        %v1254 = vunpack.c.l.s4 1966171168
        %v1255 = vunpack.c.0.s8 %v1254
        %v1256 = vlaneseq
        %v1257 = vshrl.u32 %v1256, 7
        %v1258 = vsub.s32 %v1255, %v1257
        %v1259 = vrot.slane %v1243, %v1258
        %v1261 = vunpack.c.l.s4 1966171168
        %v1262 = vunpack.c.0.s8 %v1261
        %v1263 = vlaneseq
        %v1264 = vshrl.u32 %v1263, 7
        %v1265 = vsub.s32 %v1262, %v1264
        %v1266 = vrot.slane %v1244, %v1265
        %v1268 = vunpack.c.l.s4 1966171168
        %v1269 = vunpack.c.0.s8 %v1268
        %v1270 = vlaneseq
        %v1271 = vshrl.u32 %v1270, 7
        %v1272 = vsub.s32 %v1269, %v1271
        %v1273 = vrot.slane %v1245, %v1272
        %v1274 = vcombine.high %v1252, %v1252
        %v1275 = vcombine.high %v1259, %v1259
        %v1276 = vcombine.high %v1266, %v1266
        %v1277 = vcombine.high %v1273, %v1273
        %v1279 = vunpack.c.l.s4 1966171168
        %v1280 = vunpack.c.0.s8 %v1279
        %v1281 = vlaneseq
        %v1282 = vshrl.u32 %v1281, 7
        %v1283 = vsub.s32 %v1280, %v1282
        %v1284 = vrot.slane %v192, %v1283
        %v1286 = vunpack.c.l.s4 1966171168
        %v1287 = vunpack.c.0.s8 %v1286
        %v1288 = vlaneseq
        %v1289 = vshrl.u32 %v1288, 7
        %v1290 = vsub.s32 %v1287, %v1289
        %v1291 = vrot.slane %v1284, %v1290
        %v2125 = vunpack.c.l.b16 %v193
        %v2126 = vunpack.c.l.b16 %v194
        %v2127 = vunpack.c.l.b16 %v195
        %v2128 = vunpack.c.l.b16 %v196
        %v2129 = vunpack.c.l.b16 %v197
        %v2130 = vunpack.c.l.b16 %v198
        %v2131 = vunpack.c.l.b16 %v199
        %v2132 = vunpack.c.l.b16 %v200
        %v2133 = vunpack.c.l.b16 %v201
        %v2134 = vunpack.c.l.b16 %v202
        %v2135 = vunpack.c.l.b16 %v203
        %v2136 = vunpack.c.l.b16 %v204
        %v2137 = vunpack.c.l.b16 %v205
        %v2138 = vunpack.c.l.b16 %v206
        %v2139 = vunpack.c.l.b16 %v207
        %v2140 = vunpack.c.l.b16 %v208
        %v2141 = vunpack.c.l.b16 %v209
        %v2142 = vunpack.c.l.b16 %v210
        %v2143 = vunpack.c.l.b16 %v211
        %v2144 = vunpack.c.l.b16 %v212
        %v2145 = vunpack.c.l.b16 %v213
        %v2146 = vunpack.c.l.b16 %v214
        %v2147 = vunpack.c.l.b16 %v215
        %v2148 = vunpack.c.l.b16 %v216
        %v2149 = vunpack.c.l.b16 %v217
        %v2150 = vunpack.c.l.b16 %v218
        %v2151 = vunpack.c.l.b16 %v219
        %v2152 = vunpack.c.l.b16 %v220
        %v2153 = vunpack.c.l.b16 %v221
        %v2154 = vunpack.c.l.b16 %v222
        %v2155 = vunpack.c.l.b16 %v223
        %v2156 = vunpack.c.l.b16 %v224
        %v2157 = vunpack.c.l.b16 %v225
        %v2158 = vunpack.c.l.b16 %v226
        %v2159 = vunpack.c.l.b16 %v227
        %v2160 = vunpack.c.l.b16 %v228
        %v2161 = vunpack.c.l.b16 %v229
        %v2162 = vunpack.c.l.b16 %v230
        %v2163 = vunpack.c.l.b16 %v231
        %v2164 = vunpack.c.l.b16 %v232
        %v2165 = vunpack.c.l.b16 %v233
        %v2166 = vunpack.c.l.b16 %v234
        %v2167 = vunpack.c.l.b16 %v235
        %v2168 = vunpack.c.l.b16 %v236
        %v2169 = vunpack.c.l.b16 %v237
        %v2170 = vunpack.c.l.b16 %v238
        %v2171 = vunpack.c.l.b16 %v239
        %v2172 = vunpack.c.l.b16 %v240
        %v2173 = vunpack.c.l.b16 %v241
        %v2174 = vunpack.c.l.b16 %v242
        %v2175 = vunpack.c.l.b16 %v243
        %v2176 = vunpack.c.l.b16 %v244
        %v2177 = vunpack.c.l.b16 %v245
        %v2178 = vunpack.c.l.b16 %v246
        %v2179 = vunpack.c.l.b16 %v247
        %v2180 = vunpack.c.l.b16 %v248
        %v2181 = vunpack.c.l.b16 %v249
        %v2182 = vunpack.c.l.b16 %v250
        %v2183 = vunpack.c.l.b16 %v251
        %v2184 = vunpack.c.l.b16 %v252
        %v2185 = vunpack.c.l.b16 %v253
        %v2186 = vunpack.c.l.b16 %v254
        %v2187 = vunpack.c.l.b16 %v255
        %v2188 = vunpack.c.l.b16 %v256
        %v2189 = vunpack.c.l.b16 %v257
        %v2190 = vunpack.c.l.b16 %v258
        %v2191 = vunpack.c.l.b16 %v259
        %v2192 = vunpack.c.l.b16 %v260
        %v2193 = vunpack.c.l.b16 %v261
        %v2194 = vunpack.c.l.b16 %v262
        %v2195 = vunpack.c.l.b16 %v263
        %v2196 = vunpack.c.l.b16 %v264
        %v2197 = vunpack.c.l.b16 %v265
        %v2198 = vunpack.c.l.b16 %v266
        %v2199 = vunpack.c.l.b16 %v267
        %v2200 = vunpack.c.l.b16 %v268
        %v2201 = vunpack.c.l.b16 %v269
        %v2202 = vunpack.c.l.b16 %v270
        %v2203 = vunpack.c.l.b16 %v271
        %v2204 = vunpack.c.l.b16 %v272
        %v2205 = vunpack.c.l.b16 %v273
        %v2206 = vunpack.c.l.b16 %v274
        %v2207 = vunpack.c.l.b16 %v275
        %v2208 = vunpack.c.l.b16 %v276
        %v2209 = vunpack.c.l.b16 %v277
        %v2210 = vunpack.c.l.b16 %v278
        %v2211 = vunpack.c.l.b16 %v279
        %v2212 = vunpack.c.l.b16 %v280
        %v2213 = vunpack.c.l.b16 %v281
        %v2214 = vunpack.c.l.b16 %v282
        %v2215 = vunpack.c.l.b16 %v283
        %v2216 = vunpack.c.l.b16 %v284
        %v2217 = vunpack.c.l.b16 %v285
        %v2218 = vunpack.c.l.b16 %v286
        %v2219 = vunpack.c.l.b16 %v287
        %v2220 = vunpack.c.l.b16 %v288
        %v2221 = vunpack.c.l.b16 %v289
        %v2222 = vunpack.c.l.b16 %v290
        %v2223 = vunpack.c.l.b16 %v291
        %v2224 = vunpack.c.l.b16 %v292
        %v2225 = vunpack.c.l.b16 %v293
        %v2226 = vunpack.c.l.b16 %v294
        %v2227 = vunpack.c.l.b16 %v295
        %v2228 = vunpack.c.l.b16 %v296
        %v2229 = vunpack.c.l.b16 %v297
        %v2230 = vunpack.c.l.b16 %v298
        %v2231 = vunpack.c.l.b16 %v299
        %v2232 = vunpack.c.l.b16 %v300
        %v2233 = vunpack.c.l.b16 %v301
        %v2234 = vunpack.c.l.b16 %v302
        %v2235 = vunpack.c.l.b16 %v303
        %v2236 = vunpack.c.l.b16 %v304
        %v2237 = vunpack.c.l.b16 %v305
        %v2238 = vunpack.c.l.b16 %v306
        %v2239 = vunpack.c.l.b16 %v307
        %v2240 = vunpack.c.l.b16 %v308
        %v2241 = vunpack.c.l.b16 %v309
        %v2242 = vunpack.c.l.b16 %v310
        %v2243 = vunpack.c.l.b16 %v311
        %v2244 = vunpack.c.l.b16 %v312
        %v2245 = vunpack.c.l.b16 %v313
        %v2246 = vunpack.c.l.b16 %v314
        %v2247 = vunpack.c.l.b16 %v315
        %v2248 = vunpack.c.l.b16 %v316
        %v2249 = vunpack.c.l.b16 %v317
        %v2250 = vunpack.c.l.b16 %v318
        %v2251 = vunpack.c.l.b16 %v319
        %v2252 = vunpack.c.l.b16 %v320
        %v2253 = vunpack.c.l.b16 %v321
        %v2254 = vunpack.c.l.b16 %v322
        %v2255 = vunpack.c.l.b16 %v323
        %v2256 = vunpack.c.l.b16 %v324
        %v2257 = vunpack.c.l.b16 %v325
        %v2258 = vunpack.c.l.b16 %v326
        %v2259 = vunpack.c.l.b16 %v327
        %v2260 = vunpack.c.l.b16 %v328
        %v2261 = vunpack.c.l.b16 %v329
        %v2262 = vunpack.c.l.b16 %v330
        %v2263 = vunpack.c.l.b16 %v331
        %v2264 = vunpack.c.l.b16 %v332
        %v2265 = vunpack.c.l.b16 %v333
        %v2266 = vunpack.c.l.b16 %v334
        %v2267 = vunpack.c.l.b16 %v335
        %v2268 = vunpack.c.l.b16 %v336
        %v2269 = vunpack.c.l.b16 %v337
        %v2270 = vunpack.c.l.b16 %v338
        %v2271 = vunpack.c.l.b16 %v339
        %v2272 = vunpack.c.l.b16 %v340
        %v2273 = vunpack.c.l.b16 %v341
        %v2274 = vunpack.c.l.b16 %v342
        %v2275 = vunpack.c.l.b16 %v343
        %v2276 = vunpack.c.l.b16 %v344
        %v2277 = vunpack.c.l.b16 %v345
        %v2278 = vunpack.c.l.b16 %v346
        %v2279 = vunpack.c.l.b16 %v347
        %v2280 = vunpack.c.l.b16 %v348
        %v2281 = vunpack.c.l.b16 %v349
        %v2282 = vunpack.c.l.b16 %v350
        %v2283 = vunpack.c.l.b16 %v351
        %v2284 = vunpack.c.l.b16 %v352
        %v2285 = vunpack.c.l.b16 %v353
        %v2286 = vunpack.c.l.b16 %v354
        %v2287 = vunpack.c.l.b16 %v355
        %v2288 = vunpack.c.l.b16 %v356
        %v2289 = vunpack.c.l.b16 %v357
        %v2290 = vunpack.c.l.b16 %v358
        %v2291 = vunpack.c.l.b16 %v359
        %v2292 = vunpack.c.l.b16 %v360
        %v2293 = vunpack.c.l.b16 %v361
        %v2294 = vunpack.c.l.b16 %v362
        %v2295 = vunpack.c.l.b16 %v363
        %v2296 = vunpack.c.l.b16 %v364
        %v2297 = vunpack.c.l.b16 %v365
        %v2298 = vunpack.c.l.b16 %v366
        %v2299 = vunpack.c.l.b16 %v367
        %v2300 = vunpack.c.l.b16 %v368
        %v2301 = vunpack.c.l.b16 %v369
        %v2302 = vunpack.c.l.b16 %v370
        %v2303 = vunpack.c.l.b16 %v371
        %v2304 = vunpack.c.l.b16 %v372
        %v2305 = vunpack.c.l.b16 %v373
        %v2306 = vunpack.c.l.b16 %v374
        %v2307 = vunpack.c.l.b16 %v375
        %v2308 = vunpack.c.l.b16 %v376
        %v2309 = vunpack.c.l.b16 %v377
        %v2310 = vunpack.c.l.b16 %v378
        %v2311 = vunpack.c.l.b16 %v379
        %v2312 = vunpack.c.l.b16 %v380
        %v2313 = vunpack.c.l.b16 %v381
        %v2314 = vunpack.c.l.b16 %v382
        %v2315 = vunpack.c.l.b16 %v383
        %v2316 = vunpack.c.l.b16 %v384
        %v2317 = vunpack.c.l.b16 %v385
        %v2318 = vunpack.c.l.b16 %v386
        %v2319 = vunpack.c.l.b16 %v387
        %v2320 = vunpack.c.l.b16 %v388
        %v2321 = vunpack.c.l.b16 %v389
        %v2322 = vunpack.c.l.b16 %v390
        %v2323 = vunpack.c.l.b16 %v391
        %v2324 = vunpack.c.l.b16 %v392
        %v2325 = vunpack.c.l.b16 %v393
        %v2326 = vunpack.c.l.b16 %v394
        %v2327 = vunpack.c.l.b16 %v395
        %v2328 = vunpack.c.l.b16 %v396
        %v2329 = vunpack.c.l.b16 %v397
        %v2330 = vunpack.c.l.b16 %v398
        %v2331 = vunpack.c.l.b16 %v399
        %v2332 = vunpack.c.l.b16 %v400
        %v2333 = vunpack.c.l.b16 %v401
        %v2334 = vunpack.c.l.b16 %v402
        %v2335 = vunpack.c.l.b16 %v403
        %v2336 = vunpack.c.l.b16 %v404
        %v2337 = vunpack.c.l.b16 %v405
        %v2338 = vunpack.c.l.b16 %v406
        %v2339 = vunpack.c.l.b16 %v407
        %v2340 = vunpack.c.l.b16 %v408
        %v2341 = vunpack.c.l.b16 %v409
        %v2342 = vunpack.c.l.b16 %v410
        %v2343 = vunpack.c.l.b16 %v411
        %v2344 = vunpack.c.l.b16 %v412
        %v2345 = vunpack.c.l.b16 %v413
        %v2346 = vunpack.c.l.b16 %v414
        %v2347 = vunpack.c.l.b16 %v415
        %v2348 = vunpack.c.l.b16 %v416
        %v2349 = vunpack.c.l.b16 %v417
        %v2350 = vunpack.c.l.b16 %v418
        %v2351 = vunpack.c.l.b16 %v419
        %v2352 = vunpack.c.l.b16 %v420
        %v2353 = vunpack.c.l.b16 %v421
        %v2354 = vunpack.c.l.b16 %v422
        %v2355 = vunpack.c.l.b16 %v423
        %v2356 = vunpack.c.l.b16 %v424
        %v2357 = vunpack.c.l.b16 %v425
        %v2358 = vunpack.c.l.b16 %v426
        %v2359 = vunpack.c.l.b16 %v427
        %v2360 = vunpack.c.l.b16 %v428
        %v2361 = vunpack.c.l.b16 %v429
        %v2362 = vunpack.c.l.b16 %v430
        %v2363 = vunpack.c.l.b16 %v431
        %v2364 = vunpack.c.l.b16 %v432
        %v2365 = vunpack.c.l.b16 %v433
        %v2366 = vunpack.c.l.b16 %v434
        %v2367 = vunpack.c.l.b16 %v435
        %v2368 = vunpack.c.l.b16 %v436
        %v2369 = vunpack.c.l.b16 %v437
        %v2370 = vunpack.c.l.b16 %v438
        %v2371 = vunpack.c.l.b16 %v439
        %v2372 = vunpack.c.l.b16 %v440
        %v2373 = vunpack.c.l.b16 %v441
        %v2374 = vunpack.c.l.b16 %v442
        %v2375 = vunpack.c.l.b16 %v443
        %v2376 = vunpack.c.l.b16 %v444
        %v2377 = vunpack.c.l.b16 %v445
        %v2378 = vunpack.c.l.b16 %v446
        %v2379 = vunpack.c.l.b16 %v447
        %v2380 = vunpack.c.l.b16 %v448
        %v2381 = vunpack.c.l.b16 %v449
        %v2382 = vunpack.c.l.b16 %v450
        %v2383 = vunpack.c.l.b16 %v451
        %v2384 = vunpack.c.l.b16 %v452
        %v2385 = vunpack.c.l.b16 %v453
        %v2386 = vunpack.c.l.b16 %v454
        %v2387 = vunpack.c.l.b16 %v455
        %v2388 = vunpack.c.l.b16 %v456
        %v2389 = vunpack.c.l.b16 %v457
        %v2390 = vunpack.c.l.b16 %v458
        %v2391 = vunpack.c.l.b16 %v459
        %v2392 = vunpack.c.l.b16 %v460
        %v2393 = vunpack.c.l.b16 %v461
        %v2394 = vunpack.c.l.b16 %v462
        %v2395 = vunpack.c.l.b16 %v463
        %v2396 = vunpack.c.l.b16 %v464
        %v2397 = vunpack.c.l.b16 %v465
        %v2398 = vunpack.c.l.b16 %v466
        %v2399 = vunpack.c.l.b16 %v467
        %v2400 = vunpack.c.l.b16 %v468
        %v2401 = vunpack.c.l.b16 %v469
        %v2402 = vunpack.c.l.b16 %v470
        %v2403 = vunpack.c.l.b16 %v471
        %v2404 = vunpack.c.l.b16 %v472
        %v2405 = vunpack.c.l.b16 %v473
        %v2406 = vunpack.c.l.b16 %v474
        %v2407 = vunpack.c.l.b16 %v475
        %v2408 = vunpack.c.l.b16 %v476
        %v2409 = vunpack.c.l.b16 %v477
        %v2410 = vunpack.c.l.b16 %v478
        %v2411 = vunpack.c.l.b16 %v479
        %v2412 = vunpack.c.l.b16 %v480
        %v2413 = vunpack.c.l.b16 %v481
        %v2414 = vunpack.c.l.b16 %v482
        %v2415 = vunpack.c.l.b16 %v483
        %v2416 = vunpack.c.l.b16 %v484
        %v2417 = vunpack.c.l.b16 %v485
        %v2418 = vunpack.c.l.b16 %v486
        %v2419 = vunpack.c.l.b16 %v487
        %v2420 = vunpack.c.l.b16 %v488
        %v2421 = vunpack.c.l.b16 %v489
        %v2422 = vunpack.c.l.b16 %v490
        %v2423 = vunpack.c.l.b16 %v491
        %v2424 = vunpack.c.l.b16 %v492
        %v2425 = vunpack.c.l.b16 %v493
        %v2426 = vunpack.c.l.b16 %v494
        %v2427 = vunpack.c.l.b16 %v495
        %v2428 = vunpack.c.l.b16 %v496
        %v2429 = vunpack.c.l.b16 %v497
        %v2430 = vunpack.c.l.b16 %v498
        %v2431 = vunpack.c.l.b16 %v499
        %v2432 = vunpack.c.l.b16 %v500
        %v2433 = vunpack.c.l.b16 %v501
        %v2434 = vunpack.c.l.b16 %v502
        %v2435 = vunpack.c.l.b16 %v503
        %v2436 = vunpack.c.l.b16 %v504
        %v2437 = vunpack.c.l.b16 %v505
        %v2438 = vunpack.c.l.b16 %v506
        %v2439 = vunpack.c.l.b16 %v507
        %v2440 = vunpack.c.l.b16 %v508
        %v2441 = vunpack.c.l.b16 %v509
        %v2442 = vunpack.c.l.b16 %v510
        %v2443 = vunpack.c.l.b16 %v511
        %v2444 = vunpack.c.l.b16 %v512
        %v2445 = vunpack.c.l.b16 %v513
        %v2446 = vunpack.c.l.b16 %v514
        %v2447 = vunpack.c.l.b16 %v515
        %v2448 = vunpack.c.l.b16 %v516
        %v2449 = vunpack.c.l.b16 %v517
        %v2450 = vunpack.c.l.b16 %v518
        %v2451 = vunpack.c.l.b16 %v519
        %v2452 = vunpack.c.l.b16 %v520
        %v2453 = vunpack.c.l.b16 %v521
        %v2454 = vunpack.c.l.b16 %v522
        %v2455 = vunpack.c.l.b16 %v523
        %v2456 = vunpack.c.l.b16 %v524
        %v2457 = vunpack.c.l.b16 %v525
        %v2458 = vunpack.c.l.b16 %v526
        %v2459 = vunpack.c.l.b16 %v527
        %v2460 = vunpack.c.l.b16 %v528
        %v2461 = vunpack.c.l.b16 %v529
        %v2462 = vunpack.c.l.b16 %v530
        %v2463 = vunpack.c.l.b16 %v531
        %v2464 = vunpack.c.l.b16 %v532
        %v2465 = vunpack.c.l.b16 %v533
        %v2466 = vunpack.c.l.b16 %v534
        %v2467 = vunpack.c.l.b16 %v535
        %v2468 = vunpack.c.l.b16 %v536
        %v2469 = vunpack.c.l.b16 %v537
        %v2470 = vunpack.c.l.b16 %v538
        %v2471 = vunpack.c.l.b16 %v539
        %v2472 = vunpack.c.l.b16 %v540
        %v2473 = vunpack.c.l.b16 %v541
        %v2474 = vunpack.c.l.b16 %v542
        %v2475 = vunpack.c.l.b16 %v543
        %v2476 = vunpack.c.l.b16 %v544
        %v2477 = vunpack.c.l.b16 %v545
        %v2478 = vunpack.c.l.b16 %v546
        %v2479 = vunpack.c.l.b16 %v547
        %v2480 = vunpack.c.l.b16 %v548
        %v2481 = vunpack.c.l.b16 %v549
        %v2482 = vunpack.c.l.b16 %v550
        %v2483 = vunpack.c.l.b16 %v551
        %v2484 = vunpack.c.l.b16 %v552
        %v2485 = vunpack.c.l.b16 %v553
        %v2486 = vunpack.c.l.b16 %v554
        %v2487 = vunpack.c.l.b16 %v555
        %v2488 = vunpack.c.l.b16 %v556
        %v2489 = vunpack.c.l.b16 %v557
        %v2490 = vunpack.c.l.b16 %v558
        %v2491 = vunpack.c.l.b16 %v559
        %v2492 = vunpack.c.l.b16 %v560
        %v2493 = vunpack.c.l.b16 %v561
        %v2494 = vunpack.c.l.b16 %v562
        %v2495 = vunpack.c.l.b16 %v563
        %v2496 = vunpack.c.l.b16 %v564
        %v2497 = vunpack.c.l.b16 %v565
        %v2498 = vunpack.c.l.b16 %v566
        %v2499 = vunpack.c.l.b16 %v567
        %v2500 = vunpack.c.l.b16 %v568
        %v2501 = vunpack.c.l.b16 %v569
        %v2502 = vunpack.c.l.b16 %v570
        %v2503 = vunpack.c.l.b16 %v571
        %v2504 = vunpack.c.l.b16 %v572
        %v2505 = vunpack.c.l.b16 %v573
        %v2506 = vunpack.c.l.b16 %v574
        %v2507 = vunpack.c.l.b16 %v575
        %v2508 = vunpack.c.l.b16 %v576
        %v2509 = vunpack.c.l.b16 %v577
        %v2510 = vunpack.c.l.b16 %v578
        %v2511 = vunpack.c.l.b16 %v579
        %v2512 = vunpack.c.l.b16 %v580
        %v2513 = vunpack.c.l.b16 %v581
        %v2514 = vunpack.c.l.b16 %v582
        %v2515 = vunpack.c.l.b16 %v583
        %v2516 = vunpack.c.l.b16 %v584
        %v2517 = vunpack.c.l.b16 %v585
        %v2518 = vunpack.c.l.b16 %v586
        %v2519 = vunpack.c.l.b16 %v587
        %v2520 = vunpack.c.l.b16 %v588
        %v2521 = vunpack.c.l.b16 %v589
        %v2522 = vunpack.c.l.b16 %v590
        %v2523 = vunpack.c.l.b16 %v591
        %v2524 = vunpack.c.l.b16 %v592
        %v2525 = vunpack.c.l.b16 %v593
        %v2526 = vunpack.c.l.b16 %v594
        %v2527 = vunpack.c.l.b16 %v595
        %v2528 = vunpack.c.l.b16 %v596
        %v2529 = vunpack.c.l.b16 %v597
        %v2530 = vunpack.c.l.b16 %v598
        %v2531 = vunpack.c.l.b16 %v599
        %v2532 = vunpack.c.l.b16 %v600
        %v2533 = vunpack.c.l.b16 %v601
        %v2534 = vunpack.c.l.b16 %v602
        %v2535 = vunpack.c.l.b16 %v603
        %v2536 = vunpack.c.l.b16 %v604
        %v2537 = vunpack.c.l.b16 %v605
        %v2538 = vunpack.c.l.b16 %v606
        %v2539 = vunpack.c.l.b16 %v607
        %v2540 = vunpack.c.l.b16 %v608
        %v2541 = vunpack.c.l.b16 %v609
        %v2542 = vunpack.c.l.b16 %v610
        %v2543 = vunpack.c.l.b16 %v611
        %v2544 = vunpack.c.l.b16 %v612
        %v2545 = vunpack.c.l.b16 %v613
        %v2546 = vunpack.c.l.b16 %v614
        %v2547 = vunpack.c.l.b16 %v615
        %v2548 = vunpack.c.l.b16 %v616
        %v2549 = vunpack.c.l.b16 %v617
        %v2550 = vunpack.c.l.b16 %v618
        %v2551 = vunpack.c.l.b16 %v619
        %v2552 = vunpack.c.l.b16 %v620
        %v2553 = vunpack.c.l.b16 %v621
        %v2554 = vunpack.c.l.b16 %v622
        %v2555 = vunpack.c.l.b16 %v623
        %v2556 = vunpack.c.l.b16 %v624
        %v2557 = vunpack.c.l.b16 %v625
        %v2558 = vunpack.c.l.b16 %v626
        %v2559 = vunpack.c.l.b16 %v627
        %v2560 = vunpack.c.l.b16 %v628
        %v2561 = vunpack.c.l.b16 %v629
        %v2562 = vunpack.c.l.b16 %v630
        %v2563 = vunpack.c.l.b16 %v631
        %v2564 = vunpack.c.l.b16 %v632
        %v2565 = vunpack.c.l.b16 %v633
        %v2566 = vunpack.c.l.b16 %v634
        %v2567 = vunpack.c.l.b16 %v635
        %v2568 = vunpack.c.l.b16 %v636
        %v2569 = vunpack.c.l.b16 %v637
        %v2570 = vunpack.c.l.b16 %v638
        %v2571 = vunpack.c.l.b16 %v639
        %v2572 = vunpack.c.l.b16 %v640
        %v2573 = vunpack.c.l.b16 %v641
        %v2574 = vunpack.c.l.b16 %v642
        %v2575 = vunpack.c.l.b16 %v643
        %v2576 = vunpack.c.l.b16 %v644
        %v2577 = vunpack.c.l.b16 %v645
        %v2578 = vunpack.c.l.b16 %v646
        %v2579 = vunpack.c.l.b16 %v647
        %v2580 = vunpack.c.l.b16 %v648
        %v2581 = vunpack.c.l.b16 %v649
        %v2582 = vunpack.c.l.b16 %v650
        %v2583 = vunpack.c.l.b16 %v651
        %v2584 = vunpack.c.l.b16 %v652
        %v2585 = vunpack.c.l.b16 %v653
        %v2586 = vunpack.c.l.b16 %v654
        %v2587 = vunpack.c.l.b16 %v655
        %v2588 = vunpack.c.l.b16 %v656
        %v2589 = vunpack.c.l.b16 %v657
        %v2590 = vunpack.c.l.b16 %v658
        %v2591 = vunpack.c.l.b16 %v659
        %v2592 = vunpack.c.l.b16 %v660
        %v2593 = vunpack.c.l.b16 %v661
        %v2594 = vunpack.c.l.b16 %v662
        %v2595 = vunpack.c.l.b16 %v663
        %v2596 = vunpack.c.l.b16 %v664
        %v2597 = vunpack.c.l.b16 %v665
        %v2598 = vunpack.c.l.b16 %v666
        %v2599 = vunpack.c.l.b16 %v667
        %v2600 = vunpack.c.l.b16 %v668
        %v2601 = vunpack.c.l.b16 %v669
        %v2602 = vunpack.c.l.b16 %v670
        %v2603 = vunpack.c.l.b16 %v671
        %v2604 = vunpack.c.l.b16 %v672
        %v2605 = vunpack.c.l.b16 %v673
        %v2606 = vunpack.c.l.b16 %v674
        %v2607 = vunpack.c.l.b16 %v675
        %v2608 = vunpack.c.l.b16 %v676
        %v2609 = vunpack.c.l.b16 %v677
        %v2610 = vunpack.c.l.b16 %v678
        %v2611 = vunpack.c.l.b16 %v679
        %v2612 = vunpack.c.l.b16 %v680
        %v2613 = vunpack.c.l.b16 %v681
        %v2614 = vunpack.c.l.b16 %v682
        %v2615 = vunpack.c.l.b16 %v683
        %v2616 = vunpack.c.l.b16 %v684
        %v2617 = vunpack.c.l.b16 %v685
        %v2618 = vunpack.c.l.b16 %v686
        %v2619 = vunpack.c.l.b16 %v687
        %v2620 = vunpack.c.l.b16 %v688
        %v2621 = vunpack.c.l.b16 %v689
        %v2622 = vunpack.c.l.b16 %v690
        %v2623 = vunpack.c.l.b16 %v691
        %v2624 = vunpack.c.l.b16 %v692
        %v2625 = vunpack.c.l.b16 %v693
        %v2626 = vunpack.c.l.b16 %v694
        %v2627 = vunpack.c.l.b16 %v695
        %v2628 = vunpack.c.l.b16 %v696
        %v2629 = vunpack.c.l.b16 %v697
        %v2630 = vunpack.c.l.b16 %v698
        %v2631 = vunpack.c.l.b16 %v699
        %v2632 = vunpack.c.l.b16 %v700
        %v2633 = vunpack.c.l.b16 %v701
        %v2634 = vunpack.c.l.b16 %v702
        %v2635 = vunpack.c.l.b16 %v703
        %v2636 = vunpack.c.l.b16 %v704
        %v2637 = vunpack.c.l.b16 %v705
        %v2638 = vunpack.c.l.b16 %v706
        %v2639 = vunpack.c.l.b16 %v707
        %v2640 = vunpack.c.l.b16 %v708
        %v2641 = vunpack.c.l.b16 %v709
        %v2642 = vunpack.c.l.b16 %v710
        %v2643 = vunpack.c.l.b16 %v711
        %v2644 = vunpack.c.l.b16 %v712
        %v2645 = vunpack.c.l.b16 %v713
        %v2646 = vunpack.c.l.b16 %v714
        %v2647 = vunpack.c.l.b16 %v715
        %v2648 = vunpack.c.l.b16 %v716
        %v2649 = vunpack.c.l.b16 %v717
        %v2650 = vunpack.c.l.b16 %v718
        %v2651 = vunpack.c.l.b16 %v719
        %v2652 = vunpack.c.l.b16 %v720
        %v2653 = vunpack.c.l.b16 %v721
        %v2654 = vunpack.c.l.b16 %v722
        %v2655 = vunpack.c.l.b16 %v723
        %v2656 = vunpack.c.l.b16 %v724
        %v2657 = vunpack.c.l.b16 %v725
        %v2658 = vunpack.c.l.b16 %v726
        %v2659 = vunpack.c.l.b16 %v727
        %v2660 = vunpack.c.l.b16 %v728
        %v2661 = vunpack.c.l.b16 %v729
        %v2662 = vunpack.c.l.b16 %v730
        %v2663 = vunpack.c.l.b16 %v731
        %v2664 = vunpack.c.l.b16 %v732
        %v2665 = vunpack.c.l.b16 %v733
        %v2666 = vunpack.c.l.b16 %v734
        %v2667 = vunpack.c.l.b16 %v735
        %v2668 = vunpack.c.l.b16 %v736
        %v2669 = vunpack.c.l.b16 %v737
        %v2670 = vunpack.c.l.b16 %v738
        %v2671 = vunpack.c.l.b16 %v739
        %v2672 = vunpack.c.l.b16 %v740
        %v2673 = vunpack.c.l.b16 %v741
        %v2674 = vunpack.c.l.b16 %v742
        %v2675 = vunpack.c.l.b16 %v743
        %v2676 = vunpack.c.l.b16 %v744
        %v2677 = vunpack.c.l.b16 %v745
        %v2678 = vunpack.c.l.b16 %v746
        %v2679 = vunpack.c.l.b16 %v747
        %v2680 = vunpack.c.l.b16 %v748
        %v2681 = vunpack.c.l.b16 %v749
        %v2682 = vunpack.c.l.b16 %v750
        %v2683 = vunpack.c.l.b16 %v751
        %v2684 = vunpack.c.l.b16 %v752
        %v2685 = vunpack.c.l.b16 %v753
        %v2686 = vunpack.c.l.b16 %v754
        %v2687 = vunpack.c.l.b16 %v755
        %v2688 = vunpack.c.l.b16 %v756
        %v2689 = vunpack.c.l.b16 %v757
        %v2690 = vunpack.c.l.b16 %v758
        %v2691 = vunpack.c.l.b16 %v759
        %v2692 = vunpack.c.l.b16 %v760
        %v2693 = vunpack.c.l.b16 %v761
        %v2694 = vunpack.c.l.b16 %v762
        %v2695 = vunpack.c.l.b16 %v763
        %v2696 = vunpack.c.l.b16 %v764
        %v2697 = vunpack.c.l.b16 %v765
        %v2698 = vunpack.c.l.b16 %v766
        %v2699 = vunpack.c.l.b16 %v767
        %v2700 = vunpack.c.l.b16 %v768
        %v2701 = vunpack.c.l.b16 %v769
        %v2702 = vunpack.c.l.b16 %v770
        %v2703 = vunpack.c.l.b16 %v771
        %v2704 = vunpack.c.l.b16 %v772
        %v2705 = vunpack.c.l.b16 %v773
        %v2706 = vunpack.c.l.b16 %v774
        %v2707 = vunpack.c.l.b16 %v775
        %v2708 = vunpack.c.l.b16 %v776
        %v2709 = vunpack.c.l.b16 %v777
        %v2710 = vunpack.c.l.b16 %v778
        %v2711 = vunpack.c.l.b16 %v779
        %v2712 = vunpack.c.l.b16 %v780
        %v2713 = vunpack.c.l.b16 %v781
        %v2714 = vunpack.c.l.b16 %v782
        %v2715 = vunpack.c.l.b16 %v783
        %v2716 = vunpack.c.l.b16 %v784
        %v2717 = vunpack.c.l.b16 %v785
        %v2718 = vunpack.c.l.b16 %v786
        %v2719 = vunpack.c.l.b16 %v787
        %v2720 = vunpack.c.l.b16 %v788
        %v2721 = vunpack.c.l.b16 %v789
        %v2722 = vunpack.c.l.b16 %v790
        %v2723 = vunpack.c.l.b16 %v791
        %v2724 = vunpack.c.l.b16 %v792
        %v2725 = vunpack.c.l.b16 %v793
        %v2726 = vunpack.c.l.b16 %v794
        %v2727 = vunpack.c.l.b16 %v795
        %v2728 = vunpack.c.l.b16 %v796
        %v2729 = vunpack.c.l.b16 %v797
        %v2730 = vunpack.c.l.b16 %v798
        %v2731 = vunpack.c.l.b16 %v799
        %v2732 = vunpack.c.l.b16 %v800
        %v2733 = vunpack.c.l.b16 %v801
        %v2734 = vunpack.c.l.b16 %v802
        %v2735 = vunpack.c.l.b16 %v803
        %v2736 = vunpack.c.l.b16 %v804
        %v2737 = vunpack.c.l.b16 %v805
        %v2738 = vunpack.c.l.b16 %v806
        %v2739 = vunpack.c.l.b16 %v807
        %v2740 = vunpack.c.l.b16 %v808
        %v2741 = vunpack.c.l.b16 %v809
        %v2742 = vunpack.c.l.b16 %v810
        %v2743 = vunpack.c.l.b16 %v811
        %v2744 = vunpack.c.l.b16 %v812
        %v2745 = vunpack.c.l.b16 %v813
        %v2746 = vunpack.c.l.b16 %v814
        %v2747 = vunpack.c.l.b16 %v815
        %v2748 = vunpack.c.l.b16 %v816
        %v2749 = vunpack.c.l.b16 %v817
        %v2750 = vunpack.c.l.b16 %v818
        %v2751 = vunpack.c.l.b16 %v819
        %v2752 = vunpack.c.l.b16 %v820
        %v2753 = vunpack.c.l.b16 %v821
        %v2754 = vunpack.c.l.b16 %v822
        %v2755 = vunpack.c.l.b16 %v823
        %v2756 = vunpack.c.l.b16 %v824
        %v2757 = vunpack.c.l.b16 %v825
        %v2758 = vunpack.c.l.b16 %v826
        %v2759 = vunpack.c.l.b16 %v827
        %v2760 = vunpack.c.l.b16 %v828
        %v2761 = vunpack.c.l.b16 %v829
        %v2762 = vunpack.c.l.b16 %v830
        %v2763 = vunpack.c.l.b16 %v831
        %v2764 = vunpack.c.l.b16 %v832
        %v2765 = vunpack.c.l.b16 %v833
        %v2766 = vunpack.c.l.b16 %v834
        %v2767 = vunpack.c.l.b16 %v835
        %v2768 = vunpack.c.l.b16 %v836
        %v2769 = vunpack.c.l.b16 %v837
        %v2770 = vunpack.c.l.b16 %v838
        %v2771 = vunpack.c.l.b16 %v839
        %v2772 = vunpack.c.l.b16 %v840
        %v2773 = vunpack.c.l.b16 %v841
        %v2774 = vunpack.c.l.b16 %v842
        %v2775 = vunpack.c.l.b16 %v843
        %v2776 = vunpack.c.l.b16 %v844
        %v2777 = vunpack.c.l.b16 %v845
        %v2778 = vunpack.c.l.b16 %v846
        %v2779 = vunpack.c.l.b16 %v847
        %v2780 = vunpack.c.l.b16 %v848
        %v2781 = vunpack.c.l.b16 %v849
        %v2782 = vunpack.c.l.b16 %v850
        %v2783 = vunpack.c.l.b16 %v851
        %v2784 = vunpack.c.l.b16 %v852
        %v2785 = vunpack.c.l.b16 %v853
        %v2786 = vunpack.c.l.b16 %v854
        %v2787 = vunpack.c.l.b16 %v855
        %v2788 = vunpack.c.l.b16 %v856
        %v2789 = vunpack.c.l.b16 %v857
        %v2790 = vunpack.c.l.b16 %v858
        %v2791 = vunpack.c.l.b16 %v859
        %v2792 = vunpack.c.l.b16 %v860
        %v2793 = vunpack.c.l.b16 %v861
        %v2794 = vunpack.c.l.b16 %v862
        %v2795 = vunpack.c.l.b16 %v863
        %v2796 = vunpack.c.l.b16 %v864
        %v2797 = vunpack.c.l.b16 %v865
        %v2798 = vunpack.c.l.b16 %v866
        %v2799 = vunpack.c.l.b16 %v867
        %v2800 = vunpack.c.l.b16 %v868
        %v2801 = vunpack.c.l.b16 %v869
        %v2802 = vunpack.c.l.b16 %v870
        %v2803 = vunpack.c.l.b16 %v871
        %v2804 = vunpack.c.l.b16 %v872
        %v2805 = vunpack.c.l.b16 %v873
        %v2806 = vunpack.c.l.b16 %v874
        %v2807 = vunpack.c.l.b16 %v875
        %v2808 = vunpack.c.l.b16 %v876
        %v2809 = vunpack.c.l.b16 %v877
        %v2810 = vunpack.c.l.b16 %v878
        %v2811 = vunpack.c.l.b16 %v879
        %v2812 = vunpack.c.l.b16 %v880
        %v2813 = vunpack.c.l.b16 %v881
        %v2814 = vunpack.c.l.b16 %v882
        %v2815 = vunpack.c.l.b16 %v883
        %v2816 = vunpack.c.l.b16 %v884
        %v2817 = vunpack.c.l.b16 %v885
        %v2818 = vunpack.c.l.b16 %v886
        %v2819 = vunpack.c.l.b16 %v887
        %v2820 = vunpack.c.l.b16 %v888
        %v2821 = vunpack.c.l.b16 %v889
        %v2822 = vunpack.c.l.b16 %v890
        %v2823 = vunpack.c.l.b16 %v891
        %v2824 = vunpack.c.l.b16 %v892
        %v2825 = vunpack.c.l.b16 %v893
        %v2826 = vunpack.c.l.b16 %v894
        %v2827 = vunpack.c.l.b16 %v895
        %v2828 = vunpack.c.l.b16 %v896
        %v2829 = vunpack.c.l.b16 %v897
        %v2830 = vunpack.c.l.b16 %v898
        %v2831 = vunpack.c.l.b16 %v899
        %v2832 = vunpack.c.l.b16 %v900
        %v2833 = vunpack.c.l.b16 %v901
        %v2834 = vunpack.c.l.b16 %v902
        %v2835 = vunpack.c.l.b16 %v903
        %v2836 = vunpack.c.l.b16 %v904
        %v2837 = vunpack.c.l.b16 %v905
        %v2838 = vunpack.c.l.b16 %v906
        %v2839 = vunpack.c.l.b16 %v907
        %v2840 = vunpack.c.l.b16 %v908
        %v2841 = vunpack.c.l.b16 %v909
        %v2842 = vunpack.c.l.b16 %v910
        %v2843 = vunpack.c.l.b16 %v911
        %v2844 = vunpack.c.l.b16 %v912
        %v2845 = vunpack.c.l.b16 %v913
        %v2846 = vunpack.c.l.b16 %v914
        %v2847 = vunpack.c.l.b16 %v915
        %v2848 = vunpack.c.l.b16 %v916
        %v2849 = vunpack.c.l.b16 %v917
        %v2850 = vunpack.c.l.b16 %v918
        %v2851 = vunpack.c.l.b16 %v919
        %v2852 = vunpack.c.l.b16 %v920
        %v2853 = vunpack.c.l.b16 %v921
        %v2854 = vunpack.c.l.b16 %v922
        %v2855 = vunpack.c.l.b16 %v923
        %v2856 = vunpack.c.l.b16 %v924
        %v2857 = vunpack.c.l.b16 %v925
        %v2858 = vunpack.c.l.b16 %v926
        %v2859 = vunpack.c.l.b16 %v927
        %v2860 = vunpack.c.l.b16 %v928
        %v2861 = vunpack.c.l.b16 %v929
        %v2862 = vunpack.c.l.b16 %v930
        %v2863 = vunpack.c.l.b16 %v931
        %v2864 = vunpack.c.l.b16 %v932
        %v2865 = vunpack.c.l.b16 %v933
        %v2866 = vunpack.c.l.b16 %v934
        %v2867 = vunpack.c.l.b16 %v935
        %v2868 = vunpack.c.l.b16 %v936
        %v2869 = vunpack.c.l.b16 %v937
        %v2870 = vunpack.c.l.b16 %v938
        %v2871 = vunpack.c.l.b16 %v939
        %v2872 = vunpack.c.l.b16 %v940
        %v2873 = vunpack.c.l.b16 %v941
        %v2874 = vunpack.c.l.b16 %v942
        %v2875 = vunpack.c.l.b16 %v943
        %v2876 = vunpack.c.l.b16 %v944
        %v2877 = vunpack.c.l.b16 %v945
        %v2878 = vunpack.c.l.b16 %v946
        %v2879 = vunpack.c.l.b16 %v947
        %v2880 = vunpack.c.l.b16 %v948
        %v2881 = vunpack.c.l.b16 %v949
        %v2882 = vunpack.c.l.b16 %v950
        %v2883 = vunpack.c.l.b16 %v951
        %v2884 = vunpack.c.l.b16 %v952
        %v2885 = vunpack.c.l.b16 %v953
        %v2886 = vunpack.c.l.b16 %v954
        %v2887 = vunpack.c.l.b16 %v955
        %v2888 = vunpack.c.l.b16 %v956
        %v2889 = vunpack.c.l.b16 %v957
        %v2890 = vunpack.c.l.b16 %v958
        %v2891 = vunpack.c.l.b16 %v959
        %v2892 = vunpack.c.l.b16 %v960
        %v2893 = vunpack.c.l.b16 %v961
        %v2894 = vunpack.c.l.b16 %v962
        %v2895 = vunpack.c.l.b16 %v963
        %v2896 = vunpack.c.l.b16 %v964
        %v2897 = vunpack.c.l.b16 %v965
        %v2898 = vunpack.c.l.b16 %v966
        %v2899 = vunpack.c.l.b16 %v967
        %v2900 = vunpack.c.l.b16 %v968
        %v2901 = vunpack.c.l.b16 %v969
        %v2902 = vunpack.c.l.b16 %v970
        %v2903 = vunpack.c.l.b16 %v971
        %v2904 = vunpack.c.l.b16 %v972
        %v2905 = vunpack.c.l.b16 %v973
        %v2906 = vunpack.c.l.b16 %v974
        %v2907 = vunpack.c.l.b16 %v975
        %v2908 = vunpack.c.l.b16 %v976
        %v2909 = vpack.c.b16 %v2126, %v2125
        %v2910 = vpack.c.b16 %v2128, %v2127
        %v2911 = vpack.c.b16 %v2130, %v2129
        %v2912 = vpack.c.b16 %v2132, %v2131
        %v2913 = vpack.c.b16 %v2134, %v2133
        %v2914 = vpack.c.b16 %v2136, %v2135
        %v2915 = vpack.c.b16 %v2138, %v2137
        %v2916 = vpack.c.b16 %v2140, %v2139
        %v2917 = vpack.c.b16 %v2142, %v2141
        %v2918 = vpack.c.b16 %v2144, %v2143
        %v2919 = vpack.c.b16 %v2146, %v2145
        %v2920 = vpack.c.b16 %v2148, %v2147
        %v2921 = vpack.c.b16 %v2150, %v2149
        %v2922 = vpack.c.b16 %v2152, %v2151
        %v2923 = vpack.c.b16 %v2154, %v2153
        %v2924 = vpack.c.b16 %v2156, %v2155
        %v2925 = vpack.c.b16 %v2158, %v2157
        %v2926 = vpack.c.b16 %v2160, %v2159
        %v2927 = vpack.c.b16 %v2162, %v2161
        %v2928 = vpack.c.b16 %v2164, %v2163
        %v2929 = vpack.c.b16 %v2166, %v2165
        %v2930 = vpack.c.b16 %v2168, %v2167
        %v2931 = vpack.c.b16 %v2170, %v2169
        %v2932 = vpack.c.b16 %v2172, %v2171
        %v2933 = vpack.c.b16 %v2174, %v2173
        %v2934 = vpack.c.b16 %v2176, %v2175
        %v2935 = vpack.c.b16 %v2178, %v2177
        %v2936 = vpack.c.b16 %v2180, %v2179
        %v2937 = vpack.c.b16 %v2182, %v2181
        %v2938 = vpack.c.b16 %v2184, %v2183
        %v2939 = vpack.c.b16 %v2186, %v2185
        %v2940 = vpack.c.b16 %v2188, %v2187
        %v2941 = vpack.c.b16 %v2190, %v2189
        %v2942 = vpack.c.b16 %v2192, %v2191
        %v2943 = vpack.c.b16 %v2194, %v2193
        %v2944 = vpack.c.b16 %v2196, %v2195
        %v2945 = vpack.c.b16 %v2198, %v2197
        %v2946 = vpack.c.b16 %v2200, %v2199
        %v2947 = vpack.c.b16 %v2202, %v2201
        %v2948 = vpack.c.b16 %v2204, %v2203
        %v2949 = vpack.c.b16 %v2206, %v2205
        %v2950 = vpack.c.b16 %v2208, %v2207
        %v2951 = vpack.c.b16 %v2210, %v2209
        %v2952 = vpack.c.b16 %v2212, %v2211
        %v2953 = vpack.c.b16 %v2214, %v2213
        %v2954 = vpack.c.b16 %v2216, %v2215
        %v2955 = vpack.c.b16 %v2218, %v2217
        %v2956 = vpack.c.b16 %v2220, %v2219
        %v2957 = vpack.c.b16 %v2222, %v2221
        %v2958 = vpack.c.b16 %v2224, %v2223
        %v2959 = vpack.c.b16 %v2226, %v2225
        %v2960 = vpack.c.b16 %v2228, %v2227
        %v2961 = vpack.c.b16 %v2230, %v2229
        %v2962 = vpack.c.b16 %v2232, %v2231
        %v2963 = vpack.c.b16 %v2234, %v2233
        %v2964 = vpack.c.b16 %v2236, %v2235
        %v2965 = vpack.c.b16 %v2238, %v2237
        %v2966 = vpack.c.b16 %v2240, %v2239
        %v2967 = vpack.c.b16 %v2242, %v2241
        %v2968 = vpack.c.b16 %v2244, %v2243
        %v2969 = vpack.c.b16 %v2246, %v2245
        %v2970 = vpack.c.b16 %v2248, %v2247
        %v2971 = vpack.c.b16 %v2250, %v2249
        %v2972 = vpack.c.b16 %v2252, %v2251
        %v2973 = vpack.c.b16 %v2254, %v2253
        %v2974 = vpack.c.b16 %v2256, %v2255
        %v2975 = vpack.c.b16 %v2258, %v2257
        %v2976 = vpack.c.b16 %v2260, %v2259
        %v2977 = vpack.c.b16 %v2262, %v2261
        %v2978 = vpack.c.b16 %v2264, %v2263
        %v2979 = vpack.c.b16 %v2266, %v2265
        %v2980 = vpack.c.b16 %v2268, %v2267
        %v2981 = vpack.c.b16 %v2270, %v2269
        %v2982 = vpack.c.b16 %v2272, %v2271
        %v2983 = vpack.c.b16 %v2274, %v2273
        %v2984 = vpack.c.b16 %v2276, %v2275
        %v2985 = vpack.c.b16 %v2278, %v2277
        %v2986 = vpack.c.b16 %v2280, %v2279
        %v2987 = vpack.c.b16 %v2282, %v2281
        %v2988 = vpack.c.b16 %v2284, %v2283
        %v2989 = vpack.c.b16 %v2286, %v2285
        %v2990 = vpack.c.b16 %v2288, %v2287
        %v2991 = vpack.c.b16 %v2290, %v2289
        %v2992 = vpack.c.b16 %v2292, %v2291
        %v2993 = vpack.c.b16 %v2294, %v2293
        %v2994 = vpack.c.b16 %v2296, %v2295
        %v2995 = vpack.c.b16 %v2298, %v2297
        %v2996 = vpack.c.b16 %v2300, %v2299
        %v2997 = vpack.c.b16 %v2302, %v2301
        %v2998 = vpack.c.b16 %v2304, %v2303
        %v2999 = vpack.c.b16 %v2306, %v2305
        %v3000 = vpack.c.b16 %v2308, %v2307
        %v3001 = vpack.c.b16 %v2310, %v2309
        %v3002 = vpack.c.b16 %v2312, %v2311
        %v3003 = vpack.c.b16 %v2314, %v2313
        %v3004 = vpack.c.b16 %v2316, %v2315
        %v3005 = vpack.c.b16 %v2318, %v2317
        %v3006 = vpack.c.b16 %v2320, %v2319
        %v3007 = vpack.c.b16 %v2322, %v2321
        %v3008 = vpack.c.b16 %v2324, %v2323
        %v3009 = vpack.c.b16 %v2326, %v2325
        %v3010 = vpack.c.b16 %v2328, %v2327
        %v3011 = vpack.c.b16 %v2330, %v2329
        %v3012 = vpack.c.b16 %v2332, %v2331
        %v3013 = vpack.c.b16 %v2334, %v2333
        %v3014 = vpack.c.b16 %v2336, %v2335
        %v3015 = vpack.c.b16 %v2338, %v2337
        %v3016 = vpack.c.b16 %v2340, %v2339
        %v3017 = vpack.c.b16 %v2342, %v2341
        %v3018 = vpack.c.b16 %v2344, %v2343
        %v3019 = vpack.c.b16 %v2346, %v2345
        %v3020 = vpack.c.b16 %v2348, %v2347
        %v3021 = vpack.c.b16 %v2350, %v2349
        %v3022 = vpack.c.b16 %v2352, %v2351
        %v3023 = vpack.c.b16 %v2354, %v2353
        %v3024 = vpack.c.b16 %v2356, %v2355
        %v3025 = vpack.c.b16 %v2358, %v2357
        %v3026 = vpack.c.b16 %v2360, %v2359
        %v3027 = vpack.c.b16 %v2362, %v2361
        %v3028 = vpack.c.b16 %v2364, %v2363
        %v3029 = vpack.c.b16 %v2366, %v2365
        %v3030 = vpack.c.b16 %v2368, %v2367
        %v3031 = vpack.c.b16 %v2370, %v2369
        %v3032 = vpack.c.b16 %v2372, %v2371
        %v3033 = vpack.c.b16 %v2374, %v2373
        %v3034 = vpack.c.b16 %v2376, %v2375
        %v3035 = vpack.c.b16 %v2378, %v2377
        %v3036 = vpack.c.b16 %v2380, %v2379
        %v3037 = vpack.c.b16 %v2382, %v2381
        %v3038 = vpack.c.b16 %v2384, %v2383
        %v3039 = vpack.c.b16 %v2386, %v2385
        %v3040 = vpack.c.b16 %v2388, %v2387
        %v3041 = vpack.c.b16 %v2390, %v2389
        %v3042 = vpack.c.b16 %v2392, %v2391
        %v3043 = vpack.c.b16 %v2394, %v2393
        %v3044 = vpack.c.b16 %v2396, %v2395
        %v3045 = vpack.c.b16 %v2398, %v2397
        %v3046 = vpack.c.b16 %v2400, %v2399
        %v3047 = vpack.c.b16 %v2402, %v2401
        %v3048 = vpack.c.b16 %v2404, %v2403
        %v3049 = vpack.c.b16 %v2406, %v2405
        %v3050 = vpack.c.b16 %v2408, %v2407
        %v3051 = vpack.c.b16 %v2410, %v2409
        %v3052 = vpack.c.b16 %v2412, %v2411
        %v3053 = vpack.c.b16 %v2414, %v2413
        %v3054 = vpack.c.b16 %v2416, %v2415
        %v3055 = vpack.c.b16 %v2418, %v2417
        %v3056 = vpack.c.b16 %v2420, %v2419
        %v3057 = vpack.c.b16 %v2422, %v2421
        %v3058 = vpack.c.b16 %v2424, %v2423
        %v3059 = vpack.c.b16 %v2426, %v2425
        %v3060 = vpack.c.b16 %v2428, %v2427
        %v3061 = vpack.c.b16 %v2430, %v2429
        %v3062 = vpack.c.b16 %v2432, %v2431
        %v3063 = vpack.c.b16 %v2434, %v2433
        %v3064 = vpack.c.b16 %v2436, %v2435
        %v3065 = vpack.c.b16 %v2438, %v2437
        %v3066 = vpack.c.b16 %v2440, %v2439
        %v3067 = vpack.c.b16 %v2442, %v2441
        %v3068 = vpack.c.b16 %v2444, %v2443
        %v3069 = vpack.c.b16 %v2446, %v2445
        %v3070 = vpack.c.b16 %v2448, %v2447
        %v3071 = vpack.c.b16 %v2450, %v2449
        %v3072 = vpack.c.b16 %v2452, %v2451
        %v3073 = vpack.c.b16 %v2454, %v2453
        %v3074 = vpack.c.b16 %v2456, %v2455
        %v3075 = vpack.c.b16 %v2458, %v2457
        %v3076 = vpack.c.b16 %v2460, %v2459
        %v3077 = vpack.c.b16 %v2462, %v2461
        %v3078 = vpack.c.b16 %v2464, %v2463
        %v3079 = vpack.c.b16 %v2466, %v2465
        %v3080 = vpack.c.b16 %v2468, %v2467
        %v3081 = vpack.c.b16 %v2470, %v2469
        %v3082 = vpack.c.b16 %v2472, %v2471
        %v3083 = vpack.c.b16 %v2474, %v2473
        %v3084 = vpack.c.b16 %v2476, %v2475
        %v3085 = vpack.c.b16 %v2478, %v2477
        %v3086 = vpack.c.b16 %v2480, %v2479
        %v3087 = vpack.c.b16 %v2482, %v2481
        %v3088 = vpack.c.b16 %v2484, %v2483
        %v3089 = vpack.c.b16 %v2486, %v2485
        %v3090 = vpack.c.b16 %v2488, %v2487
        %v3091 = vpack.c.b16 %v2490, %v2489
        %v3092 = vpack.c.b16 %v2492, %v2491
        %v3093 = vpack.c.b16 %v2494, %v2493
        %v3094 = vpack.c.b16 %v2496, %v2495
        %v3095 = vpack.c.b16 %v2498, %v2497
        %v3096 = vpack.c.b16 %v2500, %v2499
        %v3097 = vpack.c.b16 %v2502, %v2501
        %v3098 = vpack.c.b16 %v2504, %v2503
        %v3099 = vpack.c.b16 %v2506, %v2505
        %v3100 = vpack.c.b16 %v2508, %v2507
        %v3101 = vpack.c.b16 %v2510, %v2509
        %v3102 = vpack.c.b16 %v2512, %v2511
        %v3103 = vpack.c.b16 %v2514, %v2513
        %v3104 = vpack.c.b16 %v2516, %v2515
        %v3105 = vpack.c.b16 %v2518, %v2517
        %v3106 = vpack.c.b16 %v2520, %v2519
        %v3107 = vpack.c.b16 %v2522, %v2521
        %v3108 = vpack.c.b16 %v2524, %v2523
        %v3109 = vpack.c.b16 %v2526, %v2525
        %v3110 = vpack.c.b16 %v2528, %v2527
        %v3111 = vpack.c.b16 %v2530, %v2529
        %v3112 = vpack.c.b16 %v2532, %v2531
        %v3113 = vpack.c.b16 %v2534, %v2533
        %v3114 = vpack.c.b16 %v2536, %v2535
        %v3115 = vpack.c.b16 %v2538, %v2537
        %v3116 = vpack.c.b16 %v2540, %v2539
        %v3117 = vpack.c.b16 %v2542, %v2541
        %v3118 = vpack.c.b16 %v2544, %v2543
        %v3119 = vpack.c.b16 %v2546, %v2545
        %v3120 = vpack.c.b16 %v2548, %v2547
        %v3121 = vpack.c.b16 %v2550, %v2549
        %v3122 = vpack.c.b16 %v2552, %v2551
        %v3123 = vpack.c.b16 %v2554, %v2553
        %v3124 = vpack.c.b16 %v2556, %v2555
        %v3125 = vpack.c.b16 %v2558, %v2557
        %v3126 = vpack.c.b16 %v2560, %v2559
        %v3127 = vpack.c.b16 %v2562, %v2561
        %v3128 = vpack.c.b16 %v2564, %v2563
        %v3129 = vpack.c.b16 %v2566, %v2565
        %v3130 = vpack.c.b16 %v2568, %v2567
        %v3131 = vpack.c.b16 %v2570, %v2569
        %v3132 = vpack.c.b16 %v2572, %v2571
        %v3133 = vpack.c.b16 %v2574, %v2573
        %v3134 = vpack.c.b16 %v2576, %v2575
        %v3135 = vpack.c.b16 %v2578, %v2577
        %v3136 = vpack.c.b16 %v2580, %v2579
        %v3137 = vpack.c.b16 %v2582, %v2581
        %v3138 = vpack.c.b16 %v2584, %v2583
        %v3139 = vpack.c.b16 %v2586, %v2585
        %v3140 = vpack.c.b16 %v2588, %v2587
        %v3141 = vpack.c.b16 %v2590, %v2589
        %v3142 = vpack.c.b16 %v2592, %v2591
        %v3143 = vpack.c.b16 %v2594, %v2593
        %v3144 = vpack.c.b16 %v2596, %v2595
        %v3145 = vpack.c.b16 %v2598, %v2597
        %v3146 = vpack.c.b16 %v2600, %v2599
        %v3147 = vpack.c.b16 %v2602, %v2601
        %v3148 = vpack.c.b16 %v2604, %v2603
        %v3149 = vpack.c.b16 %v2606, %v2605
        %v3150 = vpack.c.b16 %v2608, %v2607
        %v3151 = vpack.c.b16 %v2610, %v2609
        %v3152 = vpack.c.b16 %v2612, %v2611
        %v3153 = vpack.c.b16 %v2614, %v2613
        %v3154 = vpack.c.b16 %v2616, %v2615
        %v3155 = vpack.c.b16 %v2618, %v2617
        %v3156 = vpack.c.b16 %v2620, %v2619
        %v3157 = vpack.c.b16 %v2622, %v2621
        %v3158 = vpack.c.b16 %v2624, %v2623
        %v3159 = vpack.c.b16 %v2626, %v2625
        %v3160 = vpack.c.b16 %v2628, %v2627
        %v3161 = vpack.c.b16 %v2630, %v2629
        %v3162 = vpack.c.b16 %v2632, %v2631
        %v3163 = vpack.c.b16 %v2634, %v2633
        %v3164 = vpack.c.b16 %v2636, %v2635
        %v3165 = vpack.c.b16 %v2638, %v2637
        %v3166 = vpack.c.b16 %v2640, %v2639
        %v3167 = vpack.c.b16 %v2642, %v2641
        %v3168 = vpack.c.b16 %v2644, %v2643
        %v3169 = vpack.c.b16 %v2646, %v2645
        %v3170 = vpack.c.b16 %v2648, %v2647
        %v3171 = vpack.c.b16 %v2650, %v2649
        %v3172 = vpack.c.b16 %v2652, %v2651
        %v3173 = vpack.c.b16 %v2654, %v2653
        %v3174 = vpack.c.b16 %v2656, %v2655
        %v3175 = vpack.c.b16 %v2658, %v2657
        %v3176 = vpack.c.b16 %v2660, %v2659
        %v3177 = vpack.c.b16 %v2662, %v2661
        %v3178 = vpack.c.b16 %v2664, %v2663
        %v3179 = vpack.c.b16 %v2666, %v2665
        %v3180 = vpack.c.b16 %v2668, %v2667
        %v3181 = vpack.c.b16 %v2670, %v2669
        %v3182 = vpack.c.b16 %v2672, %v2671
        %v3183 = vpack.c.b16 %v2674, %v2673
        %v3184 = vpack.c.b16 %v2676, %v2675
        %v3185 = vpack.c.b16 %v2678, %v2677
        %v3186 = vpack.c.b16 %v2680, %v2679
        %v3187 = vpack.c.b16 %v2682, %v2681
        %v3188 = vpack.c.b16 %v2684, %v2683
        %v3189 = vpack.c.b16 %v2686, %v2685
        %v3190 = vpack.c.b16 %v2688, %v2687
        %v3191 = vpack.c.b16 %v2690, %v2689
        %v3192 = vpack.c.b16 %v2692, %v2691
        %v3193 = vpack.c.b16 %v2694, %v2693
        %v3194 = vpack.c.b16 %v2696, %v2695
        %v3195 = vpack.c.b16 %v2698, %v2697
        %v3196 = vpack.c.b16 %v2700, %v2699
        %v3197 = vpack.c.b16 %v2702, %v2701
        %v3198 = vpack.c.b16 %v2704, %v2703
        %v3199 = vpack.c.b16 %v2706, %v2705
        %v3200 = vpack.c.b16 %v2708, %v2707
        %v3201 = vpack.c.b16 %v2710, %v2709
        %v3202 = vpack.c.b16 %v2712, %v2711
        %v3203 = vpack.c.b16 %v2714, %v2713
        %v3204 = vpack.c.b16 %v2716, %v2715
        %v3205 = vpack.c.b16 %v2718, %v2717
        %v3206 = vpack.c.b16 %v2720, %v2719
        %v3207 = vpack.c.b16 %v2722, %v2721
        %v3208 = vpack.c.b16 %v2724, %v2723
        %v3209 = vpack.c.b16 %v2726, %v2725
        %v3210 = vpack.c.b16 %v2728, %v2727
        %v3211 = vpack.c.b16 %v2730, %v2729
        %v3212 = vpack.c.b16 %v2732, %v2731
        %v3213 = vpack.c.b16 %v2734, %v2733
        %v3214 = vpack.c.b16 %v2736, %v2735
        %v3215 = vpack.c.b16 %v2738, %v2737
        %v3216 = vpack.c.b16 %v2740, %v2739
        %v3217 = vpack.c.b16 %v2742, %v2741
        %v3218 = vpack.c.b16 %v2744, %v2743
        %v3219 = vpack.c.b16 %v2746, %v2745
        %v3220 = vpack.c.b16 %v2748, %v2747
        %v3221 = vpack.c.b16 %v2750, %v2749
        %v3222 = vpack.c.b16 %v2752, %v2751
        %v3223 = vpack.c.b16 %v2754, %v2753
        %v3224 = vpack.c.b16 %v2756, %v2755
        %v3225 = vpack.c.b16 %v2758, %v2757
        %v3226 = vpack.c.b16 %v2760, %v2759
        %v3227 = vpack.c.b16 %v2762, %v2761
        %v3228 = vpack.c.b16 %v2764, %v2763
        %v3229 = vpack.c.b16 %v2766, %v2765
        %v3230 = vpack.c.b16 %v2768, %v2767
        %v3231 = vpack.c.b16 %v2770, %v2769
        %v3232 = vpack.c.b16 %v2772, %v2771
        %v3233 = vpack.c.b16 %v2774, %v2773
        %v3234 = vpack.c.b16 %v2776, %v2775
        %v3235 = vpack.c.b16 %v2778, %v2777
        %v3236 = vpack.c.b16 %v2780, %v2779
        %v3237 = vpack.c.b16 %v2782, %v2781
        %v3238 = vpack.c.b16 %v2784, %v2783
        %v3239 = vpack.c.b16 %v2786, %v2785
        %v3240 = vpack.c.b16 %v2788, %v2787
        %v3241 = vpack.c.b16 %v2790, %v2789
        %v3242 = vpack.c.b16 %v2792, %v2791
        %v3243 = vpack.c.b16 %v2794, %v2793
        %v3244 = vpack.c.b16 %v2796, %v2795
        %v3245 = vpack.c.b16 %v2798, %v2797
        %v3246 = vpack.c.b16 %v2800, %v2799
        %v3247 = vpack.c.b16 %v2802, %v2801
        %v3248 = vpack.c.b16 %v2804, %v2803
        %v3249 = vpack.c.b16 %v2806, %v2805
        %v3250 = vpack.c.b16 %v2808, %v2807
        %v3251 = vpack.c.b16 %v2810, %v2809
        %v3252 = vpack.c.b16 %v2812, %v2811
        %v3253 = vpack.c.b16 %v2814, %v2813
        %v3254 = vpack.c.b16 %v2816, %v2815
        %v3255 = vpack.c.b16 %v2818, %v2817
        %v3256 = vpack.c.b16 %v2820, %v2819
        %v3257 = vpack.c.b16 %v2822, %v2821
        %v3258 = vpack.c.b16 %v2824, %v2823
        %v3259 = vpack.c.b16 %v2826, %v2825
        %v3260 = vpack.c.b16 %v2828, %v2827
        %v3261 = vpack.c.b16 %v2830, %v2829
        %v3262 = vpack.c.b16 %v2832, %v2831
        %v3263 = vpack.c.b16 %v2834, %v2833
        %v3264 = vpack.c.b16 %v2836, %v2835
        %v3265 = vpack.c.b16 %v2838, %v2837
        %v3266 = vpack.c.b16 %v2840, %v2839
        %v3267 = vpack.c.b16 %v2842, %v2841
        %v3268 = vpack.c.b16 %v2844, %v2843
        %v3269 = vpack.c.b16 %v2846, %v2845
        %v3270 = vpack.c.b16 %v2848, %v2847
        %v3271 = vpack.c.b16 %v2850, %v2849
        %v3272 = vpack.c.b16 %v2852, %v2851
        %v3273 = vpack.c.b16 %v2854, %v2853
        %v3274 = vpack.c.b16 %v2856, %v2855
        %v3275 = vpack.c.b16 %v2858, %v2857
        %v3276 = vpack.c.b16 %v2860, %v2859
        %v3277 = vpack.c.b16 %v2862, %v2861
        %v3278 = vpack.c.b16 %v2864, %v2863
        %v3279 = vpack.c.b16 %v2866, %v2865
        %v3280 = vpack.c.b16 %v2868, %v2867
        %v3281 = vpack.c.b16 %v2870, %v2869
        %v3282 = vpack.c.b16 %v2872, %v2871
        %v3283 = vpack.c.b16 %v2874, %v2873
        %v3284 = vpack.c.b16 %v2876, %v2875
        %v3285 = vpack.c.b16 %v2878, %v2877
        %v3286 = vpack.c.b16 %v2880, %v2879
        %v3287 = vpack.c.b16 %v2882, %v2881
        %v3288 = vpack.c.b16 %v2884, %v2883
        %v3289 = vpack.c.b16 %v2886, %v2885
        %v3290 = vpack.c.b16 %v2888, %v2887
        %v3291 = vpack.c.b16 %v2890, %v2889
        %v3292 = vpack.c.b16 %v2892, %v2891
        %v3293 = vpack.c.b16 %v2894, %v2893
        %v3294 = vpack.c.b16 %v2896, %v2895
        %v3295 = vpack.c.b16 %v2898, %v2897
        %v3296 = vpack.c.b16 %v2900, %v2899
        %v3297 = vpack.c.b16 %v2902, %v2901
        %v3298 = vpack.c.b16 %v2904, %v2903
        %v3299 = vpack.c.b16 %v2906, %v2905
        %v3300 = vpack.c.b16 %v2908, %v2907
        %3693 = vmatprep.subr.bf16.mxu0 0
        %3694 = vmatpush1.bf16.msra.mxu0 %v2916
        %3695 = vmatprep.subr.bf16.mxu0 0
        %3696 = vmatpush1.bf16.msra.mxu0 %v2915
        %3697 = vmatprep.subr.bf16.mxu0 0
        %3698 = vmatpush1.bf16.msra.mxu0 %v2914
        %3699 = vmatprep.subr.bf16.mxu0 0
        %3700 = vmatpush1.bf16.msra.mxu0 %v2913
        %3701 = vmatprep.subr.bf16.mxu0 0
        %3702 = vmatpush1.bf16.msra.mxu0 %v2912
        %3703 = vmatprep.subr.bf16.mxu0 0
        %3704 = vmatpush1.bf16.msra.mxu0 %v2911
        %3705 = vmatprep.subr.bf16.mxu0 0
        %3706 = vmatpush1.bf16.msra.mxu0 %v2910
        %3707 = vmatprep.subr.bf16.mxu0 0
        %3708 = vmatpush1.bf16.msra.mxu0 %v2909
        %3709 = vmatprep.subr.bf16.mxu0 0
        %3710 = vmatpush2.bf16.msra.mxu0 %v2924
        %3711 = vmatprep.subr.bf16.mxu0 0
        %3712 = vmatpush2.bf16.msra.mxu0 %v2923
        %3713 = vmatprep.subr.bf16.mxu0 0
        %3714 = vmatpush2.bf16.msra.mxu0 %v2922
        %3715 = vmatprep.subr.bf16.mxu0 0
        %3716 = vmatpush2.bf16.msra.mxu0 %v2921
        %3717 = vmatprep.subr.bf16.mxu0 0
        %3718 = vmatpush2.bf16.msra.mxu0 %v2920
        %3719 = vmatprep.subr.bf16.mxu0 0
        %3720 = vmatpush2.bf16.msra.mxu0 %v2919
        %3721 = vmatprep.subr.bf16.mxu0 0
        %3722 = vmatpush2.bf16.msra.mxu0 %v2918
        %3723 = vmatprep.subr.bf16.mxu0 0
        %3724 = vmatpush2.bf16.msra.mxu0 %v2917
        %3725 = vmatprep.mubr.bf16.mxu0 %v1021
        %3726 = vmatmul.mubr.bf16.gmra.mxu0 %v1007
        %v3727 = vpop.f32.mrf.mxu0
        %v3728 = vadd.f32 0.0, %v3727
        %v3729 = vpop.f32.mrf.mxu0
        %v3730 = vpop.f32.mrf.mxu0
        %v3731 = vpop.f32.mrf.mxu0
        %3732 = vdwg.mxu0
        %3733 = vmatprep.subr.bf16.mxu0 0
        %3734 = vmatpush1.bf16.msra.mxu0 %v2932
        %3735 = vmatprep.subr.bf16.mxu0 0
        %3736 = vmatpush1.bf16.msra.mxu0 %v2931
        %3737 = vmatprep.subr.bf16.mxu0 0
        %3738 = vmatpush1.bf16.msra.mxu0 %v2930
        %3739 = vmatprep.subr.bf16.mxu0 0
        %3740 = vmatpush1.bf16.msra.mxu0 %v2929
        %3741 = vmatprep.subr.bf16.mxu0 0
        %3742 = vmatpush1.bf16.msra.mxu0 %v2928
        %3743 = vmatprep.subr.bf16.mxu0 0
        %3744 = vmatpush1.bf16.msra.mxu0 %v2927
        %3745 = vmatprep.subr.bf16.mxu0 0
        %3746 = vmatpush1.bf16.msra.mxu0 %v2926
        %3747 = vmatprep.subr.bf16.mxu0 0
        %3748 = vmatpush1.bf16.msra.mxu0 %v2925
        %3749 = vmatprep.subr.bf16.mxu0 0
        %3750 = vmatpush2.bf16.msra.mxu0 %v2940
        %3751 = vmatprep.subr.bf16.mxu0 0
        %3752 = vmatpush2.bf16.msra.mxu0 %v2939
        %3753 = vmatprep.subr.bf16.mxu0 0
        %3754 = vmatpush2.bf16.msra.mxu0 %v2938
        %3755 = vmatprep.subr.bf16.mxu0 0
        %3756 = vmatpush2.bf16.msra.mxu0 %v2937
        %3757 = vmatprep.subr.bf16.mxu0 0
        %3758 = vmatpush2.bf16.msra.mxu0 %v2936
        %3759 = vmatprep.subr.bf16.mxu0 0
        %3760 = vmatpush2.bf16.msra.mxu0 %v2935
        %3761 = vmatprep.subr.bf16.mxu0 0
        %3762 = vmatpush2.bf16.msra.mxu0 %v2934
        %3763 = vmatprep.subr.bf16.mxu0 0
        %3764 = vmatpush2.bf16.msra.mxu0 %v2933
        %3765 = vmatprep.mubr.bf16.mxu0 %v1031
        %3766 = vmatmul.mubr.bf16.gmra.mxu0 %v1029
        %v3767 = vpop.f32.mrf.mxu0
        %v3768 = vadd.f32 %v3728, %v3767
        %v3769 = vpop.f32.mrf.mxu0
        %v3770 = vpop.f32.mrf.mxu0
        %v3771 = vpop.f32.mrf.mxu0
        %3772 = vdwg.mxu0
        %3773 = vmatprep.subr.bf16.mxu0 0
        %3774 = vmatpush1.bf16.msra.mxu0 %v2948
        %3775 = vmatprep.subr.bf16.mxu0 0
        %3776 = vmatpush1.bf16.msra.mxu0 %v2947
        %3777 = vmatprep.subr.bf16.mxu0 0
        %3778 = vmatpush1.bf16.msra.mxu0 %v2946
        %3779 = vmatprep.subr.bf16.mxu0 0
        %3780 = vmatpush1.bf16.msra.mxu0 %v2945
        %3781 = vmatprep.subr.bf16.mxu0 0
        %3782 = vmatpush1.bf16.msra.mxu0 %v2944
        %3783 = vmatprep.subr.bf16.mxu0 0
        %3784 = vmatpush1.bf16.msra.mxu0 %v2943
        %3785 = vmatprep.subr.bf16.mxu0 0
        %3786 = vmatpush1.bf16.msra.mxu0 %v2942
        %3787 = vmatprep.subr.bf16.mxu0 0
        %3788 = vmatpush1.bf16.msra.mxu0 %v2941
        %3789 = vmatprep.subr.bf16.mxu0 0
        %3790 = vmatpush2.bf16.msra.mxu0 %v2956
        %3791 = vmatprep.subr.bf16.mxu0 0
        %3792 = vmatpush2.bf16.msra.mxu0 %v2955
        %3793 = vmatprep.subr.bf16.mxu0 0
        %3794 = vmatpush2.bf16.msra.mxu0 %v2954
        %3795 = vmatprep.subr.bf16.mxu0 0
        %3796 = vmatpush2.bf16.msra.mxu0 %v2953
        %3797 = vmatprep.subr.bf16.mxu0 0
        %3798 = vmatpush2.bf16.msra.mxu0 %v2952
        %3799 = vmatprep.subr.bf16.mxu0 0
        %3800 = vmatpush2.bf16.msra.mxu0 %v2951
        %3801 = vmatprep.subr.bf16.mxu0 0
        %3802 = vmatpush2.bf16.msra.mxu0 %v2950
        %3803 = vmatprep.subr.bf16.mxu0 0
        %3804 = vmatpush2.bf16.msra.mxu0 %v2949
        %3805 = vmatprep.mubr.bf16.mxu0 %v1028
        %3806 = vmatmul.mubr.bf16.gmra.mxu0 %v1014
        %v3807 = vpop.f32.mrf.mxu0
        %v3808 = vadd.f32 %v3768, %v3807
        %v3809 = vpop.f32.mrf.mxu0
        %v3810 = vpop.f32.mrf.mxu0
        %v3811 = vpop.f32.mrf.mxu0
        %3812 = vdwg.mxu0
        %3813 = vmatprep.subr.bf16.mxu0 0
        %3814 = vmatpush1.bf16.msra.mxu0 %v2964
        %3815 = vmatprep.subr.bf16.mxu0 0
        %3816 = vmatpush1.bf16.msra.mxu0 %v2963
        %3817 = vmatprep.subr.bf16.mxu0 0
        %3818 = vmatpush1.bf16.msra.mxu0 %v2962
        %3819 = vmatprep.subr.bf16.mxu0 0
        %3820 = vmatpush1.bf16.msra.mxu0 %v2961
        %3821 = vmatprep.subr.bf16.mxu0 0
        %3822 = vmatpush1.bf16.msra.mxu0 %v2960
        %3823 = vmatprep.subr.bf16.mxu0 0
        %3824 = vmatpush1.bf16.msra.mxu0 %v2959
        %3825 = vmatprep.subr.bf16.mxu0 0
        %3826 = vmatpush1.bf16.msra.mxu0 %v2958
        %3827 = vmatprep.subr.bf16.mxu0 0
        %3828 = vmatpush1.bf16.msra.mxu0 %v2957
        %3829 = vmatprep.subr.bf16.mxu0 0
        %3830 = vmatpush2.bf16.msra.mxu0 %v2972
        %3831 = vmatprep.subr.bf16.mxu0 0
        %3832 = vmatpush2.bf16.msra.mxu0 %v2971
        %3833 = vmatprep.subr.bf16.mxu0 0
        %3834 = vmatpush2.bf16.msra.mxu0 %v2970
        %3835 = vmatprep.subr.bf16.mxu0 0
        %3836 = vmatpush2.bf16.msra.mxu0 %v2969
        %3837 = vmatprep.subr.bf16.mxu0 0
        %3838 = vmatpush2.bf16.msra.mxu0 %v2968
        %3839 = vmatprep.subr.bf16.mxu0 0
        %3840 = vmatpush2.bf16.msra.mxu0 %v2967
        %3841 = vmatprep.subr.bf16.mxu0 0
        %3842 = vmatpush2.bf16.msra.mxu0 %v2966
        %3843 = vmatprep.subr.bf16.mxu0 0
        %3844 = vmatpush2.bf16.msra.mxu0 %v2965
        %3845 = vmatprep.mubr.bf16.mxu0 %v1032
        %3846 = vmatmul.mubr.bf16.gmra.mxu0 %v1030
        %v3847 = vpop.f32.mrf.mxu0
        %v3848 = vadd.f32 %v3808, %v3847
        %v3849 = vpop.f32.mrf.mxu0
        %v3850 = vpop.f32.mrf.mxu0
        %v3851 = vpop.f32.mrf.mxu0
        %3852 = vdwg.mxu0
        %3853 = vmatprep.subr.bf16.mxu0 0
        %3854 = vmatpush1.bf16.msra.mxu0 %v2980
        %3855 = vmatprep.subr.bf16.mxu0 0
        %3856 = vmatpush1.bf16.msra.mxu0 %v2979
        %3857 = vmatprep.subr.bf16.mxu0 0
        %3858 = vmatpush1.bf16.msra.mxu0 %v2978
        %3859 = vmatprep.subr.bf16.mxu0 0
        %3860 = vmatpush1.bf16.msra.mxu0 %v2977
        %3861 = vmatprep.subr.bf16.mxu0 0
        %3862 = vmatpush1.bf16.msra.mxu0 %v2976
        %3863 = vmatprep.subr.bf16.mxu0 0
        %3864 = vmatpush1.bf16.msra.mxu0 %v2975
        %3865 = vmatprep.subr.bf16.mxu0 0
        %3866 = vmatpush1.bf16.msra.mxu0 %v2974
        %3867 = vmatprep.subr.bf16.mxu0 0
        %3868 = vmatpush1.bf16.msra.mxu0 %v2973
        %3869 = vmatprep.subr.bf16.mxu0 0
        %3870 = vmatpush2.bf16.msra.mxu0 %v2988
        %3871 = vmatprep.subr.bf16.mxu0 0
        %3872 = vmatpush2.bf16.msra.mxu0 %v2987
        %3873 = vmatprep.subr.bf16.mxu0 0
        %3874 = vmatpush2.bf16.msra.mxu0 %v2986
        %3875 = vmatprep.subr.bf16.mxu0 0
        %3876 = vmatpush2.bf16.msra.mxu0 %v2985
        %3877 = vmatprep.subr.bf16.mxu0 0
        %3878 = vmatpush2.bf16.msra.mxu0 %v2984
        %3879 = vmatprep.subr.bf16.mxu0 0
        %3880 = vmatpush2.bf16.msra.mxu0 %v2983
        %3881 = vmatprep.subr.bf16.mxu0 0
        %3882 = vmatpush2.bf16.msra.mxu0 %v2982
        %3883 = vmatprep.subr.bf16.mxu0 0
        %3884 = vmatpush2.bf16.msra.mxu0 %v2981
        %3885 = vmatprep.mubr.bf16.mxu0 %v1070
        %3886 = vmatmul.mubr.bf16.gmra.mxu0 %v1056
        %v3887 = vpop.f32.mrf.mxu0
        %v3888 = vadd.f32 %v3848, %v3887
        %v3889 = vpop.f32.mrf.mxu0
        %v3890 = vpop.f32.mrf.mxu0
        %v3891 = vpop.f32.mrf.mxu0
        %3892 = vdwg.mxu0
        %3893 = vmatprep.subr.bf16.mxu0 0
        %3894 = vmatpush1.bf16.msra.mxu0 %v2996
        %3895 = vmatprep.subr.bf16.mxu0 0
        %3896 = vmatpush1.bf16.msra.mxu0 %v2995
        %3897 = vmatprep.subr.bf16.mxu0 0
        %3898 = vmatpush1.bf16.msra.mxu0 %v2994
        %3899 = vmatprep.subr.bf16.mxu0 0
        %3900 = vmatpush1.bf16.msra.mxu0 %v2993
        %3901 = vmatprep.subr.bf16.mxu0 0
        %3902 = vmatpush1.bf16.msra.mxu0 %v2992
        %3903 = vmatprep.subr.bf16.mxu0 0
        %3904 = vmatpush1.bf16.msra.mxu0 %v2991
        %3905 = vmatprep.subr.bf16.mxu0 0
        %3906 = vmatpush1.bf16.msra.mxu0 %v2990
        %3907 = vmatprep.subr.bf16.mxu0 0
        %3908 = vmatpush1.bf16.msra.mxu0 %v2989
        %3909 = vmatprep.subr.bf16.mxu0 0
        %3910 = vmatpush2.bf16.msra.mxu0 %v3004
        %3911 = vmatprep.subr.bf16.mxu0 0
        %3912 = vmatpush2.bf16.msra.mxu0 %v3003
        %3913 = vmatprep.subr.bf16.mxu0 0
        %3914 = vmatpush2.bf16.msra.mxu0 %v3002
        %3915 = vmatprep.subr.bf16.mxu0 0
        %3916 = vmatpush2.bf16.msra.mxu0 %v3001
        %3917 = vmatprep.subr.bf16.mxu0 0
        %3918 = vmatpush2.bf16.msra.mxu0 %v3000
        %3919 = vmatprep.subr.bf16.mxu0 0
        %3920 = vmatpush2.bf16.msra.mxu0 %v2999
        %3921 = vmatprep.subr.bf16.mxu0 0
        %3922 = vmatpush2.bf16.msra.mxu0 %v2998
        %3923 = vmatprep.subr.bf16.mxu0 0
        %3924 = vmatpush2.bf16.msra.mxu0 %v2997
        %3925 = vmatprep.mubr.bf16.mxu0 %v1080
        %3926 = vmatmul.mubr.bf16.gmra.mxu0 %v1078
        %v3927 = vpop.f32.mrf.mxu0
        %v3928 = vadd.f32 %v3888, %v3927
        %v3929 = vpop.f32.mrf.mxu0
        %v3930 = vpop.f32.mrf.mxu0
        %v3931 = vpop.f32.mrf.mxu0
        %3932 = vdwg.mxu0
        %3933 = vmatprep.subr.bf16.mxu0 0
        %3934 = vmatpush1.bf16.msra.mxu0 %v3012
        %3935 = vmatprep.subr.bf16.mxu0 0
        %3936 = vmatpush1.bf16.msra.mxu0 %v3011
        %3937 = vmatprep.subr.bf16.mxu0 0
        %3938 = vmatpush1.bf16.msra.mxu0 %v3010
        %3939 = vmatprep.subr.bf16.mxu0 0
        %3940 = vmatpush1.bf16.msra.mxu0 %v3009
        %3941 = vmatprep.subr.bf16.mxu0 0
        %3942 = vmatpush1.bf16.msra.mxu0 %v3008
        %3943 = vmatprep.subr.bf16.mxu0 0
        %3944 = vmatpush1.bf16.msra.mxu0 %v3007
        %3945 = vmatprep.subr.bf16.mxu0 0
        %3946 = vmatpush1.bf16.msra.mxu0 %v3006
        %3947 = vmatprep.subr.bf16.mxu0 0
        %3948 = vmatpush1.bf16.msra.mxu0 %v3005
        %3949 = vmatprep.subr.bf16.mxu0 0
        %3950 = vmatpush2.bf16.msra.mxu0 %v3020
        %3951 = vmatprep.subr.bf16.mxu0 0
        %3952 = vmatpush2.bf16.msra.mxu0 %v3019
        %3953 = vmatprep.subr.bf16.mxu0 0
        %3954 = vmatpush2.bf16.msra.mxu0 %v3018
        %3955 = vmatprep.subr.bf16.mxu0 0
        %3956 = vmatpush2.bf16.msra.mxu0 %v3017
        %3957 = vmatprep.subr.bf16.mxu0 0
        %3958 = vmatpush2.bf16.msra.mxu0 %v3016
        %3959 = vmatprep.subr.bf16.mxu0 0
        %3960 = vmatpush2.bf16.msra.mxu0 %v3015
        %3961 = vmatprep.subr.bf16.mxu0 0
        %3962 = vmatpush2.bf16.msra.mxu0 %v3014
        %3963 = vmatprep.subr.bf16.mxu0 0
        %3964 = vmatpush2.bf16.msra.mxu0 %v3013
        %3965 = vmatprep.mubr.bf16.mxu0 %v1077
        %3966 = vmatmul.mubr.bf16.gmra.mxu0 %v1063
        %v3967 = vpop.f32.mrf.mxu0
        %v3968 = vadd.f32 %v3928, %v3967
        %v3969 = vpop.f32.mrf.mxu0
        %v3970 = vpop.f32.mrf.mxu0
        %v3971 = vpop.f32.mrf.mxu0
        %3972 = vdwg.mxu0
        %3973 = vmatprep.subr.bf16.mxu0 0
        %3974 = vmatpush1.bf16.msra.mxu0 %v3028
        %3975 = vmatprep.subr.bf16.mxu0 0
        %3976 = vmatpush1.bf16.msra.mxu0 %v3027
        %3977 = vmatprep.subr.bf16.mxu0 0
        %3978 = vmatpush1.bf16.msra.mxu0 %v3026
        %3979 = vmatprep.subr.bf16.mxu0 0
        %3980 = vmatpush1.bf16.msra.mxu0 %v3025
        %3981 = vmatprep.subr.bf16.mxu0 0
        %3982 = vmatpush1.bf16.msra.mxu0 %v3024
        %3983 = vmatprep.subr.bf16.mxu0 0
        %3984 = vmatpush1.bf16.msra.mxu0 %v3023
        %3985 = vmatprep.subr.bf16.mxu0 0
        %3986 = vmatpush1.bf16.msra.mxu0 %v3022
        %3987 = vmatprep.subr.bf16.mxu0 0
        %3988 = vmatpush1.bf16.msra.mxu0 %v3021
        %3989 = vmatprep.subr.bf16.mxu0 0
        %3990 = vmatpush2.bf16.msra.mxu0 %v3036
        %3991 = vmatprep.subr.bf16.mxu0 0
        %3992 = vmatpush2.bf16.msra.mxu0 %v3035
        %3993 = vmatprep.subr.bf16.mxu0 0
        %3994 = vmatpush2.bf16.msra.mxu0 %v3034
        %3995 = vmatprep.subr.bf16.mxu0 0
        %3996 = vmatpush2.bf16.msra.mxu0 %v3033
        %3997 = vmatprep.subr.bf16.mxu0 0
        %3998 = vmatpush2.bf16.msra.mxu0 %v3032
        %3999 = vmatprep.subr.bf16.mxu0 0
        %4000 = vmatpush2.bf16.msra.mxu0 %v3031
        %4001 = vmatprep.subr.bf16.mxu0 0
        %4002 = vmatpush2.bf16.msra.mxu0 %v3030
        %4003 = vmatprep.subr.bf16.mxu0 0
        %4004 = vmatpush2.bf16.msra.mxu0 %v3029
        %4005 = vmatprep.mubr.bf16.mxu0 %v1081
        %4006 = vmatmul.mubr.bf16.gmra.mxu0 %v1079
        %v4007 = vpop.f32.mrf.mxu0
        %v4008 = vadd.f32 %v3968, %v4007
        %v4009 = vpop.f32.mrf.mxu0
        %v4010 = vpop.f32.mrf.mxu0
        %v4011 = vpop.f32.mrf.mxu0
        %4012 = vdwg.mxu0
        %4013 = vmatprep.subr.bf16.mxu0 0
        %4014 = vmatpush1.bf16.msra.mxu0 %v3044
        %4015 = vmatprep.subr.bf16.mxu0 0
        %4016 = vmatpush1.bf16.msra.mxu0 %v3043
        %4017 = vmatprep.subr.bf16.mxu0 0
        %4018 = vmatpush1.bf16.msra.mxu0 %v3042
        %4019 = vmatprep.subr.bf16.mxu0 0
        %4020 = vmatpush1.bf16.msra.mxu0 %v3041
        %4021 = vmatprep.subr.bf16.mxu0 0
        %4022 = vmatpush1.bf16.msra.mxu0 %v3040
        %4023 = vmatprep.subr.bf16.mxu0 0
        %4024 = vmatpush1.bf16.msra.mxu0 %v3039
        %4025 = vmatprep.subr.bf16.mxu0 0
        %4026 = vmatpush1.bf16.msra.mxu0 %v3038
        %4027 = vmatprep.subr.bf16.mxu0 0
        %4028 = vmatpush1.bf16.msra.mxu0 %v3037
        %4029 = vmatprep.subr.bf16.mxu0 0
        %4030 = vmatpush2.bf16.msra.mxu0 %v3052
        %4031 = vmatprep.subr.bf16.mxu0 0
        %4032 = vmatpush2.bf16.msra.mxu0 %v3051
        %4033 = vmatprep.subr.bf16.mxu0 0
        %4034 = vmatpush2.bf16.msra.mxu0 %v3050
        %4035 = vmatprep.subr.bf16.mxu0 0
        %4036 = vmatpush2.bf16.msra.mxu0 %v3049
        %4037 = vmatprep.subr.bf16.mxu0 0
        %4038 = vmatpush2.bf16.msra.mxu0 %v3048
        %4039 = vmatprep.subr.bf16.mxu0 0
        %4040 = vmatpush2.bf16.msra.mxu0 %v3047
        %4041 = vmatprep.subr.bf16.mxu0 0
        %4042 = vmatpush2.bf16.msra.mxu0 %v3046
        %4043 = vmatprep.subr.bf16.mxu0 0
        %4044 = vmatpush2.bf16.msra.mxu0 %v3045
        %4045 = vmatprep.mubr.bf16.mxu0 %v1119
        %4046 = vmatmul.mubr.bf16.gmra.mxu0 %v1105
        %v4047 = vpop.f32.mrf.mxu0
        %v4048 = vadd.f32 %v4008, %v4047
        %v4049 = vpop.f32.mrf.mxu0
        %v4050 = vpop.f32.mrf.mxu0
        %v4051 = vpop.f32.mrf.mxu0
        %4052 = vdwg.mxu0
        %4053 = vmatprep.subr.bf16.mxu0 0
        %4054 = vmatpush1.bf16.msra.mxu0 %v3060
        %4055 = vmatprep.subr.bf16.mxu0 0
        %4056 = vmatpush1.bf16.msra.mxu0 %v3059
        %4057 = vmatprep.subr.bf16.mxu0 0
        %4058 = vmatpush1.bf16.msra.mxu0 %v3058
        %4059 = vmatprep.subr.bf16.mxu0 0
        %4060 = vmatpush1.bf16.msra.mxu0 %v3057
        %4061 = vmatprep.subr.bf16.mxu0 0
        %4062 = vmatpush1.bf16.msra.mxu0 %v3056
        %4063 = vmatprep.subr.bf16.mxu0 0
        %4064 = vmatpush1.bf16.msra.mxu0 %v3055
        %4065 = vmatprep.subr.bf16.mxu0 0
        %4066 = vmatpush1.bf16.msra.mxu0 %v3054
        %4067 = vmatprep.subr.bf16.mxu0 0
        %4068 = vmatpush1.bf16.msra.mxu0 %v3053
        %4069 = vmatprep.subr.bf16.mxu0 0
        %4070 = vmatpush2.bf16.msra.mxu0 %v3068
        %4071 = vmatprep.subr.bf16.mxu0 0
        %4072 = vmatpush2.bf16.msra.mxu0 %v3067
        %4073 = vmatprep.subr.bf16.mxu0 0
        %4074 = vmatpush2.bf16.msra.mxu0 %v3066
        %4075 = vmatprep.subr.bf16.mxu0 0
        %4076 = vmatpush2.bf16.msra.mxu0 %v3065
        %4077 = vmatprep.subr.bf16.mxu0 0
        %4078 = vmatpush2.bf16.msra.mxu0 %v3064
        %4079 = vmatprep.subr.bf16.mxu0 0
        %4080 = vmatpush2.bf16.msra.mxu0 %v3063
        %4081 = vmatprep.subr.bf16.mxu0 0
        %4082 = vmatpush2.bf16.msra.mxu0 %v3062
        %4083 = vmatprep.subr.bf16.mxu0 0
        %4084 = vmatpush2.bf16.msra.mxu0 %v3061
        %4085 = vmatprep.mubr.bf16.mxu0 %v1129
        %4086 = vmatmul.mubr.bf16.gmra.mxu0 %v1127
        %v4087 = vpop.f32.mrf.mxu0
        %v4088 = vadd.f32 %v4048, %v4087
        %v4089 = vpop.f32.mrf.mxu0
        %v4090 = vpop.f32.mrf.mxu0
        %v4091 = vpop.f32.mrf.mxu0
        %4092 = vdwg.mxu0
        %4093 = vmatprep.subr.bf16.mxu0 0
        %4094 = vmatpush1.bf16.msra.mxu0 %v3076
        %4095 = vmatprep.subr.bf16.mxu0 0
        %4096 = vmatpush1.bf16.msra.mxu0 %v3075
        %4097 = vmatprep.subr.bf16.mxu0 0
        %4098 = vmatpush1.bf16.msra.mxu0 %v3074
        %4099 = vmatprep.subr.bf16.mxu0 0
        %4100 = vmatpush1.bf16.msra.mxu0 %v3073
        %4101 = vmatprep.subr.bf16.mxu0 0
        %4102 = vmatpush1.bf16.msra.mxu0 %v3072
        %4103 = vmatprep.subr.bf16.mxu0 0
        %4104 = vmatpush1.bf16.msra.mxu0 %v3071
        %4105 = vmatprep.subr.bf16.mxu0 0
        %4106 = vmatpush1.bf16.msra.mxu0 %v3070
        %4107 = vmatprep.subr.bf16.mxu0 0
        %4108 = vmatpush1.bf16.msra.mxu0 %v3069
        %4109 = vmatprep.subr.bf16.mxu0 0
        %4110 = vmatpush2.bf16.msra.mxu0 %v3084
        %4111 = vmatprep.subr.bf16.mxu0 0
        %4112 = vmatpush2.bf16.msra.mxu0 %v3083
        %4113 = vmatprep.subr.bf16.mxu0 0
        %4114 = vmatpush2.bf16.msra.mxu0 %v3082
        %4115 = vmatprep.subr.bf16.mxu0 0
        %4116 = vmatpush2.bf16.msra.mxu0 %v3081
        %4117 = vmatprep.subr.bf16.mxu0 0
        %4118 = vmatpush2.bf16.msra.mxu0 %v3080
        %4119 = vmatprep.subr.bf16.mxu0 0
        %4120 = vmatpush2.bf16.msra.mxu0 %v3079
        %4121 = vmatprep.subr.bf16.mxu0 0
        %4122 = vmatpush2.bf16.msra.mxu0 %v3078
        %4123 = vmatprep.subr.bf16.mxu0 0
        %4124 = vmatpush2.bf16.msra.mxu0 %v3077
        %4125 = vmatprep.mubr.bf16.mxu0 %v1126
        %4126 = vmatmul.mubr.bf16.gmra.mxu0 %v1112
        %v4127 = vpop.f32.mrf.mxu0
        %v4128 = vadd.f32 %v4088, %v4127
        %v4129 = vpop.f32.mrf.mxu0
        %v4130 = vpop.f32.mrf.mxu0
        %v4131 = vpop.f32.mrf.mxu0
        %4132 = vdwg.mxu0
        %4133 = vmatprep.subr.bf16.mxu0 0
        %4134 = vmatpush1.bf16.msra.mxu0 %v3092
        %4135 = vmatprep.subr.bf16.mxu0 0
        %4136 = vmatpush1.bf16.msra.mxu0 %v3091
        %4137 = vmatprep.subr.bf16.mxu0 0
        %4138 = vmatpush1.bf16.msra.mxu0 %v3090
        %4139 = vmatprep.subr.bf16.mxu0 0
        %4140 = vmatpush1.bf16.msra.mxu0 %v3089
        %4141 = vmatprep.subr.bf16.mxu0 0
        %4142 = vmatpush1.bf16.msra.mxu0 %v3088
        %4143 = vmatprep.subr.bf16.mxu0 0
        %4144 = vmatpush1.bf16.msra.mxu0 %v3087
        %4145 = vmatprep.subr.bf16.mxu0 0
        %4146 = vmatpush1.bf16.msra.mxu0 %v3086
        %4147 = vmatprep.subr.bf16.mxu0 0
        %4148 = vmatpush1.bf16.msra.mxu0 %v3085
        %4149 = vmatprep.subr.bf16.mxu0 0
        %4150 = vmatpush2.bf16.msra.mxu0 %v3100
        %4151 = vmatprep.subr.bf16.mxu0 0
        %4152 = vmatpush2.bf16.msra.mxu0 %v3099
        %4153 = vmatprep.subr.bf16.mxu0 0
        %4154 = vmatpush2.bf16.msra.mxu0 %v3098
        %4155 = vmatprep.subr.bf16.mxu0 0
        %4156 = vmatpush2.bf16.msra.mxu0 %v3097
        %4157 = vmatprep.subr.bf16.mxu0 0
        %4158 = vmatpush2.bf16.msra.mxu0 %v3096
        %4159 = vmatprep.subr.bf16.mxu0 0
        %4160 = vmatpush2.bf16.msra.mxu0 %v3095
        %4161 = vmatprep.subr.bf16.mxu0 0
        %4162 = vmatpush2.bf16.msra.mxu0 %v3094
        %4163 = vmatprep.subr.bf16.mxu0 0
        %4164 = vmatpush2.bf16.msra.mxu0 %v3093
        %4165 = vmatprep.mubr.bf16.mxu0 %v1130
        %4166 = vmatmul.mubr.bf16.gmra.mxu0 %v1128
        %v4167 = vpop.f32.mrf.mxu0
        %v4168 = vadd.f32 %v4128, %v4167
        %v4169 = vpop.f32.mrf.mxu0
        %v4170 = vpop.f32.mrf.mxu0
        %v4171 = vpop.f32.mrf.mxu0
        %4172 = vdwg.mxu0
        %4173 = vmatprep.subr.bf16.mxu0 0
        %4174 = vmatpush1.bf16.msra.mxu0 %v3108
        %4175 = vmatprep.subr.bf16.mxu0 0
        %4176 = vmatpush1.bf16.msra.mxu0 %v3107
        %4177 = vmatprep.subr.bf16.mxu0 0
        %4178 = vmatpush1.bf16.msra.mxu0 %v3106
        %4179 = vmatprep.subr.bf16.mxu0 0
        %4180 = vmatpush1.bf16.msra.mxu0 %v3105
        %4181 = vmatprep.subr.bf16.mxu0 0
        %4182 = vmatpush1.bf16.msra.mxu0 %v3104
        %4183 = vmatprep.subr.bf16.mxu0 0
        %4184 = vmatpush1.bf16.msra.mxu0 %v3103
        %4185 = vmatprep.subr.bf16.mxu0 0
        %4186 = vmatpush1.bf16.msra.mxu0 %v3102
        %4187 = vmatprep.subr.bf16.mxu0 0
        %4188 = vmatpush1.bf16.msra.mxu0 %v3101
        %4189 = vmatprep.subr.bf16.mxu0 0
        %4190 = vmatpush2.bf16.msra.mxu0 %v3116
        %4191 = vmatprep.subr.bf16.mxu0 0
        %4192 = vmatpush2.bf16.msra.mxu0 %v3115
        %4193 = vmatprep.subr.bf16.mxu0 0
        %4194 = vmatpush2.bf16.msra.mxu0 %v3114
        %4195 = vmatprep.subr.bf16.mxu0 0
        %4196 = vmatpush2.bf16.msra.mxu0 %v3113
        %4197 = vmatprep.subr.bf16.mxu0 0
        %4198 = vmatpush2.bf16.msra.mxu0 %v3112
        %4199 = vmatprep.subr.bf16.mxu0 0
        %4200 = vmatpush2.bf16.msra.mxu0 %v3111
        %4201 = vmatprep.subr.bf16.mxu0 0
        %4202 = vmatpush2.bf16.msra.mxu0 %v3110
        %4203 = vmatprep.subr.bf16.mxu0 0
        %4204 = vmatpush2.bf16.msra.mxu0 %v3109
        %4205 = vmatprep.mubr.bf16.mxu0 %v1168
        %4206 = vmatmul.mubr.bf16.gmra.mxu0 %v1154
        %v4207 = vpop.f32.mrf.mxu0
        %v4208 = vadd.f32 %v4168, %v4207
        %v4209 = vpop.f32.mrf.mxu0
        %v4210 = vpop.f32.mrf.mxu0
        %v4211 = vpop.f32.mrf.mxu0
        %4212 = vdwg.mxu0
        %4213 = vmatprep.subr.bf16.mxu0 0
        %4214 = vmatpush1.bf16.msra.mxu0 %v3124
        %4215 = vmatprep.subr.bf16.mxu0 0
        %4216 = vmatpush1.bf16.msra.mxu0 %v3123
        %4217 = vmatprep.subr.bf16.mxu0 0
        %4218 = vmatpush1.bf16.msra.mxu0 %v3122
        %4219 = vmatprep.subr.bf16.mxu0 0
        %4220 = vmatpush1.bf16.msra.mxu0 %v3121
        %4221 = vmatprep.subr.bf16.mxu0 0
        %4222 = vmatpush1.bf16.msra.mxu0 %v3120
        %4223 = vmatprep.subr.bf16.mxu0 0
        %4224 = vmatpush1.bf16.msra.mxu0 %v3119
        %4225 = vmatprep.subr.bf16.mxu0 0
        %4226 = vmatpush1.bf16.msra.mxu0 %v3118
        %4227 = vmatprep.subr.bf16.mxu0 0
        %4228 = vmatpush1.bf16.msra.mxu0 %v3117
        %4229 = vmatprep.subr.bf16.mxu0 0
        %4230 = vmatpush2.bf16.msra.mxu0 %v3132
        %4231 = vmatprep.subr.bf16.mxu0 0
        %4232 = vmatpush2.bf16.msra.mxu0 %v3131
        %4233 = vmatprep.subr.bf16.mxu0 0
        %4234 = vmatpush2.bf16.msra.mxu0 %v3130
        %4235 = vmatprep.subr.bf16.mxu0 0
        %4236 = vmatpush2.bf16.msra.mxu0 %v3129
        %4237 = vmatprep.subr.bf16.mxu0 0
        %4238 = vmatpush2.bf16.msra.mxu0 %v3128
        %4239 = vmatprep.subr.bf16.mxu0 0
        %4240 = vmatpush2.bf16.msra.mxu0 %v3127
        %4241 = vmatprep.subr.bf16.mxu0 0
        %4242 = vmatpush2.bf16.msra.mxu0 %v3126
        %4243 = vmatprep.subr.bf16.mxu0 0
        %4244 = vmatpush2.bf16.msra.mxu0 %v3125
        %4245 = vmatprep.mubr.bf16.mxu0 %v1178
        %4246 = vmatmul.mubr.bf16.gmra.mxu0 %v1176
        %v4247 = vpop.f32.mrf.mxu0
        %v4248 = vadd.f32 %v4208, %v4247
        %v4249 = vpop.f32.mrf.mxu0
        %v4250 = vpop.f32.mrf.mxu0
        %v4251 = vpop.f32.mrf.mxu0
        %4252 = vdwg.mxu0
        %4253 = vmatprep.subr.bf16.mxu0 0
        %4254 = vmatpush1.bf16.msra.mxu0 %v3140
        %4255 = vmatprep.subr.bf16.mxu0 0
        %4256 = vmatpush1.bf16.msra.mxu0 %v3139
        %4257 = vmatprep.subr.bf16.mxu0 0
        %4258 = vmatpush1.bf16.msra.mxu0 %v3138
        %4259 = vmatprep.subr.bf16.mxu0 0
        %4260 = vmatpush1.bf16.msra.mxu0 %v3137
        %4261 = vmatprep.subr.bf16.mxu0 0
        %4262 = vmatpush1.bf16.msra.mxu0 %v3136
        %4263 = vmatprep.subr.bf16.mxu0 0
        %4264 = vmatpush1.bf16.msra.mxu0 %v3135
        %4265 = vmatprep.subr.bf16.mxu0 0
        %4266 = vmatpush1.bf16.msra.mxu0 %v3134
        %4267 = vmatprep.subr.bf16.mxu0 0
        %4268 = vmatpush1.bf16.msra.mxu0 %v3133
        %4269 = vmatprep.subr.bf16.mxu0 0
        %4270 = vmatpush2.bf16.msra.mxu0 %v3148
        %4271 = vmatprep.subr.bf16.mxu0 0
        %4272 = vmatpush2.bf16.msra.mxu0 %v3147
        %4273 = vmatprep.subr.bf16.mxu0 0
        %4274 = vmatpush2.bf16.msra.mxu0 %v3146
        %4275 = vmatprep.subr.bf16.mxu0 0
        %4276 = vmatpush2.bf16.msra.mxu0 %v3145
        %4277 = vmatprep.subr.bf16.mxu0 0
        %4278 = vmatpush2.bf16.msra.mxu0 %v3144
        %4279 = vmatprep.subr.bf16.mxu0 0
        %4280 = vmatpush2.bf16.msra.mxu0 %v3143
        %4281 = vmatprep.subr.bf16.mxu0 0
        %4282 = vmatpush2.bf16.msra.mxu0 %v3142
        %4283 = vmatprep.subr.bf16.mxu0 0
        %4284 = vmatpush2.bf16.msra.mxu0 %v3141
        %4285 = vmatprep.mubr.bf16.mxu0 %v1175
        %4286 = vmatmul.mubr.bf16.gmra.mxu0 %v1161
        %v4287 = vpop.f32.mrf.mxu0
        %v4288 = vadd.f32 %v4248, %v4287
        %v4289 = vpop.f32.mrf.mxu0
        %v4290 = vpop.f32.mrf.mxu0
        %v4291 = vpop.f32.mrf.mxu0
        %4292 = vdwg.mxu0
        %4293 = vmatprep.subr.bf16.mxu0 0
        %4294 = vmatpush1.bf16.msra.mxu0 %v3156
        %4295 = vmatprep.subr.bf16.mxu0 0
        %4296 = vmatpush1.bf16.msra.mxu0 %v3155
        %4297 = vmatprep.subr.bf16.mxu0 0
        %4298 = vmatpush1.bf16.msra.mxu0 %v3154
        %4299 = vmatprep.subr.bf16.mxu0 0
        %4300 = vmatpush1.bf16.msra.mxu0 %v3153
        %4301 = vmatprep.subr.bf16.mxu0 0
        %4302 = vmatpush1.bf16.msra.mxu0 %v3152
        %4303 = vmatprep.subr.bf16.mxu0 0
        %4304 = vmatpush1.bf16.msra.mxu0 %v3151
        %4305 = vmatprep.subr.bf16.mxu0 0
        %4306 = vmatpush1.bf16.msra.mxu0 %v3150
        %4307 = vmatprep.subr.bf16.mxu0 0
        %4308 = vmatpush1.bf16.msra.mxu0 %v3149
        %4309 = vmatprep.subr.bf16.mxu0 0
        %4310 = vmatpush2.bf16.msra.mxu0 %v3164
        %4311 = vmatprep.subr.bf16.mxu0 0
        %4312 = vmatpush2.bf16.msra.mxu0 %v3163
        %4313 = vmatprep.subr.bf16.mxu0 0
        %4314 = vmatpush2.bf16.msra.mxu0 %v3162
        %4315 = vmatprep.subr.bf16.mxu0 0
        %4316 = vmatpush2.bf16.msra.mxu0 %v3161
        %4317 = vmatprep.subr.bf16.mxu0 0
        %4318 = vmatpush2.bf16.msra.mxu0 %v3160
        %4319 = vmatprep.subr.bf16.mxu0 0
        %4320 = vmatpush2.bf16.msra.mxu0 %v3159
        %4321 = vmatprep.subr.bf16.mxu0 0
        %4322 = vmatpush2.bf16.msra.mxu0 %v3158
        %4323 = vmatprep.subr.bf16.mxu0 0
        %4324 = vmatpush2.bf16.msra.mxu0 %v3157
        %4325 = vmatprep.mubr.bf16.mxu0 %v1179
        %4326 = vmatmul.mubr.bf16.gmra.mxu0 %v1177
        %v4327 = vpop.f32.mrf.mxu0
        %v4328 = vadd.f32 %v4288, %v4327
        %v4329 = vpop.f32.mrf.mxu0
        %v4330 = vpop.f32.mrf.mxu0
        %v4331 = vpop.f32.mrf.mxu0
        %4332 = vdwg.mxu0
        %4333 = vmatprep.subr.bf16.mxu0 0
        %4334 = vmatpush1.bf16.msra.mxu0 %v3172
        %4335 = vmatprep.subr.bf16.mxu0 0
        %4336 = vmatpush1.bf16.msra.mxu0 %v3171
        %4337 = vmatprep.subr.bf16.mxu0 0
        %4338 = vmatpush1.bf16.msra.mxu0 %v3170
        %4339 = vmatprep.subr.bf16.mxu0 0
        %4340 = vmatpush1.bf16.msra.mxu0 %v3169
        %4341 = vmatprep.subr.bf16.mxu0 0
        %4342 = vmatpush1.bf16.msra.mxu0 %v3168
        %4343 = vmatprep.subr.bf16.mxu0 0
        %4344 = vmatpush1.bf16.msra.mxu0 %v3167
        %4345 = vmatprep.subr.bf16.mxu0 0
        %4346 = vmatpush1.bf16.msra.mxu0 %v3166
        %4347 = vmatprep.subr.bf16.mxu0 0
        %4348 = vmatpush1.bf16.msra.mxu0 %v3165
        %4349 = vmatprep.subr.bf16.mxu0 0
        %4350 = vmatpush2.bf16.msra.mxu0 %v3180
        %4351 = vmatprep.subr.bf16.mxu0 0
        %4352 = vmatpush2.bf16.msra.mxu0 %v3179
        %4353 = vmatprep.subr.bf16.mxu0 0
        %4354 = vmatpush2.bf16.msra.mxu0 %v3178
        %4355 = vmatprep.subr.bf16.mxu0 0
        %4356 = vmatpush2.bf16.msra.mxu0 %v3177
        %4357 = vmatprep.subr.bf16.mxu0 0
        %4358 = vmatpush2.bf16.msra.mxu0 %v3176
        %4359 = vmatprep.subr.bf16.mxu0 0
        %4360 = vmatpush2.bf16.msra.mxu0 %v3175
        %4361 = vmatprep.subr.bf16.mxu0 0
        %4362 = vmatpush2.bf16.msra.mxu0 %v3174
        %4363 = vmatprep.subr.bf16.mxu0 0
        %4364 = vmatpush2.bf16.msra.mxu0 %v3173
        %4365 = vmatprep.mubr.bf16.mxu0 %v1217
        %4366 = vmatmul.mubr.bf16.gmra.mxu0 %v1203
        %v4367 = vpop.f32.mrf.mxu0
        %v4368 = vadd.f32 %v4328, %v4367
        %v4369 = vpop.f32.mrf.mxu0
        %v4370 = vpop.f32.mrf.mxu0
        %v4371 = vpop.f32.mrf.mxu0
        %4372 = vdwg.mxu0
        %4373 = vmatprep.subr.bf16.mxu0 0
        %4374 = vmatpush1.bf16.msra.mxu0 %v3188
        %4375 = vmatprep.subr.bf16.mxu0 0
        %4376 = vmatpush1.bf16.msra.mxu0 %v3187
        %4377 = vmatprep.subr.bf16.mxu0 0
        %4378 = vmatpush1.bf16.msra.mxu0 %v3186
        %4379 = vmatprep.subr.bf16.mxu0 0
        %4380 = vmatpush1.bf16.msra.mxu0 %v3185
        %4381 = vmatprep.subr.bf16.mxu0 0
        %4382 = vmatpush1.bf16.msra.mxu0 %v3184
        %4383 = vmatprep.subr.bf16.mxu0 0
        %4384 = vmatpush1.bf16.msra.mxu0 %v3183
        %4385 = vmatprep.subr.bf16.mxu0 0
        %4386 = vmatpush1.bf16.msra.mxu0 %v3182
        %4387 = vmatprep.subr.bf16.mxu0 0
        %4388 = vmatpush1.bf16.msra.mxu0 %v3181
        %4389 = vmatprep.subr.bf16.mxu0 0
        %4390 = vmatpush2.bf16.msra.mxu0 %v3196
        %4391 = vmatprep.subr.bf16.mxu0 0
        %4392 = vmatpush2.bf16.msra.mxu0 %v3195
        %4393 = vmatprep.subr.bf16.mxu0 0
        %4394 = vmatpush2.bf16.msra.mxu0 %v3194
        %4395 = vmatprep.subr.bf16.mxu0 0
        %4396 = vmatpush2.bf16.msra.mxu0 %v3193
        %4397 = vmatprep.subr.bf16.mxu0 0
        %4398 = vmatpush2.bf16.msra.mxu0 %v3192
        %4399 = vmatprep.subr.bf16.mxu0 0
        %4400 = vmatpush2.bf16.msra.mxu0 %v3191
        %4401 = vmatprep.subr.bf16.mxu0 0
        %4402 = vmatpush2.bf16.msra.mxu0 %v3190
        %4403 = vmatprep.subr.bf16.mxu0 0
        %4404 = vmatpush2.bf16.msra.mxu0 %v3189
        %4405 = vmatprep.mubr.bf16.mxu0 %v1227
        %4406 = vmatmul.mubr.bf16.gmra.mxu0 %v1225
        %v4407 = vpop.f32.mrf.mxu0
        %v4408 = vadd.f32 %v4368, %v4407
        %v4409 = vpop.f32.mrf.mxu0
        %v4410 = vpop.f32.mrf.mxu0
        %v4411 = vpop.f32.mrf.mxu0
        %4412 = vdwg.mxu0
        %4413 = vmatprep.subr.bf16.mxu0 0
        %4414 = vmatpush1.bf16.msra.mxu0 %v3204
        %4415 = vmatprep.subr.bf16.mxu0 0
        %4416 = vmatpush1.bf16.msra.mxu0 %v3203
        %4417 = vmatprep.subr.bf16.mxu0 0
        %4418 = vmatpush1.bf16.msra.mxu0 %v3202
        %4419 = vmatprep.subr.bf16.mxu0 0
        %4420 = vmatpush1.bf16.msra.mxu0 %v3201
        %4421 = vmatprep.subr.bf16.mxu0 0
        %4422 = vmatpush1.bf16.msra.mxu0 %v3200
        %4423 = vmatprep.subr.bf16.mxu0 0
        %4424 = vmatpush1.bf16.msra.mxu0 %v3199
        %4425 = vmatprep.subr.bf16.mxu0 0
        %4426 = vmatpush1.bf16.msra.mxu0 %v3198
        %4427 = vmatprep.subr.bf16.mxu0 0
        %4428 = vmatpush1.bf16.msra.mxu0 %v3197
        %4429 = vmatprep.subr.bf16.mxu0 0
        %4430 = vmatpush2.bf16.msra.mxu0 %v3212
        %4431 = vmatprep.subr.bf16.mxu0 0
        %4432 = vmatpush2.bf16.msra.mxu0 %v3211
        %4433 = vmatprep.subr.bf16.mxu0 0
        %4434 = vmatpush2.bf16.msra.mxu0 %v3210
        %4435 = vmatprep.subr.bf16.mxu0 0
        %4436 = vmatpush2.bf16.msra.mxu0 %v3209
        %4437 = vmatprep.subr.bf16.mxu0 0
        %4438 = vmatpush2.bf16.msra.mxu0 %v3208
        %4439 = vmatprep.subr.bf16.mxu0 0
        %4440 = vmatpush2.bf16.msra.mxu0 %v3207
        %4441 = vmatprep.subr.bf16.mxu0 0
        %4442 = vmatpush2.bf16.msra.mxu0 %v3206
        %4443 = vmatprep.subr.bf16.mxu0 0
        %4444 = vmatpush2.bf16.msra.mxu0 %v3205
        %4445 = vmatprep.mubr.bf16.mxu0 %v1224
        %4446 = vmatmul.mubr.bf16.gmra.mxu0 %v1210
        %v4447 = vpop.f32.mrf.mxu0
        %v4448 = vadd.f32 %v4408, %v4447
        %v4449 = vpop.f32.mrf.mxu0
        %v4450 = vpop.f32.mrf.mxu0
        %v4451 = vpop.f32.mrf.mxu0
        %4452 = vdwg.mxu0
        %4453 = vmatprep.subr.bf16.mxu0 0
        %4454 = vmatpush1.bf16.msra.mxu0 %v3220
        %4455 = vmatprep.subr.bf16.mxu0 0
        %4456 = vmatpush1.bf16.msra.mxu0 %v3219
        %4457 = vmatprep.subr.bf16.mxu0 0
        %4458 = vmatpush1.bf16.msra.mxu0 %v3218
        %4459 = vmatprep.subr.bf16.mxu0 0
        %4460 = vmatpush1.bf16.msra.mxu0 %v3217
        %4461 = vmatprep.subr.bf16.mxu0 0
        %4462 = vmatpush1.bf16.msra.mxu0 %v3216
        %4463 = vmatprep.subr.bf16.mxu0 0
        %4464 = vmatpush1.bf16.msra.mxu0 %v3215
        %4465 = vmatprep.subr.bf16.mxu0 0
        %4466 = vmatpush1.bf16.msra.mxu0 %v3214
        %4467 = vmatprep.subr.bf16.mxu0 0
        %4468 = vmatpush1.bf16.msra.mxu0 %v3213
        %4469 = vmatprep.subr.bf16.mxu0 0
        %4470 = vmatpush2.bf16.msra.mxu0 %v3228
        %4471 = vmatprep.subr.bf16.mxu0 0
        %4472 = vmatpush2.bf16.msra.mxu0 %v3227
        %4473 = vmatprep.subr.bf16.mxu0 0
        %4474 = vmatpush2.bf16.msra.mxu0 %v3226
        %4475 = vmatprep.subr.bf16.mxu0 0
        %4476 = vmatpush2.bf16.msra.mxu0 %v3225
        %4477 = vmatprep.subr.bf16.mxu0 0
        %4478 = vmatpush2.bf16.msra.mxu0 %v3224
        %4479 = vmatprep.subr.bf16.mxu0 0
        %4480 = vmatpush2.bf16.msra.mxu0 %v3223
        %4481 = vmatprep.subr.bf16.mxu0 0
        %4482 = vmatpush2.bf16.msra.mxu0 %v3222
        %4483 = vmatprep.subr.bf16.mxu0 0
        %4484 = vmatpush2.bf16.msra.mxu0 %v3221
        %4485 = vmatprep.mubr.bf16.mxu0 %v1228
        %4486 = vmatmul.mubr.bf16.gmra.mxu0 %v1226
        %v4487 = vpop.f32.mrf.mxu0
        %v4488 = vadd.f32 %v4448, %v4487
        %v4489 = vpop.f32.mrf.mxu0
        %v4490 = vpop.f32.mrf.mxu0
        %v4491 = vpop.f32.mrf.mxu0
        %4492 = vdwg.mxu0
        %4493 = vmatprep.subr.bf16.mxu0 0
        %4494 = vmatpush1.bf16.msra.mxu0 %v3236
        %4495 = vmatprep.subr.bf16.mxu0 0
        %4496 = vmatpush1.bf16.msra.mxu0 %v3235
        %4497 = vmatprep.subr.bf16.mxu0 0
        %4498 = vmatpush1.bf16.msra.mxu0 %v3234
        %4499 = vmatprep.subr.bf16.mxu0 0
        %4500 = vmatpush1.bf16.msra.mxu0 %v3233
        %4501 = vmatprep.subr.bf16.mxu0 0
        %4502 = vmatpush1.bf16.msra.mxu0 %v3232
        %4503 = vmatprep.subr.bf16.mxu0 0
        %4504 = vmatpush1.bf16.msra.mxu0 %v3231
        %4505 = vmatprep.subr.bf16.mxu0 0
        %4506 = vmatpush1.bf16.msra.mxu0 %v3230
        %4507 = vmatprep.subr.bf16.mxu0 0
        %4508 = vmatpush1.bf16.msra.mxu0 %v3229
        %4509 = vmatprep.subr.bf16.mxu0 0
        %4510 = vmatpush2.bf16.msra.mxu0 %v3244
        %4511 = vmatprep.subr.bf16.mxu0 0
        %4512 = vmatpush2.bf16.msra.mxu0 %v3243
        %4513 = vmatprep.subr.bf16.mxu0 0
        %4514 = vmatpush2.bf16.msra.mxu0 %v3242
        %4515 = vmatprep.subr.bf16.mxu0 0
        %4516 = vmatpush2.bf16.msra.mxu0 %v3241
        %4517 = vmatprep.subr.bf16.mxu0 0
        %4518 = vmatpush2.bf16.msra.mxu0 %v3240
        %4519 = vmatprep.subr.bf16.mxu0 0
        %4520 = vmatpush2.bf16.msra.mxu0 %v3239
        %4521 = vmatprep.subr.bf16.mxu0 0
        %4522 = vmatpush2.bf16.msra.mxu0 %v3238
        %4523 = vmatprep.subr.bf16.mxu0 0
        %4524 = vmatpush2.bf16.msra.mxu0 %v3237
        %4525 = vmatprep.mubr.bf16.mxu0 %v1266
        %4526 = vmatmul.mubr.bf16.gmra.mxu0 %v1252
        %v4527 = vpop.f32.mrf.mxu0
        %v4528 = vadd.f32 %v4488, %v4527
        %v4529 = vpop.f32.mrf.mxu0
        %v4530 = vpop.f32.mrf.mxu0
        %v4531 = vpop.f32.mrf.mxu0
        %4532 = vdwg.mxu0
        %4533 = vmatprep.subr.bf16.mxu0 0
        %4534 = vmatpush1.bf16.msra.mxu0 %v3252
        %4535 = vmatprep.subr.bf16.mxu0 0
        %4536 = vmatpush1.bf16.msra.mxu0 %v3251
        %4537 = vmatprep.subr.bf16.mxu0 0
        %4538 = vmatpush1.bf16.msra.mxu0 %v3250
        %4539 = vmatprep.subr.bf16.mxu0 0
        %4540 = vmatpush1.bf16.msra.mxu0 %v3249
        %4541 = vmatprep.subr.bf16.mxu0 0
        %4542 = vmatpush1.bf16.msra.mxu0 %v3248
        %4543 = vmatprep.subr.bf16.mxu0 0
        %4544 = vmatpush1.bf16.msra.mxu0 %v3247
        %4545 = vmatprep.subr.bf16.mxu0 0
        %4546 = vmatpush1.bf16.msra.mxu0 %v3246
        %4547 = vmatprep.subr.bf16.mxu0 0
        %4548 = vmatpush1.bf16.msra.mxu0 %v3245
        %4549 = vmatprep.subr.bf16.mxu0 0
        %4550 = vmatpush2.bf16.msra.mxu0 %v3260
        %4551 = vmatprep.subr.bf16.mxu0 0
        %4552 = vmatpush2.bf16.msra.mxu0 %v3259
        %4553 = vmatprep.subr.bf16.mxu0 0
        %4554 = vmatpush2.bf16.msra.mxu0 %v3258
        %4555 = vmatprep.subr.bf16.mxu0 0
        %4556 = vmatpush2.bf16.msra.mxu0 %v3257
        %4557 = vmatprep.subr.bf16.mxu0 0
        %4558 = vmatpush2.bf16.msra.mxu0 %v3256
        %4559 = vmatprep.subr.bf16.mxu0 0
        %4560 = vmatpush2.bf16.msra.mxu0 %v3255
        %4561 = vmatprep.subr.bf16.mxu0 0
        %4562 = vmatpush2.bf16.msra.mxu0 %v3254
        %4563 = vmatprep.subr.bf16.mxu0 0
        %4564 = vmatpush2.bf16.msra.mxu0 %v3253
        %4565 = vmatprep.mubr.bf16.mxu0 %v1276
        %4566 = vmatmul.mubr.bf16.gmra.mxu0 %v1274
        %v4567 = vpop.f32.mrf.mxu0
        %v4568 = vadd.f32 %v4528, %v4567
        %v4569 = vpop.f32.mrf.mxu0
        %v4570 = vpop.f32.mrf.mxu0
        %v4571 = vpop.f32.mrf.mxu0
        %4572 = vdwg.mxu0
        %4573 = vmatprep.subr.bf16.mxu0 0
        %4574 = vmatpush1.bf16.msra.mxu0 %v3268
        %4575 = vmatprep.subr.bf16.mxu0 0
        %4576 = vmatpush1.bf16.msra.mxu0 %v3267
        %4577 = vmatprep.subr.bf16.mxu0 0
        %4578 = vmatpush1.bf16.msra.mxu0 %v3266
        %4579 = vmatprep.subr.bf16.mxu0 0
        %4580 = vmatpush1.bf16.msra.mxu0 %v3265
        %4581 = vmatprep.subr.bf16.mxu0 0
        %4582 = vmatpush1.bf16.msra.mxu0 %v3264
        %4583 = vmatprep.subr.bf16.mxu0 0
        %4584 = vmatpush1.bf16.msra.mxu0 %v3263
        %4585 = vmatprep.subr.bf16.mxu0 0
        %4586 = vmatpush1.bf16.msra.mxu0 %v3262
        %4587 = vmatprep.subr.bf16.mxu0 0
        %4588 = vmatpush1.bf16.msra.mxu0 %v3261
        %4589 = vmatprep.subr.bf16.mxu0 0
        %4590 = vmatpush2.bf16.msra.mxu0 %v3276
        %4591 = vmatprep.subr.bf16.mxu0 0
        %4592 = vmatpush2.bf16.msra.mxu0 %v3275
        %4593 = vmatprep.subr.bf16.mxu0 0
        %4594 = vmatpush2.bf16.msra.mxu0 %v3274
        %4595 = vmatprep.subr.bf16.mxu0 0
        %4596 = vmatpush2.bf16.msra.mxu0 %v3273
        %4597 = vmatprep.subr.bf16.mxu0 0
        %4598 = vmatpush2.bf16.msra.mxu0 %v3272
        %4599 = vmatprep.subr.bf16.mxu0 0
        %4600 = vmatpush2.bf16.msra.mxu0 %v3271
        %4601 = vmatprep.subr.bf16.mxu0 0
        %4602 = vmatpush2.bf16.msra.mxu0 %v3270
        %4603 = vmatprep.subr.bf16.mxu0 0
        %4604 = vmatpush2.bf16.msra.mxu0 %v3269
        %4605 = vmatprep.mubr.bf16.mxu0 %v1273
        %4606 = vmatmul.mubr.bf16.gmra.mxu0 %v1259
        %v4607 = vpop.f32.mrf.mxu0
        %v4608 = vadd.f32 %v4568, %v4607
        %v4609 = vpop.f32.mrf.mxu0
        %v4610 = vpop.f32.mrf.mxu0
        %v4611 = vpop.f32.mrf.mxu0
        %4612 = vdwg.mxu0
        %4613 = vmatprep.subr.bf16.mxu0 0
        %4614 = vmatpush1.bf16.msra.mxu0 %v3284
        %4615 = vmatprep.subr.bf16.mxu0 0
        %4616 = vmatpush1.bf16.msra.mxu0 %v3283
        %4617 = vmatprep.subr.bf16.mxu0 0
        %4618 = vmatpush1.bf16.msra.mxu0 %v3282
        %4619 = vmatprep.subr.bf16.mxu0 0
        %4620 = vmatpush1.bf16.msra.mxu0 %v3281
        %4621 = vmatprep.subr.bf16.mxu0 0
        %4622 = vmatpush1.bf16.msra.mxu0 %v3280
        %4623 = vmatprep.subr.bf16.mxu0 0
        %4624 = vmatpush1.bf16.msra.mxu0 %v3279
        %4625 = vmatprep.subr.bf16.mxu0 0
        %4626 = vmatpush1.bf16.msra.mxu0 %v3278
        %4627 = vmatprep.subr.bf16.mxu0 0
        %4628 = vmatpush1.bf16.msra.mxu0 %v3277
        %4629 = vmatprep.subr.bf16.mxu0 0
        %4630 = vmatpush2.bf16.msra.mxu0 %v3292
        %4631 = vmatprep.subr.bf16.mxu0 0
        %4632 = vmatpush2.bf16.msra.mxu0 %v3291
        %4633 = vmatprep.subr.bf16.mxu0 0
        %4634 = vmatpush2.bf16.msra.mxu0 %v3290
        %4635 = vmatprep.subr.bf16.mxu0 0
        %4636 = vmatpush2.bf16.msra.mxu0 %v3289
        %4637 = vmatprep.subr.bf16.mxu0 0
        %4638 = vmatpush2.bf16.msra.mxu0 %v3288
        %4639 = vmatprep.subr.bf16.mxu0 0
        %4640 = vmatpush2.bf16.msra.mxu0 %v3287
        %4641 = vmatprep.subr.bf16.mxu0 0
        %4642 = vmatpush2.bf16.msra.mxu0 %v3286
        %4643 = vmatprep.subr.bf16.mxu0 0
        %4644 = vmatpush2.bf16.msra.mxu0 %v3285
        %4645 = vmatprep.mubr.bf16.mxu0 %v1277
        %4646 = vmatmul.mubr.bf16.gmra.mxu0 %v1275
        %v4647 = vpop.f32.mrf.mxu0
        %v4648 = vadd.f32 %v4608, %v4647
        %v4649 = vpop.f32.mrf.mxu0
        %v4650 = vpop.f32.mrf.mxu0
        %v4651 = vpop.f32.mrf.mxu0
        %4652 = vdwg.mxu0
        %4653 = vmatprep.subr.bf16.mxu0 0
        %4654 = vmatpush1.bf16.msra.mxu0 %v3300
        %4655 = vmatprep.subr.bf16.mxu0 0
        %4656 = vmatpush1.bf16.msra.mxu0 %v3299
        %4657 = vmatprep.subr.bf16.mxu0 0
        %4658 = vmatpush1.bf16.msra.mxu0 %v3298
        %4659 = vmatprep.subr.bf16.mxu0 0
        %4660 = vmatpush1.bf16.msra.mxu0 %v3297
        %4661 = vmatprep.subr.bf16.mxu0 0
        %4662 = vmatpush1.bf16.msra.mxu0 %v3296
        %4663 = vmatprep.subr.bf16.mxu0 0
        %4664 = vmatpush1.bf16.msra.mxu0 %v3295
        %4665 = vmatprep.subr.bf16.mxu0 0
        %4666 = vmatpush1.bf16.msra.mxu0 %v3294
        %4667 = vmatprep.subr.bf16.mxu0 0
        %4668 = vmatpush1.bf16.msra.mxu0 %v3293
        %4669 = vmatprep.subr.bf16.mxu0 0
        %4670 = vmatpush2.bf16.msra.mxu0 0
        %4671 = vmatprep.subr.bf16.mxu0 0
        %4672 = vmatpush2.bf16.msra.mxu0 0
        %4673 = vmatprep.subr.bf16.mxu0 0
        %4674 = vmatpush2.bf16.msra.mxu0 0
        %4675 = vmatprep.subr.bf16.mxu0 0
        %4676 = vmatpush2.bf16.msra.mxu0 0
        %4677 = vmatprep.subr.bf16.mxu0 0
        %4678 = vmatpush2.bf16.msra.mxu0 0
        %4679 = vmatprep.subr.bf16.mxu0 0
        %4680 = vmatpush2.bf16.msra.mxu0 0
        %4681 = vmatprep.subr.bf16.mxu0 0
        %4682 = vmatpush2.bf16.msra.mxu0 0
        %4683 = vmatprep.subr.bf16.mxu0 0
        %4684 = vmatpush2.bf16.msra.mxu0 0
        %4685 = vmatprep.mubr.bf16.mxu0 0
        %4686 = vmatmul.mubr.bf16.gmra.mxu0 %v1291
        %v4687 = vpop.f32.mrf.mxu0
        %v4688 = vadd.f32 %v4648, %v4687
        %v4689 = vpop.f32.mrf.mxu0
        %v4690 = vpop.f32.mrf.mxu0
        %v4691 = vpop.f32.mrf.mxu0
        %4692 = vdwg.mxu0
        %v4693 = vadd.f32 %v185, %v4688
        %vm4694 = vcmask 74752
        %4695 = vst.msk [vmem:[#allocation2] sm:$0x3] %vm4694, %v4693
        %p4696 = scmp.eq.s32.totalorder %s15, 3
        // Predicated region
        $region37: #{msn_convnet_forward.5} parent=31 // pred_check
          %p4697 = pneg %p4696
        $region38: #{msn_convnet_forward.5} parent=31 // pred_check_branch
          %4699 = sbr.rel (%p4697) target = $region40
        $region39: #{msn_convnet_forward.5} parent=31 // pred_region
          %v4700 = vld [vmem:[#allocation2] sm:$0x3]
          %v4701 = vsel %vm4694, %v4700, 0.0
          %v4702 = vrot.slane %v4701, 4
          %v4703 = vadd.f32 %v4701, %v4702
          %v4704 = vrot.slane %v4703, 2
          %v4705 = vadd.f32 %v4703, %v4704
          %v4706 = vrot.slane %v4705, 1
          %v4707 = vadd.f32 %v4705, %v4706
          %v4708 = vrcp.pop 2.0
          %v4709 = vmul.f32 %v4707, %v4708
          %v4710 = vsub.f32 %v4700, %v4709
          %v4711 = vld [vmem:[%s2] sm:$0x1]
          %v4713 = vlaneseq
          %v4714 = vshrl.u32 %v4713, 7
          %v4715 = vsub.s32 0, %v4714
          %v4716 = vrot.slane %v4711, %v4715
          %v4718 = vadd.f32 %v4710, %v4716
          %4719 = vst.msk [vmem:[#allocation3] sm:$0x3] %vm4694, %v4718
        $region40: #{msn_convnet_forward.5} parent=31 // pred_fallthru
          _
        // Predicated region
        $region41: #{msn_convnet_forward.5} parent=31 // pred_check
          %p4720 = pneg %p101
        $region42: #{msn_convnet_forward.5} parent=31 // pred_check_branch
          %4722 = sbr.rel (%p4720) target = $region44
        $region43: #{msn_convnet_forward.5} parent=31 // pred_region
          %s4724 = ssub.s32 32, 32
          %4725 = vsyncadd [#allocation4], %s4724
          %s4727 = sshll.u32 [#allocation3], 4
          %s4728 = int_to_ptr.vmem [resolvable:$true] %s4727
          %4730 = dma.vmem_to_hbm [thread:$0]  %s4728, 32, %s3, [#allocation4]
        $region44: #{msn_convnet_forward.5} parent=31 // pred_fallthru
          _
        // Predicated region
        $region45: #{msn_convnet_forward.5} parent=31 // pred_check
          %p4731 = pneg %p101
        $region46: #{msn_convnet_forward.5} parent=31 // pred_check_branch
          %4733 = sbr.rel (%p4731) target = $region48
        $region47: #{msn_convnet_forward.5} parent=31 // pred_region
          %4734 = dma.done [#allocation4], 32
        $region48: #{msn_convnet_forward.5} parent=31 // pred_fallthru
          _
      $region32: #{msn_convnet_forward.5} parent=5 // pred_fallthru
        _
      %p4735 = scmp.le.s32.totalorder 2, %s10
      // Predicated region
      $region49: #{msn_convnet_forward.5} parent=5 // pred_check
        %p4736 = pneg %p4735
      $region50: #{msn_convnet_forward.5} parent=5 // pred_check_branch
        %4738 = sbr.rel (%p4736) target = $region52
      $region51: #{msn_convnet_forward.5} parent=5 // pred_region
        %s4739 = ssub.s32 %s10, 2
      $region52: #{msn_convnet_forward.5} parent=5 // pred_fallthru
        _
    $region6: #{msn_convnet_forward.5} parent=1 // loop_footer
      %s14 = sadd.s32 1, %s10
    $region7: #{msn_convnet_forward.5} parent=1 // loop_footer_branch
      %9 = sbr.rel target = $region3
    $region8: #{msn_convnet_forward.5} parent=1 // loop_exit
      _
    %4740 = vsyncpa [#allocation4], 1
    %s4741 = scalar_lea.sflag [#allocation4], 1
    %4742 = vsyncpa %s4741, 1

</llo_original>
